<compile_context>
chip_gen: v5e
topology: v5e:2x2
jax: 0.10.0
libtpu: 0.0.40
codegen_flags: <defaults>
</compile_context>

<pallas_src>
import functools
import math

import jax
import jax.numpy as jnp
from jax.experimental import pallas as pl
from jax.experimental.pallas import tpu as pltpu

# ----------------------------- configuration --------------------------------
IMG_H = IMG_W = 16
HW = IMG_H * IMG_W                    # 256 (lane-dense pixel axis)
G = 4                                 # encoder grid (stride-4 "conv")
NUM_CELLS = G * G                     # 16 discovery cells per frame
ENC_DIM = 32
Z_WHAT_DIM = 8
Z_WHERE_DIM = 4                       # scale(2) + shift(2)
Z_DEPTH_DIM = 1
Z_PRES_DIM = 1
BG_WHAT_DIM = 4
HID = 16                              # all GRU hidden sizes (temporal/prior/bg)
SIGMA = 0.1
EPS = 1e-15
Z_PRES_THRESHOLD = 0.7
PRES_PRIOR_DISC = 0.01
PRES_PRIOR_PROP = 0.99
HEAD_DIM = 1 + 2 * Z_DEPTH_DIM + 2 * Z_WHERE_DIM + 2 * Z_WHAT_DIM   # = 27

HEAD_PAD = 128                        # lane-dense latent-head output width
STATE_PAD = 128                       # packed [h_new | ph_new | prior_raw | 0]
BG_STATE_PAD = 64                     # packed background state output
MXU_DTYPE = jnp.bfloat16              # matmul operand dtype (f32 accumulation)

# packed per-object carry layout (OBJ_DIM lanes per object slot)
OBJ_DIM = 64
O_WHAT = 0      # 8  z_what
O_WHERE = 8     # 4  z_where
O_DEPTH = 12    # 1  z_depth
O_PRES = 13     # 1  z_pres     (cols 14..15 zero pad -> GRU input = obj[:, :16])
O_THID = 16     # 16 temporal GRU hidden
O_PHID = 32     # 16 prior GRU hidden
O_WBIAS = 48    # 4  z_where_bias
O_CUM = 52      # 1  cumulative (1 - z_pres)
O_ID = 53       # 1  object id


# ----------------------------- spec helpers ---------------------------------
def _full_spec(shape):
    zeros = (0,) * len(shape)
    return pl.BlockSpec(shape, lambda *_: zeros)


# ----------------------------- Pallas kernels -------------------------------
def _gru_cell(x, h, wih_ref, whh_ref, bih_ref, bhh_ref):
    """nn.GRUCell on VMEM values; weights are bf16, accumulation f32."""
    hid = h.shape[1]
    gi = jnp.dot(x.astype(MXU_DTYPE), wih_ref[...],
                 preferred_element_type=jnp.float32) + bih_ref[...]
    gh = jnp.dot(h.astype(MXU_DTYPE), whh_ref[...],
                 preferred_element_type=jnp.float32) + bhh_ref[...]
    r = jax.nn.sigmoid(gi[:, :hid] + gh[:, :hid])
    z = jax.nn.sigmoid(gi[:, hid:2 * hid] + gh[:, hid:2 * hid])
    n = jnp.tanh(gi[:, 2 * hid:3 * hid] + r * gh[:, 2 * hid:3 * hid])
    return (1.0 - z) * n + z * h


def _linear_kernel(x_ref, w_ref, b_ref, o_ref, *, activation):
    acc = jnp.dot(x_ref[...].astype(MXU_DTYPE), w_ref[...],
                  preferred_element_type=jnp.float32) + b_ref[...]
    if activation == "relu":
        acc = jnp.maximum(acc, 0.0)
    elif activation == "sigmoid":
        acc = jax.nn.sigmoid(acc)
    o_ref[...] = acc


def pallas_linear(x, w, b, activation="none"):
    """Single matmul + fused activation (used once, for the image encoder)."""
    M, K = x.shape
    N = w.shape[1]
    return pl.pallas_call(
        functools.partial(_linear_kernel, activation=activation),
        out_shape=jax.ShapeDtypeStruct((M, N), jnp.float32),
        grid=(1,),
        in_specs=[_full_spec((M, K)), _full_spec((K, N)), _full_spec((1, N))],
        out_specs=_full_spec((M, N)),
    )(x, w, b)


def _latents_kernel(obj_ref, feat_ref,
                    twih_ref, twhh_ref, tbih_ref, tbhh_ref,
                    phw_ref, phb_ref,
                    pwih_ref, pwhh_ref, pbih_ref, pbhh_ref,
                    pnw_ref, pnb_ref,
                    dhw_ref, dhb_ref,
                    headp_ref, statep_ref, headd_ref):
    """Fused per-frame latent nets: temporal-GRU -> propagation head,
    prior-GRU -> prior net, and the discovery head — one launch."""
    obj = obj_ref[...]                                   # (Mp, OBJ_DIM) f32
    mp = obj.shape[0]
    x_gru = obj[:, :16]                                  # [what|where|depth|pres|pad]
    h_t = obj[:, O_THID:O_THID + HID]
    h_p = obj[:, O_PHID:O_PHID + HID]
    z_what_prev = obj[:, :Z_WHAT_DIM]

    # temporal GRU -> propagation head (hidden stays in VMEM)
    h_new = _gru_cell(x_gru, h_t, twih_ref, twhh_ref, tbih_ref, tbhh_ref)
    headp_ref[...] = jnp.dot(h_new.astype(MXU_DTYPE), phw_ref[...],
                             preferred_element_type=jnp.float32) + phb_ref[...]

    # prior GRU -> prior net
    ph_new = _gru_cell(z_what_prev, h_p, pwih_ref, pwhh_ref, pbih_ref, pbhh_ref)
    prior_raw = jnp.dot(ph_new.astype(MXU_DTYPE), pnw_ref[...],
                        preferred_element_type=jnp.float32) + pnb_ref[...]
    statep_ref[...] = jnp.concatenate(
        [h_new, ph_new, prior_raw,
         jnp.zeros((mp, STATE_PAD - 2 * HID - 2 * Z_WHAT_DIM), jnp.float32)],
        axis=1)

    # discovery head
    headd_ref[...] = jnp.dot(feat_ref[...].astype(MXU_DTYPE), dhw_ref[...],
                             preferred_element_type=jnp.float32) + dhb_ref[...]


def pallas_latents(obj_flat, feat_d, p):
    mp, md = obj_flat.shape[0], feat_d.shape[0]
    macs = (16 * 3 * HID * 2 + HID * HEAD_PAD + Z_WHAT_DIM * 3 * HID
            + HID * 3 * HID + HID * 2 * Z_WHAT_DIM)
    flops = 2 * mp * macs + 2 * md * ENC_DIM * HEAD_PAD
    tran = 8 * mp * HID
    w_elems = (16 * 3 * HID * 2 + HID * HEAD_PAD + (Z_WHAT_DIM + HID) * 3 * HID
               + HID * 2 * Z_WHAT_DIM + ENC_DIM * HEAD_PAD)
    bytes_acc = (4 * (mp * (OBJ_DIM + HEAD_PAD + STATE_PAD)
                      + md * (ENC_DIM + HEAD_PAD)) + 2 * w_elems)
    return pl.pallas_call(
        _latents_kernel,
        out_shape=(jax.ShapeDtypeStruct((mp, HEAD_PAD), jnp.float32),
                   jax.ShapeDtypeStruct((mp, STATE_PAD), jnp.float32),
                   jax.ShapeDtypeStruct((md, HEAD_PAD), jnp.float32)),
        grid=(1,),
        in_specs=[_full_spec((mp, OBJ_DIM)), _full_spec((md, ENC_DIM)),
                  _full_spec((16, 3 * HID)), _full_spec((HID, 3 * HID)),
                  _full_spec((1, 3 * HID)), _full_spec((1, 3 * HID)),
                  _full_spec((HID, HEAD_PAD)), _full_spec((1, HEAD_PAD)),
                  _full_spec((Z_WHAT_DIM, 3 * HID)), _full_spec((HID, 3 * HID)),
                  _full_spec((1, 3 * HID)), _full_spec((1, 3 * HID)),
                  _full_spec((HID, 2 * Z_WHAT_DIM)), _full_spec((1, 2 * Z_WHAT_DIM)),
                  _full_spec((ENC_DIM, HEAD_PAD)), _full_spec((1, HEAD_PAD))],
        out_specs=(_full_spec((mp, HEAD_PAD)), _full_spec((mp, STATE_PAD)),
                   _full_spec((md, HEAD_PAD))),
        cost_estimate=pl.CostEstimate(flops=int(flops), transcendentals=int(tran),
                                      bytes_accessed=int(bytes_acc)),
    )(obj_flat, feat_d,
      p['t_wih'], p['t_whh'], p['t_bih'], p['t_bhh'],
      p['prop_head_w'], p['prop_head_b'],
      p['p_wih'], p['p_whh'], p['p_bih'], p['p_bhh'],
      p['prior_net_w'], p['prior_net_b'],
      p['disc_head_w'], p['disc_head_b'])


def _render_kernel(z_ref, gw_ref, gb_ref, y_ref, alpha_ref, seg_ref,
                   *, bs, k_total, k_prop, hw, eps):
    """Fused glimpse decode + alpha/importance masking + compositing +
    segmentation-id selection.  Batch folded into one 128-row MXU pass."""
    zp = z_ref[...]                                      # (bs*K, 16) f32
    g = jax.nn.sigmoid(
        jnp.dot(zp[:, :Z_WHAT_DIM].astype(MXU_DTYPE), gw_ref[...],
                preferred_element_type=jnp.float32) + gb_ref[...])   # (bs*K, 4*hw)
    g = g.reshape(bs, k_total, 4 * hw)
    meta = zp.reshape(bs, k_total, 16)
    a_gain = meta[:, :, 8:9]
    i_gain = meta[:, :, 9:10]
    ids = meta[:, :, 10:11]

    a_att = g[:, :, 3 * hw:]
    is_prop = (jax.lax.broadcasted_iota(jnp.int32, (bs, k_total, 1), 1) < k_prop
               ).astype(jnp.float32)
    a_base = a_att * a_gain
    # propagated-alpha sum with straight-through clamp (forward value)
    prop_sum = jnp.clip(jnp.sum(a_base * is_prop, axis=1, keepdims=True),
                        eps, 1.0 - eps)                  # (bs,1,hw)
    alpha = a_base * (is_prop + (1.0 - is_prop) * (1.0 - prop_sum))
    imp = alpha * i_gain
    imp_norm = imp * pl.reciprocal(jnp.sum(imp, axis=1, keepdims=True) + eps,
                                   approx=True)
    alpha_tot = jnp.clip(jnp.sum(alpha, axis=1, keepdims=True), eps, 1.0 - eps)

    w = alpha * imp_norm
    y0 = jnp.sum(g[:, :, 0:hw] * w, axis=1, keepdims=True)
    y1 = jnp.sum(g[:, :, hw:2 * hw] * w, axis=1, keepdims=True)
    y2 = jnp.sum(g[:, :, 2 * hw:3 * hw] * w, axis=1, keepdims=True)
    y_ref[...] = jnp.concatenate([y0, y1, y2], axis=-1)
    alpha_ref[...] = alpha_tot

    # segmentation: first-index argmax over objects, gather the object id.
    score = (alpha > 0.3).astype(jnp.float32) * imp_norm
    mx = jnp.max(score, axis=1, keepdims=True)
    kidx = jax.lax.broadcasted_iota(jnp.int32, (bs, k_total, hw), 1)
    first = jnp.min(jnp.where(score == mx, kidx, k_total), axis=1, keepdims=True)
    sel = (kidx == first).astype(jnp.float32)
    seg_id = jnp.sum(sel * ids, axis=1, keepdims=True)
    fg = (alpha_tot > 0.3).astype(jnp.float32)
    seg_ref[...] = fg * seg_id


def pallas_render(z_packed, gw, gb, *, bs, k_total, k_prop):
    rows = bs * k_total
    flops = 2 * rows * Z_WHAT_DIM * 4 * HW + 24 * rows * 4 * HW
    tran = rows * 4 * HW
    bytes_acc = 4 * (rows * 16 + bs * 5 * HW) + 2 * Z_WHAT_DIM * 4 * HW
    y, alpha, seg = pl.pallas_call(
        functools.partial(_render_kernel, bs=bs, k_total=k_total,
                          k_prop=k_prop, hw=HW, eps=EPS),
        out_shape=(jax.ShapeDtypeStruct((bs, 1, 3 * HW), jnp.float32),
                   jax.ShapeDtypeStruct((bs, 1, HW), jnp.float32),
                   jax.ShapeDtypeStruct((bs, 1, HW), jnp.float32)),
        grid=(1,),
        in_specs=[_full_spec((rows, 16)),
                  _full_spec((Z_WHAT_DIM, 4 * HW)),
                  _full_spec((1, 4 * HW))],
        out_specs=(_full_spec((bs, 1, 3 * HW)),
                   _full_spec((bs, 1, HW)),
                   _full_spec((bs, 1, HW))),
        compiler_params=pltpu.CompilerParams(dimension_semantics=("arbitrary",)),
        cost_estimate=pl.CostEstimate(flops=int(flops), transcendentals=int(tran),
                                      bytes_accessed=int(bytes_acc)),
    )(z_packed.reshape(rows, 16), gw, gb)
    return y[:, 0], alpha[:, 0], seg[:, 0]


def _bg_kernel(bgw_ref, bgh_ref, xa_ref, noise_ref,
               gwih_ref, gwhh_ref, gbih_ref, gbhh_ref,
               pnw_ref, pnb_ref, encw_ref, encb_ref, decw_ref, decb_ref,
               bg_ref, state_ref):
    """Fused background path: bg-GRU -> prior net -> encoder -> sample -> decoder."""
    bg_what = bgw_ref[...]                               # (bs, 4)
    h_new = _gru_cell(bg_what, bgh_ref[...], gwih_ref, gwhh_ref,
                      gbih_ref, gbhh_ref)                # (bs, 16)
    pbg = jnp.dot(h_new.astype(MXU_DTYPE), pnw_ref[...],
                  preferred_element_type=jnp.float32) + pnb_ref[...]    # (bs, 8)
    enc = jnp.dot(xa_ref[...].astype(MXU_DTYPE), encw_ref[...],
                  preferred_element_type=jnp.float32) + encb_ref[...]   # (bs, 8)
    z_mean = enc[:, :BG_WHAT_DIM]
    z_std = jax.nn.softplus(enc[:, BG_WHAT_DIM:2 * BG_WHAT_DIM])
    z_bg = z_mean + z_std * noise_ref[...]
    bg_ref[...] = jax.nn.sigmoid(
        jnp.dot(z_bg.astype(MXU_DTYPE), decw_ref[...],
                preferred_element_type=jnp.float32) + decb_ref[...])
    m = bg_what.shape[0]
    pad = BG_STATE_PAD - (HID + 2 * BG_WHAT_DIM + 3 * BG_WHAT_DIM)
    state_ref[...] = jnp.concatenate(
        [h_new, pbg, z_mean, z_std, z_bg, jnp.zeros((m, pad), jnp.float32)],
        axis=1)


def pallas_background(bg_what, bg_hid, xa, noise, p):
    bs = bg_what.shape[0]
    return pl.pallas_call(
        _bg_kernel,
        out_shape=(jax.ShapeDtypeStruct((bs, 3 * HW), jnp.float32),
                   jax.ShapeDtypeStruct((bs, BG_STATE_PAD), jnp.float32)),
        grid=(1,),
        in_specs=[_full_spec((bs, BG_WHAT_DIM)), _full_spec((bs, HID)),
                  _full_spec((bs, 4 * HW)), _full_spec((bs, BG_WHAT_DIM)),
                  _full_spec((BG_WHAT_DIM, 3 * HID)), _full_spec((HID, 3 * HID)),
                  _full_spec((1, 3 * HID)), _full_spec((1, 3 * HID)),
                  _full_spec((HID, 2 * BG_WHAT_DIM)), _full_spec((1, 2 * BG_WHAT_DIM)),
                  _full_spec((4 * HW, 2 * BG_WHAT_DIM)), _full_spec((1, 2 * BG_WHAT_DIM)),
                  _full_spec((BG_WHAT_DIM, 3 * HW)), _full_spec((1, 3 * HW))],
        out_specs=(_full_spec((bs, 3 * HW)), _full_spec((bs, BG_STATE_PAD))),
    )(bg_what, bg_hid, xa, noise,
      p['bg_gru_wih'], p['bg_gru_whh'], p['bg_gru_bih'], p['bg_gru_bhh'],
      p['bg_prior_net_w'], p['bg_prior_net_b'],
      p['bg_enc_w'], p['bg_enc_b'], p['bg_dec_w'], p['bg_dec_b'])


# ----------------------------- math helpers ---------------------------------
def softplus(x):
    return jax.nn.softplus(x)


def kl_normal(qm, qs, pm, ps):
    return jnp.log(ps / qs) + (qs ** 2 + (qm - pm) ** 2) / (2.0 * ps ** 2) - 0.5


def kl_bernoulli(q, p):
    q = jnp.clip(q, 1e-6, 1.0 - 1e-6)
    return q * jnp.log(q / p) + (1.0 - q) * jnp.log((1.0 - q) / (1.0 - p))


def split_head(h):
    pres_logit = h[:, 0:1]
    depth_m, depth_s = h[:, 1:2], h[:, 2:3]
    where_m, where_s = h[:, 3:7], h[:, 7:11]
    what_m, what_s = h[:, 11:19], h[:, 19:27]
    return pres_logit, depth_m, depth_s, where_m, where_s, what_m, what_s


# ----------------------------- SCALOR forward --------------------------------
def _scalor_forward_impl(params, seq, key):
    bs, seq_len = seq.shape[0], seq.shape[1]
    k_prop = NUM_CELLS * seq_len           # static max object-slot count
    k_total = k_prop + NUM_CELLS

    # ---- image encoder for all frames in one Pallas matmul (stride-4 im2col)
    ph_, pw_ = IMG_H // G, IMG_W // G
    x_all = seq.reshape(bs * seq_len, 3, G, ph_, G, pw_)
    patches = x_all.transpose(0, 2, 4, 1, 3, 5).reshape(
        bs * seq_len * NUM_CELLS, 3 * ph_ * pw_)
    feat = pallas_linear(patches, params['img_enc_w'], params['img_enc_b'],
                         activation="relu")[:, :ENC_DIM]
    img_enc_seq = feat.reshape(bs, seq_len, NUM_CELLS, ENC_DIM).transpose(1, 0, 2, 3)

    seq_flat = seq.reshape(bs, seq_len, 3 * HW).transpose(1, 0, 2)   # (T, bs, 768)

    init_carry = dict(
        obj=jnp.zeros((bs, k_prop, OBJ_DIM), jnp.float32),
        bg_what=jnp.zeros((bs, BG_WHAT_DIM), jnp.float32),
        bg_hid=jnp.zeros((bs, HID), jnp.float32),
    )

    def step(carry, inputs):
        x_flat, img_enc_t, t = inputs
        key_t = jax.random.fold_in(key, t)
        k_prop_key, k_disc_key, k_bg_key = jax.random.split(key_t, 3)

        obj = carry['obj']
        obj_flat = obj.reshape(bs * k_prop, OBJ_DIM)
        feat_d = img_enc_t.reshape(bs * NUM_CELLS, ENC_DIM)

        # ---------- fused latent nets (one Pallas launch) ----------
        # TODO(synk): the original PropagationCell's glimpse re-encoding of x at
        # propagated locations is not reproduced (source unavailable).
        head_p, state_p, head_d = pallas_latents(obj_flat, feat_d, params)

        alive = (obj_flat[:, O_PRES:O_PRES + 1] > 0).astype(jnp.float32)   # (Mp,1)
        alive3 = alive.reshape(bs, k_prop, 1)

        (pres_logit_p, depth_m_p, depth_s_p, where_m_p, where_s_p,
         what_m_p, what_s_p) = split_head(head_p)
        depth_s_p, where_s_p, what_s_p = (softplus(depth_s_p), softplus(where_s_p),
                                          softplus(what_s_p))
        kp1, kp2, kp3 = jax.random.split(k_prop_key, 3)
        z_depth_p = depth_m_p + depth_s_p * jax.random.normal(kp1, depth_m_p.shape)
        z_where_p = obj_flat[:, O_WHERE:O_WHERE + Z_WHERE_DIM] + where_m_p \
            + where_s_p * jax.random.normal(kp2, where_m_p.shape)
        z_what_p = what_m_p + what_s_p * jax.random.normal(kp3, what_m_p.shape)
        z_pres_p = jax.nn.sigmoid(pres_logit_p) * alive

        h_new = state_p[:, :HID]
        ph_new = state_p[:, HID:2 * HID]
        prior_raw = state_p[:, 2 * HID:2 * HID + 2 * Z_WHAT_DIM]
        p_what_m = prior_raw[:, :Z_WHAT_DIM] + obj_flat[:, O_WHAT:O_WHAT + Z_WHAT_DIM]
        p_what_s = softplus(prior_raw[:, Z_WHAT_DIM:])

        kl_what_prop = (kl_normal(what_m_p, what_s_p, p_what_m, p_what_s)
                        .reshape(bs, k_prop, Z_WHAT_DIM) * alive3).sum(axis=(1, 2))
        kl_where_prop = (kl_normal(where_m_p, where_s_p, 0.0, 1.0)
                         .reshape(bs, k_prop, Z_WHERE_DIM) * alive3).sum(axis=(1, 2))
        kl_depth_prop = (kl_normal(depth_m_p, depth_s_p, 0.0, 1.0)
                         .reshape(bs, k_prop, Z_DEPTH_DIM) * alive3).sum(axis=(1, 2))
        kl_pres_prop = (kl_bernoulli(jax.nn.sigmoid(pres_logit_p), PRES_PRIOR_PROP)
                        .reshape(bs, k_prop, 1) * alive3).sum(axis=(1, 2))
        cumsum_new = obj[:, :, O_CUM:O_CUM + 1] \
            + (1.0 - z_pres_p.reshape(bs, k_prop, 1)) * alive3

        # ---------- discovery ----------
        # TODO(synk): spatial-transformer glimpse extraction and overlap-based
        # proposal rejection of the original cell are not reproduced.
        (pres_logit_d, depth_m_d, depth_s_d, where_m_d, where_s_d,
         what_m_d, what_s_d) = split_head(head_d)
        depth_s_d, where_s_d, what_s_d = (softplus(depth_s_d), softplus(where_s_d),
                                          softplus(what_s_d))
        kd1, kd2, kd3 = jax.random.split(k_disc_key, 3)
        z_depth_d = depth_m_d + depth_s_d * jax.random.normal(kd1, depth_m_d.shape)
        z_where_d = where_m_d + where_s_d * jax.random.normal(kd2, where_m_d.shape)
        z_what_d = what_m_d + what_s_d * jax.random.normal(kd3, what_m_d.shape)
        z_pres_d = jax.nn.sigmoid(pres_logit_d)

        kl_what_disc = kl_normal(what_m_d, what_s_d, 0.0, 1.0).reshape(bs, -1).sum(axis=1)
        kl_where_disc = kl_normal(where_m_d, where_s_d, 0.0, 1.0).reshape(bs, -1).sum(axis=1)
        kl_depth_disc = kl_normal(depth_m_d, depth_s_d, 0.0, 1.0).reshape(bs, -1).sum(axis=1)
        kl_pres_disc = kl_bernoulli(z_pres_d, PRES_PRIOR_DISC).reshape(bs, -1).sum(axis=1)

        ids_disc = jnp.broadcast_to(
            jnp.arange(1, NUM_CELLS + 1, dtype=jnp.float32)[None, :]
            + t.astype(jnp.float32) * 1000.0, (bs, NUM_CELLS))

        # ---------- fused glimpse decode / masking / compositing / seg ----------
        z_what_all = jnp.concatenate(
            [z_what_p.reshape(bs, k_prop, Z_WHAT_DIM),
             z_what_d.reshape(bs, NUM_CELLS, Z_WHAT_DIM)], axis=1)
        a_gain = jnp.concatenate(
            [z_pres_p.reshape(bs, k_prop, 1),
             z_pres_d.reshape(bs, NUM_CELLS, 1)], axis=1)
        i_gain = jnp.concatenate(
            [(jax.nn.sigmoid(-z_depth_p) * z_pres_p).reshape(bs, k_prop, 1),
             (jax.nn.sigmoid(-z_depth_d) * z_pres_d).reshape(bs, NUM_CELLS, 1)], axis=1)
        ids_all = jnp.concatenate([obj[:, :, O_ID], ids_disc], axis=1)
        z_packed = jnp.concatenate(
            [z_what_all, a_gain, i_gain, ids_all[:, :, None],
             jnp.zeros((bs, k_total, 5), jnp.float32)], axis=-1)      # (bs, K, 16)

        y_nobg, alpha_tot, seg = pallas_render(
            z_packed, params['glimpse_w'], params['glimpse_b'],
            bs=bs, k_total=k_total, k_prop=k_prop)

        # ---------- background (single fused kernel) ----------
        xa = jnp.concatenate([x_flat, 1.0 - alpha_tot], axis=1)        # (bs, 1024)
        noise_bg = jax.random.normal(k_bg_key, (bs, BG_WHAT_DIM))
        bg, bg_state = pallas_background(carry['bg_what'], carry['bg_hid'],
                                         xa, noise_bg, params)
        h_bg = bg_state[:, :HID]
        pbg = bg_state[:, HID:HID + 2 * BG_WHAT_DIM]
        z_bg_mean = bg_state[:, HID + 8:HID + 12]
        z_bg_std = bg_state[:, HID + 12:HID + 16]
        z_bg = bg_state[:, HID + 16:HID + 20]
        is_first = (t == 0)
        p_bg_mean = jnp.where(is_first, 0.0, pbg[:, :BG_WHAT_DIM] + carry['bg_what'])
        p_bg_std = jnp.where(is_first, 1.0, softplus(pbg[:, BG_WHAT_DIM:]))
        bg_hid_new = jnp.where(is_first, carry['bg_hid'], h_bg)
        kl_bg = kl_normal(z_bg_mean, z_bg_std, p_bg_mean, p_bg_std).sum(axis=1)

        # ---------- final composite + Gaussian log-likelihood ----------
        y_flat = y_nobg + jnp.tile(1.0 - alpha_tot, (1, 3)) * bg
        diff = (x_flat - y_flat) / SIGMA
        log_like = jnp.sum(-0.5 * diff * diff - math.log(SIGMA)
                           - 0.5 * math.log(2.0 * math.pi), axis=1)

        # ---------- carry update: static slot writes (no argsort / gather) ----
        # TODO(synk): the original dynamically re-sizes the buffer on host; here
        # discoveries of frame t occupy a dedicated static band and dead slots
        # stay masked — identical forward values, no host sync, no sort.
        prop_obj = jnp.concatenate([
            z_what_p.reshape(bs, k_prop, Z_WHAT_DIM),
            z_where_p.reshape(bs, k_prop, Z_WHERE_DIM),
            z_depth_p.reshape(bs, k_prop, Z_DEPTH_DIM),
            z_pres_p.reshape(bs, k_prop, Z_PRES_DIM),
            jnp.zeros((bs, k_prop, 2), jnp.float32),
            h_new.reshape(bs, k_prop, HID),
            ph_new.reshape(bs, k_prop, HID),
            obj[:, :, O_WBIAS:O_WBIAS + Z_WHERE_DIM]
            + where_m_p.reshape(bs, k_prop, Z_WHERE_DIM),
            cumsum_new,
            obj[:, :, O_ID:O_ID + 1],
            jnp.zeros((bs, k_prop, OBJ_DIM - (O_ID + 1)), jnp.float32),
        ], axis=-1) * alive3

        disc_mask = (z_pres_d.reshape(bs, NUM_CELLS, 1) > Z_PRES_THRESHOLD
                     ).astype(jnp.float32)
        disc_obj = jnp.concatenate([
            z_what_d.reshape(bs, NUM_CELLS, Z_WHAT_DIM),
            z_where_d.reshape(bs, NUM_CELLS, Z_WHERE_DIM),
            z_depth_d.reshape(bs, NUM_CELLS, Z_DEPTH_DIM),
            z_pres_d.reshape(bs, NUM_CELLS, Z_PRES_DIM),
            jnp.zeros((bs, NUM_CELLS, 2), jnp.float32),
            jnp.zeros((bs, NUM_CELLS, 2 * HID), jnp.float32),   # fresh hiddens
            where_m_d.reshape(bs, NUM_CELLS, Z_WHERE_DIM),
            jnp.zeros((bs, NUM_CELLS, 1), jnp.float32),          # cumsum
            ids_disc[:, :, None],
            jnp.zeros((bs, NUM_CELLS, OBJ_DIM - (O_ID + 1)), jnp.float32),
        ], axis=-1) * disc_mask

        new_obj = jax.lax.dynamic_update_slice_in_dim(
            prop_obj, disc_obj, t * NUM_CELLS, axis=1)
        lengths = (new_obj[:, :, O_PRES] > 0).astype(jnp.float32).sum(axis=1)

        new_carry = dict(obj=new_obj, bg_what=z_bg, bg_hid=bg_hid_new)
        outs = dict(
            y=y_flat, seg=seg, log_like=log_like,
            kl_what=kl_what_disc + kl_what_prop,
            kl_where=kl_where_disc + kl_where_prop,
            kl_depth=kl_depth_disc + kl_depth_prop,
            kl_pres=kl_pres_disc + kl_pres_prop,
            kl_bg=kl_bg, counting=lengths,
        )
        return new_carry, outs

    t_idx = jnp.arange(seq_len)
    _, ys = jax.lax.scan(step, init_carry, (seq_flat, img_enc_seq, t_idx))

    y_seq = ys['y'].transpose(1, 0, 2).reshape(bs, seq_len, 3, IMG_H, IMG_W)
    seg_seq = ys['seg'].transpose(1, 0, 2).reshape(
        bs, seq_len, 1, IMG_H, IMG_W).astype(jnp.int32)
    counting = ys['counting'].transpose(1, 0)
    mean_t = lambda a: a.transpose(1, 0).mean(axis=1)
    log_imp = jnp.zeros((bs,))

    return (y_seq, seg_seq, mean_t(ys['log_like']), mean_t(ys['kl_what']),
            mean_t(ys['kl_where']), mean_t(ys['kl_depth']), mean_t(ys['kl_pres']),
            mean_t(ys['kl_bg']), log_imp, counting)


_scalor_forward_jit = jax.jit(_scalor_forward_impl)


def scalor_forward(params, seq, key):
    outs = _scalor_forward_jit(params, seq, key)
    seq_len = seq.shape[1]
    log_disc_list = [None] * seq_len
    log_prop_list = [None] * seq_len
    scalor_log_list = [{} for _ in range(seq_len)]
    return tuple(outs) + (log_disc_list, log_prop_list, scalor_log_list)


# ----------------------------- parameter init --------------------------------
def init_params(key):
    def w(k, shape, scale=0.1):
        return (scale * jax.random.normal(k, shape, dtype=jnp.float32)
                ).astype(MXU_DTYPE)

    def head_w(k, in_dim, scale=0.1):
        full = jnp.zeros((in_dim, HEAD_PAD), jnp.float32)
        full = full.at[:, :HEAD_DIM].set(
            scale * jax.random.normal(k, (in_dim, HEAD_DIM), dtype=jnp.float32))
        return full.astype(MXU_DTYPE)

    def head_b(pres_bias):
        return jnp.zeros((1, HEAD_PAD), jnp.float32).at[0, 0].set(pres_bias)

    ks = jax.random.split(key, 16)
    p = {}
    # image encoder: 48 -> ENC_DIM (padded to 128 lanes, sliced outside)
    img_w = jnp.zeros((3 * (IMG_H // G) * (IMG_W // G), HEAD_PAD), jnp.float32)
    img_w = img_w.at[:, :ENC_DIM].set(
        0.1 * jax.random.normal(ks[0], (3 * (IMG_H // G) * (IMG_W // G), ENC_DIM),
                                dtype=jnp.float32))
    p['img_enc_w'] = img_w.astype(MXU_DTYPE)
    p['img_enc_b'] = jnp.zeros((1, HEAD_PAD), jnp.float32)

    # temporal GRU (input = packed 16 leading cols of the object slot)
    p['t_wih'] = w(ks[1], (16, 3 * HID))
    p['t_whh'] = w(ks[2], (HID, 3 * HID))
    p['t_bih'] = jnp.zeros((1, 3 * HID), jnp.float32)
    p['t_bhh'] = jnp.zeros((1, 3 * HID), jnp.float32)
    p['prop_head_w'] = head_w(ks[3], HID)
    p['prop_head_b'] = head_b(2.0)

    # prior GRU + prior net
    p['p_wih'] = w(ks[4], (Z_WHAT_DIM, 3 * HID))
    p['p_whh'] = w(ks[5], (HID, 3 * HID))
    p['p_bih'] = jnp.zeros((1, 3 * HID), jnp.float32)
    p['p_bhh'] = jnp.zeros((1, 3 * HID), jnp.float32)
    p['prior_net_w'] = w(ks[6], (HID, 2 * Z_WHAT_DIM))
    p['prior_net_b'] = jnp.zeros((1, 2 * Z_WHAT_DIM), jnp.float32)

    # discovery head
    p['disc_head_w'] = head_w(ks[7], ENC_DIM)
    p['disc_head_b'] = head_b(1.5)

    # glimpse decoder (z_what -> [r | g | b | alpha] x HW)
    p['glimpse_w'] = w(ks[8], (Z_WHAT_DIM, 4 * HW))
    p['glimpse_b'] = jnp.zeros((1, 4 * HW), jnp.float32)

    # background nets
    p['bg_gru_wih'] = w(ks[9], (BG_WHAT_DIM, 3 * HID))
    p['bg_gru_whh'] = w(ks[10], (HID, 3 * HID))
    p['bg_gru_bih'] = jnp.zeros((1, 3 * HID), jnp.float32)
    p['bg_gru_bhh'] = jnp.zeros((1, 3 * HID), jnp.float32)
    p['bg_prior_net_w'] = w(ks[11], (HID, 2 * BG_WHAT_DIM))
    p['bg_prior_net_b'] = jnp.zeros((1, 2 * BG_WHAT_DIM), jnp.float32)
    p['bg_enc_w'] = w(ks[12], (4 * HW, 2 * BG_WHAT_DIM), scale=0.01)
    p['bg_enc_b'] = jnp.zeros((1, 2 * BG_WHAT_DIM), jnp.float32)
    p['bg_dec_w'] = w(ks[13], (BG_WHAT_DIM, 3 * HW))
    p['bg_dec_b'] = jnp.zeros((1, 3 * HW), jnp.float32)
    return p


# --------------------------------- main --------------------------------------
if __name__ == "__main__":
    key = jax.random.PRNGKey(0)
    pkey, dkey, skey = jax.random.split(key, 3)
    params = init_params(pkey)

    bs, seq_len = 2, 3
    seq = jax.random.uniform(dkey, (bs, seq_len, 3, IMG_H, IMG_W), dtype=jnp.float32)

    outs = scalor_forward(params, seq, skey)
    jax.block_until_ready(outs[0])   # y_seq
    jax.block_until_ready(outs[1])   # seg_seq
    jax.block_until_ready(outs[2])   # log-likelihood
    jax.block_until_ready(outs[9])   # counting
    print("KERNEL_OK")
</pallas_src>

<mosaic_0001>
module attributes {stable_mosaic.version = 11 : i64} {
  func.func @_linear_kernel(%arg0: i32, %arg1: memref<96x48xf32, #tpu.memory_space<vmem>>, %arg2: memref<48x128xbf16, #tpu.memory_space<vmem>>, %arg3: memref<1x128xf32, #tpu.memory_space<vmem>>, %arg4: memref<96x128xf32, #tpu.memory_space<vmem>>) attributes {dimension_semantics = [#tpu.dimension_semantics<arbitrary>], iteration_bounds = array<i64: 1>, scalar_prefetch = 0 : i64, scratch_operands = 0 : i64, tpu.core_type = #tpu.core_type<tc>, window_params = [{pipeline_mode = #tpu.pipeline_mode<synchronous>, transform_indices = @transform_0, window_bounds = array<i64: 96, 48>}, {pipeline_mode = #tpu.pipeline_mode<synchronous>, transform_indices = @transform_1, window_bounds = array<i64: 48, 128>}, {pipeline_mode = #tpu.pipeline_mode<synchronous>, transform_indices = @transform_2, window_bounds = array<i64: 1, 128>}, {pipeline_mode = #tpu.pipeline_mode<synchronous>, transform_indices = @transform_3, window_bounds = array<i64: 96, 128>}]} {
    %c0 = arith.constant 0 : index
    %c0_0 = arith.constant 0 : index
    %0 = vector.load %arg1[%c0, %c0_0] : memref<96x48xf32, #tpu.memory_space<vmem>>, vector<96x48xf32>
    %1 = arith.truncf %0 : vector<96x48xf32> to vector<96x48xbf16>
    %c0_1 = arith.constant 0 : index
    %c0_2 = arith.constant 0 : index
    %2 = vector.load %arg2[%c0_1, %c0_2] : memref<48x128xbf16, #tpu.memory_space<vmem>>, vector<48x128xbf16>
    %cst = arith.constant dense<0.000000e+00> : vector<96x128xf32>
    %3 = tpu.matmul %1, %2, %cst {dimension_numbers = #tpu.dot_dimension_numbers<[1], [0], [0], [1], [0, 0, 1, 1], [], []>} : vector<96x48xbf16>, vector<48x128xbf16>, vector<96x128xf32> -> vector<96x128xf32>
    %c0_3 = arith.constant 0 : index
    %c0_4 = arith.constant 0 : index
    %4 = vector.load %arg3[%c0_3, %c0_4] : memref<1x128xf32, #tpu.memory_space<vmem>>, vector<1x128xf32>
    %5 = vector.broadcast %4 : vector<1x128xf32> to vector<96x128xf32>
    %6 = arith.addf %3, %5 : vector<96x128xf32>
    %cst_5 = arith.constant 0.000000e+00 : f32
    %7 = vector.broadcast %cst_5 : f32 to vector<96x128xf32>
    %8 = arith.maximumf %6, %7 : vector<96x128xf32>
    %c0_6 = arith.constant 0 : index
    %c0_7 = arith.constant 0 : index
    %9 = vector.load %arg4[%c0_6, %c0_7] : memref<96x128xf32, #tpu.memory_space<vmem>>, vector<96x128xf32>
    tpu.vector_store %arg4[%c0_6, %c0_7], %8 {strides = array<i32>} : memref<96x128xf32, #tpu.memory_space<vmem>>, vector<96x128xf32>,
    return
  }
  func.func @transform_0(%arg0: i32) -> (i32, i32) {
    %c0_i32 = arith.constant 0 : i32
    %c0_i32_0 = arith.constant 0 : i32
    %c0_i32_1 = arith.constant 0 : i32
    return %c0_i32, %c0_i32_0 : i32, i32
  }
  func.func @transform_1(%arg0: i32) -> (i32, i32) {
    %c0_i32 = arith.constant 0 : i32
    %c0_i32_0 = arith.constant 0 : i32
    %c0_i32_1 = arith.constant 0 : i32
    return %c0_i32, %c0_i32_0 : i32, i32
  }
  func.func @transform_2(%arg0: i32) -> (i32, i32) {
    %c0_i32 = arith.constant 0 : i32
    %c0_i32_0 = arith.constant 0 : i32
    %c0_i32_1 = arith.constant 0 : i32
    return %c0_i32, %c0_i32_0 : i32, i32
  }
  func.func @transform_3(%arg0: i32) -> (i32, i32) {
    %c0_i32 = arith.constant 0 : i32
    %c0_i32_0 = arith.constant 0 : i32
    %c0_i32_1 = arith.constant 0 : i32
    return %c0_i32, %c0_i32_0 : i32, i32
  }
}

module attributes {stable_mosaic.version = 11 : i64} {
  func.func @_latents_kernel(%arg0: i32, %arg1: memref<96x64xf32, #tpu.memory_space<vmem>>, %arg2: memref<32x32xf32, #tpu.memory_space<vmem>>, %arg3: memref<16x48xbf16, #tpu.memory_space<vmem>>, %arg4: memref<16x48xbf16, #tpu.memory_space<vmem>>, %arg5: memref<1x48xf32, #tpu.memory_space<vmem>>, %arg6: memref<1x48xf32, #tpu.memory_space<vmem>>, %arg7: memref<16x128xbf16, #tpu.memory_space<vmem>>, %arg8: memref<1x128xf32, #tpu.memory_space<vmem>>, %arg9: memref<8x48xbf16, #tpu.memory_space<vmem>>, %arg10: memref<16x48xbf16, #tpu.memory_space<vmem>>, %arg11: memref<1x48xf32, #tpu.memory_space<vmem>>, %arg12: memref<1x48xf32, #tpu.memory_space<vmem>>, %arg13: memref<16x16xbf16, #tpu.memory_space<vmem>>, %arg14: memref<1x16xf32, #tpu.memory_space<vmem>>, %arg15: memref<32x128xbf16, #tpu.memory_space<vmem>>, %arg16: memref<1x128xf32, #tpu.memory_space<vmem>>, %arg17: memref<96x128xf32, #tpu.memory_space<vmem>>, %arg18: memref<96x128xf32, #tpu.memory_space<vmem>>, %arg19: memref<32x128xf32, #tpu.memory_space<vmem>>) attributes {dimension_semantics = [#tpu.dimension_semantics<arbitrary>], iteration_bounds = array<i64: 1>, scalar_prefetch = 0 : i64, scratch_operands = 0 : i64, tpu.core_type = #tpu.core_type<tc>, window_params = [{pipeline_mode = #tpu.pipeline_mode<synchronous>, transform_indices = @transform_0, window_bounds = array<i64: 96, 64>}, {pipeline_mode = #tpu.pipeline_mode<synchronous>, transform_indices = @transform_1, window_bounds = array<i64: 32, 32>}, {pipeline_mode = #tpu.pipeline_mode<synchronous>, transform_indices = @transform_2, window_bounds = array<i64: 16, 48>}, {pipeline_mode = #tpu.pipeline_mode<synchronous>, transform_indices = @transform_3, window_bounds = array<i64: 16, 48>}, {pipeline_mode = #tpu.pipeline_mode<synchronous>, transform_indices = @transform_4, window_bounds = array<i64: 1, 48>}, {pipeline_mode = #tpu.pipeline_mode<synchronous>, transform_indices = @transform_5, window_bounds = array<i64: 1, 48>}, {pipeline_mode = #tpu.pipeline_mode<synchronous>, transform_indices = @transform_6, window_bounds = array<i64: 16, 128>}, {pipeline_mode = #tpu.pipeline_mode<synchronous>, transform_indices = @transform_7, window_bounds = array<i64: 1, 128>}, {pipeline_mode = #tpu.pipeline_mode<synchronous>, transform_indices = @transform_8, window_bounds = array<i64: 8, 48>}, {pipeline_mode = #tpu.pipeline_mode<synchronous>, transform_indices = @transform_9, window_bounds = array<i64: 16, 48>}, {pipeline_mode = #tpu.pipeline_mode<synchronous>, transform_indices = @transform_10, window_bounds = array<i64: 1, 48>}, {pipeline_mode = #tpu.pipeline_mode<synchronous>, transform_indices = @transform_11, window_bounds = array<i64: 1, 48>}, {pipeline_mode = #tpu.pipeline_mode<synchronous>, transform_indices = @transform_12, window_bounds = array<i64: 16, 16>}, {pipeline_mode = #tpu.pipeline_mode<synchronous>, transform_indices = @transform_13, window_bounds = array<i64: 1, 16>}, {pipeline_mode = #tpu.pipeline_mode<synchronous>, transform_indices = @transform_14, window_bounds = array<i64: 32, 128>}, {pipeline_mode = #tpu.pipeline_mode<synchronous>, transform_indices = @transform_15, window_bounds = array<i64: 1, 128>}, {pipeline_mode = #tpu.pipeline_mode<synchronous>, transform_indices = @transform_16, window_bounds = array<i64: 96, 128>}, {pipeline_mode = #tpu.pipeline_mode<synchronous>, transform_indices = @transform_17, window_bounds = array<i64: 96, 128>}, {pipeline_mode = #tpu.pipeline_mode<synchronous>, transform_indices = @transform_18, window_bounds = array<i64: 32, 128>}]} {
    %c0 = arith.constant 0 : index
    %c0_0 = arith.constant 0 : index
    %0 = vector.load %arg1[%c0, %c0_0] : memref<96x64xf32, #tpu.memory_space<vmem>>, vector<96x64xf32>
    %1 = vector.extract_strided_slice %0 {offsets = [0, 0], sizes = [96, 16], strides = [1, 1]} : vector<96x64xf32> to vector<96x16xf32>
    %2 = vector.extract_strided_slice %0 {offsets = [0, 16], sizes = [96, 16], strides = [1, 1]} : vector<96x64xf32> to vector<96x16xf32>
    %3 = vector.extract_strided_slice %0 {offsets = [0, 32], sizes = [96, 16], strides = [1, 1]} : vector<96x64xf32> to vector<96x16xf32>
    %4 = vector.extract_strided_slice %0 {offsets = [0, 0], sizes = [96, 8], strides = [1, 1]} : vector<96x64xf32> to vector<96x8xf32>
    %5 = arith.truncf %1 : vector<96x16xf32> to vector<96x16xbf16>
    %c0_1 = arith.constant 0 : index
    %c0_2 = arith.constant 0 : index
    %6 = vector.load %arg3[%c0_1, %c0_2] : memref<16x48xbf16, #tpu.memory_space<vmem>>, vector<16x48xbf16>
    %cst = arith.constant dense<0.000000e+00> : vector<96x48xf32>
    %7 = tpu.matmul %5, %6, %cst {dimension_numbers = #tpu.dot_dimension_numbers<[1], [0], [0], [1], [0, 0, 1, 1], [], []>} : vector<96x16xbf16>, vector<16x48xbf16>, vector<96x48xf32> -> vector<96x48xf32>
    %c0_3 = arith.constant 0 : index
    %c0_4 = arith.constant 0 : index
    %8 = vector.load %arg5[%c0_3, %c0_4] : memref<1x48xf32, #tpu.memory_space<vmem>>, vector<1x48xf32>
    %9 = vector.broadcast %8 : vector<1x48xf32> to vector<96x48xf32>
    %10 = arith.addf %7, %9 : vector<96x48xf32>
    %11 = arith.truncf %2 : vector<96x16xf32> to vector<96x16xbf16>
    %c0_5 = arith.constant 0 : index
    %c0_6 = arith.constant 0 : index
    %12 = vector.load %arg4[%c0_5, %c0_6] : memref<16x48xbf16, #tpu.memory_space<vmem>>, vector<16x48xbf16>
    %cst_7 = arith.constant dense<0.000000e+00> : vector<96x48xf32>
    %13 = tpu.matmul %11, %12, %cst_7 {dimension_numbers = #tpu.dot_dimension_numbers<[1], [0], [0], [1], [0, 0, 1, 1], [], []>} : vector<96x16xbf16>, vector<16x48xbf16>, vector<96x48xf32> -> vector<96x48xf32>
    %c0_8 = arith.constant 0 : index
    %c0_9 = arith.constant 0 : index
    %14 = vector.load %arg6[%c0_8, %c0_9] : memref<1x48xf32, #tpu.memory_space<vmem>>, vector<1x48xf32>
    %15 = vector.broadcast %14 : vector<1x48xf32> to vector<96x48xf32>
    %16 = arith.addf %13, %15 : vector<96x48xf32>
    %17 = vector.extract_strided_slice %10 {offsets = [0, 0], sizes = [96, 16], strides = [1, 1]} : vector<96x48xf32> to vector<96x16xf32>
    %18 = vector.extract_strided_slice %16 {offsets = [0, 0], sizes = [96, 16], strides = [1, 1]} : vector<96x48xf32> to vector<96x16xf32>
    %19 = arith.addf %17, %18 : vector<96x16xf32>
    %20 = arith.negf %19 : vector<96x16xf32>
    %21 = math.exp %20 : vector<96x16xf32>
    %cst_10 = arith.constant 1.000000e+00 : f32
    %22 = vector.broadcast %cst_10 : f32 to vector<96x16xf32>
    %23 = arith.addf %22, %21 : vector<96x16xf32>
    %24 = arith.divf %22, %23 : vector<96x16xf32>
    %25 = vector.extract_strided_slice %10 {offsets = [0, 16], sizes = [96, 16], strides = [1, 1]} : vector<96x48xf32> to vector<96x16xf32>
    %26 = vector.extract_strided_slice %16 {offsets = [0, 16], sizes = [96, 16], strides = [1, 1]} : vector<96x48xf32> to vector<96x16xf32>
    %27 = arith.addf %25, %26 : vector<96x16xf32>
    %28 = arith.negf %27 : vector<96x16xf32>
    %29 = math.exp %28 : vector<96x16xf32>
    %cst_11 = arith.constant 1.000000e+00 : f32
    %30 = vector.broadcast %cst_11 : f32 to vector<96x16xf32>
    %31 = arith.addf %30, %29 : vector<96x16xf32>
    %32 = arith.divf %30, %31 : vector<96x16xf32>
    %33 = vector.extract_strided_slice %10 {offsets = [0, 32], sizes = [96, 16], strides = [1, 1]} : vector<96x48xf32> to vector<96x16xf32>
    %34 = vector.extract_strided_slice %16 {offsets = [0, 32], sizes = [96, 16], strides = [1, 1]} : vector<96x48xf32> to vector<96x16xf32>
    %35 = arith.mulf %24, %34 : vector<96x16xf32>
    %36 = arith.addf %33, %35 : vector<96x16xf32>
    %37 = math.tanh %36 : vector<96x16xf32>
    %cst_12 = arith.constant 1.000000e+00 : f32
    %38 = vector.broadcast %cst_12 : f32 to vector<96x16xf32>
    %39 = arith.subf %38, %32 : vector<96x16xf32>
    %40 = arith.mulf %39, %37 : vector<96x16xf32>
    %41 = arith.mulf %32, %2 : vector<96x16xf32>
    %42 = arith.addf %40, %41 : vector<96x16xf32>
    %43 = arith.truncf %42 : vector<96x16xf32> to vector<96x16xbf16>
    %c0_13 = arith.constant 0 : index
    %c0_14 = arith.constant 0 : index
    %44 = vector.load %arg7[%c0_13, %c0_14] : memref<16x128xbf16, #tpu.memory_space<vmem>>, vector<16x128xbf16>
    %cst_15 = arith.constant dense<0.000000e+00> : vector<96x128xf32>
    %45 = tpu.matmul %43, %44, %cst_15 {dimension_numbers = #tpu.dot_dimension_numbers<[1], [0], [0], [1], [0, 0, 1, 1], [], []>} : vector<96x16xbf16>, vector<16x128xbf16>, vector<96x128xf32> -> vector<96x128xf32>
    %c0_16 = arith.constant 0 : index
    %c0_17 = arith.constant 0 : index
    %46 = vector.load %arg8[%c0_16, %c0_17] : memref<1x128xf32, #tpu.memory_space<vmem>>, vector<1x128xf32>
    %47 = vector.broadcast %46 : vector<1x128xf32> to vector<96x128xf32>
    %48 = arith.addf %45, %47 : vector<96x128xf32>
    %c0_18 = arith.constant 0 : index
    %c0_19 = arith.constant 0 : index
    %49 = vector.load %arg17[%c0_18, %c0_19] : memref<96x128xf32, #tpu.memory_space<vmem>>, vector<96x128xf32>
    tpu.vector_store %arg17[%c0_18, %c0_19], %48 {strides = array<i32>} : memref<96x128xf32, #tpu.memory_space<vmem>>, vector<96x128xf32>,
    %50 = arith.truncf %4 : vector<96x8xf32> to vector<96x8xbf16>
    %c0_20 = arith.constant 0 : index
    %c0_21 = arith.constant 0 : index
    %51 = vector.load %arg9[%c0_20, %c0_21] : memref<8x48xbf16, #tpu.memory_space<vmem>>, vector<8x48xbf16>
    %cst_22 = arith.constant dense<0.000000e+00> : vector<96x48xf32>
    %52 = tpu.matmul %50, %51, %cst_22 {dimension_numbers = #tpu.dot_dimension_numbers<[1], [0], [0], [1], [0, 0, 1, 1], [], []>} : vector<96x8xbf16>, vector<8x48xbf16>, vector<96x48xf32> -> vector<96x48xf32>
    %c0_23 = arith.constant 0 : index
    %c0_24 = arith.constant 0 : index
    %53 = vector.load %arg11[%c0_23, %c0_24] : memref<1x48xf32, #tpu.memory_space<vmem>>, vector<1x48xf32>
    %54 = vector.broadcast %53 : vector<1x48xf32> to vector<96x48xf32>
    %55 = arith.addf %52, %54 : vector<96x48xf32>
    %56 = arith.truncf %3 : vector<96x16xf32> to vector<96x16xbf16>
    %c0_25 = arith.constant 0 : index
    %c0_26 = arith.constant 0 : index
    %57 = vector.load %arg10[%c0_25, %c0_26] : memref<16x48xbf16, #tpu.memory_space<vmem>>, vector<16x48xbf16>
    %cst_27 = arith.constant dense<0.000000e+00> : vector<96x48xf32>
    %58 = tpu.matmul %56, %57, %cst_27 {dimension_numbers = #tpu.dot_dimension_numbers<[1], [0], [0], [1], [0, 0, 1, 1], [], []>} : vector<96x16xbf16>, vector<16x48xbf16>, vector<96x48xf32> -> vector<96x48xf32>
    %c0_28 = arith.constant 0 : index
    %c0_29 = arith.constant 0 : index
    %59 = vector.load %arg12[%c0_28, %c0_29] : memref<1x48xf32, #tpu.memory_space<vmem>>, vector<1x48xf32>
    %60 = vector.broadcast %59 : vector<1x48xf32> to vector<96x48xf32>
    %61 = arith.addf %58, %60 : vector<96x48xf32>
    %62 = vector.extract_strided_slice %55 {offsets = [0, 0], sizes = [96, 16], strides = [1, 1]} : vector<96x48xf32> to vector<96x16xf32>
    %63 = vector.extract_strided_slice %61 {offsets = [0, 0], sizes = [96, 16], strides = [1, 1]} : vector<96x48xf32> to vector<96x16xf32>
    %64 = arith.addf %62, %63 : vector<96x16xf32>
    %65 = arith.negf %64 : vector<96x16xf32>
    %66 = math.exp %65 : vector<96x16xf32>
    %cst_30 = arith.constant 1.000000e+00 : f32
    %67 = vector.broadcast %cst_30 : f32 to vector<96x16xf32>
    %68 = arith.addf %67, %66 : vector<96x16xf32>
    %69 = arith.divf %67, %68 : vector<96x16xf32>
    %70 = vector.extract_strided_slice %55 {offsets = [0, 16], sizes = [96, 16], strides = [1, 1]} : vector<96x48xf32> to vector<96x16xf32>
    %71 = vector.extract_strided_slice %61 {offsets = [0, 16], sizes = [96, 16], strides = [1, 1]} : vector<96x48xf32> to vector<96x16xf32>
    %72 = arith.addf %70, %71 : vector<96x16xf32>
    %73 = arith.negf %72 : vector<96x16xf32>
    %74 = math.exp %73 : vector<96x16xf32>
    %cst_31 = arith.constant 1.000000e+00 : f32
    %75 = vector.broadcast %cst_31 : f32 to vector<96x16xf32>
    %76 = arith.addf %75, %74 : vector<96x16xf32>
    %77 = arith.divf %75, %76 : vector<96x16xf32>
    %78 = vector.extract_strided_slice %55 {offsets = [0, 32], sizes = [96, 16], strides = [1, 1]} : vector<96x48xf32> to vector<96x16xf32>
    %79 = vector.extract_strided_slice %61 {offsets = [0, 32], sizes = [96, 16], strides = [1, 1]} : vector<96x48xf32> to vector<96x16xf32>
    %80 = arith.mulf %69, %79 : vector<96x16xf32>
    %81 = arith.addf %78, %80 : vector<96x16xf32>
    %82 = math.tanh %81 : vector<96x16xf32>
    %cst_32 = arith.constant 1.000000e+00 : f32
    %83 = vector.broadcast %cst_32 : f32 to vector<96x16xf32>
    %84 = arith.subf %83, %77 : vector<96x16xf32>
    %85 = arith.mulf %84, %82 : vector<96x16xf32>
    %86 = arith.mulf %77, %3 : vector<96x16xf32>
    %87 = arith.addf %85, %86 : vector<96x16xf32>
    %88 = arith.truncf %87 : vector<96x16xf32> to vector<96x16xbf16>
    %c0_33 = arith.constant 0 : index
    %c0_34 = arith.constant 0 : index
    %89 = vector.load %arg13[%c0_33, %c0_34] : memref<16x16xbf16, #tpu.memory_space<vmem>>, vector<16x16xbf16>
    %cst_35 = arith.constant dense<0.000000e+00> : vector<96x16xf32>
    %90 = tpu.matmul %88, %89, %cst_35 {dimension_numbers = #tpu.dot_dimension_numbers<[1], [0], [0], [1], [0, 0, 1, 1], [], []>} : vector<96x16xbf16>, vector<16x16xbf16>, vector<96x16xf32> -> vector<96x16xf32>
    %c0_36 = arith.constant 0 : index
    %c0_37 = arith.constant 0 : index
    %91 = vector.load %arg14[%c0_36, %c0_37] : memref<1x16xf32, #tpu.memory_space<vmem>>, vector<1x16xf32>
    %92 = vector.broadcast %91 : vector<1x16xf32> to vector<96x16xf32>
    %93 = arith.addf %90, %92 : vector<96x16xf32>
    %cst_38 = arith.constant 0.000000e+00 : f32
    %94 = vector.broadcast %cst_38 : f32 to vector<96x80xf32>
    %95 = tpu.concatenate %42, %87, %93, %94 in 1 : vector<96x16xf32>, vector<96x16xf32>, vector<96x16xf32>, vector<96x80xf32> -> vector<96x128xf32>
    %c0_39 = arith.constant 0 : index
    %c0_40 = arith.constant 0 : index
    %96 = vector.load %arg18[%c0_39, %c0_40] : memref<96x128xf32, #tpu.memory_space<vmem>>, vector<96x128xf32>
    tpu.vector_store %arg18[%c0_39, %c0_40], %95 {strides = array<i32>} : memref<96x128xf32, #tpu.memory_space<vmem>>, vector<96x128xf32>,
    %c0_41 = arith.constant 0 : index
    %c0_42 = arith.constant 0 : index
    %97 = vector.load %arg2[%c0_41, %c0_42] : memref<32x32xf32, #tpu.memory_space<vmem>>, vector<32x32xf32>
    %98 = arith.truncf %97 : vector<32x32xf32> to vector<32x32xbf16>
    %c0_43 = arith.constant 0 : index
    %c0_44 = arith.constant 0 : index
    %99 = vector.load %arg15[%c0_43, %c0_44] : memref<32x128xbf16, #tpu.memory_space<vmem>>, vector<32x128xbf16>
    %cst_45 = arith.constant dense<0.000000e+00> : vector<32x128xf32>
    %100 = tpu.matmul %98, %99, %cst_45 {dimension_numbers = #tpu.dot_dimension_numbers<[1], [0], [0], [1], [0, 0, 1, 1], [], []>} : vector<32x32xbf16>, vector<32x128xbf16>, vector<32x128xf32> -> vector<32x128xf32>
    %c0_46 = arith.constant 0 : index
    %c0_47 = arith.constant 0 : index
    %101 = vector.load %arg16[%c0_46, %c0_47] : memref<1x128xf32, #tpu.memory_space<vmem>>, vector<1x128xf32>
    %102 = vector.broadcast %101 : vector<1x128xf32> to vector<32x128xf32>
    %103 = arith.addf %100, %102 : vector<32x128xf32>
    %c0_48 = arith.constant 0 : index
    %c0_49 = arith.constant 0 : index
    %104 = vector.load %arg19[%c0_48, %c0_49] : memref<32x128xf32, #tpu.memory_space<vmem>>, vector<32x128xf32>
    tpu.vector_store %arg19[%c0_48, %c0_49], %103 {strides = array<i32>} : memref<32x128xf32, #tpu.memory_space<vmem>>, vector<32x128xf32>,
    return
  }
  func.func @transform_0(%arg0: i32) -> (i32, i32) {
    %c0_i32 = arith.constant 0 : i32
    %c0_i32_0 = arith.constant 0 : i32
    %c0_i32_1 = arith.constant 0 : i32
    return %c0_i32, %c0_i32_0 : i32, i32
  }
  func.func @transform_1(%arg0: i32) -> (i32, i32) {
    %c0_i32 = arith.constant 0 : i32
    %c0_i32_0 = arith.constant 0 : i32
    %c0_i32_1 = arith.constant 0 : i32
    return %c0_i32, %c0_i32_0 : i32, i32
  }
  func.func @transform_2(%arg0: i32) -> (i32, i32) {
    %c0_i32 = arith.constant 0 : i32
    %c0_i32_0 = arith.constant 0 : i32
    %c0_i32_1 = arith.constant 0 : i32
    return %c0_i32, %c0_i32_0 : i32, i32
  }
  func.func @transform_3(%arg0: i32) -> (i32, i32) {
    %c0_i32 = arith.constant 0 : i32
    %c0_i32_0 = arith.constant 0 : i32
    %c0_i32_1 = arith.constant 0 : i32
    return %c0_i32, %c0_i32_0 : i32, i32
  }
  func.func @transform_4(%arg0: i32) -> (i32, i32) {
    %c0_i32 = arith.constant 0 : i32
    %c0_i32_0 = arith.constant 0 : i32
    %c0_i32_1 = arith.constant 0 : i32
    return %c0_i32, %c0_i32_0 : i32, i32
  }
  func.func @transform_5(%arg0: i32) -> (i32, i32) {
    %c0_i32 = arith.constant 0 : i32
    %c0_i32_0 = arith.constant 0 : i32
    %c0_i32_1 = arith.constant 0 : i32
    return %c0_i32, %c0_i32_0 : i32, i32
  }
  func.func @transform_6(%arg0: i32) -> (i32, i32) {
    %c0_i32 = arith.constant 0 : i32
    %c0_i32_0 = arith.constant 0 : i32
    %c0_i32_1 = arith.constant 0 : i32
    return %c0_i32, %c0_i32_0 : i32, i32
  }
  func.func @transform_7(%arg0: i32) -> (i32, i32) {
    %c0_i32 = arith.constant 0 : i32
    %c0_i32_0 = arith.constant 0 : i32
    %c0_i32_1 = arith.constant 0 : i32
    return %c0_i32, %c0_i32_0 : i32, i32
  }
  func.func @transform_8(%arg0: i32) -> (i32, i32) {
    %c0_i32 = arith.constant 0 : i32
    %c0_i32_0 = arith.constant 0 : i32
    %c0_i32_1 = arith.constant 0 : i32
    return %c0_i32, %c0_i32_0 : i32, i32
  }
  func.func @transform_9(%arg0: i32) -> (i32, i32) {
    %c0_i32 = arith.constant 0 : i32
    %c0_i32_0 = arith.constant 0 : i32
    %c0_i32_1 = arith.constant 0 : i32
    return %c0_i32, %c0_i32_0 : i32, i32
  }
  func.func @transform_10(%arg0: i32) -> (i32, i32) {
    %c0_i32 = arith.constant 0 : i32
    %c0_i32_0 = arith.constant 0 : i32
    %c0_i32_1 = arith.constant 0 : i32
    return %c0_i32, %c0_i32_0 : i32, i32
  }
  func.func @transform_11(%arg0: i32) -> (i32, i32) {
    %c0_i32 = arith.constant 0 : i32
    %c0_i32_0 = arith.constant 0 : i32
    %c0_i32_1 = arith.constant 0 : i32
    return %c0_i32, %c0_i32_0 : i32, i32
  }
  func.func @transform_12(%arg0: i32) -> (i32, i32) {
    %c0_i32 = arith.constant 0 : i32
    %c0_i32_0 = arith.constant 0 : i32
    %c0_i32_1 = arith.constant 0 : i32
    return %c0_i32, %c0_i32_0 : i32, i32
  }
  func.func @transform_13(%arg0: i32) -> (i32, i32) {
    %c0_i32 = arith.constant 0 : i32
    %c0_i32_0 = arith.constant 0 : i32
    %c0_i32_1 = arith.constant 0 : i32
    return %c0_i32, %c0_i32_0 : i32, i32
  }
  func.func @transform_14(%arg0: i32) -> (i32, i32) {
    %c0_i32 = arith.constant 0 : i32
    %c0_i32_0 = arith.constant 0 : i32
    %c0_i32_1 = arith.constant 0 : i32
    return %c0_i32, %c0_i32_0 : i32, i32
  }
  func.func @transform_15(%arg0: i32) -> (i32, i32) {
    %c0_i32 = arith.constant 0 : i32
    %c0_i32_0 = arith.constant 0 : i32
    %c0_i32_1 = arith.constant 0 : i32
    return %c0_i32, %c0_i32_0 : i32, i32
  }
  func.func @transform_16(%arg0: i32) -> (i32, i32) {
    %c0_i32 = arith.constant 0 : i32
    %c0_i32_0 = arith.constant 0 : i32
    %c0_i32_1 = arith.constant 0 : i32
    return %c0_i32, %c0_i32_0 : i32, i32
  }
  func.func @transform_17(%arg0: i32) -> (i32, i32) {
    %c0_i32 = arith.constant 0 : i32
    %c0_i32_0 = arith.constant 0 : i32
    %c0_i32_1 = arith.constant 0 : i32
    return %c0_i32, %c0_i32_0 : i32, i32
  }
  func.func @transform_18(%arg0: i32) -> (i32, i32) {
    %c0_i32 = arith.constant 0 : i32
    %c0_i32_0 = arith.constant 0 : i32
    %c0_i32_1 = arith.constant 0 : i32
    return %c0_i32, %c0_i32_0 : i32, i32
  }
}

module attributes {stable_mosaic.version = 11 : i64} {
  func.func @_render_kernel(%arg0: i32, %arg1: memref<128x16xf32, #tpu.memory_space<vmem>>, %arg2: memref<8x1024xbf16, #tpu.memory_space<vmem>>, %arg3: memref<1x1024xf32, #tpu.memory_space<vmem>>, %arg4: memref<2x1x768xf32, #tpu.memory_space<vmem>>, %arg5: memref<2x1x256xf32, #tpu.memory_space<vmem>>, %arg6: memref<2x1x256xf32, #tpu.memory_space<vmem>>) attributes {dimension_semantics = [#tpu.dimension_semantics<arbitrary>], iteration_bounds = array<i64: 1>, scalar_prefetch = 0 : i64, scratch_operands = 0 : i64, tpu.core_type = #tpu.core_type<tc>, window_params = [{pipeline_mode = #tpu.pipeline_mode<synchronous>, transform_indices = @transform_0, window_bounds = array<i64: 128, 16>}, {pipeline_mode = #tpu.pipeline_mode<synchronous>, transform_indices = @transform_1, window_bounds = array<i64: 8, 1024>}, {pipeline_mode = #tpu.pipeline_mode<synchronous>, transform_indices = @transform_2, window_bounds = array<i64: 1, 1024>}, {pipeline_mode = #tpu.pipeline_mode<synchronous>, transform_indices = @transform_3, window_bounds = array<i64: 2, 1, 768>}, {pipeline_mode = #tpu.pipeline_mode<synchronous>, transform_indices = @transform_4, window_bounds = array<i64: 2, 1, 256>}, {pipeline_mode = #tpu.pipeline_mode<synchronous>, transform_indices = @transform_5, window_bounds = array<i64: 2, 1, 256>}]} {
    %c0 = arith.constant 0 : index
    %c0_0 = arith.constant 0 : index
    %0 = vector.load %arg1[%c0, %c0_0] : memref<128x16xf32, #tpu.memory_space<vmem>>, vector<128x16xf32>
    %1 = vector.extract_strided_slice %0 {offsets = [0, 0], sizes = [128, 8], strides = [1, 1]} : vector<128x16xf32> to vector<128x8xf32>
    %2 = arith.truncf %1 : vector<128x8xf32> to vector<128x8xbf16>
    %c0_1 = arith.constant 0 : index
    %c0_2 = arith.constant 0 : index
    %3 = vector.load %arg2[%c0_1, %c0_2] : memref<8x1024xbf16, #tpu.memory_space<vmem>>, vector<8x1024xbf16>
    %cst = arith.constant dense<0.000000e+00> : vector<128x1024xf32>
    %4 = tpu.matmul %2, %3, %cst {dimension_numbers = #tpu.dot_dimension_numbers<[1], [0], [0], [1], [0, 0, 1, 1], [], []>} : vector<128x8xbf16>, vector<8x1024xbf16>, vector<128x1024xf32> -> vector<128x1024xf32>
    %c0_3 = arith.constant 0 : index
    %c0_4 = arith.constant 0 : index
    %5 = vector.load %arg3[%c0_3, %c0_4] : memref<1x1024xf32, #tpu.memory_space<vmem>>, vector<1x1024xf32>
    %6 = vector.broadcast %5 : vector<1x1024xf32> to vector<128x1024xf32>
    %7 = arith.addf %4, %6 : vector<128x1024xf32>
    %8 = arith.negf %7 : vector<128x1024xf32>
    %9 = math.exp %8 : vector<128x1024xf32>
    %cst_5 = arith.constant 1.000000e+00 : f32
    %10 = vector.broadcast %cst_5 : f32 to vector<128x1024xf32>
    %11 = arith.addf %10, %9 : vector<128x1024xf32>
    %12 = arith.divf %10, %11 : vector<128x1024xf32>
    %13 = vector.shape_cast %12 : vector<128x1024xf32> to vector<2x64x1024xf32>
    %14 = vector.shape_cast %0 : vector<128x16xf32> to vector<2x64x16xf32>
    %15 = vector.extract_strided_slice %14 {offsets = [0, 0, 8], sizes = [2, 64, 1], strides = [1, 1, 1]} : vector<2x64x16xf32> to vector<2x64x1xf32>
    %16 = vector.extract_strided_slice %14 {offsets = [0, 0, 9], sizes = [2, 64, 1], strides = [1, 1, 1]} : vector<2x64x16xf32> to vector<2x64x1xf32>
    %17 = vector.extract_strided_slice %14 {offsets = [0, 0, 10], sizes = [2, 64, 1], strides = [1, 1, 1]} : vector<2x64x16xf32> to vector<2x64x1xf32>
    %18 = vector.extract_strided_slice %13 {offsets = [0, 0, 768], sizes = [2, 64, 256], strides = [1, 1, 1]} : vector<2x64x1024xf32> to vector<2x64x256xf32>
    %19 = tpu.iota {dimensions = array<i32: 1>} : vector<2x64x1xi32>
    %c48_i32 = arith.constant 48 : i32
    %20 = vector.broadcast %c48_i32 : i32 to vector<2x64x1xi32>
    %21 = arith.cmpi slt, %19, %20 : vector<2x64x1xi32>
    %22 = arith.extui %21 : vector<2x64x1xi1> to vector<2x64x1xi32>
    %23 = arith.sitofp %22 : vector<2x64x1xi32> to vector<2x64x1xf32>
    %24 = vector.broadcast %15 : vector<2x64x1xf32> to vector<2x64x256xf32>
    %25 = arith.mulf %18, %24 : vector<2x64x256xf32>
    %26 = vector.broadcast %23 : vector<2x64x1xf32> to vector<2x64x256xf32>
    %27 = arith.mulf %25, %26 : vector<2x64x256xf32>
    %cst_6 = arith.constant dense<0.000000e+00> : vector<2x256xf32>
    %28 = vector.multi_reduction <add>, %27, %cst_6 [1] : vector<2x64x256xf32> to vector<2x256xf32>
    %29 = vector.shape_cast %28 : vector<2x256xf32> to vector<2x1x256xf32>
    %cst_7 = arith.constant 1.000000e-15 : f32
    %cst_8 = arith.constant 1.000000e+00 : f32
    %30 = vector.broadcast %cst_7 : f32 to vector<2x1x256xf32>
    %31 = arith.maximumf %30, %29 : vector<2x1x256xf32>
    %32 = vector.broadcast %cst_8 : f32 to vector<2x1x256xf32>
    %33 = arith.minimumf %32, %31 : vector<2x1x256xf32>
    %cst_9 = arith.constant 1.000000e+00 : f32
    %34 = vector.broadcast %cst_9 : f32 to vector<2x64x1xf32>
    %35 = arith.subf %34, %23 : vector<2x64x1xf32>
    %cst_10 = arith.constant 1.000000e+00 : f32
    %36 = vector.broadcast %cst_10 : f32 to vector<2x1x256xf32>
    %37 = arith.subf %36, %33 : vector<2x1x256xf32>
    %38 = vector.broadcast %35 : vector<2x64x1xf32> to vector<2x64x256xf32>
    %39 = vector.broadcast %37 : vector<2x1x256xf32> to vector<2x64x256xf32>
    %40 = arith.mulf %38, %39 : vector<2x64x256xf32>
    %41 = vector.broadcast %23 : vector<2x64x1xf32> to vector<2x64x256xf32>
    %42 = arith.addf %41, %40 : vector<2x64x256xf32>
    %43 = arith.mulf %25, %42 : vector<2x64x256xf32>
    %44 = vector.broadcast %16 : vector<2x64x1xf32> to vector<2x64x256xf32>
    %45 = arith.mulf %43, %44 : vector<2x64x256xf32>
    %cst_11 = arith.constant dense<0.000000e+00> : vector<2x256xf32>
    %46 = vector.multi_reduction <add>, %45, %cst_11 [1] : vector<2x64x256xf32> to vector<2x256xf32>
    %47 = vector.shape_cast %46 : vector<2x256xf32> to vector<2x1x256xf32>
    %cst_12 = arith.constant 1.000000e-15 : f32
    %48 = vector.broadcast %cst_12 : f32 to vector<2x1x256xf32>
    %49 = arith.addf %47, %48 : vector<2x1x256xf32>
    %50 = tpu.reciprocal %49 {approx = true} : vector<2x1x256xf32> -> vector<2x1x256xf32>
    %51 = vector.broadcast %50 : vector<2x1x256xf32> to vector<2x64x256xf32>
    %52 = arith.mulf %45, %51 : vector<2x64x256xf32>
    %cst_13 = arith.constant dense<0.000000e+00> : vector<2x256xf32>
    %53 = vector.multi_reduction <add>, %43, %cst_13 [1] : vector<2x64x256xf32> to vector<2x256xf32>
    %54 = vector.shape_cast %53 : vector<2x256xf32> to vector<2x1x256xf32>
    %cst_14 = arith.constant 1.000000e-15 : f32
    %cst_15 = arith.constant 1.000000e+00 : f32
    %55 = vector.broadcast %cst_14 : f32 to vector<2x1x256xf32>
    %56 = arith.maximumf %55, %54 : vector<2x1x256xf32>
    %57 = vector.broadcast %cst_15 : f32 to vector<2x1x256xf32>
    %58 = arith.minimumf %57, %56 : vector<2x1x256xf32>
    %59 = arith.mulf %43, %52 : vector<2x64x256xf32>
    %60 = vector.extract_strided_slice %13 {offsets = [0, 0, 0], sizes = [2, 64, 256], strides = [1, 1, 1]} : vector<2x64x1024xf32> to vector<2x64x256xf32>
    %61 = arith.mulf %60, %59 : vector<2x64x256xf32>
    %cst_16 = arith.constant dense<0.000000e+00> : vector<2x256xf32>
    %62 = vector.multi_reduction <add>, %61, %cst_16 [1] : vector<2x64x256xf32> to vector<2x256xf32>
    %63 = vector.shape_cast %62 : vector<2x256xf32> to vector<2x1x256xf32>
    %64 = vector.extract_strided_slice %13 {offsets = [0, 0, 256], sizes = [2, 64, 256], strides = [1, 1, 1]} : vector<2x64x1024xf32> to vector<2x64x256xf32>
    %65 = arith.mulf %64, %59 : vector<2x64x256xf32>
    %cst_17 = arith.constant dense<0.000000e+00> : vector<2x256xf32>
    %66 = vector.multi_reduction <add>, %65, %cst_17 [1] : vector<2x64x256xf32> to vector<2x256xf32>
    %67 = vector.shape_cast %66 : vector<2x256xf32> to vector<2x1x256xf32>
    %68 = vector.extract_strided_slice %13 {offsets = [0, 0, 512], sizes = [2, 64, 256], strides = [1, 1, 1]} : vector<2x64x1024xf32> to vector<2x64x256xf32>
    %69 = arith.mulf %68, %59 : vector<2x64x256xf32>
    %cst_18 = arith.constant dense<0.000000e+00> : vector<2x256xf32>
    %70 = vector.multi_reduction <add>, %69, %cst_18 [1] : vector<2x64x256xf32> to vector<2x256xf32>
    %71 = vector.shape_cast %70 : vector<2x256xf32> to vector<2x1x256xf32>
    %72 = tpu.concatenate %63, %67, %71 in 2 : vector<2x1x256xf32>, vector<2x1x256xf32>, vector<2x1x256xf32> -> vector<2x1x768xf32>
    %c0_19 = arith.constant 0 : index
    %c0_20 = arith.constant 0 : index
    %c0_21 = arith.constant 0 : index
    %73 = vector.load %arg4[%c0_19, %c0_20, %c0_21] : memref<2x1x768xf32, #tpu.memory_space<vmem>>, vector<2x1x768xf32>
    tpu.vector_store %arg4[%c0_19, %c0_20, %c0_21], %72 {strides = array<i32>} : memref<2x1x768xf32, #tpu.memory_space<vmem>>, vector<2x1x768xf32>,
    %c0_22 = arith.constant 0 : index
    %c0_23 = arith.constant 0 : index
    %c0_24 = arith.constant 0 : index
    %74 = vector.load %arg5[%c0_22, %c0_23, %c0_24] : memref<2x1x256xf32, #tpu.memory_space<vmem>>, vector<2x1x256xf32>
    tpu.vector_store %arg5[%c0_22, %c0_23, %c0_24], %58 {strides = array<i32>} : memref<2x1x256xf32, #tpu.memory_space<vmem>>, vector<2x1x256xf32>,
    %cst_25 = arith.constant 3.000000e-01 : f32
    %75 = vector.broadcast %cst_25 : f32 to vector<2x64x256xf32>
    %76 = arith.cmpf ogt, %43, %75 : vector<2x64x256xf32>
    %77 = arith.extui %76 : vector<2x64x256xi1> to vector<2x64x256xi32>
    %78 = arith.sitofp %77 : vector<2x64x256xi32> to vector<2x64x256xf32>
    %79 = arith.mulf %78, %52 : vector<2x64x256xf32>
    %cst_26 = arith.constant dense<0xFF800000> : vector<2x256xf32>
    %80 = vector.multi_reduction <maximumf>, %79, %cst_26 [1] : vector<2x64x256xf32> to vector<2x256xf32>
    %81 = vector.shape_cast %80 : vector<2x256xf32> to vector<2x1x256xf32>
    %82 = tpu.iota {dimensions = array<i32: 1>} : vector<2x64x256xi32>
    %83 = vector.broadcast %81 : vector<2x1x256xf32> to vector<2x64x256xf32>
    %84 = arith.cmpf oeq, %79, %83 : vector<2x64x256xf32>
    %c64_i32 = arith.constant 64 : i32
    %85 = vector.broadcast %c64_i32 : i32 to vector<2x64x256xi32>
    %86 = arith.select %84, %82, %85 : vector<2x64x256xi1>, vector<2x64x256xi32>
    %cst_27 = arith.constant dense<2147483647> : vector<2x256xi32>
    %87 = vector.multi_reduction <minsi>, %86, %cst_27 [1] : vector<2x64x256xi32> to vector<2x256xi32>
    %88 = vector.shape_cast %87 : vector<2x256xi32> to vector<2x1x256xi32>
    %89 = vector.broadcast %88 : vector<2x1x256xi32> to vector<2x64x256xi32>
    %90 = arith.cmpi eq, %82, %89 : vector<2x64x256xi32>
    %91 = arith.extui %90 : vector<2x64x256xi1> to vector<2x64x256xi32>
    %92 = arith.sitofp %91 : vector<2x64x256xi32> to vector<2x64x256xf32>
    %93 = vector.broadcast %17 : vector<2x64x1xf32> to vector<2x64x256xf32>
    %94 = arith.mulf %92, %93 : vector<2x64x256xf32>
    %cst_28 = arith.constant dense<0.000000e+00> : vector<2x256xf32>
    %95 = vector.multi_reduction <add>, %94, %cst_28 [1] : vector<2x64x256xf32> to vector<2x256xf32>
    %96 = vector.shape_cast %95 : vector<2x256xf32> to vector<2x1x256xf32>
    %cst_29 = arith.constant 3.000000e-01 : f32
    %97 = vector.broadcast %cst_29 : f32 to vector<2x1x256xf32>
    %98 = arith.cmpf ogt, %58, %97 : vector<2x1x256xf32>
    %99 = arith.extui %98 : vector<2x1x256xi1> to vector<2x1x256xi32>
    %100 = arith.sitofp %99 : vector<2x1x256xi32> to vector<2x1x256xf32>
    %101 = arith.mulf %100, %96 : vector<2x1x256xf32>
    %c0_30 = arith.constant 0 : index
    %c0_31 = arith.constant 0 : index
    %c0_32 = arith.constant 0 : index
    %102 = vector.load %arg6[%c0_30, %c0_31, %c0_32] : memref<2x1x256xf32, #tpu.memory_space<vmem>>, vector<2x1x256xf32>
    tpu.vector_store %arg6[%c0_30, %c0_31, %c0_32], %101 {strides = array<i32>} : memref<2x1x256xf32, #tpu.memory_space<vmem>>, vector<2x1x256xf32>,
    return
  }
  func.func @transform_0(%arg0: i32) -> (i32, i32) {
    %c0_i32 = arith.constant 0 : i32
    %c0_i32_0 = arith.constant 0 : i32
    %c0_i32_1 = arith.constant 0 : i32
    return %c0_i32, %c0_i32_0 : i32, i32
  }
  func.func @transform_1(%arg0: i32) -> (i32, i32) {
    %c0_i32 = arith.constant 0 : i32
    %c0_i32_0 = arith.constant 0 : i32
    %c0_i32_1 = arith.constant 0 : i32
    return %c0_i32, %c0_i32_0 : i32, i32
  }
  func.func @transform_2(%arg0: i32) -> (i32, i32) {
    %c0_i32 = arith.constant 0 : i32
    %c0_i32_0 = arith.constant 0 : i32
    %c0_i32_1 = arith.constant 0 : i32
    return %c0_i32, %c0_i32_0 : i32, i32
  }
  func.func @transform_3(%arg0: i32) -> (i32, i32, i32) {
    %c0_i32 = arith.constant 0 : i32
    %c0_i32_0 = arith.constant 0 : i32
    %c0_i32_1 = arith.constant 0 : i32
    %c0_i32_2 = arith.constant 0 : i32
    return %c0_i32, %c0_i32_0, %c0_i32_1 : i32, i32, i32
  }
  func.func @transform_4(%arg0: i32) -> (i32, i32, i32) {
    %c0_i32 = arith.constant 0 : i32
    %c0_i32_0 = arith.constant 0 : i32
    %c0_i32_1 = arith.constant 0 : i32
    %c0_i32_2 = arith.constant 0 : i32
    return %c0_i32, %c0_i32_0, %c0_i32_1 : i32, i32, i32
  }
  func.func @transform_5(%arg0: i32) -> (i32, i32, i32) {
    %c0_i32 = arith.constant 0 : i32
    %c0_i32_0 = arith.constant 0 : i32
    %c0_i32_1 = arith.constant 0 : i32
    %c0_i32_2 = arith.constant 0 : i32
    return %c0_i32, %c0_i32_0, %c0_i32_1 : i32, i32, i32
  }
}

module attributes {stable_mosaic.version = 11 : i64} {
  func.func @_bg_kernel(%arg0: i32, %arg1: memref<2x4xf32, #tpu.memory_space<vmem>>, %arg2: memref<2x16xf32, #tpu.memory_space<vmem>>, %arg3: memref<2x1024xf32, #tpu.memory_space<vmem>>, %arg4: memref<2x4xf32, #tpu.memory_space<vmem>>, %arg5: memref<4x48xbf16, #tpu.memory_space<vmem>>, %arg6: memref<16x48xbf16, #tpu.memory_space<vmem>>, %arg7: memref<1x48xf32, #tpu.memory_space<vmem>>, %arg8: memref<1x48xf32, #tpu.memory_space<vmem>>, %arg9: memref<16x8xbf16, #tpu.memory_space<vmem>>, %arg10: memref<1x8xf32, #tpu.memory_space<vmem>>, %arg11: memref<1024x8xbf16, #tpu.memory_space<vmem>>, %arg12: memref<1x8xf32, #tpu.memory_space<vmem>>, %arg13: memref<4x768xbf16, #tpu.memory_space<vmem>>, %arg14: memref<1x768xf32, #tpu.memory_space<vmem>>, %arg15: memref<2x768xf32, #tpu.memory_space<vmem>>, %arg16: memref<2x64xf32, #tpu.memory_space<vmem>>) attributes {dimension_semantics = [#tpu.dimension_semantics<arbitrary>], iteration_bounds = array<i64: 1>, scalar_prefetch = 0 : i64, scratch_operands = 0 : i64, tpu.core_type = #tpu.core_type<tc>, window_params = [{pipeline_mode = #tpu.pipeline_mode<synchronous>, transform_indices = @transform_0, window_bounds = array<i64: 2, 4>}, {pipeline_mode = #tpu.pipeline_mode<synchronous>, transform_indices = @transform_1, window_bounds = array<i64: 2, 16>}, {pipeline_mode = #tpu.pipeline_mode<synchronous>, transform_indices = @transform_2, window_bounds = array<i64: 2, 1024>}, {pipeline_mode = #tpu.pipeline_mode<synchronous>, transform_indices = @transform_3, window_bounds = array<i64: 2, 4>}, {pipeline_mode = #tpu.pipeline_mode<synchronous>, transform_indices = @transform_4, window_bounds = array<i64: 4, 48>}, {pipeline_mode = #tpu.pipeline_mode<synchronous>, transform_indices = @transform_5, window_bounds = array<i64: 16, 48>}, {pipeline_mode = #tpu.pipeline_mode<synchronous>, transform_indices = @transform_6, window_bounds = array<i64: 1, 48>}, {pipeline_mode = #tpu.pipeline_mode<synchronous>, transform_indices = @transform_7, window_bounds = array<i64: 1, 48>}, {pipeline_mode = #tpu.pipeline_mode<synchronous>, transform_indices = @transform_8, window_bounds = array<i64: 16, 8>}, {pipeline_mode = #tpu.pipeline_mode<synchronous>, transform_indices = @transform_9, window_bounds = array<i64: 1, 8>}, {pipeline_mode = #tpu.pipeline_mode<synchronous>, transform_indices = @transform_10, window_bounds = array<i64: 1024, 8>}, {pipeline_mode = #tpu.pipeline_mode<synchronous>, transform_indices = @transform_11, window_bounds = array<i64: 1, 8>}, {pipeline_mode = #tpu.pipeline_mode<synchronous>, transform_indices = @transform_12, window_bounds = array<i64: 4, 768>}, {pipeline_mode = #tpu.pipeline_mode<synchronous>, transform_indices = @transform_13, window_bounds = array<i64: 1, 768>}, {pipeline_mode = #tpu.pipeline_mode<synchronous>, transform_indices = @transform_14, window_bounds = array<i64: 2, 768>}, {pipeline_mode = #tpu.pipeline_mode<synchronous>, transform_indices = @transform_15, window_bounds = array<i64: 2, 64>}]} {
    %c0 = arith.constant 0 : index
    %c0_0 = arith.constant 0 : index
    %0 = vector.load %arg1[%c0, %c0_0] : memref<2x4xf32, #tpu.memory_space<vmem>>, vector<2x4xf32>
    %c0_1 = arith.constant 0 : index
    %c0_2 = arith.constant 0 : index
    %1 = vector.load %arg2[%c0_1, %c0_2] : memref<2x16xf32, #tpu.memory_space<vmem>>, vector<2x16xf32>
    %2 = arith.truncf %0 : vector<2x4xf32> to vector<2x4xbf16>
    %c0_3 = arith.constant 0 : index
    %c0_4 = arith.constant 0 : index
    %3 = vector.load %arg5[%c0_3, %c0_4] : memref<4x48xbf16, #tpu.memory_space<vmem>>, vector<4x48xbf16>
    %cst = arith.constant dense<0.000000e+00> : vector<2x48xf32>
    %4 = tpu.matmul %2, %3, %cst {dimension_numbers = #tpu.dot_dimension_numbers<[1], [0], [0], [1], [0, 0, 1, 1], [], []>} : vector<2x4xbf16>, vector<4x48xbf16>, vector<2x48xf32> -> vector<2x48xf32>
    %c0_5 = arith.constant 0 : index
    %c0_6 = arith.constant 0 : index
    %5 = vector.load %arg7[%c0_5, %c0_6] : memref<1x48xf32, #tpu.memory_space<vmem>>, vector<1x48xf32>
    %6 = vector.broadcast %5 : vector<1x48xf32> to vector<2x48xf32>
    %7 = arith.addf %4, %6 : vector<2x48xf32>
    %8 = arith.truncf %1 : vector<2x16xf32> to vector<2x16xbf16>
    %c0_7 = arith.constant 0 : index
    %c0_8 = arith.constant 0 : index
    %9 = vector.load %arg6[%c0_7, %c0_8] : memref<16x48xbf16, #tpu.memory_space<vmem>>, vector<16x48xbf16>
    %cst_9 = arith.constant dense<0.000000e+00> : vector<2x48xf32>
    %10 = tpu.matmul %8, %9, %cst_9 {dimension_numbers = #tpu.dot_dimension_numbers<[1], [0], [0], [1], [0, 0, 1, 1], [], []>} : vector<2x16xbf16>, vector<16x48xbf16>, vector<2x48xf32> -> vector<2x48xf32>
    %c0_10 = arith.constant 0 : index
    %c0_11 = arith.constant 0 : index
    %11 = vector.load %arg8[%c0_10, %c0_11] : memref<1x48xf32, #tpu.memory_space<vmem>>, vector<1x48xf32>
    %12 = vector.broadcast %11 : vector<1x48xf32> to vector<2x48xf32>
    %13 = arith.addf %10, %12 : vector<2x48xf32>
    %14 = vector.extract_strided_slice %7 {offsets = [0, 0], sizes = [2, 16], strides = [1, 1]} : vector<2x48xf32> to vector<2x16xf32>
    %15 = vector.extract_strided_slice %13 {offsets = [0, 0], sizes = [2, 16], strides = [1, 1]} : vector<2x48xf32> to vector<2x16xf32>
    %16 = arith.addf %14, %15 : vector<2x16xf32>
    %17 = arith.negf %16 : vector<2x16xf32>
    %18 = math.exp %17 : vector<2x16xf32>
    %cst_12 = arith.constant 1.000000e+00 : f32
    %19 = vector.broadcast %cst_12 : f32 to vector<2x16xf32>
    %20 = arith.addf %19, %18 : vector<2x16xf32>
    %21 = arith.divf %19, %20 : vector<2x16xf32>
    %22 = vector.extract_strided_slice %7 {offsets = [0, 16], sizes = [2, 16], strides = [1, 1]} : vector<2x48xf32> to vector<2x16xf32>
    %23 = vector.extract_strided_slice %13 {offsets = [0, 16], sizes = [2, 16], strides = [1, 1]} : vector<2x48xf32> to vector<2x16xf32>
    %24 = arith.addf %22, %23 : vector<2x16xf32>
    %25 = arith.negf %24 : vector<2x16xf32>
    %26 = math.exp %25 : vector<2x16xf32>
    %cst_13 = arith.constant 1.000000e+00 : f32
    %27 = vector.broadcast %cst_13 : f32 to vector<2x16xf32>
    %28 = arith.addf %27, %26 : vector<2x16xf32>
    %29 = arith.divf %27, %28 : vector<2x16xf32>
    %30 = vector.extract_strided_slice %7 {offsets = [0, 32], sizes = [2, 16], strides = [1, 1]} : vector<2x48xf32> to vector<2x16xf32>
    %31 = vector.extract_strided_slice %13 {offsets = [0, 32], sizes = [2, 16], strides = [1, 1]} : vector<2x48xf32> to vector<2x16xf32>
    %32 = arith.mulf %21, %31 : vector<2x16xf32>
    %33 = arith.addf %30, %32 : vector<2x16xf32>
    %34 = math.tanh %33 : vector<2x16xf32>
    %cst_14 = arith.constant 1.000000e+00 : f32
    %35 = vector.broadcast %cst_14 : f32 to vector<2x16xf32>
    %36 = arith.subf %35, %29 : vector<2x16xf32>
    %37 = arith.mulf %36, %34 : vector<2x16xf32>
    %38 = arith.mulf %29, %1 : vector<2x16xf32>
    %39 = arith.addf %37, %38 : vector<2x16xf32>
    %40 = arith.truncf %39 : vector<2x16xf32> to vector<2x16xbf16>
    %c0_15 = arith.constant 0 : index
    %c0_16 = arith.constant 0 : index
    %41 = vector.load %arg9[%c0_15, %c0_16] : memref<16x8xbf16, #tpu.memory_space<vmem>>, vector<16x8xbf16>
    %cst_17 = arith.constant dense<0.000000e+00> : vector<2x8xf32>
    %42 = tpu.matmul %40, %41, %cst_17 {dimension_numbers = #tpu.dot_dimension_numbers<[1], [0], [0], [1], [0, 0, 1, 1], [], []>} : vector<2x16xbf16>, vector<16x8xbf16>, vector<2x8xf32> -> vector<2x8xf32>
    %c0_18 = arith.constant 0 : index
    %c0_19 = arith.constant 0 : index
    %43 = vector.load %arg10[%c0_18, %c0_19] : memref<1x8xf32, #tpu.memory_space<vmem>>, vector<1x8xf32>
    %44 = vector.broadcast %43 : vector<1x8xf32> to vector<2x8xf32>
    %45 = arith.addf %42, %44 : vector<2x8xf32>
    %c0_20 = arith.constant 0 : index
    %c0_21 = arith.constant 0 : index
    %46 = vector.load %arg3[%c0_20, %c0_21] : memref<2x1024xf32, #tpu.memory_space<vmem>>, vector<2x1024xf32>
    %47 = arith.truncf %46 : vector<2x1024xf32> to vector<2x1024xbf16>
    %c0_22 = arith.constant 0 : index
    %c0_23 = arith.constant 0 : index
    %48 = vector.load %arg11[%c0_22, %c0_23] : memref<1024x8xbf16, #tpu.memory_space<vmem>>, vector<1024x8xbf16>
    %cst_24 = arith.constant dense<0.000000e+00> : vector<2x8xf32>
    %49 = tpu.matmul %47, %48, %cst_24 {dimension_numbers = #tpu.dot_dimension_numbers<[1], [0], [0], [1], [0, 0, 1, 1], [], []>} : vector<2x1024xbf16>, vector<1024x8xbf16>, vector<2x8xf32> -> vector<2x8xf32>
    %c0_25 = arith.constant 0 : index
    %c0_26 = arith.constant 0 : index
    %50 = vector.load %arg12[%c0_25, %c0_26] : memref<1x8xf32, #tpu.memory_space<vmem>>, vector<1x8xf32>
    %51 = vector.broadcast %50 : vector<1x8xf32> to vector<2x8xf32>
    %52 = arith.addf %49, %51 : vector<2x8xf32>
    %53 = vector.extract_strided_slice %52 {offsets = [0, 0], sizes = [2, 4], strides = [1, 1]} : vector<2x8xf32> to vector<2x4xf32>
    %54 = vector.extract_strided_slice %52 {offsets = [0, 4], sizes = [2, 4], strides = [1, 1]} : vector<2x8xf32> to vector<2x4xf32>
    %cst_27 = arith.constant 0.000000e+00 : f32
    %55 = vector.broadcast %cst_27 : f32 to vector<2x4xf32>
    %56 = arith.maximumf %54, %55 : vector<2x4xf32>
    %57 = vector.broadcast %cst_27 : f32 to vector<2x4xf32>
    %58 = arith.subf %54, %57 : vector<2x4xf32>
    %59 = arith.cmpf one, %58, %58 : vector<2x4xf32>
    %60 = vector.broadcast %cst_27 : f32 to vector<2x4xf32>
    %61 = arith.addf %54, %60 : vector<2x4xf32>
    %62 = math.absf %58 : vector<2x4xf32>
    %cst_28 = arith.constant 0.000000e+00 : f32
    %63 = vector.broadcast %cst_28 : f32 to vector<2x4xf32>
    %64 = arith.subf %63, %62 : vector<2x4xf32>
    %65 = math.exp %64 : vector<2x4xf32>
    %66 = math.log1p %65 : vector<2x4xf32>
    %67 = arith.addf %56, %66 : vector<2x4xf32>
    %68 = arith.select %59, %61, %67 : vector<2x4xi1>, vector<2x4xf32>
    %c0_29 = arith.constant 0 : index
    %c0_30 = arith.constant 0 : index
    %69 = vector.load %arg4[%c0_29, %c0_30] : memref<2x4xf32, #tpu.memory_space<vmem>>, vector<2x4xf32>
    %70 = arith.mulf %68, %69 : vector<2x4xf32>
    %71 = arith.addf %53, %70 : vector<2x4xf32>
    %72 = arith.truncf %71 : vector<2x4xf32> to vector<2x4xbf16>
    %c0_31 = arith.constant 0 : index
    %c0_32 = arith.constant 0 : index
    %73 = vector.load %arg13[%c0_31, %c0_32] : memref<4x768xbf16, #tpu.memory_space<vmem>>, vector<4x768xbf16>
    %cst_33 = arith.constant dense<0.000000e+00> : vector<2x768xf32>
    %74 = tpu.matmul %72, %73, %cst_33 {dimension_numbers = #tpu.dot_dimension_numbers<[1], [0], [0], [1], [0, 0, 1, 1], [], []>} : vector<2x4xbf16>, vector<4x768xbf16>, vector<2x768xf32> -> vector<2x768xf32>
    %c0_34 = arith.constant 0 : index
    %c0_35 = arith.constant 0 : index
    %75 = vector.load %arg14[%c0_34, %c0_35] : memref<1x768xf32, #tpu.memory_space<vmem>>, vector<1x768xf32>
    %76 = vector.broadcast %75 : vector<1x768xf32> to vector<2x768xf32>
    %77 = arith.addf %74, %76 : vector<2x768xf32>
    %78 = arith.negf %77 : vector<2x768xf32>
    %79 = math.exp %78 : vector<2x768xf32>
    %cst_36 = arith.constant 1.000000e+00 : f32
    %80 = vector.broadcast %cst_36 : f32 to vector<2x768xf32>
    %81 = arith.addf %80, %79 : vector<2x768xf32>
    %82 = arith.divf %80, %81 : vector<2x768xf32>
    %c0_37 = arith.constant 0 : index
    %c0_38 = arith.constant 0 : index
    %83 = vector.load %arg15[%c0_37, %c0_38] : memref<2x768xf32, #tpu.memory_space<vmem>>, vector<2x768xf32>
    tpu.vector_store %arg15[%c0_37, %c0_38], %82 {strides = array<i32>} : memref<2x768xf32, #tpu.memory_space<vmem>>, vector<2x768xf32>,
    %cst_39 = arith.constant 0.000000e+00 : f32
    %84 = vector.broadcast %cst_39 : f32 to vector<2x28xf32>
    %85 = tpu.concatenate %39, %45, %53, %68, %71, %84 in 1 : vector<2x16xf32>, vector<2x8xf32>, vector<2x4xf32>, vector<2x4xf32>, vector<2x4xf32>, vector<2x28xf32> -> vector<2x64xf32>
    %c0_40 = arith.constant 0 : index
    %c0_41 = arith.constant 0 : index
    %86 = vector.load %arg16[%c0_40, %c0_41] : memref<2x64xf32, #tpu.memory_space<vmem>>, vector<2x64xf32>
    tpu.vector_store %arg16[%c0_40, %c0_41], %85 {strides = array<i32>} : memref<2x64xf32, #tpu.memory_space<vmem>>, vector<2x64xf32>,
    return
  }
  func.func @transform_0(%arg0: i32) -> (i32, i32) {
    %c0_i32 = arith.constant 0 : i32
    %c0_i32_0 = arith.constant 0 : i32
    %c0_i32_1 = arith.constant 0 : i32
    return %c0_i32, %c0_i32_0 : i32, i32
  }
  func.func @transform_1(%arg0: i32) -> (i32, i32) {
    %c0_i32 = arith.constant 0 : i32
    %c0_i32_0 = arith.constant 0 : i32
    %c0_i32_1 = arith.constant 0 : i32
    return %c0_i32, %c0_i32_0 : i32, i32
  }
  func.func @transform_2(%arg0: i32) -> (i32, i32) {
    %c0_i32 = arith.constant 0 : i32
    %c0_i32_0 = arith.constant 0 : i32
    %c0_i32_1 = arith.constant 0 : i32
    return %c0_i32, %c0_i32_0 : i32, i32
  }
  func.func @transform_3(%arg0: i32) -> (i32, i32) {
    %c0_i32 = arith.constant 0 : i32
    %c0_i32_0 = arith.constant 0 : i32
    %c0_i32_1 = arith.constant 0 : i32
    return %c0_i32, %c0_i32_0 : i32, i32
  }
  func.func @transform_4(%arg0: i32) -> (i32, i32) {
    %c0_i32 = arith.constant 0 : i32
    %c0_i32_0 = arith.constant 0 : i32
    %c0_i32_1 = arith.constant 0 : i32
    return %c0_i32, %c0_i32_0 : i32, i32
  }
  func.func @transform_5(%arg0: i32) -> (i32, i32) {
    %c0_i32 = arith.constant 0 : i32
    %c0_i32_0 = arith.constant 0 : i32
    %c0_i32_1 = arith.constant 0 : i32
    return %c0_i32, %c0_i32_0 : i32, i32
  }
  func.func @transform_6(%arg0: i32) -> (i32, i32) {
    %c0_i32 = arith.constant 0 : i32
    %c0_i32_0 = arith.constant 0 : i32
    %c0_i32_1 = arith.constant 0 : i32
    return %c0_i32, %c0_i32_0 : i32, i32
  }
  func.func @transform_7(%arg0: i32) -> (i32, i32) {
    %c0_i32 = arith.constant 0 : i32
    %c0_i32_0 = arith.constant 0 : i32
    %c0_i32_1 = arith.constant 0 : i32
    return %c0_i32, %c0_i32_0 : i32, i32
  }
  func.func @transform_8(%arg0: i32) -> (i32, i32) {
    %c0_i32 = arith.constant 0 : i32
    %c0_i32_0 = arith.constant 0 : i32
    %c0_i32_1 = arith.constant 0 : i32
    return %c0_i32, %c0_i32_0 : i32, i32
  }
  func.func @transform_9(%arg0: i32) -> (i32, i32) {
    %c0_i32 = arith.constant 0 : i32
    %c0_i32_0 = arith.constant 0 : i32
    %c0_i32_1 = arith.constant 0 : i32
    return %c0_i32, %c0_i32_0 : i32, i32
  }
  func.func @transform_10(%arg0: i32) -> (i32, i32) {
    %c0_i32 = arith.constant 0 : i32
    %c0_i32_0 = arith.constant 0 : i32
    %c0_i32_1 = arith.constant 0 : i32
    return %c0_i32, %c0_i32_0 : i32, i32
  }
  func.func @transform_11(%arg0: i32) -> (i32, i32) {
    %c0_i32 = arith.constant 0 : i32
    %c0_i32_0 = arith.constant 0 : i32
    %c0_i32_1 = arith.constant 0 : i32
    return %c0_i32, %c0_i32_0 : i32, i32
  }
  func.func @transform_12(%arg0: i32) -> (i32, i32) {
    %c0_i32 = arith.constant 0 : i32
    %c0_i32_0 = arith.constant 0 : i32
    %c0_i32_1 = arith.constant 0 : i32
    return %c0_i32, %c0_i32_0 : i32, i32
  }
  func.func @transform_13(%arg0: i32) -> (i32, i32) {
    %c0_i32 = arith.constant 0 : i32
    %c0_i32_0 = arith.constant 0 : i32
    %c0_i32_1 = arith.constant 0 : i32
    return %c0_i32, %c0_i32_0 : i32, i32
  }
  func.func @transform_14(%arg0: i32) -> (i32, i32) {
    %c0_i32 = arith.constant 0 : i32
    %c0_i32_0 = arith.constant 0 : i32
    %c0_i32_1 = arith.constant 0 : i32
    return %c0_i32, %c0_i32_0 : i32, i32
  }
  func.func @transform_15(%arg0: i32) -> (i32, i32) {
    %c0_i32 = arith.constant 0 : i32
    %c0_i32_0 = arith.constant 0 : i32
    %c0_i32_1 = arith.constant 0 : i32
    return %c0_i32, %c0_i32_0 : i32, i32
  }
}

</mosaic_0001>

<llo_original>
// kernel: custom-call.9
$region0: #{custom-call.9}
  %s0 = inlined_call_operand.vmem [shape: f32[3,2,768], index: 0, kind: output, shape index: {}]

// kernel: custom-call.8
$region0: #{custom-call.8}
  %s0 = inlined_call_operand.vmem [shape: f32[3,2,256], index: 0, kind: output, shape index: {}]

// kernel: custom-call.1
$region0: #{custom-call.1}
  %s0 = inlined_call_operand.vmem [shape: f32[3,2], index: 0, kind: output, shape index: {}]

// kernel: custom-call
$region0: #{custom-call}
  %s0 = inlined_call_operand.vmem [shape: f32[2,16], index: 0, kind: output, shape index: {}]

// kernel: _scalor_forward_impl.1
$region0: #{_scalor_forward_impl.1}
  #allocation0 [shape = 'u32[]', space=smem, size = 0x4, offset = 0x4, fixed_abs, tag = 'smem constant byte address 0x4 - core index']
  #allocation1 [shape = 'u32[72,128]{1,0:T(1,128)}', space=vmem, size = 0x9000, scoped, tag = 'internal scratch']
  %s0 = inlined_call_operand.vmem [shape: f32[96,48], index: 0, kind: input, shape index: {}]
  %s1 = inlined_call_operand.vmem [shape: bf16[48,128], index: 1, kind: input, shape index: {}]
  %s2 = inlined_call_operand.vmem [shape: f32[1,128], index: 2, kind: input, shape index: {}]
  %s3 = inlined_call_operand.vmem [shape: f32[96,128], index: 3, kind: output, shape index: {}]
  %s4 = sld [smem:[#allocation0]]
  $region22: #{_scalor_forward_impl.1} parent=0
    _
  %s6 = ssub.s32 1, %s4
  %s7 = scalar_select 0, %s6, %s4
  // Predicated region
  $region2: #{_scalor_forward_impl.1} parent=0 // pred_check
    _
  $region3: #{_scalor_forward_impl.1} parent=0 // pred_check_branch
    %9 = sbr.rel (0) target = $region5
  $region4: #{_scalor_forward_impl.1} parent=0 // pred_region
    _
  $region5: #{_scalor_forward_impl.1} parent=0 // pred_fallthru
    _
  // Predicated region
  $region6: #{_scalor_forward_impl.1} parent=0 // pred_check
    _
  $region7: #{_scalor_forward_impl.1} parent=0 // pred_check_branch
    %11 = sbr.rel (0) target = $region9
  $region8: #{_scalor_forward_impl.1} parent=0 // pred_region
    _
  $region9: #{_scalor_forward_impl.1} parent=0 // pred_fallthru
    _
  // Predicated region
  $region10: #{_scalor_forward_impl.1} parent=0 // pred_check
    _
  $region11: #{_scalor_forward_impl.1} parent=0 // pred_check_branch
    %13 = sbr.rel (0) target = $region13
  $region12: #{_scalor_forward_impl.1} parent=0 // pred_region
    _
  $region13: #{_scalor_forward_impl.1} parent=0 // pred_fallthru
    _
  %v15 = vld [vmem:[%s0] sm:$0xff]
  %v16 = vld [vmem:[%s0 + $0x8] sm:$0xff]
  %v17 = vld [vmem:[%s0 + $0x10] sm:$0xff]
  %v18 = vld [vmem:[%s0 + $0x18] sm:$0xff]
  %v19 = vld [vmem:[%s0 + $0x20] sm:$0xff]
  %v20 = vld [vmem:[%s0 + $0x28] sm:$0xff]
  %v21 = vld [vmem:[%s0 + $0x30] sm:$0xff]
  %v22 = vld [vmem:[%s0 + $0x38] sm:$0xff]
  %v23 = vld [vmem:[%s0 + $0x40] sm:$0xff]
  %v24 = vld [vmem:[%s0 + $0x48] sm:$0xff]
  %v25 = vld [vmem:[%s0 + $0x50] sm:$0xff]
  %v26 = vld [vmem:[%s0 + $0x58] sm:$0xff]
  %v27 = vpack.c.bf16 %v16, %v15
  %v28 = vpack.c.bf16 %v18, %v17
  %v29 = vpack.c.bf16 %v20, %v19
  %v30 = vpack.c.bf16 %v22, %v21
  %v31 = vpack.c.bf16 %v24, %v23
  %v32 = vpack.c.bf16 %v26, %v25
  %v33 = vld [vmem:[%s1] sm:$0xf]
  %v34 = vld [vmem:[%s1 + $0x4] sm:$0xf]
  %v35 = vld [vmem:[%s1 + $0x8] sm:$0xf]
  %v36 = vld [vmem:[%s1 + $0xc] sm:$0xf]
  %v37 = vld [vmem:[%s1 + $0x10] sm:$0xf]
  %v38 = vld [vmem:[%s1 + $0x14] sm:$0xf]
  %v39 = vld [vmem:[%s2] sm:$0x1]
  %v41 = vperm.slane %v39, 0
  %v49 = vunpack.c.l.b16 %v33
  %v50 = vunpack.c.l.b16 %v34
  %v51 = vunpack.c.l.b16 %v35
  %v52 = vunpack.c.l.b16 %v36
  %v53 = vunpack.c.l.b16 %v37
  %v54 = vunpack.c.l.b16 %v38
  %v55 = vpack.c.b16 %v50, %v49
  %v56 = vpack.c.b16 %v52, %v51
  %v57 = vpack.c.b16 %v54, %v53
  %vm61 = vcmask 392192
  %v63 = vsel %vm61, %v27, 0
  %v66 = vsel %vm61, %v28, 0
  %v69 = vsel %vm61, %v29, 0
  %v72 = vsel %vm61, %v30, 0
  %v75 = vsel %vm61, %v31, 0
  %v78 = vsel %vm61, %v32, 0
  %80 = vmatpush.bf16.msra.mxu0 0
  %81 = vmatpush.bf16.msra.mxu0 0
  %82 = vmatpush.bf16.msra.mxu0 0
  %83 = vmatpush.bf16.msra.mxu0 0
  %84 = vmatpush.bf16.msra.mxu0 0
  %85 = vmatpush.bf16.msra.mxu0 %v57
  %86 = vmatpush.bf16.msra.mxu0 %v56
  %87 = vmatpush.bf16.msra.mxu0 %v55
  %88 = vmatmul.bf16.gmra.mxu0 %v63
  %v89 = vpop.f32.mrf.mxu0
  %v90 = vadd.f32 %v41, %v89
  %v91 = vpop.f32.mrf.mxu0
  %v92 = vadd.f32 %v41, %v91
  %93 = vmatmul.bf16.gmra.mxu0 %v66
  %v94 = vpop.f32.mrf.mxu0
  %v95 = vadd.f32 %v41, %v94
  %v96 = vpop.f32.mrf.mxu0
  %v97 = vadd.f32 %v41, %v96
  %98 = vmatmul.bf16.gmra.mxu0 %v69
  %v99 = vpop.f32.mrf.mxu0
  %v100 = vadd.f32 %v41, %v99
  %v101 = vpop.f32.mrf.mxu0
  %v102 = vadd.f32 %v41, %v101
  %103 = vmatmul.bf16.gmra.mxu0 %v72
  %v104 = vpop.f32.mrf.mxu0
  %v105 = vadd.f32 %v41, %v104
  %v106 = vpop.f32.mrf.mxu0
  %v107 = vadd.f32 %v41, %v106
  %108 = vmatmul.bf16.gmra.mxu0 %v75
  %v109 = vpop.f32.mrf.mxu0
  %v110 = vadd.f32 %v41, %v109
  %v111 = vpop.f32.mrf.mxu0
  %v112 = vadd.f32 %v41, %v111
  %113 = vmatmul.bf16.gmra.mxu0 %v78
  %v114 = vpop.f32.mrf.mxu0
  %v115 = vadd.f32 %v41, %v114
  %v116 = vpop.f32.mrf.mxu0
  %v117 = vadd.f32 %v41, %v116
  %118 = vdwg.mxu0
  %v119 = vmax.f32 %v90, 0.0
  %v120 = vmax.f32 %v92, 0.0
  %v121 = vmax.f32 %v95, 0.0
  %v122 = vmax.f32 %v97, 0.0
  %v123 = vmax.f32 %v100, 0.0
  %v124 = vmax.f32 %v102, 0.0
  %v125 = vmax.f32 %v105, 0.0
  %v126 = vmax.f32 %v107, 0.0
  %v127 = vmax.f32 %v110, 0.0
  %v128 = vmax.f32 %v112, 0.0
  %v129 = vmax.f32 %v115, 0.0
  %v130 = vmax.f32 %v117, 0.0
  %131 = vst [vmem:[%s3] sm:$0xff] %v119
  %132 = vst [vmem:[%s3 + $0x8] sm:$0xff] %v120
  %133 = vst [vmem:[%s3 + $0x10] sm:$0xff] %v121
  %134 = vst [vmem:[%s3 + $0x18] sm:$0xff] %v122
  %135 = vst [vmem:[%s3 + $0x20] sm:$0xff] %v123
  %136 = vst [vmem:[%s3 + $0x28] sm:$0xff] %v124
  %137 = vst [vmem:[%s3 + $0x30] sm:$0xff] %v125
  %138 = vst [vmem:[%s3 + $0x38] sm:$0xff] %v126
  %139 = vst [vmem:[%s3 + $0x40] sm:$0xff] %v127
  %140 = vst [vmem:[%s3 + $0x48] sm:$0xff] %v128
  %141 = vst [vmem:[%s3 + $0x50] sm:$0xff] %v129
  %142 = vst [vmem:[%s3 + $0x58] sm:$0xff] %v130
  // Predicated region
  $region14: #{_scalor_forward_impl.1} parent=0 // pred_check
    _
  $region15: #{_scalor_forward_impl.1} parent=0 // pred_check_branch
    %144 = sbr.rel (0) target = $region17
  $region16: #{_scalor_forward_impl.1} parent=0 // pred_region
    _
  $region17: #{_scalor_forward_impl.1} parent=0 // pred_fallthru
    _
  // Predicated region
  $region18: #{_scalor_forward_impl.1} parent=0 // pred_check
    _
  $region19: #{_scalor_forward_impl.1} parent=0 // pred_check_branch
    %146 = sbr.rel (0) target = $region21
  $region20: #{_scalor_forward_impl.1} parent=0 // pred_region
    _
  $region21: #{_scalor_forward_impl.1} parent=0 // pred_fallthru
    _

// kernel: closed_call.45
$region0: #{closed_call.45}
  #allocation0 [shape = 'u32[]', space=smem, size = 0x4, offset = 0x4, fixed_abs, tag = 'smem constant byte address 0x4 - core index']
  #allocation1 [shape = 'u32[72,128]{1,0:T(1,128)}', space=vmem, size = 0x9000, scoped, tag = 'internal scratch']
  %s0 = inlined_call_operand.vmem [shape: f32[96,64], index: 0, kind: input, shape index: {}]
  %s1 = inlined_call_operand.vmem [shape: f32[32,32], index: 1, kind: input, shape index: {}]
  %s2 = inlined_call_operand.vmem [shape: bf16[16,48], index: 2, kind: input, shape index: {}]
  %s3 = inlined_call_operand.vmem [shape: bf16[16,48], index: 3, kind: input, shape index: {}]
  %s4 = inlined_call_operand.vmem [shape: f32[1,48], index: 4, kind: input, shape index: {}]
  %s5 = inlined_call_operand.vmem [shape: f32[1,48], index: 5, kind: input, shape index: {}]
  %s6 = inlined_call_operand.vmem [shape: bf16[16,128], index: 6, kind: input, shape index: {}]
  %s7 = inlined_call_operand.vmem [shape: f32[1,128], index: 7, kind: input, shape index: {}]
  %s8 = inlined_call_operand.vmem [shape: bf16[8,48], index: 8, kind: input, shape index: {}]
  %s9 = inlined_call_operand.vmem [shape: bf16[16,48], index: 9, kind: input, shape index: {}]
  %s10 = inlined_call_operand.vmem [shape: f32[1,48], index: 10, kind: input, shape index: {}]
  %s11 = inlined_call_operand.vmem [shape: f32[1,48], index: 11, kind: input, shape index: {}]
  %s12 = inlined_call_operand.vmem [shape: bf16[16,16], index: 12, kind: input, shape index: {}]
  %s13 = inlined_call_operand.vmem [shape: f32[1,16], index: 13, kind: input, shape index: {}]
  %s14 = inlined_call_operand.vmem [shape: bf16[32,128], index: 14, kind: input, shape index: {}]
  %s15 = inlined_call_operand.vmem [shape: f32[1,128], index: 15, kind: input, shape index: {}]
  %s16 = inlined_call_operand.vmem [shape: f32[96,128], index: 16, kind: output, shape index: {0}]
  %s17 = inlined_call_operand.vmem [shape: f32[96,128], index: 17, kind: output, shape index: {1}]
  %s18 = inlined_call_operand.vmem [shape: f32[32,128], index: 18, kind: output, shape index: {2}]
  %19 = xla_tuple %s16, %s17, %s18
  %s20 = sld [smem:[#allocation0]]
  $region90: #{closed_call.45} parent=0
    _
  %s22 = ssub.s32 1, %s20
  %s23 = scalar_select 0, %s22, %s20
  // Predicated region
  $region2: #{closed_call.45} parent=0 // pred_check
    _
  $region3: #{closed_call.45} parent=0 // pred_check_branch
    %25 = sbr.rel (0) target = $region5
  $region4: #{closed_call.45} parent=0 // pred_region
    _
  $region5: #{closed_call.45} parent=0 // pred_fallthru
    _
  // Predicated region
  $region6: #{closed_call.45} parent=0 // pred_check
    _
  $region7: #{closed_call.45} parent=0 // pred_check_branch
    %27 = sbr.rel (0) target = $region9
  $region8: #{closed_call.45} parent=0 // pred_region
    _
  $region9: #{closed_call.45} parent=0 // pred_fallthru
    _
  // Predicated region
  $region10: #{closed_call.45} parent=0 // pred_check
    _
  $region11: #{closed_call.45} parent=0 // pred_check_branch
    %29 = sbr.rel (0) target = $region13
  $region12: #{closed_call.45} parent=0 // pred_region
    _
  $region13: #{closed_call.45} parent=0 // pred_fallthru
    _
  // Predicated region
  $region14: #{closed_call.45} parent=0 // pred_check
    _
  $region15: #{closed_call.45} parent=0 // pred_check_branch
    %31 = sbr.rel (0) target = $region17
  $region16: #{closed_call.45} parent=0 // pred_region
    _
  $region17: #{closed_call.45} parent=0 // pred_fallthru
    _
  // Predicated region
  $region18: #{closed_call.45} parent=0 // pred_check
    _
  $region19: #{closed_call.45} parent=0 // pred_check_branch
    %33 = sbr.rel (0) target = $region21
  $region20: #{closed_call.45} parent=0 // pred_region
    _
  $region21: #{closed_call.45} parent=0 // pred_fallthru
    _
  // Predicated region
  $region22: #{closed_call.45} parent=0 // pred_check
    _
  $region23: #{closed_call.45} parent=0 // pred_check_branch
    %35 = sbr.rel (0) target = $region25
  $region24: #{closed_call.45} parent=0 // pred_region
    _
  $region25: #{closed_call.45} parent=0 // pred_fallthru
    _
  // Predicated region
  $region26: #{closed_call.45} parent=0 // pred_check
    _
  $region27: #{closed_call.45} parent=0 // pred_check_branch
    %37 = sbr.rel (0) target = $region29
  $region28: #{closed_call.45} parent=0 // pred_region
    _
  $region29: #{closed_call.45} parent=0 // pred_fallthru
    _
  // Predicated region
  $region30: #{closed_call.45} parent=0 // pred_check
    _
  $region31: #{closed_call.45} parent=0 // pred_check_branch
    %39 = sbr.rel (0) target = $region33
  $region32: #{closed_call.45} parent=0 // pred_region
    _
  $region33: #{closed_call.45} parent=0 // pred_fallthru
    _
  // Predicated region
  $region34: #{closed_call.45} parent=0 // pred_check
    _
  $region35: #{closed_call.45} parent=0 // pred_check_branch
    %41 = sbr.rel (0) target = $region37
  $region36: #{closed_call.45} parent=0 // pred_region
    _
  $region37: #{closed_call.45} parent=0 // pred_fallthru
    _
  // Predicated region
  $region38: #{closed_call.45} parent=0 // pred_check
    _
  $region39: #{closed_call.45} parent=0 // pred_check_branch
    %43 = sbr.rel (0) target = $region41
  $region40: #{closed_call.45} parent=0 // pred_region
    _
  $region41: #{closed_call.45} parent=0 // pred_fallthru
    _
  // Predicated region
  $region42: #{closed_call.45} parent=0 // pred_check
    _
  $region43: #{closed_call.45} parent=0 // pred_check_branch
    %45 = sbr.rel (0) target = $region45
  $region44: #{closed_call.45} parent=0 // pred_region
    _
  $region45: #{closed_call.45} parent=0 // pred_fallthru
    _
  // Predicated region
  $region46: #{closed_call.45} parent=0 // pred_check
    _
  $region47: #{closed_call.45} parent=0 // pred_check_branch
    %47 = sbr.rel (0) target = $region49
  $region48: #{closed_call.45} parent=0 // pred_region
    _
  $region49: #{closed_call.45} parent=0 // pred_fallthru
    _
  // Predicated region
  $region50: #{closed_call.45} parent=0 // pred_check
    _
  $region51: #{closed_call.45} parent=0 // pred_check_branch
    %49 = sbr.rel (0) target = $region53
  $region52: #{closed_call.45} parent=0 // pred_region
    _
  $region53: #{closed_call.45} parent=0 // pred_fallthru
    _
  // Predicated region
  $region54: #{closed_call.45} parent=0 // pred_check
    _
  $region55: #{closed_call.45} parent=0 // pred_check_branch
    %51 = sbr.rel (0) target = $region57
  $region56: #{closed_call.45} parent=0 // pred_region
    _
  $region57: #{closed_call.45} parent=0 // pred_fallthru
    _
  // Predicated region
  $region58: #{closed_call.45} parent=0 // pred_check
    _
  $region59: #{closed_call.45} parent=0 // pred_check_branch
    %53 = sbr.rel (0) target = $region61
  $region60: #{closed_call.45} parent=0 // pred_region
    _
  $region61: #{closed_call.45} parent=0 // pred_fallthru
    _
  // Predicated region
  $region62: #{closed_call.45} parent=0 // pred_check
    _
  $region63: #{closed_call.45} parent=0 // pred_check_branch
    %55 = sbr.rel (0) target = $region65
  $region64: #{closed_call.45} parent=0 // pred_region
    _
  $region65: #{closed_call.45} parent=0 // pred_fallthru
    _
  %v57 = vld [vmem:[%s0] sm:$0xff]
  %v58 = vld [vmem:[%s0 + $0x8] sm:$0xff]
  %v59 = vld [vmem:[%s0 + $0x10] sm:$0xff]
  %v60 = vld [vmem:[%s0 + $0x18] sm:$0xff]
  %v61 = vld [vmem:[%s0 + $0x20] sm:$0xff]
  %v62 = vld [vmem:[%s0 + $0x28] sm:$0xff]
  %v63 = vld [vmem:[%s0 + $0x30] sm:$0xff]
  %v64 = vld [vmem:[%s0 + $0x38] sm:$0xff]
  %v65 = vld [vmem:[%s0 + $0x40] sm:$0xff]
  %v66 = vld [vmem:[%s0 + $0x48] sm:$0xff]
  %v67 = vld [vmem:[%s0 + $0x50] sm:$0xff]
  %v68 = vld [vmem:[%s0 + $0x58] sm:$0xff]
  %v69 = vpack.c.bf16 %v58, %v57
  %v70 = vpack.c.bf16 %v60, %v59
  %v71 = vpack.c.bf16 %v62, %v61
  %v72 = vpack.c.bf16 %v64, %v63
  %v73 = vpack.c.bf16 %v66, %v65
  %v74 = vpack.c.bf16 %v68, %v67
  %v75 = vld [vmem:[%s2] sm:$0xf]
  %v76 = vld [vmem:[%s2 + $0x4] sm:$0xf]
  %v77 = vld [vmem:[%s4] sm:$0x1]
  %v79 = vperm.slane %v77, 0
  %v83 = vunpack.c.l.b16 %v75
  %v84 = vunpack.c.l.b16 %v76
  %v85 = vpack.c.b16 %v84, %v83
  %vm87 = vcmask 130048
  %v89 = vsel %vm87, %v69, 0
  %v92 = vsel %vm87, %v70, 0
  %v95 = vsel %vm87, %v71, 0
  %v98 = vsel %vm87, %v72, 0
  %v101 = vsel %vm87, %v73, 0
  %v104 = vsel %vm87, %v74, 0
  %106 = vmatpush.bf16.msra.mxu0 0
  %107 = vmatpush.bf16.msra.mxu0 0
  %108 = vmatpush.bf16.msra.mxu0 0
  %109 = vmatpush.bf16.msra.mxu0 0
  %110 = vmatpush.bf16.msra.mxu0 0
  %111 = vmatpush.bf16.msra.mxu0 0
  %112 = vmatpush.bf16.msra.mxu0 0
  %113 = vmatpush.bf16.msra.mxu0 %v85
  %114 = vmatmul.bf16.gmra.mxu0 %v89
  %v115 = vpop.f32.mrf.mxu0
  %v116 = vadd.f32 %v79, %v115
  %v117 = vpop.f32.mrf.mxu0
  %v118 = vadd.f32 %v79, %v117
  %119 = vmatmul.bf16.gmra.mxu0 %v92
  %v120 = vpop.f32.mrf.mxu0
  %v121 = vadd.f32 %v79, %v120
  %v122 = vpop.f32.mrf.mxu0
  %v123 = vadd.f32 %v79, %v122
  %124 = vmatmul.bf16.gmra.mxu0 %v95
  %v125 = vpop.f32.mrf.mxu0
  %v126 = vadd.f32 %v79, %v125
  %v127 = vpop.f32.mrf.mxu0
  %v128 = vadd.f32 %v79, %v127
  %129 = vmatmul.bf16.gmra.mxu0 %v98
  %v130 = vpop.f32.mrf.mxu0
  %v131 = vadd.f32 %v79, %v130
  %v132 = vpop.f32.mrf.mxu0
  %v133 = vadd.f32 %v79, %v132
  %134 = vmatmul.bf16.gmra.mxu0 %v101
  %v135 = vpop.f32.mrf.mxu0
  %v136 = vadd.f32 %v79, %v135
  %v137 = vpop.f32.mrf.mxu0
  %v138 = vadd.f32 %v79, %v137
  %139 = vmatmul.bf16.gmra.mxu0 %v104
  %v140 = vpop.f32.mrf.mxu0
  %v141 = vadd.f32 %v79, %v140
  %v142 = vpop.f32.mrf.mxu0
  %v143 = vadd.f32 %v79, %v142
  %144 = vdwg.mxu0
  %v145 = vld [vmem:[%s3] sm:$0xf]
  %v146 = vld [vmem:[%s3 + $0x4] sm:$0xf]
  %v147 = vld [vmem:[%s5] sm:$0x1]
  %v149 = vperm.slane %v147, 0
  %157 = vrot.lane.b32.xlu0 %v69, 112
  %v158 = vpop.permute.xlu0 %157
  %159 = vrot.lane.b32.xlu0 %v70, 112
  %v160 = vpop.permute.xlu0 %159
  %161 = vrot.lane.b32.xlu0 %v71, 112
  %v162 = vpop.permute.xlu0 %161
  %163 = vrot.lane.b32.xlu0 %v72, 112
  %v164 = vpop.permute.xlu0 %163
  %165 = vrot.lane.b32.xlu0 %v73, 112
  %v166 = vpop.permute.xlu0 %165
  %167 = vrot.lane.b32.xlu0 %v74, 112
  %v168 = vpop.permute.xlu0 %167
  %v171 = vunpack.c.l.b16 %v145
  %v172 = vunpack.c.l.b16 %v146
  %v173 = vpack.c.b16 %v172, %v171
  %v176 = vsel %vm87, %v158, 0
  %v179 = vsel %vm87, %v160, 0
  %v182 = vsel %vm87, %v162, 0
  %v185 = vsel %vm87, %v164, 0
  %v188 = vsel %vm87, %v166, 0
  %v191 = vsel %vm87, %v168, 0
  %193 = vmatpush.bf16.msra.mxu0 0
  %194 = vmatpush.bf16.msra.mxu0 0
  %195 = vmatpush.bf16.msra.mxu0 0
  %196 = vmatpush.bf16.msra.mxu0 0
  %197 = vmatpush.bf16.msra.mxu0 0
  %198 = vmatpush.bf16.msra.mxu0 0
  %199 = vmatpush.bf16.msra.mxu0 0
  %200 = vmatpush.bf16.msra.mxu0 %v173
  %201 = vmatmul.bf16.gmra.mxu0 %v176
  %v202 = vpop.f32.mrf.mxu0
  %v203 = vadd.f32 %v149, %v202
  %v204 = vpop.f32.mrf.mxu0
  %v205 = vadd.f32 %v149, %v204
  %206 = vmatmul.bf16.gmra.mxu0 %v179
  %v207 = vpop.f32.mrf.mxu0
  %v208 = vadd.f32 %v149, %v207
  %v209 = vpop.f32.mrf.mxu0
  %v210 = vadd.f32 %v149, %v209
  %211 = vmatmul.bf16.gmra.mxu0 %v182
  %v212 = vpop.f32.mrf.mxu0
  %v213 = vadd.f32 %v149, %v212
  %v214 = vpop.f32.mrf.mxu0
  %v215 = vadd.f32 %v149, %v214
  %216 = vmatmul.bf16.gmra.mxu0 %v185
  %v217 = vpop.f32.mrf.mxu0
  %v218 = vadd.f32 %v149, %v217
  %v219 = vpop.f32.mrf.mxu0
  %v220 = vadd.f32 %v149, %v219
  %221 = vmatmul.bf16.gmra.mxu0 %v188
  %v222 = vpop.f32.mrf.mxu0
  %v223 = vadd.f32 %v149, %v222
  %v224 = vpop.f32.mrf.mxu0
  %v225 = vadd.f32 %v149, %v224
  %226 = vmatmul.bf16.gmra.mxu0 %v191
  %v227 = vpop.f32.mrf.mxu0
  %v228 = vadd.f32 %v149, %v227
  %v229 = vpop.f32.mrf.mxu0
  %v230 = vadd.f32 %v149, %v229
  %231 = vdwg.mxu0
  %v232 = vadd.f32 %v116, %v203
  %v233 = vadd.f32 %v118, %v205
  %v234 = vadd.f32 %v121, %v208
  %v235 = vadd.f32 %v123, %v210
  %v236 = vadd.f32 %v126, %v213
  %v237 = vadd.f32 %v128, %v215
  %v238 = vadd.f32 %v131, %v218
  %v239 = vadd.f32 %v133, %v220
  %v240 = vadd.f32 %v136, %v223
  %v241 = vadd.f32 %v138, %v225
  %v242 = vadd.f32 %v141, %v228
  %v243 = vadd.f32 %v143, %v230
  %v244 = vxor.u32 %v232, 2147483648
  %v245 = vxor.u32 %v233, 2147483648
  %v246 = vxor.u32 %v234, 2147483648
  %v247 = vxor.u32 %v235, 2147483648
  %v248 = vxor.u32 %v236, 2147483648
  %v249 = vxor.u32 %v237, 2147483648
  %v250 = vxor.u32 %v238, 2147483648
  %v251 = vxor.u32 %v239, 2147483648
  %v252 = vxor.u32 %v240, 2147483648
  %v253 = vxor.u32 %v241, 2147483648
  %v254 = vxor.u32 %v242, 2147483648
  %v255 = vxor.u32 %v243, 2147483648
  %v256 = vmul.f32 %v244, 1.442695
  %v257 = vpow.pop %v256
  %v258 = vmul.f32 %v245, 1.442695
  %v259 = vpow.pop %v258
  %v260 = vmul.f32 %v246, 1.442695
  %v261 = vpow.pop %v260
  %v262 = vmul.f32 %v247, 1.442695
  %v263 = vpow.pop %v262
  %v264 = vmul.f32 %v248, 1.442695
  %v265 = vpow.pop %v264
  %v266 = vmul.f32 %v249, 1.442695
  %v267 = vpow.pop %v266
  %v268 = vmul.f32 %v250, 1.442695
  %v269 = vpow.pop %v268
  %v270 = vmul.f32 %v251, 1.442695
  %v271 = vpow.pop %v270
  %v272 = vmul.f32 %v252, 1.442695
  %v273 = vpow.pop %v272
  %v274 = vmul.f32 %v253, 1.442695
  %v275 = vpow.pop %v274
  %v276 = vmul.f32 %v254, 1.442695
  %v277 = vpow.pop %v276
  %v278 = vmul.f32 %v255, 1.442695
  %v279 = vpow.pop %v278
  %v280 = vadd.f32 %v257, 1.0
  %v281 = vadd.f32 %v259, 1.0
  %v282 = vadd.f32 %v261, 1.0
  %v283 = vadd.f32 %v263, 1.0
  %v284 = vadd.f32 %v265, 1.0
  %v285 = vadd.f32 %v267, 1.0
  %v286 = vadd.f32 %v269, 1.0
  %v287 = vadd.f32 %v271, 1.0
  %v288 = vadd.f32 %v273, 1.0
  %v289 = vadd.f32 %v275, 1.0
  %v290 = vadd.f32 %v277, 1.0
  %v291 = vadd.f32 %v279, 1.0
  %v292 = vrcp.pop %v280
  %v293 = vmul.f32 %v280, %v292
  %v294 = vsub.f32 1.0, %v293
  %v295 = vmul.f32 %v292, %v294
  %v296 = vadd.f32 %v292, %v295
  %vm297 = vweird.f32 %v280
  %vm298 = vweird.f32 %v292
  %vm299 = vmor %vm297, %vm298
  %v300 = vsel %vm299, %v292, %v296
  %v301 = vand.u32 2147483647, %v280
  %vm302 = vcmp.eq.f32.partialorder %v301, 8.507059e+37
  %v303 = vand.u32 %v280, 2147483648
  %v304 = vor.u32 1.1754944e-38, %v303
  %v305 = vsel %vm302, %v304, %v300
  %v306 = vmul.f32 1.0, %v305
  %v307 = vrcp.pop %v281
  %v308 = vmul.f32 %v281, %v307
  %v309 = vsub.f32 1.0, %v308
  %v310 = vmul.f32 %v307, %v309
  %v311 = vadd.f32 %v307, %v310
  %vm312 = vweird.f32 %v281
  %vm313 = vweird.f32 %v307
  %vm314 = vmor %vm312, %vm313
  %v315 = vsel %vm314, %v307, %v311
  %v316 = vand.u32 2147483647, %v281
  %vm317 = vcmp.eq.f32.partialorder %v316, 8.507059e+37
  %v318 = vand.u32 %v281, 2147483648
  %v319 = vor.u32 1.1754944e-38, %v318
  %v320 = vsel %vm317, %v319, %v315
  %v321 = vmul.f32 1.0, %v320
  %v322 = vrcp.pop %v282
  %v323 = vmul.f32 %v282, %v322
  %v324 = vsub.f32 1.0, %v323
  %v325 = vmul.f32 %v322, %v324
  %v326 = vadd.f32 %v322, %v325
  %vm327 = vweird.f32 %v282
  %vm328 = vweird.f32 %v322
  %vm329 = vmor %vm327, %vm328
  %v330 = vsel %vm329, %v322, %v326
  %v331 = vand.u32 2147483647, %v282
  %vm332 = vcmp.eq.f32.partialorder %v331, 8.507059e+37
  %v333 = vand.u32 %v282, 2147483648
  %v334 = vor.u32 1.1754944e-38, %v333
  %v335 = vsel %vm332, %v334, %v330
  %v336 = vmul.f32 1.0, %v335
  %v337 = vrcp.pop %v283
  %v338 = vmul.f32 %v283, %v337
  %v339 = vsub.f32 1.0, %v338
  %v340 = vmul.f32 %v337, %v339
  %v341 = vadd.f32 %v337, %v340
  %vm342 = vweird.f32 %v283
  %vm343 = vweird.f32 %v337
  %vm344 = vmor %vm342, %vm343
  %v345 = vsel %vm344, %v337, %v341
  %v346 = vand.u32 2147483647, %v283
  %vm347 = vcmp.eq.f32.partialorder %v346, 8.507059e+37
  %v348 = vand.u32 %v283, 2147483648
  %v349 = vor.u32 1.1754944e-38, %v348
  %v350 = vsel %vm347, %v349, %v345
  %v351 = vmul.f32 1.0, %v350
  %v352 = vrcp.pop %v284
  %v353 = vmul.f32 %v284, %v352
  %v354 = vsub.f32 1.0, %v353
  %v355 = vmul.f32 %v352, %v354
  %v356 = vadd.f32 %v352, %v355
  %vm357 = vweird.f32 %v284
  %vm358 = vweird.f32 %v352
  %vm359 = vmor %vm357, %vm358
  %v360 = vsel %vm359, %v352, %v356
  %v361 = vand.u32 2147483647, %v284
  %vm362 = vcmp.eq.f32.partialorder %v361, 8.507059e+37
  %v363 = vand.u32 %v284, 2147483648
  %v364 = vor.u32 1.1754944e-38, %v363
  %v365 = vsel %vm362, %v364, %v360
  %v366 = vmul.f32 1.0, %v365
  %v367 = vrcp.pop %v285
  %v368 = vmul.f32 %v285, %v367
  %v369 = vsub.f32 1.0, %v368
  %v370 = vmul.f32 %v367, %v369
  %v371 = vadd.f32 %v367, %v370
  %vm372 = vweird.f32 %v285
  %vm373 = vweird.f32 %v367
  %vm374 = vmor %vm372, %vm373
  %v375 = vsel %vm374, %v367, %v371
  %v376 = vand.u32 2147483647, %v285
  %vm377 = vcmp.eq.f32.partialorder %v376, 8.507059e+37
  %v378 = vand.u32 %v285, 2147483648
  %v379 = vor.u32 1.1754944e-38, %v378
  %v380 = vsel %vm377, %v379, %v375
  %v381 = vmul.f32 1.0, %v380
  %v382 = vrcp.pop %v286
  %v383 = vmul.f32 %v286, %v382
  %v384 = vsub.f32 1.0, %v383
  %v385 = vmul.f32 %v382, %v384
  %v386 = vadd.f32 %v382, %v385
  %vm387 = vweird.f32 %v286
  %vm388 = vweird.f32 %v382
  %vm389 = vmor %vm387, %vm388
  %v390 = vsel %vm389, %v382, %v386
  %v391 = vand.u32 2147483647, %v286
  %vm392 = vcmp.eq.f32.partialorder %v391, 8.507059e+37
  %v393 = vand.u32 %v286, 2147483648
  %v394 = vor.u32 1.1754944e-38, %v393
  %v395 = vsel %vm392, %v394, %v390
  %v396 = vmul.f32 1.0, %v395
  %v397 = vrcp.pop %v287
  %v398 = vmul.f32 %v287, %v397
  %v399 = vsub.f32 1.0, %v398
  %v400 = vmul.f32 %v397, %v399
  %v401 = vadd.f32 %v397, %v400
  %vm402 = vweird.f32 %v287
  %vm403 = vweird.f32 %v397
  %vm404 = vmor %vm402, %vm403
  %v405 = vsel %vm404, %v397, %v401
  %v406 = vand.u32 2147483647, %v287
  %vm407 = vcmp.eq.f32.partialorder %v406, 8.507059e+37
  %v408 = vand.u32 %v287, 2147483648
  %v409 = vor.u32 1.1754944e-38, %v408
  %v410 = vsel %vm407, %v409, %v405
  %v411 = vmul.f32 1.0, %v410
  %v412 = vrcp.pop %v288
  %v413 = vmul.f32 %v288, %v412
  %v414 = vsub.f32 1.0, %v413
  %v415 = vmul.f32 %v412, %v414
  %v416 = vadd.f32 %v412, %v415
  %vm417 = vweird.f32 %v288
  %vm418 = vweird.f32 %v412
  %vm419 = vmor %vm417, %vm418
  %v420 = vsel %vm419, %v412, %v416
  %v421 = vand.u32 2147483647, %v288
  %vm422 = vcmp.eq.f32.partialorder %v421, 8.507059e+37
  %v423 = vand.u32 %v288, 2147483648
  %v424 = vor.u32 1.1754944e-38, %v423
  %v425 = vsel %vm422, %v424, %v420
  %v426 = vmul.f32 1.0, %v425
  %v427 = vrcp.pop %v289
  %v428 = vmul.f32 %v289, %v427
  %v429 = vsub.f32 1.0, %v428
  %v430 = vmul.f32 %v427, %v429
  %v431 = vadd.f32 %v427, %v430
  %vm432 = vweird.f32 %v289
  %vm433 = vweird.f32 %v427
  %vm434 = vmor %vm432, %vm433
  %v435 = vsel %vm434, %v427, %v431
  %v436 = vand.u32 2147483647, %v289
  %vm437 = vcmp.eq.f32.partialorder %v436, 8.507059e+37
  %v438 = vand.u32 %v289, 2147483648
  %v439 = vor.u32 1.1754944e-38, %v438
  %v440 = vsel %vm437, %v439, %v435
  %v441 = vmul.f32 1.0, %v440
  %v442 = vrcp.pop %v290
  %v443 = vmul.f32 %v290, %v442
  %v444 = vsub.f32 1.0, %v443
  %v445 = vmul.f32 %v442, %v444
  %v446 = vadd.f32 %v442, %v445
  %vm447 = vweird.f32 %v290
  %vm448 = vweird.f32 %v442
  %vm449 = vmor %vm447, %vm448
  %v450 = vsel %vm449, %v442, %v446
  %v451 = vand.u32 2147483647, %v290
  %vm452 = vcmp.eq.f32.partialorder %v451, 8.507059e+37
  %v453 = vand.u32 %v290, 2147483648
  %v454 = vor.u32 1.1754944e-38, %v453
  %v455 = vsel %vm452, %v454, %v450
  %v456 = vmul.f32 1.0, %v455
  %v457 = vrcp.pop %v291
  %v458 = vmul.f32 %v291, %v457
  %v459 = vsub.f32 1.0, %v458
  %v460 = vmul.f32 %v457, %v459
  %v461 = vadd.f32 %v457, %v460
  %vm462 = vweird.f32 %v291
  %vm463 = vweird.f32 %v457
  %vm464 = vmor %vm462, %vm463
  %v465 = vsel %vm464, %v457, %v461
  %v466 = vand.u32 2147483647, %v291
  %vm467 = vcmp.eq.f32.partialorder %v466, 8.507059e+37
  %v468 = vand.u32 %v291, 2147483648
  %v469 = vor.u32 1.1754944e-38, %v468
  %v470 = vsel %vm467, %v469, %v465
  %v471 = vmul.f32 1.0, %v470
  %484 = vrot.lane.b32.xlu0 %v203, 96
  %v485 = vpop.permute.xlu0 %484
  %486 = vrot.lane.b32.xlu0 %v205, 96
  %v487 = vpop.permute.xlu0 %486
  %488 = vrot.lane.b32.xlu0 %v208, 96
  %v489 = vpop.permute.xlu0 %488
  %490 = vrot.lane.b32.xlu0 %v210, 96
  %v491 = vpop.permute.xlu0 %490
  %492 = vrot.lane.b32.xlu0 %v213, 96
  %v493 = vpop.permute.xlu0 %492
  %494 = vrot.lane.b32.xlu0 %v215, 96
  %v495 = vpop.permute.xlu0 %494
  %496 = vrot.lane.b32.xlu0 %v218, 96
  %v497 = vpop.permute.xlu0 %496
  %498 = vrot.lane.b32.xlu0 %v220, 96
  %v499 = vpop.permute.xlu0 %498
  %500 = vrot.lane.b32.xlu0 %v223, 96
  %v501 = vpop.permute.xlu0 %500
  %502 = vrot.lane.b32.xlu0 %v225, 96
  %v503 = vpop.permute.xlu0 %502
  %504 = vrot.lane.b32.xlu0 %v228, 96
  %v505 = vpop.permute.xlu0 %504
  %506 = vrot.lane.b32.xlu0 %v230, 96
  %v507 = vpop.permute.xlu0 %506
  %v520 = vmul.f32 %v306, %v485
  %v521 = vmul.f32 %v321, %v487
  %v522 = vmul.f32 %v336, %v489
  %v523 = vmul.f32 %v351, %v491
  %v524 = vmul.f32 %v366, %v493
  %v525 = vmul.f32 %v381, %v495
  %v526 = vmul.f32 %v396, %v497
  %v527 = vmul.f32 %v411, %v499
  %v528 = vmul.f32 %v426, %v501
  %v529 = vmul.f32 %v441, %v503
  %v530 = vmul.f32 %v456, %v505
  %v531 = vmul.f32 %v471, %v507
  %544 = vrot.lane.b32.xlu0 %v520, 32
  %v545 = vpop.permute.xlu0 %544
  %546 = vrot.lane.b32.xlu0 %v521, 32
  %v547 = vpop.permute.xlu0 %546
  %548 = vrot.lane.b32.xlu0 %v522, 32
  %v549 = vpop.permute.xlu0 %548
  %550 = vrot.lane.b32.xlu0 %v523, 32
  %v551 = vpop.permute.xlu0 %550
  %552 = vrot.lane.b32.xlu0 %v524, 32
  %v553 = vpop.permute.xlu0 %552
  %554 = vrot.lane.b32.xlu0 %v525, 32
  %v555 = vpop.permute.xlu0 %554
  %556 = vrot.lane.b32.xlu0 %v526, 32
  %v557 = vpop.permute.xlu0 %556
  %558 = vrot.lane.b32.xlu0 %v527, 32
  %v559 = vpop.permute.xlu0 %558
  %560 = vrot.lane.b32.xlu0 %v528, 32
  %v561 = vpop.permute.xlu0 %560
  %562 = vrot.lane.b32.xlu0 %v529, 32
  %v563 = vpop.permute.xlu0 %562
  %564 = vrot.lane.b32.xlu0 %v530, 32
  %v565 = vpop.permute.xlu0 %564
  %566 = vrot.lane.b32.xlu0 %v531, 32
  %v567 = vpop.permute.xlu0 %566
  %v580 = vadd.f32 %v116, %v545
  %v581 = vadd.f32 %v118, %v547
  %v582 = vadd.f32 %v121, %v549
  %v583 = vadd.f32 %v123, %v551
  %v584 = vadd.f32 %v126, %v553
  %v585 = vadd.f32 %v128, %v555
  %v586 = vadd.f32 %v131, %v557
  %v587 = vadd.f32 %v133, %v559
  %v588 = vadd.f32 %v136, %v561
  %v589 = vadd.f32 %v138, %v563
  %v590 = vadd.f32 %v141, %v565
  %v591 = vadd.f32 %v143, %v567
  %v592 = vtanh.pop %v580
  %v593 = vtanh.pop %v581
  %v594 = vtanh.pop %v582
  %v595 = vtanh.pop %v583
  %v596 = vtanh.pop %v584
  %v597 = vtanh.pop %v585
  %v598 = vtanh.pop %v586
  %v599 = vtanh.pop %v587
  %v600 = vtanh.pop %v588
  %v601 = vtanh.pop %v589
  %v602 = vtanh.pop %v590
  %v603 = vtanh.pop %v591
  %v604 = vsub.f32 1.0, %v306
  %v605 = vsub.f32 1.0, %v321
  %v606 = vsub.f32 1.0, %v336
  %v607 = vsub.f32 1.0, %v351
  %v608 = vsub.f32 1.0, %v366
  %v609 = vsub.f32 1.0, %v381
  %v610 = vsub.f32 1.0, %v396
  %v611 = vsub.f32 1.0, %v411
  %v612 = vsub.f32 1.0, %v426
  %v613 = vsub.f32 1.0, %v441
  %v614 = vsub.f32 1.0, %v456
  %v615 = vsub.f32 1.0, %v471
  %628 = vrot.lane.b32.xlu0 %v592, 112
  %v629 = vpop.permute.xlu0 %628
  %630 = vrot.lane.b32.xlu0 %v593, 112
  %v631 = vpop.permute.xlu0 %630
  %632 = vrot.lane.b32.xlu0 %v594, 112
  %v633 = vpop.permute.xlu0 %632
  %634 = vrot.lane.b32.xlu0 %v595, 112
  %v635 = vpop.permute.xlu0 %634
  %636 = vrot.lane.b32.xlu0 %v596, 112
  %v637 = vpop.permute.xlu0 %636
  %638 = vrot.lane.b32.xlu0 %v597, 112
  %v639 = vpop.permute.xlu0 %638
  %640 = vrot.lane.b32.xlu0 %v598, 112
  %v641 = vpop.permute.xlu0 %640
  %642 = vrot.lane.b32.xlu0 %v599, 112
  %v643 = vpop.permute.xlu0 %642
  %644 = vrot.lane.b32.xlu0 %v600, 112
  %v645 = vpop.permute.xlu0 %644
  %646 = vrot.lane.b32.xlu0 %v601, 112
  %v647 = vpop.permute.xlu0 %646
  %648 = vrot.lane.b32.xlu0 %v602, 112
  %v649 = vpop.permute.xlu0 %648
  %650 = vrot.lane.b32.xlu0 %v603, 112
  %v651 = vpop.permute.xlu0 %650
  %v664 = vmul.f32 %v604, %v629
  %v665 = vmul.f32 %v605, %v631
  %v666 = vmul.f32 %v606, %v633
  %v667 = vmul.f32 %v607, %v635
  %v668 = vmul.f32 %v608, %v637
  %v669 = vmul.f32 %v609, %v639
  %v670 = vmul.f32 %v610, %v641
  %v671 = vmul.f32 %v611, %v643
  %v672 = vmul.f32 %v612, %v645
  %v673 = vmul.f32 %v613, %v647
  %v674 = vmul.f32 %v614, %v649
  %v675 = vmul.f32 %v615, %v651
  %v676 = vmul.f32 %v306, %v57
  %v677 = vmul.f32 %v321, %v58
  %v678 = vmul.f32 %v336, %v59
  %v679 = vmul.f32 %v351, %v60
  %v680 = vmul.f32 %v366, %v61
  %v681 = vmul.f32 %v381, %v62
  %v682 = vmul.f32 %v396, %v63
  %v683 = vmul.f32 %v411, %v64
  %v684 = vmul.f32 %v426, %v65
  %v685 = vmul.f32 %v441, %v66
  %v686 = vmul.f32 %v456, %v67
  %v687 = vmul.f32 %v471, %v68
  %v688 = vadd.f32 %v664, %v676
  %v689 = vadd.f32 %v665, %v677
  %v690 = vadd.f32 %v666, %v678
  %v691 = vadd.f32 %v667, %v679
  %v692 = vadd.f32 %v668, %v680
  %v693 = vadd.f32 %v669, %v681
  %v694 = vadd.f32 %v670, %v682
  %v695 = vadd.f32 %v671, %v683
  %v696 = vadd.f32 %v672, %v684
  %v697 = vadd.f32 %v673, %v685
  %v698 = vadd.f32 %v674, %v686
  %v699 = vadd.f32 %v675, %v687
  %v700 = vpack.c.bf16 %v689, %v688
  %v701 = vpack.c.bf16 %v691, %v690
  %v702 = vpack.c.bf16 %v693, %v692
  %v703 = vpack.c.bf16 %v695, %v694
  %v704 = vpack.c.bf16 %v697, %v696
  %v705 = vpack.c.bf16 %v699, %v698
  %v706 = vld [vmem:[%s6] sm:$0xf]
  %v707 = vld [vmem:[%s6 + $0x4] sm:$0xf]
  %v708 = vld [vmem:[%s7] sm:$0x1]
  %v710 = vperm.slane %v708, 0
  %718 = vrot.lane.b32.xlu0 %v700, 112
  %v719 = vpop.permute.xlu0 %718
  %720 = vrot.lane.b32.xlu0 %v701, 112
  %v721 = vpop.permute.xlu0 %720
  %722 = vrot.lane.b32.xlu0 %v702, 112
  %v723 = vpop.permute.xlu0 %722
  %724 = vrot.lane.b32.xlu0 %v703, 112
  %v725 = vpop.permute.xlu0 %724
  %726 = vrot.lane.b32.xlu0 %v704, 112
  %v727 = vpop.permute.xlu0 %726
  %728 = vrot.lane.b32.xlu0 %v705, 112
  %v729 = vpop.permute.xlu0 %728
  %v732 = vunpack.c.l.b16 %v706
  %v733 = vunpack.c.l.b16 %v707
  %v734 = vpack.c.b16 %v733, %v732
  %v737 = vsel %vm87, %v719, 0
  %v740 = vsel %vm87, %v721, 0
  %v743 = vsel %vm87, %v723, 0
  %v746 = vsel %vm87, %v725, 0
  %v749 = vsel %vm87, %v727, 0
  %v752 = vsel %vm87, %v729, 0
  %754 = vmatpush.bf16.msra.mxu0 0
  %755 = vmatpush.bf16.msra.mxu0 0
  %756 = vmatpush.bf16.msra.mxu0 0
  %757 = vmatpush.bf16.msra.mxu0 0
  %758 = vmatpush.bf16.msra.mxu0 0
  %759 = vmatpush.bf16.msra.mxu0 0
  %760 = vmatpush.bf16.msra.mxu0 0
  %761 = vmatpush.bf16.msra.mxu0 %v734
  %762 = vmatmul.bf16.gmra.mxu0 %v737
  %v763 = vpop.f32.mrf.mxu0
  %v764 = vadd.f32 %v710, %v763
  %v765 = vpop.f32.mrf.mxu0
  %v766 = vadd.f32 %v710, %v765
  %767 = vmatmul.bf16.gmra.mxu0 %v740
  %v768 = vpop.f32.mrf.mxu0
  %v769 = vadd.f32 %v710, %v768
  %v770 = vpop.f32.mrf.mxu0
  %v771 = vadd.f32 %v710, %v770
  %772 = vmatmul.bf16.gmra.mxu0 %v743
  %v773 = vpop.f32.mrf.mxu0
  %v774 = vadd.f32 %v710, %v773
  %v775 = vpop.f32.mrf.mxu0
  %v776 = vadd.f32 %v710, %v775
  %777 = vmatmul.bf16.gmra.mxu0 %v746
  %v778 = vpop.f32.mrf.mxu0
  %v779 = vadd.f32 %v710, %v778
  %v780 = vpop.f32.mrf.mxu0
  %v781 = vadd.f32 %v710, %v780
  %782 = vmatmul.bf16.gmra.mxu0 %v749
  %v783 = vpop.f32.mrf.mxu0
  %v784 = vadd.f32 %v710, %v783
  %v785 = vpop.f32.mrf.mxu0
  %v786 = vadd.f32 %v710, %v785
  %787 = vmatmul.bf16.gmra.mxu0 %v752
  %v788 = vpop.f32.mrf.mxu0
  %v789 = vadd.f32 %v710, %v788
  %v790 = vpop.f32.mrf.mxu0
  %v791 = vadd.f32 %v710, %v790
  %792 = vdwg.mxu0
  %793 = vst [vmem:[%s16] sm:$0xff] %v764
  %794 = vst [vmem:[%s16 + $0x8] sm:$0xff] %v766
  %795 = vst [vmem:[%s16 + $0x10] sm:$0xff] %v769
  %796 = vst [vmem:[%s16 + $0x18] sm:$0xff] %v771
  %797 = vst [vmem:[%s16 + $0x20] sm:$0xff] %v774
  %798 = vst [vmem:[%s16 + $0x28] sm:$0xff] %v776
  %799 = vst [vmem:[%s16 + $0x30] sm:$0xff] %v779
  %800 = vst [vmem:[%s16 + $0x38] sm:$0xff] %v781
  %801 = vst [vmem:[%s16 + $0x40] sm:$0xff] %v784
  %802 = vst [vmem:[%s16 + $0x48] sm:$0xff] %v786
  %803 = vst [vmem:[%s16 + $0x50] sm:$0xff] %v789
  %804 = vst [vmem:[%s16 + $0x58] sm:$0xff] %v791
  %v805 = vld [vmem:[%s8] sm:$0xf]
  %v806 = vld [vmem:[%s10] sm:$0x1]
  %v808 = vperm.slane %v806, 0
  %vm810 = vcmask 64512
  %v811 = vsel %vm810, %v69, 0
  %v813 = vsel %vm810, %v70, 0
  %v815 = vsel %vm810, %v71, 0
  %v817 = vsel %vm810, %v72, 0
  %v819 = vsel %vm810, %v73, 0
  %v821 = vsel %vm810, %v74, 0
  %vm823 = vcmask 1043456
  %v825 = vsel %vm823, %v805, 0
  %827 = vmatpush.bf16.msra.mxu0 0
  %828 = vmatpush.bf16.msra.mxu0 0
  %829 = vmatpush.bf16.msra.mxu0 0
  %830 = vmatpush.bf16.msra.mxu0 0
  %831 = vmatpush.bf16.msra.mxu0 0
  %832 = vmatpush.bf16.msra.mxu0 0
  %833 = vmatpush.bf16.msra.mxu0 0
  %834 = vmatpush.bf16.msra.mxu0 %v825
  %835 = vmatmul.bf16.gmra.mxu0 %v811
  %v836 = vpop.f32.mrf.mxu0
  %v837 = vadd.f32 %v808, %v836
  %v838 = vpop.f32.mrf.mxu0
  %v839 = vadd.f32 %v808, %v838
  %840 = vmatmul.bf16.gmra.mxu0 %v813
  %v841 = vpop.f32.mrf.mxu0
  %v842 = vadd.f32 %v808, %v841
  %v843 = vpop.f32.mrf.mxu0
  %v844 = vadd.f32 %v808, %v843
  %845 = vmatmul.bf16.gmra.mxu0 %v815
  %v846 = vpop.f32.mrf.mxu0
  %v847 = vadd.f32 %v808, %v846
  %v848 = vpop.f32.mrf.mxu0
  %v849 = vadd.f32 %v808, %v848
  %850 = vmatmul.bf16.gmra.mxu0 %v817
  %v851 = vpop.f32.mrf.mxu0
  %v852 = vadd.f32 %v808, %v851
  %v853 = vpop.f32.mrf.mxu0
  %v854 = vadd.f32 %v808, %v853
  %855 = vmatmul.bf16.gmra.mxu0 %v819
  %v856 = vpop.f32.mrf.mxu0
  %v857 = vadd.f32 %v808, %v856
  %v858 = vpop.f32.mrf.mxu0
  %v859 = vadd.f32 %v808, %v858
  %860 = vmatmul.bf16.gmra.mxu0 %v821
  %v861 = vpop.f32.mrf.mxu0
  %v862 = vadd.f32 %v808, %v861
  %v863 = vpop.f32.mrf.mxu0
  %v864 = vadd.f32 %v808, %v863
  %865 = vdwg.mxu0
  %v866 = vld [vmem:[%s9] sm:$0xf]
  %v867 = vld [vmem:[%s9 + $0x4] sm:$0xf]
  %v868 = vld [vmem:[%s11] sm:$0x1]
  %v870 = vperm.slane %v868, 0
  %872 = vrot.lane.b32.xlu0 %v69, 96
  %v873 = vpop.permute.xlu0 %872
  %874 = vrot.lane.b32.xlu0 %v70, 96
  %v875 = vpop.permute.xlu0 %874
  %876 = vrot.lane.b32.xlu0 %v71, 96
  %v877 = vpop.permute.xlu0 %876
  %878 = vrot.lane.b32.xlu0 %v72, 96
  %v879 = vpop.permute.xlu0 %878
  %880 = vrot.lane.b32.xlu0 %v73, 96
  %v881 = vpop.permute.xlu0 %880
  %882 = vrot.lane.b32.xlu0 %v74, 96
  %v883 = vpop.permute.xlu0 %882
  %v886 = vunpack.c.l.b16 %v866
  %v887 = vunpack.c.l.b16 %v867
  %v888 = vpack.c.b16 %v887, %v886
  %v891 = vsel %vm87, %v873, 0
  %v894 = vsel %vm87, %v875, 0
  %v897 = vsel %vm87, %v877, 0
  %v900 = vsel %vm87, %v879, 0
  %v903 = vsel %vm87, %v881, 0
  %v906 = vsel %vm87, %v883, 0
  %908 = vmatpush.bf16.msra.mxu0 0
  %909 = vmatpush.bf16.msra.mxu0 0
  %910 = vmatpush.bf16.msra.mxu0 0
  %911 = vmatpush.bf16.msra.mxu0 0
  %912 = vmatpush.bf16.msra.mxu0 0
  %913 = vmatpush.bf16.msra.mxu0 0
  %914 = vmatpush.bf16.msra.mxu0 0
  %915 = vmatpush.bf16.msra.mxu0 %v888
  %916 = vmatmul.bf16.gmra.mxu0 %v891
  %v917 = vpop.f32.mrf.mxu0
  %v918 = vadd.f32 %v870, %v917
  %v919 = vpop.f32.mrf.mxu0
  %v920 = vadd.f32 %v870, %v919
  %921 = vmatmul.bf16.gmra.mxu0 %v894
  %v922 = vpop.f32.mrf.mxu0
  %v923 = vadd.f32 %v870, %v922
  %v924 = vpop.f32.mrf.mxu0
  %v925 = vadd.f32 %v870, %v924
  %926 = vmatmul.bf16.gmra.mxu0 %v897
  %v927 = vpop.f32.mrf.mxu0
  %v928 = vadd.f32 %v870, %v927
  %v929 = vpop.f32.mrf.mxu0
  %v930 = vadd.f32 %v870, %v929
  %931 = vmatmul.bf16.gmra.mxu0 %v900
  %v932 = vpop.f32.mrf.mxu0
  %v933 = vadd.f32 %v870, %v932
  %v934 = vpop.f32.mrf.mxu0
  %v935 = vadd.f32 %v870, %v934
  %936 = vmatmul.bf16.gmra.mxu0 %v903
  %v937 = vpop.f32.mrf.mxu0
  %v938 = vadd.f32 %v870, %v937
  %v939 = vpop.f32.mrf.mxu0
  %v940 = vadd.f32 %v870, %v939
  %941 = vmatmul.bf16.gmra.mxu0 %v906
  %v942 = vpop.f32.mrf.mxu0
  %v943 = vadd.f32 %v870, %v942
  %v944 = vpop.f32.mrf.mxu0
  %v945 = vadd.f32 %v870, %v944
  %946 = vdwg.mxu0
  %v947 = vadd.f32 %v837, %v918
  %v948 = vadd.f32 %v839, %v920
  %v949 = vadd.f32 %v842, %v923
  %v950 = vadd.f32 %v844, %v925
  %v951 = vadd.f32 %v847, %v928
  %v952 = vadd.f32 %v849, %v930
  %v953 = vadd.f32 %v852, %v933
  %v954 = vadd.f32 %v854, %v935
  %v955 = vadd.f32 %v857, %v938
  %v956 = vadd.f32 %v859, %v940
  %v957 = vadd.f32 %v862, %v943
  %v958 = vadd.f32 %v864, %v945
  %v959 = vxor.u32 %v947, 2147483648
  %v960 = vxor.u32 %v948, 2147483648
  %v961 = vxor.u32 %v949, 2147483648
  %v962 = vxor.u32 %v950, 2147483648
  %v963 = vxor.u32 %v951, 2147483648
  %v964 = vxor.u32 %v952, 2147483648
  %v965 = vxor.u32 %v953, 2147483648
  %v966 = vxor.u32 %v954, 2147483648
  %v967 = vxor.u32 %v955, 2147483648
  %v968 = vxor.u32 %v956, 2147483648
  %v969 = vxor.u32 %v957, 2147483648
  %v970 = vxor.u32 %v958, 2147483648
  %v971 = vmul.f32 %v959, 1.442695
  %v972 = vpow.pop %v971
  %v973 = vmul.f32 %v960, 1.442695
  %v974 = vpow.pop %v973
  %v975 = vmul.f32 %v961, 1.442695
  %v976 = vpow.pop %v975
  %v977 = vmul.f32 %v962, 1.442695
  %v978 = vpow.pop %v977
  %v979 = vmul.f32 %v963, 1.442695
  %v980 = vpow.pop %v979
  %v981 = vmul.f32 %v964, 1.442695
  %v982 = vpow.pop %v981
  %v983 = vmul.f32 %v965, 1.442695
  %v984 = vpow.pop %v983
  %v985 = vmul.f32 %v966, 1.442695
  %v986 = vpow.pop %v985
  %v987 = vmul.f32 %v967, 1.442695
  %v988 = vpow.pop %v987
  %v989 = vmul.f32 %v968, 1.442695
  %v990 = vpow.pop %v989
  %v991 = vmul.f32 %v969, 1.442695
  %v992 = vpow.pop %v991
  %v993 = vmul.f32 %v970, 1.442695
  %v994 = vpow.pop %v993
  %v995 = vadd.f32 %v972, 1.0
  %v996 = vadd.f32 %v974, 1.0
  %v997 = vadd.f32 %v976, 1.0
  %v998 = vadd.f32 %v978, 1.0
  %v999 = vadd.f32 %v980, 1.0
  %v1000 = vadd.f32 %v982, 1.0
  %v1001 = vadd.f32 %v984, 1.0
  %v1002 = vadd.f32 %v986, 1.0
  %v1003 = vadd.f32 %v988, 1.0
  %v1004 = vadd.f32 %v990, 1.0
  %v1005 = vadd.f32 %v992, 1.0
  %v1006 = vadd.f32 %v994, 1.0
  %v1007 = vrcp.pop %v995
  %v1008 = vmul.f32 %v995, %v1007
  %v1009 = vsub.f32 1.0, %v1008
  %v1010 = vmul.f32 %v1007, %v1009
  %v1011 = vadd.f32 %v1007, %v1010
  %vm1012 = vweird.f32 %v995
  %vm1013 = vweird.f32 %v1007
  %vm1014 = vmor %vm1012, %vm1013
  %v1015 = vsel %vm1014, %v1007, %v1011
  %v1016 = vand.u32 2147483647, %v995
  %vm1017 = vcmp.eq.f32.partialorder %v1016, 8.507059e+37
  %v1018 = vand.u32 %v995, 2147483648
  %v1019 = vor.u32 1.1754944e-38, %v1018
  %v1020 = vsel %vm1017, %v1019, %v1015
  %v1021 = vmul.f32 1.0, %v1020
  %v1022 = vrcp.pop %v996
  %v1023 = vmul.f32 %v996, %v1022
  %v1024 = vsub.f32 1.0, %v1023
  %v1025 = vmul.f32 %v1022, %v1024
  %v1026 = vadd.f32 %v1022, %v1025
  %vm1027 = vweird.f32 %v996
  %vm1028 = vweird.f32 %v1022
  %vm1029 = vmor %vm1027, %vm1028
  %v1030 = vsel %vm1029, %v1022, %v1026
  %v1031 = vand.u32 2147483647, %v996
  %vm1032 = vcmp.eq.f32.partialorder %v1031, 8.507059e+37
  %v1033 = vand.u32 %v996, 2147483648
  %v1034 = vor.u32 1.1754944e-38, %v1033
  %v1035 = vsel %vm1032, %v1034, %v1030
  %v1036 = vmul.f32 1.0, %v1035
  %v1037 = vrcp.pop %v997
  %v1038 = vmul.f32 %v997, %v1037
  %v1039 = vsub.f32 1.0, %v1038
  %v1040 = vmul.f32 %v1037, %v1039
  %v1041 = vadd.f32 %v1037, %v1040
  %vm1042 = vweird.f32 %v997
  %vm1043 = vweird.f32 %v1037
  %vm1044 = vmor %vm1042, %vm1043
  %v1045 = vsel %vm1044, %v1037, %v1041
  %v1046 = vand.u32 2147483647, %v997
  %vm1047 = vcmp.eq.f32.partialorder %v1046, 8.507059e+37
  %v1048 = vand.u32 %v997, 2147483648
  %v1049 = vor.u32 1.1754944e-38, %v1048
  %v1050 = vsel %vm1047, %v1049, %v1045
  %v1051 = vmul.f32 1.0, %v1050
  %v1052 = vrcp.pop %v998
  %v1053 = vmul.f32 %v998, %v1052
  %v1054 = vsub.f32 1.0, %v1053
  %v1055 = vmul.f32 %v1052, %v1054
  %v1056 = vadd.f32 %v1052, %v1055
  %vm1057 = vweird.f32 %v998
  %vm1058 = vweird.f32 %v1052
  %vm1059 = vmor %vm1057, %vm1058
  %v1060 = vsel %vm1059, %v1052, %v1056
  %v1061 = vand.u32 2147483647, %v998
  %vm1062 = vcmp.eq.f32.partialorder %v1061, 8.507059e+37
  %v1063 = vand.u32 %v998, 2147483648
  %v1064 = vor.u32 1.1754944e-38, %v1063
  %v1065 = vsel %vm1062, %v1064, %v1060
  %v1066 = vmul.f32 1.0, %v1065
  %v1067 = vrcp.pop %v999
  %v1068 = vmul.f32 %v999, %v1067
  %v1069 = vsub.f32 1.0, %v1068
  %v1070 = vmul.f32 %v1067, %v1069
  %v1071 = vadd.f32 %v1067, %v1070
  %vm1072 = vweird.f32 %v999
  %vm1073 = vweird.f32 %v1067
  %vm1074 = vmor %vm1072, %vm1073
  %v1075 = vsel %vm1074, %v1067, %v1071
  %v1076 = vand.u32 2147483647, %v999
  %vm1077 = vcmp.eq.f32.partialorder %v1076, 8.507059e+37
  %v1078 = vand.u32 %v999, 2147483648
  %v1079 = vor.u32 1.1754944e-38, %v1078
  %v1080 = vsel %vm1077, %v1079, %v1075
  %v1081 = vmul.f32 1.0, %v1080
  %v1082 = vrcp.pop %v1000
  %v1083 = vmul.f32 %v1000, %v1082
  %v1084 = vsub.f32 1.0, %v1083
  %v1085 = vmul.f32 %v1082, %v1084
  %v1086 = vadd.f32 %v1082, %v1085
  %vm1087 = vweird.f32 %v1000
  %vm1088 = vweird.f32 %v1082
  %vm1089 = vmor %vm1087, %vm1088
  %v1090 = vsel %vm1089, %v1082, %v1086
  %v1091 = vand.u32 2147483647, %v1000
  %vm1092 = vcmp.eq.f32.partialorder %v1091, 8.507059e+37
  %v1093 = vand.u32 %v1000, 2147483648
  %v1094 = vor.u32 1.1754944e-38, %v1093
  %v1095 = vsel %vm1092, %v1094, %v1090
  %v1096 = vmul.f32 1.0, %v1095
  %v1097 = vrcp.pop %v1001
  %v1098 = vmul.f32 %v1001, %v1097
  %v1099 = vsub.f32 1.0, %v1098
  %v1100 = vmul.f32 %v1097, %v1099
  %v1101 = vadd.f32 %v1097, %v1100
  %vm1102 = vweird.f32 %v1001
  %vm1103 = vweird.f32 %v1097
  %vm1104 = vmor %vm1102, %vm1103
  %v1105 = vsel %vm1104, %v1097, %v1101
  %v1106 = vand.u32 2147483647, %v1001
  %vm1107 = vcmp.eq.f32.partialorder %v1106, 8.507059e+37
  %v1108 = vand.u32 %v1001, 2147483648
  %v1109 = vor.u32 1.1754944e-38, %v1108
  %v1110 = vsel %vm1107, %v1109, %v1105
  %v1111 = vmul.f32 1.0, %v1110
  %v1112 = vrcp.pop %v1002
  %v1113 = vmul.f32 %v1002, %v1112
  %v1114 = vsub.f32 1.0, %v1113
  %v1115 = vmul.f32 %v1112, %v1114
  %v1116 = vadd.f32 %v1112, %v1115
  %vm1117 = vweird.f32 %v1002
  %vm1118 = vweird.f32 %v1112
  %vm1119 = vmor %vm1117, %vm1118
  %v1120 = vsel %vm1119, %v1112, %v1116
  %v1121 = vand.u32 2147483647, %v1002
  %vm1122 = vcmp.eq.f32.partialorder %v1121, 8.507059e+37
  %v1123 = vand.u32 %v1002, 2147483648
  %v1124 = vor.u32 1.1754944e-38, %v1123
  %v1125 = vsel %vm1122, %v1124, %v1120
  %v1126 = vmul.f32 1.0, %v1125
  %v1127 = vrcp.pop %v1003
  %v1128 = vmul.f32 %v1003, %v1127
  %v1129 = vsub.f32 1.0, %v1128
  %v1130 = vmul.f32 %v1127, %v1129
  %v1131 = vadd.f32 %v1127, %v1130
  %vm1132 = vweird.f32 %v1003
  %vm1133 = vweird.f32 %v1127
  %vm1134 = vmor %vm1132, %vm1133
  %v1135 = vsel %vm1134, %v1127, %v1131
  %v1136 = vand.u32 2147483647, %v1003
  %vm1137 = vcmp.eq.f32.partialorder %v1136, 8.507059e+37
  %v1138 = vand.u32 %v1003, 2147483648
  %v1139 = vor.u32 1.1754944e-38, %v1138
  %v1140 = vsel %vm1137, %v1139, %v1135
  %v1141 = vmul.f32 1.0, %v1140
  %v1142 = vrcp.pop %v1004
  %v1143 = vmul.f32 %v1004, %v1142
  %v1144 = vsub.f32 1.0, %v1143
  %v1145 = vmul.f32 %v1142, %v1144
  %v1146 = vadd.f32 %v1142, %v1145
  %vm1147 = vweird.f32 %v1004
  %vm1148 = vweird.f32 %v1142
  %vm1149 = vmor %vm1147, %vm1148
  %v1150 = vsel %vm1149, %v1142, %v1146
  %v1151 = vand.u32 2147483647, %v1004
  %vm1152 = vcmp.eq.f32.partialorder %v1151, 8.507059e+37
  %v1153 = vand.u32 %v1004, 2147483648
  %v1154 = vor.u32 1.1754944e-38, %v1153
  %v1155 = vsel %vm1152, %v1154, %v1150
  %v1156 = vmul.f32 1.0, %v1155
  %v1157 = vrcp.pop %v1005
  %v1158 = vmul.f32 %v1005, %v1157
  %v1159 = vsub.f32 1.0, %v1158
  %v1160 = vmul.f32 %v1157, %v1159
  %v1161 = vadd.f32 %v1157, %v1160
  %vm1162 = vweird.f32 %v1005
  %vm1163 = vweird.f32 %v1157
  %vm1164 = vmor %vm1162, %vm1163
  %v1165 = vsel %vm1164, %v1157, %v1161
  %v1166 = vand.u32 2147483647, %v1005
  %vm1167 = vcmp.eq.f32.partialorder %v1166, 8.507059e+37
  %v1168 = vand.u32 %v1005, 2147483648
  %v1169 = vor.u32 1.1754944e-38, %v1168
  %v1170 = vsel %vm1167, %v1169, %v1165
  %v1171 = vmul.f32 1.0, %v1170
  %v1172 = vrcp.pop %v1006
  %v1173 = vmul.f32 %v1006, %v1172
  %v1174 = vsub.f32 1.0, %v1173
  %v1175 = vmul.f32 %v1172, %v1174
  %v1176 = vadd.f32 %v1172, %v1175
  %vm1177 = vweird.f32 %v1006
  %vm1178 = vweird.f32 %v1172
  %vm1179 = vmor %vm1177, %vm1178
  %v1180 = vsel %vm1179, %v1172, %v1176
  %v1181 = vand.u32 2147483647, %v1006
  %vm1182 = vcmp.eq.f32.partialorder %v1181, 8.507059e+37
  %v1183 = vand.u32 %v1006, 2147483648
  %v1184 = vor.u32 1.1754944e-38, %v1183
  %v1185 = vsel %vm1182, %v1184, %v1180
  %v1186 = vmul.f32 1.0, %v1185
  %1199 = vrot.lane.b32.xlu0 %v918, 96
  %v1200 = vpop.permute.xlu0 %1199
  %1201 = vrot.lane.b32.xlu0 %v920, 96
  %v1202 = vpop.permute.xlu0 %1201
  %1203 = vrot.lane.b32.xlu0 %v923, 96
  %v1204 = vpop.permute.xlu0 %1203
  %1205 = vrot.lane.b32.xlu0 %v925, 96
  %v1206 = vpop.permute.xlu0 %1205
  %1207 = vrot.lane.b32.xlu0 %v928, 96
  %v1208 = vpop.permute.xlu0 %1207
  %1209 = vrot.lane.b32.xlu0 %v930, 96
  %v1210 = vpop.permute.xlu0 %1209
  %1211 = vrot.lane.b32.xlu0 %v933, 96
  %v1212 = vpop.permute.xlu0 %1211
  %1213 = vrot.lane.b32.xlu0 %v935, 96
  %v1214 = vpop.permute.xlu0 %1213
  %1215 = vrot.lane.b32.xlu0 %v938, 96
  %v1216 = vpop.permute.xlu0 %1215
  %1217 = vrot.lane.b32.xlu0 %v940, 96
  %v1218 = vpop.permute.xlu0 %1217
  %1219 = vrot.lane.b32.xlu0 %v943, 96
  %v1220 = vpop.permute.xlu0 %1219
  %1221 = vrot.lane.b32.xlu0 %v945, 96
  %v1222 = vpop.permute.xlu0 %1221
  %v1235 = vmul.f32 %v1021, %v1200
  %v1236 = vmul.f32 %v1036, %v1202
  %v1237 = vmul.f32 %v1051, %v1204
  %v1238 = vmul.f32 %v1066, %v1206
  %v1239 = vmul.f32 %v1081, %v1208
  %v1240 = vmul.f32 %v1096, %v1210
  %v1241 = vmul.f32 %v1111, %v1212
  %v1242 = vmul.f32 %v1126, %v1214
  %v1243 = vmul.f32 %v1141, %v1216
  %v1244 = vmul.f32 %v1156, %v1218
  %v1245 = vmul.f32 %v1171, %v1220
  %v1246 = vmul.f32 %v1186, %v1222
  %1259 = vrot.lane.b32.xlu0 %v1235, 32
  %v1260 = vpop.permute.xlu0 %1259
  %1261 = vrot.lane.b32.xlu0 %v1236, 32
  %v1262 = vpop.permute.xlu0 %1261
  %1263 = vrot.lane.b32.xlu0 %v1237, 32
  %v1264 = vpop.permute.xlu0 %1263
  %1265 = vrot.lane.b32.xlu0 %v1238, 32
  %v1266 = vpop.permute.xlu0 %1265
  %1267 = vrot.lane.b32.xlu0 %v1239, 32
  %v1268 = vpop.permute.xlu0 %1267
  %1269 = vrot.lane.b32.xlu0 %v1240, 32
  %v1270 = vpop.permute.xlu0 %1269
  %1271 = vrot.lane.b32.xlu0 %v1241, 32
  %v1272 = vpop.permute.xlu0 %1271
  %1273 = vrot.lane.b32.xlu0 %v1242, 32
  %v1274 = vpop.permute.xlu0 %1273
  %1275 = vrot.lane.b32.xlu0 %v1243, 32
  %v1276 = vpop.permute.xlu0 %1275
  %1277 = vrot.lane.b32.xlu0 %v1244, 32
  %v1278 = vpop.permute.xlu0 %1277
  %1279 = vrot.lane.b32.xlu0 %v1245, 32
  %v1280 = vpop.permute.xlu0 %1279
  %1281 = vrot.lane.b32.xlu0 %v1246, 32
  %v1282 = vpop.permute.xlu0 %1281
  %v1295 = vadd.f32 %v837, %v1260
  %v1296 = vadd.f32 %v839, %v1262
  %v1297 = vadd.f32 %v842, %v1264
  %v1298 = vadd.f32 %v844, %v1266
  %v1299 = vadd.f32 %v847, %v1268
  %v1300 = vadd.f32 %v849, %v1270
  %v1301 = vadd.f32 %v852, %v1272
  %v1302 = vadd.f32 %v854, %v1274
  %v1303 = vadd.f32 %v857, %v1276
  %v1304 = vadd.f32 %v859, %v1278
  %v1305 = vadd.f32 %v862, %v1280
  %v1306 = vadd.f32 %v864, %v1282
  %v1307 = vtanh.pop %v1295
  %v1308 = vtanh.pop %v1296
  %v1309 = vtanh.pop %v1297
  %v1310 = vtanh.pop %v1298
  %v1311 = vtanh.pop %v1299
  %v1312 = vtanh.pop %v1300
  %v1313 = vtanh.pop %v1301
  %v1314 = vtanh.pop %v1302
  %v1315 = vtanh.pop %v1303
  %v1316 = vtanh.pop %v1304
  %v1317 = vtanh.pop %v1305
  %v1318 = vtanh.pop %v1306
  %v1319 = vsub.f32 1.0, %v1021
  %v1320 = vsub.f32 1.0, %v1036
  %v1321 = vsub.f32 1.0, %v1051
  %v1322 = vsub.f32 1.0, %v1066
  %v1323 = vsub.f32 1.0, %v1081
  %v1324 = vsub.f32 1.0, %v1096
  %v1325 = vsub.f32 1.0, %v1111
  %v1326 = vsub.f32 1.0, %v1126
  %v1327 = vsub.f32 1.0, %v1141
  %v1328 = vsub.f32 1.0, %v1156
  %v1329 = vsub.f32 1.0, %v1171
  %v1330 = vsub.f32 1.0, %v1186
  %1343 = vrot.lane.b32.xlu0 %v1307, 112
  %v1344 = vpop.permute.xlu0 %1343
  %1345 = vrot.lane.b32.xlu0 %v1308, 112
  %v1346 = vpop.permute.xlu0 %1345
  %1347 = vrot.lane.b32.xlu0 %v1309, 112
  %v1348 = vpop.permute.xlu0 %1347
  %1349 = vrot.lane.b32.xlu0 %v1310, 112
  %v1350 = vpop.permute.xlu0 %1349
  %1351 = vrot.lane.b32.xlu0 %v1311, 112
  %v1352 = vpop.permute.xlu0 %1351
  %1353 = vrot.lane.b32.xlu0 %v1312, 112
  %v1354 = vpop.permute.xlu0 %1353
  %1355 = vrot.lane.b32.xlu0 %v1313, 112
  %v1356 = vpop.permute.xlu0 %1355
  %1357 = vrot.lane.b32.xlu0 %v1314, 112
  %v1358 = vpop.permute.xlu0 %1357
  %1359 = vrot.lane.b32.xlu0 %v1315, 112
  %v1360 = vpop.permute.xlu0 %1359
  %1361 = vrot.lane.b32.xlu0 %v1316, 112
  %v1362 = vpop.permute.xlu0 %1361
  %1363 = vrot.lane.b32.xlu0 %v1317, 112
  %v1364 = vpop.permute.xlu0 %1363
  %1365 = vrot.lane.b32.xlu0 %v1318, 112
  %v1366 = vpop.permute.xlu0 %1365
  %v1379 = vmul.f32 %v1319, %v1344
  %v1380 = vmul.f32 %v1320, %v1346
  %v1381 = vmul.f32 %v1321, %v1348
  %v1382 = vmul.f32 %v1322, %v1350
  %v1383 = vmul.f32 %v1323, %v1352
  %v1384 = vmul.f32 %v1324, %v1354
  %v1385 = vmul.f32 %v1325, %v1356
  %v1386 = vmul.f32 %v1326, %v1358
  %v1387 = vmul.f32 %v1327, %v1360
  %v1388 = vmul.f32 %v1328, %v1362
  %v1389 = vmul.f32 %v1329, %v1364
  %v1390 = vmul.f32 %v1330, %v1366
  %1403 = vrot.lane.b32.xlu0 %v57, 112
  %v1404 = vpop.permute.xlu0 %1403
  %1405 = vrot.lane.b32.xlu0 %v58, 112
  %v1406 = vpop.permute.xlu0 %1405
  %1407 = vrot.lane.b32.xlu0 %v59, 112
  %v1408 = vpop.permute.xlu0 %1407
  %1409 = vrot.lane.b32.xlu0 %v60, 112
  %v1410 = vpop.permute.xlu0 %1409
  %1411 = vrot.lane.b32.xlu0 %v61, 112
  %v1412 = vpop.permute.xlu0 %1411
  %1413 = vrot.lane.b32.xlu0 %v62, 112
  %v1414 = vpop.permute.xlu0 %1413
  %1415 = vrot.lane.b32.xlu0 %v63, 112
  %v1416 = vpop.permute.xlu0 %1415
  %1417 = vrot.lane.b32.xlu0 %v64, 112
  %v1418 = vpop.permute.xlu0 %1417
  %1419 = vrot.lane.b32.xlu0 %v65, 112
  %v1420 = vpop.permute.xlu0 %1419
  %1421 = vrot.lane.b32.xlu0 %v66, 112
  %v1422 = vpop.permute.xlu0 %1421
  %1423 = vrot.lane.b32.xlu0 %v67, 112
  %v1424 = vpop.permute.xlu0 %1423
  %1425 = vrot.lane.b32.xlu0 %v68, 112
  %v1426 = vpop.permute.xlu0 %1425
  %v1439 = vmul.f32 %v1021, %v1404
  %v1440 = vmul.f32 %v1036, %v1406
  %v1441 = vmul.f32 %v1051, %v1408
  %v1442 = vmul.f32 %v1066, %v1410
  %v1443 = vmul.f32 %v1081, %v1412
  %v1444 = vmul.f32 %v1096, %v1414
  %v1445 = vmul.f32 %v1111, %v1416
  %v1446 = vmul.f32 %v1126, %v1418
  %v1447 = vmul.f32 %v1141, %v1420
  %v1448 = vmul.f32 %v1156, %v1422
  %v1449 = vmul.f32 %v1171, %v1424
  %v1450 = vmul.f32 %v1186, %v1426
  %v1451 = vadd.f32 %v1379, %v1439
  %v1452 = vadd.f32 %v1380, %v1440
  %v1453 = vadd.f32 %v1381, %v1441
  %v1454 = vadd.f32 %v1382, %v1442
  %v1455 = vadd.f32 %v1383, %v1443
  %v1456 = vadd.f32 %v1384, %v1444
  %v1457 = vadd.f32 %v1385, %v1445
  %v1458 = vadd.f32 %v1386, %v1446
  %v1459 = vadd.f32 %v1387, %v1447
  %v1460 = vadd.f32 %v1388, %v1448
  %v1461 = vadd.f32 %v1389, %v1449
  %v1462 = vadd.f32 %v1390, %v1450
  %v1463 = vpack.c.bf16 %v1452, %v1451
  %v1464 = vpack.c.bf16 %v1454, %v1453
  %v1465 = vpack.c.bf16 %v1456, %v1455
  %v1466 = vpack.c.bf16 %v1458, %v1457
  %v1467 = vpack.c.bf16 %v1460, %v1459
  %v1468 = vpack.c.bf16 %v1462, %v1461
  %v1469 = vld [vmem:[%s12] sm:$0xf]
  %v1470 = vld [vmem:[%s12 + $0x4] sm:$0xf]
  %v1471 = vld [vmem:[%s13] sm:$0x1]
  %v1473 = vperm.slane %v1471, 0
  %1481 = vrot.lane.b32.xlu0 %v1463, 112
  %v1482 = vpop.permute.xlu0 %1481
  %1483 = vrot.lane.b32.xlu0 %v1464, 112
  %v1484 = vpop.permute.xlu0 %1483
  %1485 = vrot.lane.b32.xlu0 %v1465, 112
  %v1486 = vpop.permute.xlu0 %1485
  %1487 = vrot.lane.b32.xlu0 %v1466, 112
  %v1488 = vpop.permute.xlu0 %1487
  %1489 = vrot.lane.b32.xlu0 %v1467, 112
  %v1490 = vpop.permute.xlu0 %1489
  %1491 = vrot.lane.b32.xlu0 %v1468, 112
  %v1492 = vpop.permute.xlu0 %1491
  %v1495 = vunpack.c.l.b16 %v1469
  %v1496 = vunpack.c.l.b16 %v1470
  %v1497 = vpack.c.b16 %v1496, %v1495
  %v1500 = vsel %vm87, %v1482, 0
  %v1503 = vsel %vm87, %v1484, 0
  %v1506 = vsel %vm87, %v1486, 0
  %v1509 = vsel %vm87, %v1488, 0
  %v1512 = vsel %vm87, %v1490, 0
  %v1515 = vsel %vm87, %v1492, 0
  %1517 = vmatpush.bf16.msra.mxu0 0
  %1518 = vmatpush.bf16.msra.mxu0 0
  %1519 = vmatpush.bf16.msra.mxu0 0
  %1520 = vmatpush.bf16.msra.mxu0 0
  %1521 = vmatpush.bf16.msra.mxu0 0
  %1522 = vmatpush.bf16.msra.mxu0 0
  %1523 = vmatpush.bf16.msra.mxu0 0
  %1524 = vmatpush.bf16.msra.mxu0 %v1497
  %1525 = vmatmul.bf16.gmra.mxu0 %v1500
  %v1526 = vpop.f32.mrf.mxu0
  %v1527 = vadd.f32 %v1473, %v1526
  %v1528 = vpop.f32.mrf.mxu0
  %v1529 = vadd.f32 %v1473, %v1528
  %1530 = vmatmul.bf16.gmra.mxu0 %v1503
  %v1531 = vpop.f32.mrf.mxu0
  %v1532 = vadd.f32 %v1473, %v1531
  %v1533 = vpop.f32.mrf.mxu0
  %v1534 = vadd.f32 %v1473, %v1533
  %1535 = vmatmul.bf16.gmra.mxu0 %v1506
  %v1536 = vpop.f32.mrf.mxu0
  %v1537 = vadd.f32 %v1473, %v1536
  %v1538 = vpop.f32.mrf.mxu0
  %v1539 = vadd.f32 %v1473, %v1538
  %1540 = vmatmul.bf16.gmra.mxu0 %v1509
  %v1541 = vpop.f32.mrf.mxu0
  %v1542 = vadd.f32 %v1473, %v1541
  %v1543 = vpop.f32.mrf.mxu0
  %v1544 = vadd.f32 %v1473, %v1543
  %1545 = vmatmul.bf16.gmra.mxu0 %v1512
  %v1546 = vpop.f32.mrf.mxu0
  %v1547 = vadd.f32 %v1473, %v1546
  %v1548 = vpop.f32.mrf.mxu0
  %v1549 = vadd.f32 %v1473, %v1548
  %1550 = vmatmul.bf16.gmra.mxu0 %v1515
  %v1551 = vpop.f32.mrf.mxu0
  %v1552 = vadd.f32 %v1473, %v1551
  %v1553 = vpop.f32.mrf.mxu0
  %v1554 = vadd.f32 %v1473, %v1553
  %1555 = vdwg.mxu0
  %1568 = vrot.lane.b32.xlu0 %v688, 112
  %v1569 = vpop.permute.xlu0 %1568
  %1570 = vrot.lane.b32.xlu0 %v689, 112
  %v1571 = vpop.permute.xlu0 %1570
  %1572 = vrot.lane.b32.xlu0 %v690, 112
  %v1573 = vpop.permute.xlu0 %1572
  %1574 = vrot.lane.b32.xlu0 %v691, 112
  %v1575 = vpop.permute.xlu0 %1574
  %1576 = vrot.lane.b32.xlu0 %v692, 112
  %v1577 = vpop.permute.xlu0 %1576
  %1578 = vrot.lane.b32.xlu0 %v693, 112
  %v1579 = vpop.permute.xlu0 %1578
  %1580 = vrot.lane.b32.xlu0 %v694, 112
  %v1581 = vpop.permute.xlu0 %1580
  %1582 = vrot.lane.b32.xlu0 %v695, 112
  %v1583 = vpop.permute.xlu0 %1582
  %1584 = vrot.lane.b32.xlu0 %v696, 112
  %v1585 = vpop.permute.xlu0 %1584
  %1586 = vrot.lane.b32.xlu0 %v697, 112
  %v1587 = vpop.permute.xlu0 %1586
  %1588 = vrot.lane.b32.xlu0 %v698, 112
  %v1589 = vpop.permute.xlu0 %1588
  %1590 = vrot.lane.b32.xlu0 %v699, 112
  %v1591 = vpop.permute.xlu0 %1590
  %1616 = vrot.lane.b32.xlu0 %v1527, 32
  %v1617 = vpop.permute.xlu0 %1616
  %1618 = vrot.lane.b32.xlu0 %v1529, 32
  %v1619 = vpop.permute.xlu0 %1618
  %1620 = vrot.lane.b32.xlu0 %v1532, 32
  %v1621 = vpop.permute.xlu0 %1620
  %1622 = vrot.lane.b32.xlu0 %v1534, 32
  %v1623 = vpop.permute.xlu0 %1622
  %1624 = vrot.lane.b32.xlu0 %v1537, 32
  %v1625 = vpop.permute.xlu0 %1624
  %1626 = vrot.lane.b32.xlu0 %v1539, 32
  %v1627 = vpop.permute.xlu0 %1626
  %1628 = vrot.lane.b32.xlu0 %v1542, 32
  %v1629 = vpop.permute.xlu0 %1628
  %1630 = vrot.lane.b32.xlu0 %v1544, 32
  %v1631 = vpop.permute.xlu0 %1630
  %1632 = vrot.lane.b32.xlu0 %v1547, 32
  %v1633 = vpop.permute.xlu0 %1632
  %1634 = vrot.lane.b32.xlu0 %v1549, 32
  %v1635 = vpop.permute.xlu0 %1634
  %1636 = vrot.lane.b32.xlu0 %v1552, 32
  %v1637 = vpop.permute.xlu0 %1636
  %1638 = vrot.lane.b32.xlu0 %v1554, 32
  %v1639 = vpop.permute.xlu0 %1638
  %v1652 = vsel %vm87, %v1569, %v1451
  %v1653 = vsel %vm87, %v1571, %v1452
  %v1654 = vsel %vm87, %v1573, %v1453
  %v1655 = vsel %vm87, %v1575, %v1454
  %v1656 = vsel %vm87, %v1577, %v1455
  %v1657 = vsel %vm87, %v1579, %v1456
  %v1658 = vsel %vm87, %v1581, %v1457
  %v1659 = vsel %vm87, %v1583, %v1458
  %v1660 = vsel %vm87, %v1585, %v1459
  %v1661 = vsel %vm87, %v1587, %v1460
  %v1662 = vsel %vm87, %v1589, %v1461
  %v1663 = vsel %vm87, %v1591, %v1462
  %vm1664 = vcmask 261120
  %v1665 = vsel %vm1664, %v1652, %v1617
  %v1666 = vsel %vm1664, %v1653, %v1619
  %v1667 = vsel %vm1664, %v1654, %v1621
  %v1668 = vsel %vm1664, %v1655, %v1623
  %v1669 = vsel %vm1664, %v1656, %v1625
  %v1670 = vsel %vm1664, %v1657, %v1627
  %v1671 = vsel %vm1664, %v1658, %v1629
  %v1672 = vsel %vm1664, %v1659, %v1631
  %v1673 = vsel %vm1664, %v1660, %v1633
  %v1674 = vsel %vm1664, %v1661, %v1635
  %v1675 = vsel %vm1664, %v1662, %v1637
  %v1676 = vsel %vm1664, %v1663, %v1639
  %vm1677 = vcmask 392192
  %v1678 = vsel %vm1677, %v1665, 0.0
  %v1679 = vsel %vm1677, %v1666, 0.0
  %v1680 = vsel %vm1677, %v1667, 0.0
  %v1681 = vsel %vm1677, %v1668, 0.0
  %v1682 = vsel %vm1677, %v1669, 0.0
  %v1683 = vsel %vm1677, %v1670, 0.0
  %v1684 = vsel %vm1677, %v1671, 0.0
  %v1685 = vsel %vm1677, %v1672, 0.0
  %v1686 = vsel %vm1677, %v1673, 0.0
  %v1687 = vsel %vm1677, %v1674, 0.0
  %v1688 = vsel %vm1677, %v1675, 0.0
  %v1689 = vsel %vm1677, %v1676, 0.0
  %1690 = vst [vmem:[%s17] sm:$0xff] %v1678
  %1691 = vst [vmem:[%s17 + $0x8] sm:$0xff] %v1679
  %1692 = vst [vmem:[%s17 + $0x10] sm:$0xff] %v1680
  %1693 = vst [vmem:[%s17 + $0x18] sm:$0xff] %v1681
  %1694 = vst [vmem:[%s17 + $0x20] sm:$0xff] %v1682
  %1695 = vst [vmem:[%s17 + $0x28] sm:$0xff] %v1683
  %1696 = vst [vmem:[%s17 + $0x30] sm:$0xff] %v1684
  %1697 = vst [vmem:[%s17 + $0x38] sm:$0xff] %v1685
  %1698 = vst [vmem:[%s17 + $0x40] sm:$0xff] %v1686
  %1699 = vst [vmem:[%s17 + $0x48] sm:$0xff] %v1687
  %1700 = vst [vmem:[%s17 + $0x50] sm:$0xff] %v1688
  %1701 = vst [vmem:[%s17 + $0x58] sm:$0xff] %v1689
  %v1702 = vld [vmem:[%s1] sm:$0xff]
  %v1703 = vld [vmem:[%s1 + $0x8] sm:$0xff]
  %v1704 = vld [vmem:[%s1 + $0x10] sm:$0xff]
  %v1705 = vld [vmem:[%s1 + $0x18] sm:$0xff]
  %v1706 = vpack.c.bf16 %v1703, %v1702
  %v1707 = vpack.c.bf16 %v1705, %v1704
  %v1708 = vld [vmem:[%s14] sm:$0xf]
  %v1709 = vld [vmem:[%s14 + $0x4] sm:$0xf]
  %v1710 = vld [vmem:[%s14 + $0x8] sm:$0xf]
  %v1711 = vld [vmem:[%s14 + $0xc] sm:$0xf]
  %v1712 = vld [vmem:[%s15] sm:$0x1]
  %v1714 = vperm.slane %v1712, 0
  %v1720 = vunpack.c.l.b16 %v1708
  %v1721 = vunpack.c.l.b16 %v1709
  %v1722 = vunpack.c.l.b16 %v1710
  %v1723 = vunpack.c.l.b16 %v1711
  %v1724 = vpack.c.b16 %v1721, %v1720
  %v1725 = vpack.c.b16 %v1723, %v1722
  %v1729 = vsel %vm1664, %v1706, 0
  %v1732 = vsel %vm1664, %v1707, 0
  %1734 = vmatpush.bf16.msra.mxu0 0
  %1735 = vmatpush.bf16.msra.mxu0 0
  %1736 = vmatpush.bf16.msra.mxu0 0
  %1737 = vmatpush.bf16.msra.mxu0 0
  %1738 = vmatpush.bf16.msra.mxu0 0
  %1739 = vmatpush.bf16.msra.mxu0 0
  %1740 = vmatpush.bf16.msra.mxu0 %v1725
  %1741 = vmatpush.bf16.msra.mxu0 %v1724
  %1742 = vmatmul.bf16.gmra.mxu0 %v1729
  %v1743 = vpop.f32.mrf.mxu0
  %v1744 = vadd.f32 %v1714, %v1743
  %v1745 = vpop.f32.mrf.mxu0
  %v1746 = vadd.f32 %v1714, %v1745
  %1747 = vmatmul.bf16.gmra.mxu0 %v1732
  %v1748 = vpop.f32.mrf.mxu0
  %v1749 = vadd.f32 %v1714, %v1748
  %v1750 = vpop.f32.mrf.mxu0
  %v1751 = vadd.f32 %v1714, %v1750
  %1752 = vdwg.mxu0
  %1753 = vst [vmem:[%s18] sm:$0xff] %v1744
  %1754 = vst [vmem:[%s18 + $0x8] sm:$0xff] %v1746
  %1755 = vst [vmem:[%s18 + $0x10] sm:$0xff] %v1749
  %1756 = vst [vmem:[%s18 + $0x18] sm:$0xff] %v1751
  // Predicated region
  $region66: #{closed_call.45} parent=0 // pred_check
    _
  $region67: #{closed_call.45} parent=0 // pred_check_branch
    %1758 = sbr.rel (0) target = $region69
  $region68: #{closed_call.45} parent=0 // pred_region
    _
  $region69: #{closed_call.45} parent=0 // pred_fallthru
    _
  // Predicated region
  $region70: #{closed_call.45} parent=0 // pred_check
    _
  $region71: #{closed_call.45} parent=0 // pred_check_branch
    %1760 = sbr.rel (0) target = $region73
  $region72: #{closed_call.45} parent=0 // pred_region
    _
  $region73: #{closed_call.45} parent=0 // pred_fallthru
    _
  // Predicated region
  $region74: #{closed_call.45} parent=0 // pred_check
    _
  $region75: #{closed_call.45} parent=0 // pred_check_branch
    %1762 = sbr.rel (0) target = $region77
  $region76: #{closed_call.45} parent=0 // pred_region
    _
  $region77: #{closed_call.45} parent=0 // pred_fallthru
    _
  // Predicated region
  $region78: #{closed_call.45} parent=0 // pred_check
    _
  $region79: #{closed_call.45} parent=0 // pred_check_branch
    %1764 = sbr.rel (0) target = $region81
  $region80: #{closed_call.45} parent=0 // pred_region
    _
  $region81: #{closed_call.45} parent=0 // pred_fallthru
    _
  // Predicated region
  $region82: #{closed_call.45} parent=0 // pred_check
    _
  $region83: #{closed_call.45} parent=0 // pred_check_branch
    %1766 = sbr.rel (0) target = $region85
  $region84: #{closed_call.45} parent=0 // pred_region
    _
  $region85: #{closed_call.45} parent=0 // pred_fallthru
    _
  // Predicated region
  $region86: #{closed_call.45} parent=0 // pred_check
    _
  $region87: #{closed_call.45} parent=0 // pred_check_branch
    %1768 = sbr.rel (0) target = $region89
  $region88: #{closed_call.45} parent=0 // pred_region
    _
  $region89: #{closed_call.45} parent=0 // pred_fallthru
    _

// kernel: closed_call.47
$region0: #{closed_call.47}
  #allocation0 [shape = 'u32[]', space=smem, size = 0x4, offset = 0x4, fixed_abs, tag = 'smem constant byte address 0x4 - core index']
  #allocation1 [shape = 'u32[72,128]{1,0:T(1,128)}', space=vmem, size = 0x9000, scoped, tag = 'internal scratch']
  %s0 = inlined_call_operand.vmem [shape: f32[2,4], index: 0, kind: input, shape index: {}]
  %s1 = inlined_call_operand.vmem [shape: f32[2,16], index: 1, kind: input, shape index: {}]
  %s2 = inlined_call_operand.vmem [shape: f32[2,1024], index: 2, kind: input, shape index: {}]
  %s3 = inlined_call_operand.vmem [shape: f32[2,4], index: 3, kind: input, shape index: {}]
  %s4 = inlined_call_operand.vmem [shape: bf16[4,48], index: 4, kind: input, shape index: {}]
  %s5 = inlined_call_operand.vmem [shape: bf16[16,48], index: 5, kind: input, shape index: {}]
  %s6 = inlined_call_operand.vmem [shape: f32[1,48], index: 6, kind: input, shape index: {}]
  %s7 = inlined_call_operand.vmem [shape: f32[1,48], index: 7, kind: input, shape index: {}]
  %s8 = inlined_call_operand.vmem [shape: bf16[16,8], index: 8, kind: input, shape index: {}]
  %s9 = inlined_call_operand.vmem [shape: f32[1,8], index: 9, kind: input, shape index: {}]
  %s10 = inlined_call_operand.vmem [shape: bf16[1024,8], index: 10, kind: input, shape index: {}]
  %s11 = inlined_call_operand.vmem [shape: f32[1,8], index: 11, kind: input, shape index: {}]
  %s12 = inlined_call_operand.vmem [shape: bf16[4,768], index: 12, kind: input, shape index: {}]
  %s13 = inlined_call_operand.vmem [shape: f32[1,768], index: 13, kind: input, shape index: {}]
  %s14 = inlined_call_operand.vmem [shape: f32[2,768], index: 14, kind: output, shape index: {0}]
  %s15 = inlined_call_operand.vmem [shape: f32[2,64], index: 15, kind: output, shape index: {1}]
  %16 = xla_tuple %s14, %s15
  %s17 = sld [smem:[#allocation0]]
  $region74: #{closed_call.47} parent=0
    _
  %s19 = ssub.s32 1, %s17
  %s20 = scalar_select 0, %s19, %s17
  // Predicated region
  $region2: #{closed_call.47} parent=0 // pred_check
    _
  $region3: #{closed_call.47} parent=0 // pred_check_branch
    %22 = sbr.rel (0) target = $region5
  $region4: #{closed_call.47} parent=0 // pred_region
    _
  $region5: #{closed_call.47} parent=0 // pred_fallthru
    _
  // Predicated region
  $region6: #{closed_call.47} parent=0 // pred_check
    _
  $region7: #{closed_call.47} parent=0 // pred_check_branch
    %24 = sbr.rel (0) target = $region9
  $region8: #{closed_call.47} parent=0 // pred_region
    _
  $region9: #{closed_call.47} parent=0 // pred_fallthru
    _
  // Predicated region
  $region10: #{closed_call.47} parent=0 // pred_check
    _
  $region11: #{closed_call.47} parent=0 // pred_check_branch
    %26 = sbr.rel (0) target = $region13
  $region12: #{closed_call.47} parent=0 // pred_region
    _
  $region13: #{closed_call.47} parent=0 // pred_fallthru
    _
  // Predicated region
  $region14: #{closed_call.47} parent=0 // pred_check
    _
  $region15: #{closed_call.47} parent=0 // pred_check_branch
    %28 = sbr.rel (0) target = $region17
  $region16: #{closed_call.47} parent=0 // pred_region
    _
  $region17: #{closed_call.47} parent=0 // pred_fallthru
    _
  // Predicated region
  $region18: #{closed_call.47} parent=0 // pred_check
    _
  $region19: #{closed_call.47} parent=0 // pred_check_branch
    %30 = sbr.rel (0) target = $region21
  $region20: #{closed_call.47} parent=0 // pred_region
    _
  $region21: #{closed_call.47} parent=0 // pred_fallthru
    _
  // Predicated region
  $region22: #{closed_call.47} parent=0 // pred_check
    _
  $region23: #{closed_call.47} parent=0 // pred_check_branch
    %32 = sbr.rel (0) target = $region25
  $region24: #{closed_call.47} parent=0 // pred_region
    _
  $region25: #{closed_call.47} parent=0 // pred_fallthru
    _
  // Predicated region
  $region26: #{closed_call.47} parent=0 // pred_check
    _
  $region27: #{closed_call.47} parent=0 // pred_check_branch
    %34 = sbr.rel (0) target = $region29
  $region28: #{closed_call.47} parent=0 // pred_region
    _
  $region29: #{closed_call.47} parent=0 // pred_fallthru
    _
  // Predicated region
  $region30: #{closed_call.47} parent=0 // pred_check
    _
  $region31: #{closed_call.47} parent=0 // pred_check_branch
    %36 = sbr.rel (0) target = $region33
  $region32: #{closed_call.47} parent=0 // pred_region
    _
  $region33: #{closed_call.47} parent=0 // pred_fallthru
    _
  // Predicated region
  $region34: #{closed_call.47} parent=0 // pred_check
    _
  $region35: #{closed_call.47} parent=0 // pred_check_branch
    %38 = sbr.rel (0) target = $region37
  $region36: #{closed_call.47} parent=0 // pred_region
    _
  $region37: #{closed_call.47} parent=0 // pred_fallthru
    _
  // Predicated region
  $region38: #{closed_call.47} parent=0 // pred_check
    _
  $region39: #{closed_call.47} parent=0 // pred_check_branch
    %40 = sbr.rel (0) target = $region41
  $region40: #{closed_call.47} parent=0 // pred_region
    _
  $region41: #{closed_call.47} parent=0 // pred_fallthru
    _
  // Predicated region
  $region42: #{closed_call.47} parent=0 // pred_check
    _
  $region43: #{closed_call.47} parent=0 // pred_check_branch
    %42 = sbr.rel (0) target = $region45
  $region44: #{closed_call.47} parent=0 // pred_region
    _
  $region45: #{closed_call.47} parent=0 // pred_fallthru
    _
  // Predicated region
  $region46: #{closed_call.47} parent=0 // pred_check
    _
  $region47: #{closed_call.47} parent=0 // pred_check_branch
    %44 = sbr.rel (0) target = $region49
  $region48: #{closed_call.47} parent=0 // pred_region
    _
  $region49: #{closed_call.47} parent=0 // pred_fallthru
    _
  // Predicated region
  $region50: #{closed_call.47} parent=0 // pred_check
    _
  $region51: #{closed_call.47} parent=0 // pred_check_branch
    %46 = sbr.rel (0) target = $region53
  $region52: #{closed_call.47} parent=0 // pred_region
    _
  $region53: #{closed_call.47} parent=0 // pred_fallthru
    _
  // Predicated region
  $region54: #{closed_call.47} parent=0 // pred_check
    _
  $region55: #{closed_call.47} parent=0 // pred_check_branch
    %48 = sbr.rel (0) target = $region57
  $region56: #{closed_call.47} parent=0 // pred_region
    _
  $region57: #{closed_call.47} parent=0 // pred_fallthru
    _
  %v50 = vld [vmem:[%s0] sm:$0x3]
  %v51 = vld [vmem:[%s1] sm:$0x3]
  %v52 = vpack.c.bf16 %v50, %v50
  %v53 = vld [vmem:[%s4] sm:$0x3]
  %v54 = vld [vmem:[%s6] sm:$0x1]
  %v56 = vperm.slane %v54, 0
  %vm58 = vcmask 31744
  %v60 = vsel %vm58, %v52, 0
  %vm62 = vcmask 1041408
  %v64 = vsel %vm62, %v53, 0
  %66 = vmatpush.bf16.msra.mxu0 0
  %67 = vmatpush.bf16.msra.mxu0 0
  %68 = vmatpush.bf16.msra.mxu0 0
  %69 = vmatpush.bf16.msra.mxu0 0
  %70 = vmatpush.bf16.msra.mxu0 0
  %71 = vmatpush.bf16.msra.mxu0 0
  %72 = vmatpush.bf16.msra.mxu0 0
  %73 = vmatpush.bf16.msra.mxu0 %v64
  %74 = vmatmul.bf16.gmra.mxu0 %v60
  %v75 = vpop.f32.mrf.mxu0
  %v76 = vadd.f32 %v56, %v75
  %v77 = vpop.f32.mrf.mxu0
  %78 = vdwg.mxu0
  %v79 = vpack.c.bf16 %v51, %v51
  %v80 = vld [vmem:[%s5] sm:$0xf]
  %v81 = vld [vmem:[%s5 + $0x4] sm:$0xf]
  %v82 = vld [vmem:[%s7] sm:$0x1]
  %v84 = vperm.slane %v82, 0
  %v88 = vunpack.c.l.b16 %v80
  %v89 = vunpack.c.l.b16 %v81
  %v90 = vpack.c.b16 %v89, %v88
  %vm92 = vcmask 130048
  %v94 = vsel %vm92, %v79, 0
  %96 = vmatpush.bf16.msra.mxu0 0
  %97 = vmatpush.bf16.msra.mxu0 0
  %98 = vmatpush.bf16.msra.mxu0 0
  %99 = vmatpush.bf16.msra.mxu0 0
  %100 = vmatpush.bf16.msra.mxu0 0
  %101 = vmatpush.bf16.msra.mxu0 0
  %102 = vmatpush.bf16.msra.mxu0 0
  %103 = vmatpush.bf16.msra.mxu0 %v90
  %104 = vmatmul.bf16.gmra.mxu0 %v94
  %v105 = vpop.f32.mrf.mxu0
  %v106 = vadd.f32 %v84, %v105
  %v107 = vpop.f32.mrf.mxu0
  %108 = vdwg.mxu0
  %v109 = vadd.f32 %v76, %v106
  %v110 = vxor.u32 %v109, 2147483648
  %v111 = vmul.f32 %v110, 1.442695
  %v112 = vpow.pop %v111
  %v113 = vadd.f32 %v112, 1.0
  %v114 = vrcp.pop %v113
  %v115 = vmul.f32 %v113, %v114
  %v116 = vsub.f32 1.0, %v115
  %v117 = vmul.f32 %v114, %v116
  %v118 = vadd.f32 %v114, %v117
  %vm119 = vweird.f32 %v113
  %vm120 = vweird.f32 %v114
  %vm121 = vmor %vm119, %vm120
  %v122 = vsel %vm121, %v114, %v118
  %v123 = vand.u32 2147483647, %v113
  %vm124 = vcmp.eq.f32.partialorder %v123, 8.507059e+37
  %v125 = vand.u32 %v113, 2147483648
  %v126 = vor.u32 1.1754944e-38, %v125
  %v127 = vsel %vm124, %v126, %v122
  %v128 = vmul.f32 1.0, %v127
  %130 = vrot.lane.b32.xlu0 %v106, 96
  %v131 = vpop.permute.xlu0 %130
  %v133 = vmul.f32 %v128, %v131
  %135 = vrot.lane.b32.xlu0 %v133, 32
  %v136 = vpop.permute.xlu0 %135
  %v138 = vadd.f32 %v76, %v136
  %v139 = vtanh.pop %v138
  %v140 = vsub.f32 1.0, %v128
  %142 = vrot.lane.b32.xlu0 %v139, 112
  %v143 = vpop.permute.xlu0 %142
  %v145 = vmul.f32 %v140, %v143
  %147 = vrot.lane.b32.xlu0 %v51, 16
  %v148 = vpop.permute.xlu0 %147
  %v150 = vmul.f32 %v128, %v148
  %v151 = vadd.f32 %v145, %v150
  %v152 = vpack.c.bf16 %v151, %v151
  %v153 = vld [vmem:[%s8] sm:$0xf]
  %v154 = vld [vmem:[%s8 + $0x4] sm:$0xf]
  %v155 = vld [vmem:[%s9] sm:$0x1]
  %v157 = vperm.slane %v155, 0
  %160 = vrot.lane.b32.xlu0 %v152, 112
  %v161 = vpop.permute.xlu0 %160
  %v164 = vunpack.c.l.b16 %v153
  %v165 = vunpack.c.l.b16 %v154
  %v166 = vpack.c.b16 %v165, %v164
  %v169 = vsel %vm92, %v161, 0
  %171 = vmatpush.bf16.msra.mxu0 0
  %172 = vmatpush.bf16.msra.mxu0 0
  %173 = vmatpush.bf16.msra.mxu0 0
  %174 = vmatpush.bf16.msra.mxu0 0
  %175 = vmatpush.bf16.msra.mxu0 0
  %176 = vmatpush.bf16.msra.mxu0 0
  %177 = vmatpush.bf16.msra.mxu0 0
  %178 = vmatpush.bf16.msra.mxu0 %v166
  %179 = vmatmul.bf16.gmra.mxu0 %v169
  %v180 = vpop.f32.mrf.mxu0
  %v181 = vadd.f32 %v157, %v180
  %v182 = vpop.f32.mrf.mxu0
  %183 = vdwg.mxu0
  %v184 = vld [vmem:[%s2] sm:$0xff]
  %v185 = vld [vmem:[%s2 + $0x8] sm:$0xff]
  %188 = vst [vmem:[#allocation1] ss:$4 sm:$0xff] %v184
  %s189 = scalar_lea.vmem [#allocation1], 32
  %190 = vst [vmem:[%s189] ss:$4 sm:$0xff] %v185
  %v191 = vld.sshfl [vmem:[#allocation1] sm:$0xff pattern:$0x73625140]
  %v192 = vld.sshfl [vmem:[#allocation1 + $0x8] sm:$0xff pattern:$0x73625140]
  %v193 = vld.sshfl [vmem:[#allocation1 + $0x10] sm:$0xff pattern:$0x73625140]
  %v194 = vld.sshfl [vmem:[#allocation1 + $0x18] sm:$0xff pattern:$0x73625140]
  %v195 = vld.sshfl [vmem:[#allocation1 + $0x20] sm:$0xff pattern:$0x73625140]
  %v196 = vld.sshfl [vmem:[#allocation1 + $0x28] sm:$0xff pattern:$0x73625140]
  %v197 = vld.sshfl [vmem:[#allocation1 + $0x30] sm:$0xff pattern:$0x73625140]
  %v198 = vld.sshfl [vmem:[#allocation1 + $0x38] sm:$0xff pattern:$0x73625140]
  %v207 = vpack.c.bf16 %v191, %v191
  %v208 = vpack.c.bf16 %v192, %v192
  %v209 = vpack.c.bf16 %v193, %v193
  %v210 = vpack.c.bf16 %v194, %v194
  %v211 = vpack.c.bf16 %v195, %v195
  %v212 = vpack.c.bf16 %v196, %v196
  %v213 = vpack.c.bf16 %v197, %v197
  %v214 = vpack.c.bf16 %v198, %v198
  %v215 = vld [vmem:[%s10] sm:$0xf]
  %v216 = vld [vmem:[%s10 + $0x4] sm:$0xf]
  %v217 = vld [vmem:[%s10 + $0x8] sm:$0xf]
  %v218 = vld [vmem:[%s10 + $0xc] sm:$0xf]
  %v219 = vld [vmem:[%s10 + $0x10] sm:$0xf]
  %v220 = vld [vmem:[%s10 + $0x14] sm:$0xf]
  %v221 = vld [vmem:[%s10 + $0x18] sm:$0xf]
  %v222 = vld [vmem:[%s10 + $0x1c] sm:$0xf]
  %v223 = vld [vmem:[%s10 + $0x20] sm:$0xf]
  %v224 = vld [vmem:[%s10 + $0x24] sm:$0xf]
  %v225 = vld [vmem:[%s10 + $0x28] sm:$0xf]
  %v226 = vld [vmem:[%s10 + $0x2c] sm:$0xf]
  %v227 = vld [vmem:[%s10 + $0x30] sm:$0xf]
  %v228 = vld [vmem:[%s10 + $0x34] sm:$0xf]
  %v229 = vld [vmem:[%s10 + $0x38] sm:$0xf]
  %v230 = vld [vmem:[%s10 + $0x3c] sm:$0xf]
  %v231 = vld [vmem:[%s10 + $0x40] sm:$0xf]
  %v232 = vld [vmem:[%s10 + $0x44] sm:$0xf]
  %v233 = vld [vmem:[%s10 + $0x48] sm:$0xf]
  %v234 = vld [vmem:[%s10 + $0x4c] sm:$0xf]
  %v235 = vld [vmem:[%s10 + $0x50] sm:$0xf]
  %v236 = vld [vmem:[%s10 + $0x54] sm:$0xf]
  %v237 = vld [vmem:[%s10 + $0x58] sm:$0xf]
  %v238 = vld [vmem:[%s10 + $0x5c] sm:$0xf]
  %v239 = vld [vmem:[%s10 + $0x60] sm:$0xf]
  %v240 = vld [vmem:[%s10 + $0x64] sm:$0xf]
  %v241 = vld [vmem:[%s10 + $0x68] sm:$0xf]
  %v242 = vld [vmem:[%s10 + $0x6c] sm:$0xf]
  %v243 = vld [vmem:[%s10 + $0x70] sm:$0xf]
  %v244 = vld [vmem:[%s10 + $0x74] sm:$0xf]
  %v245 = vld [vmem:[%s10 + $0x78] sm:$0xf]
  %v246 = vld [vmem:[%s10 + $0x7c] sm:$0xf]
  %v247 = vld [vmem:[%s10 + $0x80] sm:$0xf]
  %v248 = vld [vmem:[%s10 + $0x84] sm:$0xf]
  %v249 = vld [vmem:[%s10 + $0x88] sm:$0xf]
  %v250 = vld [vmem:[%s10 + $0x8c] sm:$0xf]
  %v251 = vld [vmem:[%s10 + $0x90] sm:$0xf]
  %v252 = vld [vmem:[%s10 + $0x94] sm:$0xf]
  %v253 = vld [vmem:[%s10 + $0x98] sm:$0xf]
  %v254 = vld [vmem:[%s10 + $0x9c] sm:$0xf]
  %v255 = vld [vmem:[%s10 + $0xa0] sm:$0xf]
  %v256 = vld [vmem:[%s10 + $0xa4] sm:$0xf]
  %v257 = vld [vmem:[%s10 + $0xa8] sm:$0xf]
  %v258 = vld [vmem:[%s10 + $0xac] sm:$0xf]
  %v259 = vld [vmem:[%s10 + $0xb0] sm:$0xf]
  %v260 = vld [vmem:[%s10 + $0xb4] sm:$0xf]
  %v261 = vld [vmem:[%s10 + $0xb8] sm:$0xf]
  %v262 = vld [vmem:[%s10 + $0xbc] sm:$0xf]
  %v263 = vld [vmem:[%s10 + $0xc0] sm:$0xf]
  %v264 = vld [vmem:[%s10 + $0xc4] sm:$0xf]
  %v265 = vld [vmem:[%s10 + $0xc8] sm:$0xf]
  %v266 = vld [vmem:[%s10 + $0xcc] sm:$0xf]
  %v267 = vld [vmem:[%s10 + $0xd0] sm:$0xf]
  %v268 = vld [vmem:[%s10 + $0xd4] sm:$0xf]
  %v269 = vld [vmem:[%s10 + $0xd8] sm:$0xf]
  %v270 = vld [vmem:[%s10 + $0xdc] sm:$0xf]
  %v271 = vld [vmem:[%s10 + $0xe0] sm:$0xf]
  %v272 = vld [vmem:[%s10 + $0xe4] sm:$0xf]
  %v273 = vld [vmem:[%s10 + $0xe8] sm:$0xf]
  %v274 = vld [vmem:[%s10 + $0xec] sm:$0xf]
  %v275 = vld [vmem:[%s10 + $0xf0] sm:$0xf]
  %v276 = vld [vmem:[%s10 + $0xf4] sm:$0xf]
  %v277 = vld [vmem:[%s10 + $0xf8] sm:$0xf]
  %v278 = vld [vmem:[%s10 + $0xfc] sm:$0xf]
  %v279 = vld [vmem:[%s10 + $0x100] sm:$0xf]
  %v280 = vld [vmem:[%s10 + $0x104] sm:$0xf]
  %v281 = vld [vmem:[%s10 + $0x108] sm:$0xf]
  %v282 = vld [vmem:[%s10 + $0x10c] sm:$0xf]
  %v283 = vld [vmem:[%s10 + $0x110] sm:$0xf]
  %v284 = vld [vmem:[%s10 + $0x114] sm:$0xf]
  %v285 = vld [vmem:[%s10 + $0x118] sm:$0xf]
  %v286 = vld [vmem:[%s10 + $0x11c] sm:$0xf]
  %v287 = vld [vmem:[%s10 + $0x120] sm:$0xf]
  %v288 = vld [vmem:[%s10 + $0x124] sm:$0xf]
  %v289 = vld [vmem:[%s10 + $0x128] sm:$0xf]
  %v290 = vld [vmem:[%s10 + $0x12c] sm:$0xf]
  %v291 = vld [vmem:[%s10 + $0x130] sm:$0xf]
  %v292 = vld [vmem:[%s10 + $0x134] sm:$0xf]
  %v293 = vld [vmem:[%s10 + $0x138] sm:$0xf]
  %v294 = vld [vmem:[%s10 + $0x13c] sm:$0xf]
  %v295 = vld [vmem:[%s10 + $0x140] sm:$0xf]
  %v296 = vld [vmem:[%s10 + $0x144] sm:$0xf]
  %v297 = vld [vmem:[%s10 + $0x148] sm:$0xf]
  %v298 = vld [vmem:[%s10 + $0x14c] sm:$0xf]
  %v299 = vld [vmem:[%s10 + $0x150] sm:$0xf]
  %v300 = vld [vmem:[%s10 + $0x154] sm:$0xf]
  %v301 = vld [vmem:[%s10 + $0x158] sm:$0xf]
  %v302 = vld [vmem:[%s10 + $0x15c] sm:$0xf]
  %v303 = vld [vmem:[%s10 + $0x160] sm:$0xf]
  %v304 = vld [vmem:[%s10 + $0x164] sm:$0xf]
  %v305 = vld [vmem:[%s10 + $0x168] sm:$0xf]
  %v306 = vld [vmem:[%s10 + $0x16c] sm:$0xf]
  %v307 = vld [vmem:[%s10 + $0x170] sm:$0xf]
  %v308 = vld [vmem:[%s10 + $0x174] sm:$0xf]
  %v309 = vld [vmem:[%s10 + $0x178] sm:$0xf]
  %v310 = vld [vmem:[%s10 + $0x17c] sm:$0xf]
  %v311 = vld [vmem:[%s10 + $0x180] sm:$0xf]
  %v312 = vld [vmem:[%s10 + $0x184] sm:$0xf]
  %v313 = vld [vmem:[%s10 + $0x188] sm:$0xf]
  %v314 = vld [vmem:[%s10 + $0x18c] sm:$0xf]
  %v315 = vld [vmem:[%s10 + $0x190] sm:$0xf]
  %v316 = vld [vmem:[%s10 + $0x194] sm:$0xf]
  %v317 = vld [vmem:[%s10 + $0x198] sm:$0xf]
  %v318 = vld [vmem:[%s10 + $0x19c] sm:$0xf]
  %v319 = vld [vmem:[%s10 + $0x1a0] sm:$0xf]
  %v320 = vld [vmem:[%s10 + $0x1a4] sm:$0xf]
  %v321 = vld [vmem:[%s10 + $0x1a8] sm:$0xf]
  %v322 = vld [vmem:[%s10 + $0x1ac] sm:$0xf]
  %v323 = vld [vmem:[%s10 + $0x1b0] sm:$0xf]
  %v324 = vld [vmem:[%s10 + $0x1b4] sm:$0xf]
  %v325 = vld [vmem:[%s10 + $0x1b8] sm:$0xf]
  %v326 = vld [vmem:[%s10 + $0x1bc] sm:$0xf]
  %v327 = vld [vmem:[%s10 + $0x1c0] sm:$0xf]
  %v328 = vld [vmem:[%s10 + $0x1c4] sm:$0xf]
  %v329 = vld [vmem:[%s10 + $0x1c8] sm:$0xf]
  %v330 = vld [vmem:[%s10 + $0x1cc] sm:$0xf]
  %v331 = vld [vmem:[%s10 + $0x1d0] sm:$0xf]
  %v332 = vld [vmem:[%s10 + $0x1d4] sm:$0xf]
  %v333 = vld [vmem:[%s10 + $0x1d8] sm:$0xf]
  %v334 = vld [vmem:[%s10 + $0x1dc] sm:$0xf]
  %v335 = vld [vmem:[%s10 + $0x1e0] sm:$0xf]
  %v336 = vld [vmem:[%s10 + $0x1e4] sm:$0xf]
  %v337 = vld [vmem:[%s10 + $0x1e8] sm:$0xf]
  %v338 = vld [vmem:[%s10 + $0x1ec] sm:$0xf]
  %v339 = vld [vmem:[%s10 + $0x1f0] sm:$0xf]
  %v340 = vld [vmem:[%s10 + $0x1f4] sm:$0xf]
  %v341 = vld [vmem:[%s10 + $0x1f8] sm:$0xf]
  %v342 = vld [vmem:[%s10 + $0x1fc] sm:$0xf]
  %v343 = vld [vmem:[%s11] sm:$0x1]
  %v345 = vperm.slane %v343, 0
  %v475 = vunpack.c.l.b16 %v215
  %v476 = vunpack.c.l.b16 %v216
  %v477 = vunpack.c.l.b16 %v217
  %v478 = vunpack.c.l.b16 %v218
  %v479 = vunpack.c.l.b16 %v219
  %v480 = vunpack.c.l.b16 %v220
  %v481 = vunpack.c.l.b16 %v221
  %v482 = vunpack.c.l.b16 %v222
  %v483 = vunpack.c.l.b16 %v223
  %v484 = vunpack.c.l.b16 %v224
  %v485 = vunpack.c.l.b16 %v225
  %v486 = vunpack.c.l.b16 %v226
  %v487 = vunpack.c.l.b16 %v227
  %v488 = vunpack.c.l.b16 %v228
  %v489 = vunpack.c.l.b16 %v229
  %v490 = vunpack.c.l.b16 %v230
  %v491 = vunpack.c.l.b16 %v231
  %v492 = vunpack.c.l.b16 %v232
  %v493 = vunpack.c.l.b16 %v233
  %v494 = vunpack.c.l.b16 %v234
  %v495 = vunpack.c.l.b16 %v235
  %v496 = vunpack.c.l.b16 %v236
  %v497 = vunpack.c.l.b16 %v237
  %v498 = vunpack.c.l.b16 %v238
  %v499 = vunpack.c.l.b16 %v239
  %v500 = vunpack.c.l.b16 %v240
  %v501 = vunpack.c.l.b16 %v241
  %v502 = vunpack.c.l.b16 %v242
  %v503 = vunpack.c.l.b16 %v243
  %v504 = vunpack.c.l.b16 %v244
  %v505 = vunpack.c.l.b16 %v245
  %v506 = vunpack.c.l.b16 %v246
  %v507 = vunpack.c.l.b16 %v247
  %v508 = vunpack.c.l.b16 %v248
  %v509 = vunpack.c.l.b16 %v249
  %v510 = vunpack.c.l.b16 %v250
  %v511 = vunpack.c.l.b16 %v251
  %v512 = vunpack.c.l.b16 %v252
  %v513 = vunpack.c.l.b16 %v253
  %v514 = vunpack.c.l.b16 %v254
  %v515 = vunpack.c.l.b16 %v255
  %v516 = vunpack.c.l.b16 %v256
  %v517 = vunpack.c.l.b16 %v257
  %v518 = vunpack.c.l.b16 %v258
  %v519 = vunpack.c.l.b16 %v259
  %v520 = vunpack.c.l.b16 %v260
  %v521 = vunpack.c.l.b16 %v261
  %v522 = vunpack.c.l.b16 %v262
  %v523 = vunpack.c.l.b16 %v263
  %v524 = vunpack.c.l.b16 %v264
  %v525 = vunpack.c.l.b16 %v265
  %v526 = vunpack.c.l.b16 %v266
  %v527 = vunpack.c.l.b16 %v267
  %v528 = vunpack.c.l.b16 %v268
  %v529 = vunpack.c.l.b16 %v269
  %v530 = vunpack.c.l.b16 %v270
  %v531 = vunpack.c.l.b16 %v271
  %v532 = vunpack.c.l.b16 %v272
  %v533 = vunpack.c.l.b16 %v273
  %v534 = vunpack.c.l.b16 %v274
  %v535 = vunpack.c.l.b16 %v275
  %v536 = vunpack.c.l.b16 %v276
  %v537 = vunpack.c.l.b16 %v277
  %v538 = vunpack.c.l.b16 %v278
  %v539 = vunpack.c.l.b16 %v279
  %v540 = vunpack.c.l.b16 %v280
  %v541 = vunpack.c.l.b16 %v281
  %v542 = vunpack.c.l.b16 %v282
  %v543 = vunpack.c.l.b16 %v283
  %v544 = vunpack.c.l.b16 %v284
  %v545 = vunpack.c.l.b16 %v285
  %v546 = vunpack.c.l.b16 %v286
  %v547 = vunpack.c.l.b16 %v287
  %v548 = vunpack.c.l.b16 %v288
  %v549 = vunpack.c.l.b16 %v289
  %v550 = vunpack.c.l.b16 %v290
  %v551 = vunpack.c.l.b16 %v291
  %v552 = vunpack.c.l.b16 %v292
  %v553 = vunpack.c.l.b16 %v293
  %v554 = vunpack.c.l.b16 %v294
  %v555 = vunpack.c.l.b16 %v295
  %v556 = vunpack.c.l.b16 %v296
  %v557 = vunpack.c.l.b16 %v297
  %v558 = vunpack.c.l.b16 %v298
  %v559 = vunpack.c.l.b16 %v299
  %v560 = vunpack.c.l.b16 %v300
  %v561 = vunpack.c.l.b16 %v301
  %v562 = vunpack.c.l.b16 %v302
  %v563 = vunpack.c.l.b16 %v303
  %v564 = vunpack.c.l.b16 %v304
  %v565 = vunpack.c.l.b16 %v305
  %v566 = vunpack.c.l.b16 %v306
  %v567 = vunpack.c.l.b16 %v307
  %v568 = vunpack.c.l.b16 %v308
  %v569 = vunpack.c.l.b16 %v309
  %v570 = vunpack.c.l.b16 %v310
  %v571 = vunpack.c.l.b16 %v311
  %v572 = vunpack.c.l.b16 %v312
  %v573 = vunpack.c.l.b16 %v313
  %v574 = vunpack.c.l.b16 %v314
  %v575 = vunpack.c.l.b16 %v315
  %v576 = vunpack.c.l.b16 %v316
  %v577 = vunpack.c.l.b16 %v317
  %v578 = vunpack.c.l.b16 %v318
  %v579 = vunpack.c.l.b16 %v319
  %v580 = vunpack.c.l.b16 %v320
  %v581 = vunpack.c.l.b16 %v321
  %v582 = vunpack.c.l.b16 %v322
  %v583 = vunpack.c.l.b16 %v323
  %v584 = vunpack.c.l.b16 %v324
  %v585 = vunpack.c.l.b16 %v325
  %v586 = vunpack.c.l.b16 %v326
  %v587 = vunpack.c.l.b16 %v327
  %v588 = vunpack.c.l.b16 %v328
  %v589 = vunpack.c.l.b16 %v329
  %v590 = vunpack.c.l.b16 %v330
  %v591 = vunpack.c.l.b16 %v331
  %v592 = vunpack.c.l.b16 %v332
  %v593 = vunpack.c.l.b16 %v333
  %v594 = vunpack.c.l.b16 %v334
  %v595 = vunpack.c.l.b16 %v335
  %v596 = vunpack.c.l.b16 %v336
  %v597 = vunpack.c.l.b16 %v337
  %v598 = vunpack.c.l.b16 %v338
  %v599 = vunpack.c.l.b16 %v339
  %v600 = vunpack.c.l.b16 %v340
  %v601 = vunpack.c.l.b16 %v341
  %v602 = vunpack.c.l.b16 %v342
  %v603 = vpack.c.b16 %v476, %v475
  %v604 = vpack.c.b16 %v478, %v477
  %v605 = vpack.c.b16 %v480, %v479
  %v606 = vpack.c.b16 %v482, %v481
  %v607 = vpack.c.b16 %v484, %v483
  %v608 = vpack.c.b16 %v486, %v485
  %v609 = vpack.c.b16 %v488, %v487
  %v610 = vpack.c.b16 %v490, %v489
  %v611 = vpack.c.b16 %v492, %v491
  %v612 = vpack.c.b16 %v494, %v493
  %v613 = vpack.c.b16 %v496, %v495
  %v614 = vpack.c.b16 %v498, %v497
  %v615 = vpack.c.b16 %v500, %v499
  %v616 = vpack.c.b16 %v502, %v501
  %v617 = vpack.c.b16 %v504, %v503
  %v618 = vpack.c.b16 %v506, %v505
  %v619 = vpack.c.b16 %v508, %v507
  %v620 = vpack.c.b16 %v510, %v509
  %v621 = vpack.c.b16 %v512, %v511
  %v622 = vpack.c.b16 %v514, %v513
  %v623 = vpack.c.b16 %v516, %v515
  %v624 = vpack.c.b16 %v518, %v517
  %v625 = vpack.c.b16 %v520, %v519
  %v626 = vpack.c.b16 %v522, %v521
  %v627 = vpack.c.b16 %v524, %v523
  %v628 = vpack.c.b16 %v526, %v525
  %v629 = vpack.c.b16 %v528, %v527
  %v630 = vpack.c.b16 %v530, %v529
  %v631 = vpack.c.b16 %v532, %v531
  %v632 = vpack.c.b16 %v534, %v533
  %v633 = vpack.c.b16 %v536, %v535
  %v634 = vpack.c.b16 %v538, %v537
  %v635 = vpack.c.b16 %v540, %v539
  %v636 = vpack.c.b16 %v542, %v541
  %v637 = vpack.c.b16 %v544, %v543
  %v638 = vpack.c.b16 %v546, %v545
  %v639 = vpack.c.b16 %v548, %v547
  %v640 = vpack.c.b16 %v550, %v549
  %v641 = vpack.c.b16 %v552, %v551
  %v642 = vpack.c.b16 %v554, %v553
  %v643 = vpack.c.b16 %v556, %v555
  %v644 = vpack.c.b16 %v558, %v557
  %v645 = vpack.c.b16 %v560, %v559
  %v646 = vpack.c.b16 %v562, %v561
  %v647 = vpack.c.b16 %v564, %v563
  %v648 = vpack.c.b16 %v566, %v565
  %v649 = vpack.c.b16 %v568, %v567
  %v650 = vpack.c.b16 %v570, %v569
  %v651 = vpack.c.b16 %v572, %v571
  %v652 = vpack.c.b16 %v574, %v573
  %v653 = vpack.c.b16 %v576, %v575
  %v654 = vpack.c.b16 %v578, %v577
  %v655 = vpack.c.b16 %v580, %v579
  %v656 = vpack.c.b16 %v582, %v581
  %v657 = vpack.c.b16 %v584, %v583
  %v658 = vpack.c.b16 %v586, %v585
  %v659 = vpack.c.b16 %v588, %v587
  %v660 = vpack.c.b16 %v590, %v589
  %v661 = vpack.c.b16 %v592, %v591
  %v662 = vpack.c.b16 %v594, %v593
  %v663 = vpack.c.b16 %v596, %v595
  %v664 = vpack.c.b16 %v598, %v597
  %v665 = vpack.c.b16 %v600, %v599
  %v666 = vpack.c.b16 %v602, %v601
  %731 = vmatpush.bf16.msra.mxu0 %v610
  %732 = vmatpush.bf16.msra.mxu0 %v609
  %733 = vmatpush.bf16.msra.mxu0 %v608
  %734 = vmatpush.bf16.msra.mxu0 %v607
  %735 = vmatpush.bf16.msra.mxu0 %v606
  %736 = vmatpush.bf16.msra.mxu0 %v605
  %737 = vmatpush.bf16.msra.mxu0 %v604
  %738 = vmatpush.bf16.msra.mxu0 %v603
  %739 = vmatmul.bf16.gmra.mxu0 %v207
  %v740 = vpop.f32.mrf.mxu0
  %v741 = vadd.f32 %v345, %v740
  %v742 = vpop.f32.mrf.mxu0
  %743 = vdwg.mxu0
  %744 = vmatpush.bf16.msra.mxu0 %v618
  %745 = vmatpush.bf16.msra.mxu0 %v617
  %746 = vmatpush.bf16.msra.mxu0 %v616
  %747 = vmatpush.bf16.msra.mxu0 %v615
  %748 = vmatpush.bf16.msra.mxu0 %v614
  %749 = vmatpush.bf16.msra.mxu0 %v613
  %750 = vmatpush.bf16.msra.mxu0 %v612
  %751 = vmatpush.bf16.msra.mxu0 %v611
  %752 = vmatmul.bf16.gmra.mxu0 %v208
  %v753 = vpop.f32.mrf.mxu0
  %v754 = vadd.f32 %v741, %v753
  %v755 = vpop.f32.mrf.mxu0
  %756 = vdwg.mxu0
  %757 = vmatpush.bf16.msra.mxu0 %v626
  %758 = vmatpush.bf16.msra.mxu0 %v625
  %759 = vmatpush.bf16.msra.mxu0 %v624
  %760 = vmatpush.bf16.msra.mxu0 %v623
  %761 = vmatpush.bf16.msra.mxu0 %v622
  %762 = vmatpush.bf16.msra.mxu0 %v621
  %763 = vmatpush.bf16.msra.mxu0 %v620
  %764 = vmatpush.bf16.msra.mxu0 %v619
  %765 = vmatmul.bf16.gmra.mxu0 %v209
  %v766 = vpop.f32.mrf.mxu0
  %v767 = vadd.f32 %v754, %v766
  %v768 = vpop.f32.mrf.mxu0
  %769 = vdwg.mxu0
  %770 = vmatpush.bf16.msra.mxu0 %v634
  %771 = vmatpush.bf16.msra.mxu0 %v633
  %772 = vmatpush.bf16.msra.mxu0 %v632
  %773 = vmatpush.bf16.msra.mxu0 %v631
  %774 = vmatpush.bf16.msra.mxu0 %v630
  %775 = vmatpush.bf16.msra.mxu0 %v629
  %776 = vmatpush.bf16.msra.mxu0 %v628
  %777 = vmatpush.bf16.msra.mxu0 %v627
  %778 = vmatmul.bf16.gmra.mxu0 %v210
  %v779 = vpop.f32.mrf.mxu0
  %v780 = vadd.f32 %v767, %v779
  %v781 = vpop.f32.mrf.mxu0
  %782 = vdwg.mxu0
  %783 = vmatpush.bf16.msra.mxu0 %v642
  %784 = vmatpush.bf16.msra.mxu0 %v641
  %785 = vmatpush.bf16.msra.mxu0 %v640
  %786 = vmatpush.bf16.msra.mxu0 %v639
  %787 = vmatpush.bf16.msra.mxu0 %v638
  %788 = vmatpush.bf16.msra.mxu0 %v637
  %789 = vmatpush.bf16.msra.mxu0 %v636
  %790 = vmatpush.bf16.msra.mxu0 %v635
  %791 = vmatmul.bf16.gmra.mxu0 %v211
  %v792 = vpop.f32.mrf.mxu0
  %v793 = vadd.f32 %v780, %v792
  %v794 = vpop.f32.mrf.mxu0
  %795 = vdwg.mxu0
  %796 = vmatpush.bf16.msra.mxu0 %v650
  %797 = vmatpush.bf16.msra.mxu0 %v649
  %798 = vmatpush.bf16.msra.mxu0 %v648
  %799 = vmatpush.bf16.msra.mxu0 %v647
  %800 = vmatpush.bf16.msra.mxu0 %v646
  %801 = vmatpush.bf16.msra.mxu0 %v645
  %802 = vmatpush.bf16.msra.mxu0 %v644
  %803 = vmatpush.bf16.msra.mxu0 %v643
  %804 = vmatmul.bf16.gmra.mxu0 %v212
  %v805 = vpop.f32.mrf.mxu0
  %v806 = vadd.f32 %v793, %v805
  %v807 = vpop.f32.mrf.mxu0
  %808 = vdwg.mxu0
  %809 = vmatpush.bf16.msra.mxu0 %v658
  %810 = vmatpush.bf16.msra.mxu0 %v657
  %811 = vmatpush.bf16.msra.mxu0 %v656
  %812 = vmatpush.bf16.msra.mxu0 %v655
  %813 = vmatpush.bf16.msra.mxu0 %v654
  %814 = vmatpush.bf16.msra.mxu0 %v653
  %815 = vmatpush.bf16.msra.mxu0 %v652
  %816 = vmatpush.bf16.msra.mxu0 %v651
  %817 = vmatmul.bf16.gmra.mxu0 %v213
  %v818 = vpop.f32.mrf.mxu0
  %v819 = vadd.f32 %v806, %v818
  %v820 = vpop.f32.mrf.mxu0
  %821 = vdwg.mxu0
  %822 = vmatpush.bf16.msra.mxu0 %v666
  %823 = vmatpush.bf16.msra.mxu0 %v665
  %824 = vmatpush.bf16.msra.mxu0 %v664
  %825 = vmatpush.bf16.msra.mxu0 %v663
  %826 = vmatpush.bf16.msra.mxu0 %v662
  %827 = vmatpush.bf16.msra.mxu0 %v661
  %828 = vmatpush.bf16.msra.mxu0 %v660
  %829 = vmatpush.bf16.msra.mxu0 %v659
  %830 = vmatmul.bf16.gmra.mxu0 %v214
  %v831 = vpop.f32.mrf.mxu0
  %v832 = vadd.f32 %v819, %v831
  %v833 = vpop.f32.mrf.mxu0
  %834 = vdwg.mxu0
  %v835 = vmax.f32 %v832, 0.0
  %vm836 = vcmp.ne.f32.partialorder %v832, %v832
  %v837 = vadd.f32 %v832, 0.0
  %v838 = vand.u32 2147483647, %v832
  %v839 = vsub.f32 0.0, %v838
  %v840 = vmul.f32 %v839, 1.442695
  %v841 = vpow.pop %v840
  %v842 = vadd.f32 %v841, 1.0
  %v843 = vlog2.pop %v842
  %v844 = vmul.f32 %v843, 0.6931472
  %v845 = vmul.f32 -0.5, %v841
  %v846 = vadd.f32 %v845, 1.0
  %v847 = vmul.f32 %v846, %v841
  %v848 = vand.u32 2147483647, %v841
  %vm849 = vcmp.lt.f32.partialorder %v848, 0.0004427343
  %v850 = vsel %vm849, %v847, %v844
  %v851 = vadd.f32 %v835, %v850
  %v852 = vsel %vm836, %v837, %v851
  %v853 = vld [vmem:[%s3] sm:$0x3]
  %855 = vrot.lane.b32.xlu0 %v853, 4
  %v856 = vpop.permute.xlu0 %855
  %v858 = vmul.f32 %v852, %v856
  %860 = vrot.lane.b32.xlu0 %v858, 124
  %v861 = vpop.permute.xlu0 %860
  %v863 = vadd.f32 %v832, %v861
  %v864 = vpack.c.bf16 %v863, %v863
  %v865 = vld [vmem:[%s12] sm:$0xff]
  %v866 = vld [vmem:[%s12 + $0x8] sm:$0xf]
  %v867 = vld [vmem:[%s13] sm:$0x3f]
  %v869 = vperm.slane %v867, 0
  %v870 = vperm.slane %v867, 1
  %v871 = vperm.slane %v867, 2
  %v872 = vperm.slane %v867, 3
  %v873 = vperm.slane %v867, 4
  %v874 = vperm.slane %v867, 5
  %882 = vst [vmem:[#allocation1] ss:$4 sm:$0xff] %v865
  %s884 = scalar_lea.vmem [#allocation1], 32
  %885 = vst [vmem:[%s884] ss:$4 sm:$0xff] %v866
  %v886 = vld.sshfl [vmem:[#allocation1] sm:$0xff pattern:$0x73625140]
  %v887 = vld.sshfl [vmem:[#allocation1 + $0x8] sm:$0xff pattern:$0x73625140]
  %v888 = vld.sshfl [vmem:[#allocation1 + $0x10] sm:$0xff pattern:$0x73625140]
  %v889 = vld.sshfl [vmem:[#allocation1 + $0x18] sm:$0xff pattern:$0x73625140]
  %v890 = vld.sshfl [vmem:[#allocation1 + $0x20] sm:$0xff pattern:$0x73625140]
  %v891 = vld.sshfl [vmem:[#allocation1 + $0x28] sm:$0xff pattern:$0x73625140]
  %v893 = vsel %vm58, %v864, 0
  %v895 = vsel %vm62, %v886, 0
  %v897 = vsel %vm62, %v887, 0
  %v899 = vsel %vm62, %v888, 0
  %v901 = vsel %vm62, %v889, 0
  %v903 = vsel %vm62, %v890, 0
  %v905 = vsel %vm62, %v891, 0
  %907 = vmatpush.bf16.msra.mxu0 0
  %908 = vmatpush.bf16.msra.mxu0 0
  %909 = vmatpush.bf16.msra.mxu0 0
  %910 = vmatpush.bf16.msra.mxu0 0
  %911 = vmatpush.bf16.msra.mxu0 0
  %912 = vmatpush.bf16.msra.mxu0 0
  %913 = vmatpush.bf16.msra.mxu0 0
  %914 = vmatpush.bf16.msra.mxu0 %v895
  %915 = vmatmul.bf16.gmra.mxu0 %v893
  %v916 = vpop.f32.mrf.mxu0
  %v917 = vadd.f32 %v869, %v916
  %v918 = vpop.f32.mrf.mxu0
  %919 = vdwg.mxu0
  %920 = vmatpush.bf16.msra.mxu0 0
  %921 = vmatpush.bf16.msra.mxu0 0
  %922 = vmatpush.bf16.msra.mxu0 0
  %923 = vmatpush.bf16.msra.mxu0 0
  %924 = vmatpush.bf16.msra.mxu0 0
  %925 = vmatpush.bf16.msra.mxu0 0
  %926 = vmatpush.bf16.msra.mxu0 0
  %927 = vmatpush.bf16.msra.mxu0 %v897
  %928 = vmatmul.bf16.gmra.mxu0 %v893
  %v929 = vpop.f32.mrf.mxu0
  %v930 = vadd.f32 %v870, %v929
  %v931 = vpop.f32.mrf.mxu0
  %932 = vdwg.mxu0
  %933 = vmatpush.bf16.msra.mxu0 0
  %934 = vmatpush.bf16.msra.mxu0 0
  %935 = vmatpush.bf16.msra.mxu0 0
  %936 = vmatpush.bf16.msra.mxu0 0
  %937 = vmatpush.bf16.msra.mxu0 0
  %938 = vmatpush.bf16.msra.mxu0 0
  %939 = vmatpush.bf16.msra.mxu0 0
  %940 = vmatpush.bf16.msra.mxu0 %v899
  %941 = vmatmul.bf16.gmra.mxu0 %v893
  %v942 = vpop.f32.mrf.mxu0
  %v943 = vadd.f32 %v871, %v942
  %v944 = vpop.f32.mrf.mxu0
  %945 = vdwg.mxu0
  %946 = vmatpush.bf16.msra.mxu0 0
  %947 = vmatpush.bf16.msra.mxu0 0
  %948 = vmatpush.bf16.msra.mxu0 0
  %949 = vmatpush.bf16.msra.mxu0 0
  %950 = vmatpush.bf16.msra.mxu0 0
  %951 = vmatpush.bf16.msra.mxu0 0
  %952 = vmatpush.bf16.msra.mxu0 0
  %953 = vmatpush.bf16.msra.mxu0 %v901
  %954 = vmatmul.bf16.gmra.mxu0 %v893
  %v955 = vpop.f32.mrf.mxu0
  %v956 = vadd.f32 %v872, %v955
  %v957 = vpop.f32.mrf.mxu0
  %958 = vdwg.mxu0
  %959 = vmatpush.bf16.msra.mxu0 0
  %960 = vmatpush.bf16.msra.mxu0 0
  %961 = vmatpush.bf16.msra.mxu0 0
  %962 = vmatpush.bf16.msra.mxu0 0
  %963 = vmatpush.bf16.msra.mxu0 0
  %964 = vmatpush.bf16.msra.mxu0 0
  %965 = vmatpush.bf16.msra.mxu0 0
  %966 = vmatpush.bf16.msra.mxu0 %v903
  %967 = vmatmul.bf16.gmra.mxu0 %v893
  %v968 = vpop.f32.mrf.mxu0
  %v969 = vadd.f32 %v873, %v968
  %v970 = vpop.f32.mrf.mxu0
  %971 = vdwg.mxu0
  %972 = vmatpush.bf16.msra.mxu0 0
  %973 = vmatpush.bf16.msra.mxu0 0
  %974 = vmatpush.bf16.msra.mxu0 0
  %975 = vmatpush.bf16.msra.mxu0 0
  %976 = vmatpush.bf16.msra.mxu0 0
  %977 = vmatpush.bf16.msra.mxu0 0
  %978 = vmatpush.bf16.msra.mxu0 0
  %979 = vmatpush.bf16.msra.mxu0 %v905
  %980 = vmatmul.bf16.gmra.mxu0 %v893
  %v981 = vpop.f32.mrf.mxu0
  %v982 = vadd.f32 %v874, %v981
  %v983 = vpop.f32.mrf.mxu0
  %984 = vdwg.mxu0
  %v985 = vxor.u32 %v917, 2147483648
  %v986 = vxor.u32 %v930, 2147483648
  %v987 = vxor.u32 %v943, 2147483648
  %v988 = vxor.u32 %v956, 2147483648
  %v989 = vxor.u32 %v969, 2147483648
  %v990 = vxor.u32 %v982, 2147483648
  %v991 = vmul.f32 %v985, 1.442695
  %v992 = vpow.pop %v991
  %v993 = vmul.f32 %v986, 1.442695
  %v994 = vpow.pop %v993
  %v995 = vmul.f32 %v987, 1.442695
  %v996 = vpow.pop %v995
  %v997 = vmul.f32 %v988, 1.442695
  %v998 = vpow.pop %v997
  %v999 = vmul.f32 %v989, 1.442695
  %v1000 = vpow.pop %v999
  %v1001 = vmul.f32 %v990, 1.442695
  %v1002 = vpow.pop %v1001
  %v1003 = vadd.f32 %v992, 1.0
  %v1004 = vadd.f32 %v994, 1.0
  %v1005 = vadd.f32 %v996, 1.0
  %v1006 = vadd.f32 %v998, 1.0
  %v1007 = vadd.f32 %v1000, 1.0
  %v1008 = vadd.f32 %v1002, 1.0
  %v1009 = vrcp.pop %v1003
  %v1010 = vmul.f32 %v1003, %v1009
  %v1011 = vsub.f32 1.0, %v1010
  %v1012 = vmul.f32 %v1009, %v1011
  %v1013 = vadd.f32 %v1009, %v1012
  %vm1014 = vweird.f32 %v1003
  %vm1015 = vweird.f32 %v1009
  %vm1016 = vmor %vm1014, %vm1015
  %v1017 = vsel %vm1016, %v1009, %v1013
  %v1018 = vand.u32 2147483647, %v1003
  %vm1019 = vcmp.eq.f32.partialorder %v1018, 8.507059e+37
  %v1020 = vand.u32 %v1003, 2147483648
  %v1021 = vor.u32 1.1754944e-38, %v1020
  %v1022 = vsel %vm1019, %v1021, %v1017
  %v1023 = vmul.f32 1.0, %v1022
  %v1024 = vrcp.pop %v1004
  %v1025 = vmul.f32 %v1004, %v1024
  %v1026 = vsub.f32 1.0, %v1025
  %v1027 = vmul.f32 %v1024, %v1026
  %v1028 = vadd.f32 %v1024, %v1027
  %vm1029 = vweird.f32 %v1004
  %vm1030 = vweird.f32 %v1024
  %vm1031 = vmor %vm1029, %vm1030
  %v1032 = vsel %vm1031, %v1024, %v1028
  %v1033 = vand.u32 2147483647, %v1004
  %vm1034 = vcmp.eq.f32.partialorder %v1033, 8.507059e+37
  %v1035 = vand.u32 %v1004, 2147483648
  %v1036 = vor.u32 1.1754944e-38, %v1035
  %v1037 = vsel %vm1034, %v1036, %v1032
  %v1038 = vmul.f32 1.0, %v1037
  %v1039 = vrcp.pop %v1005
  %v1040 = vmul.f32 %v1005, %v1039
  %v1041 = vsub.f32 1.0, %v1040
  %v1042 = vmul.f32 %v1039, %v1041
  %v1043 = vadd.f32 %v1039, %v1042
  %vm1044 = vweird.f32 %v1005
  %vm1045 = vweird.f32 %v1039
  %vm1046 = vmor %vm1044, %vm1045
  %v1047 = vsel %vm1046, %v1039, %v1043
  %v1048 = vand.u32 2147483647, %v1005
  %vm1049 = vcmp.eq.f32.partialorder %v1048, 8.507059e+37
  %v1050 = vand.u32 %v1005, 2147483648
  %v1051 = vor.u32 1.1754944e-38, %v1050
  %v1052 = vsel %vm1049, %v1051, %v1047
  %v1053 = vmul.f32 1.0, %v1052
  %v1054 = vrcp.pop %v1006
  %v1055 = vmul.f32 %v1006, %v1054
  %v1056 = vsub.f32 1.0, %v1055
  %v1057 = vmul.f32 %v1054, %v1056
  %v1058 = vadd.f32 %v1054, %v1057
  %vm1059 = vweird.f32 %v1006
  %vm1060 = vweird.f32 %v1054
  %vm1061 = vmor %vm1059, %vm1060
  %v1062 = vsel %vm1061, %v1054, %v1058
  %v1063 = vand.u32 2147483647, %v1006
  %vm1064 = vcmp.eq.f32.partialorder %v1063, 8.507059e+37
  %v1065 = vand.u32 %v1006, 2147483648
  %v1066 = vor.u32 1.1754944e-38, %v1065
  %v1067 = vsel %vm1064, %v1066, %v1062
  %v1068 = vmul.f32 1.0, %v1067
  %v1069 = vrcp.pop %v1007
  %v1070 = vmul.f32 %v1007, %v1069
  %v1071 = vsub.f32 1.0, %v1070
  %v1072 = vmul.f32 %v1069, %v1071
  %v1073 = vadd.f32 %v1069, %v1072
  %vm1074 = vweird.f32 %v1007
  %vm1075 = vweird.f32 %v1069
  %vm1076 = vmor %vm1074, %vm1075
  %v1077 = vsel %vm1076, %v1069, %v1073
  %v1078 = vand.u32 2147483647, %v1007
  %vm1079 = vcmp.eq.f32.partialorder %v1078, 8.507059e+37
  %v1080 = vand.u32 %v1007, 2147483648
  %v1081 = vor.u32 1.1754944e-38, %v1080
  %v1082 = vsel %vm1079, %v1081, %v1077
  %v1083 = vmul.f32 1.0, %v1082
  %v1084 = vrcp.pop %v1008
  %v1085 = vmul.f32 %v1008, %v1084
  %v1086 = vsub.f32 1.0, %v1085
  %v1087 = vmul.f32 %v1084, %v1086
  %v1088 = vadd.f32 %v1084, %v1087
  %vm1089 = vweird.f32 %v1008
  %vm1090 = vweird.f32 %v1084
  %vm1091 = vmor %vm1089, %vm1090
  %v1092 = vsel %vm1091, %v1084, %v1088
  %v1093 = vand.u32 2147483647, %v1008
  %vm1094 = vcmp.eq.f32.partialorder %v1093, 8.507059e+37
  %v1095 = vand.u32 %v1008, 2147483648
  %v1096 = vor.u32 1.1754944e-38, %v1095
  %v1097 = vsel %vm1094, %v1096, %v1092
  %v1098 = vmul.f32 1.0, %v1097
  %v1105 = vrot.slane %v1038, 6
  %v1106 = vrot.slane %v1053, 4
  %v1107 = vrot.slane %v1068, 2
  %v1108 = vrot.slane %v1098, 6
  %v1109 = vsel %vm62, %v1023, %v1105
  %vm1110 = vcmask 1045508
  %v1111 = vsel %vm1110, %v1106, %v1107
  %vm1112 = vcmask 1043456
  %v1113 = vsel %vm1112, %v1109, %v1111
  %v1114 = vsel %vm62, %v1083, %v1108
  %1117 = vst [vmem:[%s14] sm:$0xff] %v1113
  %1118 = vst [vmem:[%s14 + $0x8] sm:$0xf] %v1114
  %1120 = vrot.lane.b32.xlu0 %v151, 112
  %v1121 = vpop.permute.xlu0 %1120
  %1124 = vrot.lane.b32.xlu0 %v181, 16
  %v1125 = vpop.permute.xlu0 %1124
  %1128 = vrot.lane.b32.xlu0 %v832, 24
  %v1129 = vpop.permute.xlu0 %1128
  %1132 = vrot.lane.b32.xlu0 %v852, 24
  %v1133 = vpop.permute.xlu0 %1132
  %1136 = vrot.lane.b32.xlu0 %v863, 32
  %v1137 = vpop.permute.xlu0 %1136
  %v1139 = vsel %vm92, %v1121, %v1125
  %vm1140 = vcmask 195584
  %v1141 = vsel %vm1140, %v1139, %v1129
  %vm1142 = vcmask 228352
  %v1143 = vsel %vm1142, %v1141, %v1133
  %vm1144 = vcmask 261120
  %v1145 = vsel %vm1144, %v1143, %v1137
  %vm1146 = vcmask 293888
  %v1147 = vsel %vm1146, %v1145, 0.0
  %vm1148 = vcmask 517120
  %1149 = vst.msk [vmem:[%s15] sm:$0x3] %vm1148, %v1147
  // Predicated region
  $region58: #{closed_call.47} parent=0 // pred_check
    _
  $region59: #{closed_call.47} parent=0 // pred_check_branch
    %1151 = sbr.rel (0) target = $region61
  $region60: #{closed_call.47} parent=0 // pred_region
    _
  $region61: #{closed_call.47} parent=0 // pred_fallthru
    _
  // Predicated region
  $region62: #{closed_call.47} parent=0 // pred_check
    _
  $region63: #{closed_call.47} parent=0 // pred_check_branch
    %1153 = sbr.rel (0) target = $region65
  $region64: #{closed_call.47} parent=0 // pred_region
    _
  $region65: #{closed_call.47} parent=0 // pred_fallthru
    _
  // Predicated region
  $region66: #{closed_call.47} parent=0 // pred_check
    _
  $region67: #{closed_call.47} parent=0 // pred_check_branch
    %1155 = sbr.rel (0) target = $region69
  $region68: #{closed_call.47} parent=0 // pred_region
    _
  $region69: #{closed_call.47} parent=0 // pred_fallthru
    _
  // Predicated region
  $region70: #{closed_call.47} parent=0 // pred_check
    _
  $region71: #{closed_call.47} parent=0 // pred_check_branch
    %1157 = sbr.rel (0) target = $region73
  $region72: #{closed_call.47} parent=0 // pred_region
    _
  $region73: #{closed_call.47} parent=0 // pred_fallthru
    _

// kernel: closed_call.46
$region0: #{closed_call.46}
  #allocation0 [shape = 'u32[]', space=smem, size = 0x4, offset = 0x4, fixed_abs, tag = 'smem constant byte address 0x4 - core index']
  #allocation1 [shape = 'u32[72,128]{1,0:T(1,128)}', space=vmem, size = 0x9000, scoped, tag = 'internal scratch']
  %s0 = inlined_call_operand.vmem [shape: f32[128,16], index: 0, kind: input, shape index: {}]
  %s1 = inlined_call_operand.vmem [shape: bf16[8,1024], index: 1, kind: input, shape index: {}]
  %s2 = inlined_call_operand.vmem [shape: f32[1,1024], index: 2, kind: input, shape index: {}]
  %s3 = inlined_call_operand.vmem [shape: f32[2,1,768], index: 3, kind: output, shape index: {0}]
  %s4 = inlined_call_operand.vmem [shape: f32[2,1,256], index: 4, kind: output, shape index: {1}]
  %s5 = inlined_call_operand.vmem [shape: f32[2,1,256], index: 5, kind: output, shape index: {2}]
  %6 = xla_tuple %s3, %s4, %s5
  %s7 = sld [smem:[#allocation0]]
  $region38: #{closed_call.46} parent=0
    _
  %s9 = ssub.s32 1, %s7
  %s10 = scalar_select 0, %s9, %s7
  // Predicated region
  $region2: #{closed_call.46} parent=0 // pred_check
    _
  $region3: #{closed_call.46} parent=0 // pred_check_branch
    %12 = sbr.rel (0) target = $region5
  $region4: #{closed_call.46} parent=0 // pred_region
    _
  $region5: #{closed_call.46} parent=0 // pred_fallthru
    _
  // Predicated region
  $region6: #{closed_call.46} parent=0 // pred_check
    _
  $region7: #{closed_call.46} parent=0 // pred_check_branch
    %14 = sbr.rel (0) target = $region9
  $region8: #{closed_call.46} parent=0 // pred_region
    _
  $region9: #{closed_call.46} parent=0 // pred_fallthru
    _
  // Predicated region
  $region10: #{closed_call.46} parent=0 // pred_check
    _
  $region11: #{closed_call.46} parent=0 // pred_check_branch
    %16 = sbr.rel (0) target = $region13
  $region12: #{closed_call.46} parent=0 // pred_region
    _
  $region13: #{closed_call.46} parent=0 // pred_fallthru
    _
  %v18 = vld [vmem:[%s0] sm:$0xff]
  %v19 = vld [vmem:[%s0 + $0x8] sm:$0xff]
  %v20 = vld [vmem:[%s0 + $0x10] sm:$0xff]
  %v21 = vld [vmem:[%s0 + $0x18] sm:$0xff]
  %v22 = vld [vmem:[%s0 + $0x20] sm:$0xff]
  %v23 = vld [vmem:[%s0 + $0x28] sm:$0xff]
  %v24 = vld [vmem:[%s0 + $0x30] sm:$0xff]
  %v25 = vld [vmem:[%s0 + $0x38] sm:$0xff]
  %v26 = vld [vmem:[%s0 + $0x40] sm:$0xff]
  %v27 = vld [vmem:[%s0 + $0x48] sm:$0xff]
  %v28 = vld [vmem:[%s0 + $0x50] sm:$0xff]
  %v29 = vld [vmem:[%s0 + $0x58] sm:$0xff]
  %v30 = vld [vmem:[%s0 + $0x60] sm:$0xff]
  %v31 = vld [vmem:[%s0 + $0x68] sm:$0xff]
  %v32 = vld [vmem:[%s0 + $0x70] sm:$0xff]
  %v33 = vld [vmem:[%s0 + $0x78] sm:$0xff]
  %v34 = vpack.c.bf16 %v19, %v18
  %v35 = vpack.c.bf16 %v21, %v20
  %v36 = vpack.c.bf16 %v23, %v22
  %v37 = vpack.c.bf16 %v25, %v24
  %v38 = vpack.c.bf16 %v27, %v26
  %v39 = vpack.c.bf16 %v29, %v28
  %v40 = vpack.c.bf16 %v31, %v30
  %v41 = vpack.c.bf16 %v33, %v32
  %v42 = vld [vmem:[%s1] sm:$0xff]
  %v43 = vld [vmem:[%s1 + $0x8] sm:$0xff]
  %v44 = vld [vmem:[%s1 + $0x10] sm:$0xff]
  %v45 = vld [vmem:[%s1 + $0x18] sm:$0xff]
  %v46 = vld [vmem:[%s2] sm:$0xff]
  %v48 = vperm.slane %v46, 0
  %v49 = vperm.slane %v46, 1
  %v50 = vperm.slane %v46, 2
  %v51 = vperm.slane %v46, 3
  %v52 = vperm.slane %v46, 4
  %v53 = vperm.slane %v46, 5
  %v54 = vperm.slane %v46, 6
  %v55 = vperm.slane %v46, 7
  %v68 = vunpack.c.l.b16 %v42
  %v69 = vunpack.c.h.b16 %v42
  %v70 = vunpack.c.l.b16 %v43
  %v71 = vunpack.c.h.b16 %v43
  %v72 = vunpack.c.l.b16 %v44
  %v73 = vunpack.c.h.b16 %v44
  %v74 = vunpack.c.l.b16 %v45
  %v75 = vunpack.c.h.b16 %v45
  %v76 = vpack.c.b16 %v68, %v68
  %v77 = vpack.c.b16 %v69, %v69
  %v78 = vpack.c.b16 %v70, %v70
  %v79 = vpack.c.b16 %v71, %v71
  %v80 = vpack.c.b16 %v72, %v72
  %v81 = vpack.c.b16 %v73, %v73
  %v82 = vpack.c.b16 %v74, %v74
  %v83 = vpack.c.b16 %v75, %v75
  %vm84 = vcmask 64512
  %v86 = vsel %vm84, %v34, 0
  %v89 = vsel %vm84, %v35, 0
  %v92 = vsel %vm84, %v36, 0
  %v95 = vsel %vm84, %v37, 0
  %v98 = vsel %vm84, %v38, 0
  %v101 = vsel %vm84, %v39, 0
  %v104 = vsel %vm84, %v40, 0
  %v107 = vsel %vm84, %v41, 0
  %vm109 = vcmask 1043456
  %v111 = vsel %vm109, %v76, 0
  %v114 = vsel %vm109, %v77, 0
  %v117 = vsel %vm109, %v78, 0
  %v120 = vsel %vm109, %v79, 0
  %v123 = vsel %vm109, %v80, 0
  %v126 = vsel %vm109, %v81, 0
  %v129 = vsel %vm109, %v82, 0
  %v132 = vsel %vm109, %v83, 0
  %134 = vmatpush.bf16.msra.mxu0 0
  %135 = vmatpush.bf16.msra.mxu0 0
  %136 = vmatpush.bf16.msra.mxu0 0
  %137 = vmatpush.bf16.msra.mxu0 0
  %138 = vmatpush.bf16.msra.mxu0 0
  %139 = vmatpush.bf16.msra.mxu0 0
  %140 = vmatpush.bf16.msra.mxu0 0
  %141 = vmatpush.bf16.msra.mxu0 %v111
  %142 = vmatmul.bf16.gmra.mxu0 %v86
  %v143 = vpop.f32.mrf.mxu0
  %v144 = vadd.f32 %v48, %v143
  %v145 = vpop.f32.mrf.mxu0
  %v146 = vadd.f32 %v48, %v145
  %147 = vmatmul.bf16.gmra.mxu0 %v89
  %v148 = vpop.f32.mrf.mxu0
  %v149 = vadd.f32 %v48, %v148
  %v150 = vpop.f32.mrf.mxu0
  %v151 = vadd.f32 %v48, %v150
  %152 = vmatmul.bf16.gmra.mxu0 %v92
  %v153 = vpop.f32.mrf.mxu0
  %v154 = vadd.f32 %v48, %v153
  %v155 = vpop.f32.mrf.mxu0
  %v156 = vadd.f32 %v48, %v155
  %157 = vmatmul.bf16.gmra.mxu0 %v95
  %v158 = vpop.f32.mrf.mxu0
  %v159 = vadd.f32 %v48, %v158
  %v160 = vpop.f32.mrf.mxu0
  %v161 = vadd.f32 %v48, %v160
  %162 = vmatmul.bf16.gmra.mxu0 %v98
  %v163 = vpop.f32.mrf.mxu0
  %v164 = vadd.f32 %v48, %v163
  %v165 = vpop.f32.mrf.mxu0
  %v166 = vadd.f32 %v48, %v165
  %167 = vmatmul.bf16.gmra.mxu0 %v101
  %v168 = vpop.f32.mrf.mxu0
  %v169 = vadd.f32 %v48, %v168
  %v170 = vpop.f32.mrf.mxu0
  %v171 = vadd.f32 %v48, %v170
  %172 = vmatmul.bf16.gmra.mxu0 %v104
  %v173 = vpop.f32.mrf.mxu0
  %v174 = vadd.f32 %v48, %v173
  %v175 = vpop.f32.mrf.mxu0
  %v176 = vadd.f32 %v48, %v175
  %177 = vmatmul.bf16.gmra.mxu0 %v107
  %v178 = vpop.f32.mrf.mxu0
  %v179 = vadd.f32 %v48, %v178
  %v180 = vpop.f32.mrf.mxu0
  %v181 = vadd.f32 %v48, %v180
  %182 = vdwg.mxu0
  %183 = vmatpush.bf16.msra.mxu0 0
  %184 = vmatpush.bf16.msra.mxu0 0
  %185 = vmatpush.bf16.msra.mxu0 0
  %186 = vmatpush.bf16.msra.mxu0 0
  %187 = vmatpush.bf16.msra.mxu0 0
  %188 = vmatpush.bf16.msra.mxu0 0
  %189 = vmatpush.bf16.msra.mxu0 0
  %190 = vmatpush.bf16.msra.mxu0 %v114
  %191 = vmatmul.bf16.gmra.mxu0 %v86
  %v192 = vpop.f32.mrf.mxu0
  %v193 = vadd.f32 %v49, %v192
  %v194 = vpop.f32.mrf.mxu0
  %v195 = vadd.f32 %v49, %v194
  %196 = vmatmul.bf16.gmra.mxu0 %v89
  %v197 = vpop.f32.mrf.mxu0
  %v198 = vadd.f32 %v49, %v197
  %v199 = vpop.f32.mrf.mxu0
  %v200 = vadd.f32 %v49, %v199
  %201 = vmatmul.bf16.gmra.mxu0 %v92
  %v202 = vpop.f32.mrf.mxu0
  %v203 = vadd.f32 %v49, %v202
  %v204 = vpop.f32.mrf.mxu0
  %v205 = vadd.f32 %v49, %v204
  %206 = vmatmul.bf16.gmra.mxu0 %v95
  %v207 = vpop.f32.mrf.mxu0
  %v208 = vadd.f32 %v49, %v207
  %v209 = vpop.f32.mrf.mxu0
  %v210 = vadd.f32 %v49, %v209
  %211 = vmatmul.bf16.gmra.mxu0 %v98
  %v212 = vpop.f32.mrf.mxu0
  %v213 = vadd.f32 %v49, %v212
  %v214 = vpop.f32.mrf.mxu0
  %v215 = vadd.f32 %v49, %v214
  %216 = vmatmul.bf16.gmra.mxu0 %v101
  %v217 = vpop.f32.mrf.mxu0
  %v218 = vadd.f32 %v49, %v217
  %v219 = vpop.f32.mrf.mxu0
  %v220 = vadd.f32 %v49, %v219
  %221 = vmatmul.bf16.gmra.mxu0 %v104
  %v222 = vpop.f32.mrf.mxu0
  %v223 = vadd.f32 %v49, %v222
  %v224 = vpop.f32.mrf.mxu0
  %v225 = vadd.f32 %v49, %v224
  %226 = vmatmul.bf16.gmra.mxu0 %v107
  %v227 = vpop.f32.mrf.mxu0
  %v228 = vadd.f32 %v49, %v227
  %v229 = vpop.f32.mrf.mxu0
  %v230 = vadd.f32 %v49, %v229
  %231 = vdwg.mxu0
  %232 = vmatpush.bf16.msra.mxu0 0
  %233 = vmatpush.bf16.msra.mxu0 0
  %234 = vmatpush.bf16.msra.mxu0 0
  %235 = vmatpush.bf16.msra.mxu0 0
  %236 = vmatpush.bf16.msra.mxu0 0
  %237 = vmatpush.bf16.msra.mxu0 0
  %238 = vmatpush.bf16.msra.mxu0 0
  %239 = vmatpush.bf16.msra.mxu0 %v117
  %240 = vmatmul.bf16.gmra.mxu0 %v86
  %v241 = vpop.f32.mrf.mxu0
  %v242 = vadd.f32 %v50, %v241
  %v243 = vpop.f32.mrf.mxu0
  %v244 = vadd.f32 %v50, %v243
  %245 = vmatmul.bf16.gmra.mxu0 %v89
  %v246 = vpop.f32.mrf.mxu0
  %v247 = vadd.f32 %v50, %v246
  %v248 = vpop.f32.mrf.mxu0
  %v249 = vadd.f32 %v50, %v248
  %250 = vmatmul.bf16.gmra.mxu0 %v92
  %v251 = vpop.f32.mrf.mxu0
  %v252 = vadd.f32 %v50, %v251
  %v253 = vpop.f32.mrf.mxu0
  %v254 = vadd.f32 %v50, %v253
  %255 = vmatmul.bf16.gmra.mxu0 %v95
  %v256 = vpop.f32.mrf.mxu0
  %v257 = vadd.f32 %v50, %v256
  %v258 = vpop.f32.mrf.mxu0
  %v259 = vadd.f32 %v50, %v258
  %260 = vmatmul.bf16.gmra.mxu0 %v98
  %v261 = vpop.f32.mrf.mxu0
  %v262 = vadd.f32 %v50, %v261
  %v263 = vpop.f32.mrf.mxu0
  %v264 = vadd.f32 %v50, %v263
  %265 = vmatmul.bf16.gmra.mxu0 %v101
  %v266 = vpop.f32.mrf.mxu0
  %v267 = vadd.f32 %v50, %v266
  %v268 = vpop.f32.mrf.mxu0
  %v269 = vadd.f32 %v50, %v268
  %270 = vmatmul.bf16.gmra.mxu0 %v104
  %v271 = vpop.f32.mrf.mxu0
  %v272 = vadd.f32 %v50, %v271
  %v273 = vpop.f32.mrf.mxu0
  %v274 = vadd.f32 %v50, %v273
  %275 = vmatmul.bf16.gmra.mxu0 %v107
  %v276 = vpop.f32.mrf.mxu0
  %v277 = vadd.f32 %v50, %v276
  %v278 = vpop.f32.mrf.mxu0
  %v279 = vadd.f32 %v50, %v278
  %280 = vdwg.mxu0
  %281 = vmatpush.bf16.msra.mxu0 0
  %282 = vmatpush.bf16.msra.mxu0 0
  %283 = vmatpush.bf16.msra.mxu0 0
  %284 = vmatpush.bf16.msra.mxu0 0
  %285 = vmatpush.bf16.msra.mxu0 0
  %286 = vmatpush.bf16.msra.mxu0 0
  %287 = vmatpush.bf16.msra.mxu0 0
  %288 = vmatpush.bf16.msra.mxu0 %v120
  %289 = vmatmul.bf16.gmra.mxu0 %v86
  %v290 = vpop.f32.mrf.mxu0
  %v291 = vadd.f32 %v51, %v290
  %v292 = vpop.f32.mrf.mxu0
  %v293 = vadd.f32 %v51, %v292
  %294 = vmatmul.bf16.gmra.mxu0 %v89
  %v295 = vpop.f32.mrf.mxu0
  %v296 = vadd.f32 %v51, %v295
  %v297 = vpop.f32.mrf.mxu0
  %v298 = vadd.f32 %v51, %v297
  %299 = vmatmul.bf16.gmra.mxu0 %v92
  %v300 = vpop.f32.mrf.mxu0
  %v301 = vadd.f32 %v51, %v300
  %v302 = vpop.f32.mrf.mxu0
  %v303 = vadd.f32 %v51, %v302
  %304 = vmatmul.bf16.gmra.mxu0 %v95
  %v305 = vpop.f32.mrf.mxu0
  %v306 = vadd.f32 %v51, %v305
  %v307 = vpop.f32.mrf.mxu0
  %v308 = vadd.f32 %v51, %v307
  %309 = vmatmul.bf16.gmra.mxu0 %v98
  %v310 = vpop.f32.mrf.mxu0
  %v311 = vadd.f32 %v51, %v310
  %v312 = vpop.f32.mrf.mxu0
  %v313 = vadd.f32 %v51, %v312
  %314 = vmatmul.bf16.gmra.mxu0 %v101
  %v315 = vpop.f32.mrf.mxu0
  %v316 = vadd.f32 %v51, %v315
  %v317 = vpop.f32.mrf.mxu0
  %v318 = vadd.f32 %v51, %v317
  %319 = vmatmul.bf16.gmra.mxu0 %v104
  %v320 = vpop.f32.mrf.mxu0
  %v321 = vadd.f32 %v51, %v320
  %v322 = vpop.f32.mrf.mxu0
  %v323 = vadd.f32 %v51, %v322
  %324 = vmatmul.bf16.gmra.mxu0 %v107
  %v325 = vpop.f32.mrf.mxu0
  %v326 = vadd.f32 %v51, %v325
  %v327 = vpop.f32.mrf.mxu0
  %v328 = vadd.f32 %v51, %v327
  %329 = vdwg.mxu0
  %330 = vmatpush.bf16.msra.mxu0 0
  %331 = vmatpush.bf16.msra.mxu0 0
  %332 = vmatpush.bf16.msra.mxu0 0
  %333 = vmatpush.bf16.msra.mxu0 0
  %334 = vmatpush.bf16.msra.mxu0 0
  %335 = vmatpush.bf16.msra.mxu0 0
  %336 = vmatpush.bf16.msra.mxu0 0
  %337 = vmatpush.bf16.msra.mxu0 %v123
  %338 = vmatmul.bf16.gmra.mxu0 %v86
  %v339 = vpop.f32.mrf.mxu0
  %v340 = vadd.f32 %v52, %v339
  %v341 = vpop.f32.mrf.mxu0
  %v342 = vadd.f32 %v52, %v341
  %343 = vmatmul.bf16.gmra.mxu0 %v89
  %v344 = vpop.f32.mrf.mxu0
  %v345 = vadd.f32 %v52, %v344
  %v346 = vpop.f32.mrf.mxu0
  %v347 = vadd.f32 %v52, %v346
  %348 = vmatmul.bf16.gmra.mxu0 %v92
  %v349 = vpop.f32.mrf.mxu0
  %v350 = vadd.f32 %v52, %v349
  %v351 = vpop.f32.mrf.mxu0
  %v352 = vadd.f32 %v52, %v351
  %353 = vmatmul.bf16.gmra.mxu0 %v95
  %v354 = vpop.f32.mrf.mxu0
  %v355 = vadd.f32 %v52, %v354
  %v356 = vpop.f32.mrf.mxu0
  %v357 = vadd.f32 %v52, %v356
  %358 = vmatmul.bf16.gmra.mxu0 %v98
  %v359 = vpop.f32.mrf.mxu0
  %v360 = vadd.f32 %v52, %v359
  %v361 = vpop.f32.mrf.mxu0
  %v362 = vadd.f32 %v52, %v361
  %363 = vmatmul.bf16.gmra.mxu0 %v101
  %v364 = vpop.f32.mrf.mxu0
  %v365 = vadd.f32 %v52, %v364
  %v366 = vpop.f32.mrf.mxu0
  %v367 = vadd.f32 %v52, %v366
  %368 = vmatmul.bf16.gmra.mxu0 %v104
  %v369 = vpop.f32.mrf.mxu0
  %v370 = vadd.f32 %v52, %v369
  %v371 = vpop.f32.mrf.mxu0
  %v372 = vadd.f32 %v52, %v371
  %373 = vmatmul.bf16.gmra.mxu0 %v107
  %v374 = vpop.f32.mrf.mxu0
  %v375 = vadd.f32 %v52, %v374
  %v376 = vpop.f32.mrf.mxu0
  %v377 = vadd.f32 %v52, %v376
  %378 = vdwg.mxu0
  %379 = vmatpush.bf16.msra.mxu0 0
  %380 = vmatpush.bf16.msra.mxu0 0
  %381 = vmatpush.bf16.msra.mxu0 0
  %382 = vmatpush.bf16.msra.mxu0 0
  %383 = vmatpush.bf16.msra.mxu0 0
  %384 = vmatpush.bf16.msra.mxu0 0
  %385 = vmatpush.bf16.msra.mxu0 0
  %386 = vmatpush.bf16.msra.mxu0 %v126
  %387 = vmatmul.bf16.gmra.mxu0 %v86
  %v388 = vpop.f32.mrf.mxu0
  %v389 = vadd.f32 %v53, %v388
  %v390 = vpop.f32.mrf.mxu0
  %v391 = vadd.f32 %v53, %v390
  %392 = vmatmul.bf16.gmra.mxu0 %v89
  %v393 = vpop.f32.mrf.mxu0
  %v394 = vadd.f32 %v53, %v393
  %v395 = vpop.f32.mrf.mxu0
  %v396 = vadd.f32 %v53, %v395
  %397 = vmatmul.bf16.gmra.mxu0 %v92
  %v398 = vpop.f32.mrf.mxu0
  %v399 = vadd.f32 %v53, %v398
  %v400 = vpop.f32.mrf.mxu0
  %v401 = vadd.f32 %v53, %v400
  %402 = vmatmul.bf16.gmra.mxu0 %v95
  %v403 = vpop.f32.mrf.mxu0
  %v404 = vadd.f32 %v53, %v403
  %v405 = vpop.f32.mrf.mxu0
  %v406 = vadd.f32 %v53, %v405
  %407 = vmatmul.bf16.gmra.mxu0 %v98
  %v408 = vpop.f32.mrf.mxu0
  %v409 = vadd.f32 %v53, %v408
  %v410 = vpop.f32.mrf.mxu0
  %v411 = vadd.f32 %v53, %v410
  %412 = vmatmul.bf16.gmra.mxu0 %v101
  %v413 = vpop.f32.mrf.mxu0
  %v414 = vadd.f32 %v53, %v413
  %v415 = vpop.f32.mrf.mxu0
  %v416 = vadd.f32 %v53, %v415
  %417 = vmatmul.bf16.gmra.mxu0 %v104
  %v418 = vpop.f32.mrf.mxu0
  %v419 = vadd.f32 %v53, %v418
  %v420 = vpop.f32.mrf.mxu0
  %v421 = vadd.f32 %v53, %v420
  %422 = vmatmul.bf16.gmra.mxu0 %v107
  %v423 = vpop.f32.mrf.mxu0
  %v424 = vadd.f32 %v53, %v423
  %v425 = vpop.f32.mrf.mxu0
  %v426 = vadd.f32 %v53, %v425
  %427 = vdwg.mxu0
  %428 = vmatpush.bf16.msra.mxu0 0
  %429 = vmatpush.bf16.msra.mxu0 0
  %430 = vmatpush.bf16.msra.mxu0 0
  %431 = vmatpush.bf16.msra.mxu0 0
  %432 = vmatpush.bf16.msra.mxu0 0
  %433 = vmatpush.bf16.msra.mxu0 0
  %434 = vmatpush.bf16.msra.mxu0 0
  %435 = vmatpush.bf16.msra.mxu0 %v129
  %436 = vmatmul.bf16.gmra.mxu0 %v86
  %v437 = vpop.f32.mrf.mxu0
  %v438 = vadd.f32 %v54, %v437
  %v439 = vpop.f32.mrf.mxu0
  %v440 = vadd.f32 %v54, %v439
  %441 = vmatmul.bf16.gmra.mxu0 %v89
  %v442 = vpop.f32.mrf.mxu0
  %v443 = vadd.f32 %v54, %v442
  %v444 = vpop.f32.mrf.mxu0
  %v445 = vadd.f32 %v54, %v444
  %446 = vmatmul.bf16.gmra.mxu0 %v92
  %v447 = vpop.f32.mrf.mxu0
  %v448 = vadd.f32 %v54, %v447
  %v449 = vpop.f32.mrf.mxu0
  %v450 = vadd.f32 %v54, %v449
  %451 = vmatmul.bf16.gmra.mxu0 %v95
  %v452 = vpop.f32.mrf.mxu0
  %v453 = vadd.f32 %v54, %v452
  %v454 = vpop.f32.mrf.mxu0
  %v455 = vadd.f32 %v54, %v454
  %456 = vmatmul.bf16.gmra.mxu0 %v98
  %v457 = vpop.f32.mrf.mxu0
  %v458 = vadd.f32 %v54, %v457
  %v459 = vpop.f32.mrf.mxu0
  %v460 = vadd.f32 %v54, %v459
  %461 = vmatmul.bf16.gmra.mxu0 %v101
  %v462 = vpop.f32.mrf.mxu0
  %v463 = vadd.f32 %v54, %v462
  %v464 = vpop.f32.mrf.mxu0
  %v465 = vadd.f32 %v54, %v464
  %466 = vmatmul.bf16.gmra.mxu0 %v104
  %v467 = vpop.f32.mrf.mxu0
  %v468 = vadd.f32 %v54, %v467
  %v469 = vpop.f32.mrf.mxu0
  %v470 = vadd.f32 %v54, %v469
  %471 = vmatmul.bf16.gmra.mxu0 %v107
  %v472 = vpop.f32.mrf.mxu0
  %v473 = vadd.f32 %v54, %v472
  %v474 = vpop.f32.mrf.mxu0
  %v475 = vadd.f32 %v54, %v474
  %476 = vdwg.mxu0
  %477 = vmatpush.bf16.msra.mxu0 0
  %478 = vmatpush.bf16.msra.mxu0 0
  %479 = vmatpush.bf16.msra.mxu0 0
  %480 = vmatpush.bf16.msra.mxu0 0
  %481 = vmatpush.bf16.msra.mxu0 0
  %482 = vmatpush.bf16.msra.mxu0 0
  %483 = vmatpush.bf16.msra.mxu0 0
  %484 = vmatpush.bf16.msra.mxu0 %v132
  %485 = vmatmul.bf16.gmra.mxu0 %v86
  %v486 = vpop.f32.mrf.mxu0
  %v487 = vadd.f32 %v55, %v486
  %v488 = vpop.f32.mrf.mxu0
  %v489 = vadd.f32 %v55, %v488
  %490 = vmatmul.bf16.gmra.mxu0 %v89
  %v491 = vpop.f32.mrf.mxu0
  %v492 = vadd.f32 %v55, %v491
  %v493 = vpop.f32.mrf.mxu0
  %v494 = vadd.f32 %v55, %v493
  %495 = vmatmul.bf16.gmra.mxu0 %v92
  %v496 = vpop.f32.mrf.mxu0
  %v497 = vadd.f32 %v55, %v496
  %v498 = vpop.f32.mrf.mxu0
  %v499 = vadd.f32 %v55, %v498
  %500 = vmatmul.bf16.gmra.mxu0 %v95
  %v501 = vpop.f32.mrf.mxu0
  %v502 = vadd.f32 %v55, %v501
  %v503 = vpop.f32.mrf.mxu0
  %v504 = vadd.f32 %v55, %v503
  %505 = vmatmul.bf16.gmra.mxu0 %v98
  %v506 = vpop.f32.mrf.mxu0
  %v507 = vadd.f32 %v55, %v506
  %v508 = vpop.f32.mrf.mxu0
  %v509 = vadd.f32 %v55, %v508
  %510 = vmatmul.bf16.gmra.mxu0 %v101
  %v511 = vpop.f32.mrf.mxu0
  %v512 = vadd.f32 %v55, %v511
  %v513 = vpop.f32.mrf.mxu0
  %v514 = vadd.f32 %v55, %v513
  %515 = vmatmul.bf16.gmra.mxu0 %v104
  %v516 = vpop.f32.mrf.mxu0
  %v517 = vadd.f32 %v55, %v516
  %v518 = vpop.f32.mrf.mxu0
  %v519 = vadd.f32 %v55, %v518
  %520 = vmatmul.bf16.gmra.mxu0 %v107
  %v521 = vpop.f32.mrf.mxu0
  %v522 = vadd.f32 %v55, %v521
  %v523 = vpop.f32.mrf.mxu0
  %v524 = vadd.f32 %v55, %v523
  %525 = vdwg.mxu0
  %v526 = vxor.u32 %v144, 2147483648
  %v527 = vxor.u32 %v193, 2147483648
  %v528 = vxor.u32 %v242, 2147483648
  %v529 = vxor.u32 %v291, 2147483648
  %v530 = vxor.u32 %v340, 2147483648
  %v531 = vxor.u32 %v389, 2147483648
  %v532 = vxor.u32 %v438, 2147483648
  %v533 = vxor.u32 %v487, 2147483648
  %v534 = vxor.u32 %v146, 2147483648
  %v535 = vxor.u32 %v195, 2147483648
  %v536 = vxor.u32 %v244, 2147483648
  %v537 = vxor.u32 %v293, 2147483648
  %v538 = vxor.u32 %v342, 2147483648
  %v539 = vxor.u32 %v391, 2147483648
  %v540 = vxor.u32 %v440, 2147483648
  %v541 = vxor.u32 %v489, 2147483648
  %v542 = vxor.u32 %v149, 2147483648
  %v543 = vxor.u32 %v198, 2147483648
  %v544 = vxor.u32 %v247, 2147483648
  %v545 = vxor.u32 %v296, 2147483648
  %v546 = vxor.u32 %v345, 2147483648
  %v547 = vxor.u32 %v394, 2147483648
  %v548 = vxor.u32 %v443, 2147483648
  %v549 = vxor.u32 %v492, 2147483648
  %v550 = vxor.u32 %v151, 2147483648
  %v551 = vxor.u32 %v200, 2147483648
  %v552 = vxor.u32 %v249, 2147483648
  %v553 = vxor.u32 %v298, 2147483648
  %v554 = vxor.u32 %v347, 2147483648
  %v555 = vxor.u32 %v396, 2147483648
  %v556 = vxor.u32 %v445, 2147483648
  %v557 = vxor.u32 %v494, 2147483648
  %v558 = vxor.u32 %v154, 2147483648
  %v559 = vxor.u32 %v203, 2147483648
  %v560 = vxor.u32 %v252, 2147483648
  %v561 = vxor.u32 %v301, 2147483648
  %v562 = vxor.u32 %v350, 2147483648
  %v563 = vxor.u32 %v399, 2147483648
  %v564 = vxor.u32 %v448, 2147483648
  %v565 = vxor.u32 %v497, 2147483648
  %v566 = vxor.u32 %v156, 2147483648
  %v567 = vxor.u32 %v205, 2147483648
  %v568 = vxor.u32 %v254, 2147483648
  %v569 = vxor.u32 %v303, 2147483648
  %v570 = vxor.u32 %v352, 2147483648
  %v571 = vxor.u32 %v401, 2147483648
  %v572 = vxor.u32 %v450, 2147483648
  %v573 = vxor.u32 %v499, 2147483648
  %v574 = vxor.u32 %v159, 2147483648
  %v575 = vxor.u32 %v208, 2147483648
  %v576 = vxor.u32 %v257, 2147483648
  %v577 = vxor.u32 %v306, 2147483648
  %v578 = vxor.u32 %v355, 2147483648
  %v579 = vxor.u32 %v404, 2147483648
  %v580 = vxor.u32 %v453, 2147483648
  %v581 = vxor.u32 %v502, 2147483648
  %v582 = vxor.u32 %v161, 2147483648
  %v583 = vxor.u32 %v210, 2147483648
  %v584 = vxor.u32 %v259, 2147483648
  %v585 = vxor.u32 %v308, 2147483648
  %v586 = vxor.u32 %v357, 2147483648
  %v587 = vxor.u32 %v406, 2147483648
  %v588 = vxor.u32 %v455, 2147483648
  %v589 = vxor.u32 %v504, 2147483648
  %v590 = vxor.u32 %v164, 2147483648
  %v591 = vxor.u32 %v213, 2147483648
  %v592 = vxor.u32 %v262, 2147483648
  %v593 = vxor.u32 %v311, 2147483648
  %v594 = vxor.u32 %v360, 2147483648
  %v595 = vxor.u32 %v409, 2147483648
  %v596 = vxor.u32 %v458, 2147483648
  %v597 = vxor.u32 %v507, 2147483648
  %v598 = vxor.u32 %v166, 2147483648
  %v599 = vxor.u32 %v215, 2147483648
  %v600 = vxor.u32 %v264, 2147483648
  %v601 = vxor.u32 %v313, 2147483648
  %v602 = vxor.u32 %v362, 2147483648
  %v603 = vxor.u32 %v411, 2147483648
  %v604 = vxor.u32 %v460, 2147483648
  %v605 = vxor.u32 %v509, 2147483648
  %v606 = vxor.u32 %v169, 2147483648
  %v607 = vxor.u32 %v218, 2147483648
  %v608 = vxor.u32 %v267, 2147483648
  %v609 = vxor.u32 %v316, 2147483648
  %v610 = vxor.u32 %v365, 2147483648
  %v611 = vxor.u32 %v414, 2147483648
  %v612 = vxor.u32 %v463, 2147483648
  %v613 = vxor.u32 %v512, 2147483648
  %v614 = vxor.u32 %v171, 2147483648
  %v615 = vxor.u32 %v220, 2147483648
  %v616 = vxor.u32 %v269, 2147483648
  %v617 = vxor.u32 %v318, 2147483648
  %v618 = vxor.u32 %v367, 2147483648
  %v619 = vxor.u32 %v416, 2147483648
  %v620 = vxor.u32 %v465, 2147483648
  %v621 = vxor.u32 %v514, 2147483648
  %v622 = vxor.u32 %v174, 2147483648
  %v623 = vxor.u32 %v223, 2147483648
  %v624 = vxor.u32 %v272, 2147483648
  %v625 = vxor.u32 %v321, 2147483648
  %v626 = vxor.u32 %v370, 2147483648
  %v627 = vxor.u32 %v419, 2147483648
  %v628 = vxor.u32 %v468, 2147483648
  %v629 = vxor.u32 %v517, 2147483648
  %v630 = vxor.u32 %v176, 2147483648
  %v631 = vxor.u32 %v225, 2147483648
  %v632 = vxor.u32 %v274, 2147483648
  %v633 = vxor.u32 %v323, 2147483648
  %v634 = vxor.u32 %v372, 2147483648
  %v635 = vxor.u32 %v421, 2147483648
  %v636 = vxor.u32 %v470, 2147483648
  %v637 = vxor.u32 %v519, 2147483648
  %v638 = vxor.u32 %v179, 2147483648
  %v639 = vxor.u32 %v228, 2147483648
  %v640 = vxor.u32 %v277, 2147483648
  %v641 = vxor.u32 %v326, 2147483648
  %v642 = vxor.u32 %v375, 2147483648
  %v643 = vxor.u32 %v424, 2147483648
  %v644 = vxor.u32 %v473, 2147483648
  %v645 = vxor.u32 %v522, 2147483648
  %v646 = vxor.u32 %v181, 2147483648
  %v647 = vxor.u32 %v230, 2147483648
  %v648 = vxor.u32 %v279, 2147483648
  %v649 = vxor.u32 %v328, 2147483648
  %v650 = vxor.u32 %v377, 2147483648
  %v651 = vxor.u32 %v426, 2147483648
  %v652 = vxor.u32 %v475, 2147483648
  %v653 = vxor.u32 %v524, 2147483648
  %v654 = vmul.f32 %v526, 1.442695
  %v655 = vpow.pop %v654
  %v656 = vmul.f32 %v527, 1.442695
  %v657 = vpow.pop %v656
  %v658 = vmul.f32 %v528, 1.442695
  %v659 = vpow.pop %v658
  %v660 = vmul.f32 %v529, 1.442695
  %v661 = vpow.pop %v660
  %v662 = vmul.f32 %v530, 1.442695
  %v663 = vpow.pop %v662
  %v664 = vmul.f32 %v531, 1.442695
  %v665 = vpow.pop %v664
  %v666 = vmul.f32 %v532, 1.442695
  %v667 = vpow.pop %v666
  %v668 = vmul.f32 %v533, 1.442695
  %v669 = vpow.pop %v668
  %v670 = vmul.f32 %v534, 1.442695
  %v671 = vpow.pop %v670
  %v672 = vmul.f32 %v535, 1.442695
  %v673 = vpow.pop %v672
  %v674 = vmul.f32 %v536, 1.442695
  %v675 = vpow.pop %v674
  %v676 = vmul.f32 %v537, 1.442695
  %v677 = vpow.pop %v676
  %v678 = vmul.f32 %v538, 1.442695
  %v679 = vpow.pop %v678
  %v680 = vmul.f32 %v539, 1.442695
  %v681 = vpow.pop %v680
  %v682 = vmul.f32 %v540, 1.442695
  %v683 = vpow.pop %v682
  %v684 = vmul.f32 %v541, 1.442695
  %v685 = vpow.pop %v684
  %v686 = vmul.f32 %v542, 1.442695
  %v687 = vpow.pop %v686
  %v688 = vmul.f32 %v543, 1.442695
  %v689 = vpow.pop %v688
  %v690 = vmul.f32 %v544, 1.442695
  %v691 = vpow.pop %v690
  %v692 = vmul.f32 %v545, 1.442695
  %v693 = vpow.pop %v692
  %v694 = vmul.f32 %v546, 1.442695
  %v695 = vpow.pop %v694
  %v696 = vmul.f32 %v547, 1.442695
  %v697 = vpow.pop %v696
  %v698 = vmul.f32 %v548, 1.442695
  %v699 = vpow.pop %v698
  %v700 = vmul.f32 %v549, 1.442695
  %v701 = vpow.pop %v700
  %v702 = vmul.f32 %v550, 1.442695
  %v703 = vpow.pop %v702
  %v704 = vmul.f32 %v551, 1.442695
  %v705 = vpow.pop %v704
  %v706 = vmul.f32 %v552, 1.442695
  %v707 = vpow.pop %v706
  %v708 = vmul.f32 %v553, 1.442695
  %v709 = vpow.pop %v708
  %v710 = vmul.f32 %v554, 1.442695
  %v711 = vpow.pop %v710
  %v712 = vmul.f32 %v555, 1.442695
  %v713 = vpow.pop %v712
  %v714 = vmul.f32 %v556, 1.442695
  %v715 = vpow.pop %v714
  %v716 = vmul.f32 %v557, 1.442695
  %v717 = vpow.pop %v716
  %v718 = vmul.f32 %v558, 1.442695
  %v719 = vpow.pop %v718
  %v720 = vmul.f32 %v559, 1.442695
  %v721 = vpow.pop %v720
  %v722 = vmul.f32 %v560, 1.442695
  %v723 = vpow.pop %v722
  %v724 = vmul.f32 %v561, 1.442695
  %v725 = vpow.pop %v724
  %v726 = vmul.f32 %v562, 1.442695
  %v727 = vpow.pop %v726
  %v728 = vmul.f32 %v563, 1.442695
  %v729 = vpow.pop %v728
  %v730 = vmul.f32 %v564, 1.442695
  %v731 = vpow.pop %v730
  %v732 = vmul.f32 %v565, 1.442695
  %v733 = vpow.pop %v732
  %v734 = vmul.f32 %v566, 1.442695
  %v735 = vpow.pop %v734
  %v736 = vmul.f32 %v567, 1.442695
  %v737 = vpow.pop %v736
  %v738 = vmul.f32 %v568, 1.442695
  %v739 = vpow.pop %v738
  %v740 = vmul.f32 %v569, 1.442695
  %v741 = vpow.pop %v740
  %v742 = vmul.f32 %v570, 1.442695
  %v743 = vpow.pop %v742
  %v744 = vmul.f32 %v571, 1.442695
  %v745 = vpow.pop %v744
  %v746 = vmul.f32 %v572, 1.442695
  %v747 = vpow.pop %v746
  %v748 = vmul.f32 %v573, 1.442695
  %v749 = vpow.pop %v748
  %v750 = vmul.f32 %v574, 1.442695
  %v751 = vpow.pop %v750
  %v752 = vmul.f32 %v575, 1.442695
  %v753 = vpow.pop %v752
  %v754 = vmul.f32 %v576, 1.442695
  %v755 = vpow.pop %v754
  %v756 = vmul.f32 %v577, 1.442695
  %v757 = vpow.pop %v756
  %v758 = vmul.f32 %v578, 1.442695
  %v759 = vpow.pop %v758
  %v760 = vmul.f32 %v579, 1.442695
  %v761 = vpow.pop %v760
  %v762 = vmul.f32 %v580, 1.442695
  %v763 = vpow.pop %v762
  %v764 = vmul.f32 %v581, 1.442695
  %v765 = vpow.pop %v764
  %v766 = vmul.f32 %v582, 1.442695
  %v767 = vpow.pop %v766
  %v768 = vmul.f32 %v583, 1.442695
  %v769 = vpow.pop %v768
  %v770 = vmul.f32 %v584, 1.442695
  %v771 = vpow.pop %v770
  %v772 = vmul.f32 %v585, 1.442695
  %v773 = vpow.pop %v772
  %v774 = vmul.f32 %v586, 1.442695
  %v775 = vpow.pop %v774
  %v776 = vmul.f32 %v587, 1.442695
  %v777 = vpow.pop %v776
  %v778 = vmul.f32 %v588, 1.442695
  %v779 = vpow.pop %v778
  %v780 = vmul.f32 %v589, 1.442695
  %v781 = vpow.pop %v780
  %v782 = vmul.f32 %v590, 1.442695
  %v783 = vpow.pop %v782
  %v784 = vmul.f32 %v591, 1.442695
  %v785 = vpow.pop %v784
  %v786 = vmul.f32 %v592, 1.442695
  %v787 = vpow.pop %v786
  %v788 = vmul.f32 %v593, 1.442695
  %v789 = vpow.pop %v788
  %v790 = vmul.f32 %v594, 1.442695
  %v791 = vpow.pop %v790
  %v792 = vmul.f32 %v595, 1.442695
  %v793 = vpow.pop %v792
  %v794 = vmul.f32 %v596, 1.442695
  %v795 = vpow.pop %v794
  %v796 = vmul.f32 %v597, 1.442695
  %v797 = vpow.pop %v796
  %v798 = vmul.f32 %v598, 1.442695
  %v799 = vpow.pop %v798
  %v800 = vmul.f32 %v599, 1.442695
  %v801 = vpow.pop %v800
  %v802 = vmul.f32 %v600, 1.442695
  %v803 = vpow.pop %v802
  %v804 = vmul.f32 %v601, 1.442695
  %v805 = vpow.pop %v804
  %v806 = vmul.f32 %v602, 1.442695
  %v807 = vpow.pop %v806
  %v808 = vmul.f32 %v603, 1.442695
  %v809 = vpow.pop %v808
  %v810 = vmul.f32 %v604, 1.442695
  %v811 = vpow.pop %v810
  %v812 = vmul.f32 %v605, 1.442695
  %v813 = vpow.pop %v812
  %v814 = vmul.f32 %v606, 1.442695
  %v815 = vpow.pop %v814
  %v816 = vmul.f32 %v607, 1.442695
  %v817 = vpow.pop %v816
  %v818 = vmul.f32 %v608, 1.442695
  %v819 = vpow.pop %v818
  %v820 = vmul.f32 %v609, 1.442695
  %v821 = vpow.pop %v820
  %v822 = vmul.f32 %v610, 1.442695
  %v823 = vpow.pop %v822
  %v824 = vmul.f32 %v611, 1.442695
  %v825 = vpow.pop %v824
  %v826 = vmul.f32 %v612, 1.442695
  %v827 = vpow.pop %v826
  %v828 = vmul.f32 %v613, 1.442695
  %v829 = vpow.pop %v828
  %v830 = vmul.f32 %v614, 1.442695
  %v831 = vpow.pop %v830
  %v832 = vmul.f32 %v615, 1.442695
  %v833 = vpow.pop %v832
  %v834 = vmul.f32 %v616, 1.442695
  %v835 = vpow.pop %v834
  %v836 = vmul.f32 %v617, 1.442695
  %v837 = vpow.pop %v836
  %v838 = vmul.f32 %v618, 1.442695
  %v839 = vpow.pop %v838
  %v840 = vmul.f32 %v619, 1.442695
  %v841 = vpow.pop %v840
  %v842 = vmul.f32 %v620, 1.442695
  %v843 = vpow.pop %v842
  %v844 = vmul.f32 %v621, 1.442695
  %v845 = vpow.pop %v844
  %v846 = vmul.f32 %v622, 1.442695
  %v847 = vpow.pop %v846
  %v848 = vmul.f32 %v623, 1.442695
  %v849 = vpow.pop %v848
  %v850 = vmul.f32 %v624, 1.442695
  %v851 = vpow.pop %v850
  %v852 = vmul.f32 %v625, 1.442695
  %v853 = vpow.pop %v852
  %v854 = vmul.f32 %v626, 1.442695
  %v855 = vpow.pop %v854
  %v856 = vmul.f32 %v627, 1.442695
  %v857 = vpow.pop %v856
  %v858 = vmul.f32 %v628, 1.442695
  %v859 = vpow.pop %v858
  %v860 = vmul.f32 %v629, 1.442695
  %v861 = vpow.pop %v860
  %v862 = vmul.f32 %v630, 1.442695
  %v863 = vpow.pop %v862
  %v864 = vmul.f32 %v631, 1.442695
  %v865 = vpow.pop %v864
  %v866 = vmul.f32 %v632, 1.442695
  %v867 = vpow.pop %v866
  %v868 = vmul.f32 %v633, 1.442695
  %v869 = vpow.pop %v868
  %v870 = vmul.f32 %v634, 1.442695
  %v871 = vpow.pop %v870
  %v872 = vmul.f32 %v635, 1.442695
  %v873 = vpow.pop %v872
  %v874 = vmul.f32 %v636, 1.442695
  %v875 = vpow.pop %v874
  %v876 = vmul.f32 %v637, 1.442695
  %v877 = vpow.pop %v876
  %v878 = vmul.f32 %v638, 1.442695
  %v879 = vpow.pop %v878
  %v880 = vmul.f32 %v639, 1.442695
  %v881 = vpow.pop %v880
  %v882 = vmul.f32 %v640, 1.442695
  %v883 = vpow.pop %v882
  %v884 = vmul.f32 %v641, 1.442695
  %v885 = vpow.pop %v884
  %v886 = vmul.f32 %v642, 1.442695
  %v887 = vpow.pop %v886
  %v888 = vmul.f32 %v643, 1.442695
  %v889 = vpow.pop %v888
  %v890 = vmul.f32 %v644, 1.442695
  %v891 = vpow.pop %v890
  %v892 = vmul.f32 %v645, 1.442695
  %v893 = vpow.pop %v892
  %v894 = vmul.f32 %v646, 1.442695
  %v895 = vpow.pop %v894
  %v896 = vmul.f32 %v647, 1.442695
  %v897 = vpow.pop %v896
  %v898 = vmul.f32 %v648, 1.442695
  %v899 = vpow.pop %v898
  %v900 = vmul.f32 %v649, 1.442695
  %v901 = vpow.pop %v900
  %v902 = vmul.f32 %v650, 1.442695
  %v903 = vpow.pop %v902
  %v904 = vmul.f32 %v651, 1.442695
  %v905 = vpow.pop %v904
  %v906 = vmul.f32 %v652, 1.442695
  %v907 = vpow.pop %v906
  %v908 = vmul.f32 %v653, 1.442695
  %v909 = vpow.pop %v908
  %v910 = vadd.f32 %v655, 1.0
  %v911 = vadd.f32 %v657, 1.0
  %v912 = vadd.f32 %v659, 1.0
  %v913 = vadd.f32 %v661, 1.0
  %v914 = vadd.f32 %v663, 1.0
  %v915 = vadd.f32 %v665, 1.0
  %v916 = vadd.f32 %v667, 1.0
  %v917 = vadd.f32 %v669, 1.0
  %v918 = vadd.f32 %v671, 1.0
  %v919 = vadd.f32 %v673, 1.0
  %v920 = vadd.f32 %v675, 1.0
  %v921 = vadd.f32 %v677, 1.0
  %v922 = vadd.f32 %v679, 1.0
  %v923 = vadd.f32 %v681, 1.0
  %v924 = vadd.f32 %v683, 1.0
  %v925 = vadd.f32 %v685, 1.0
  %v926 = vadd.f32 %v687, 1.0
  %v927 = vadd.f32 %v689, 1.0
  %v928 = vadd.f32 %v691, 1.0
  %v929 = vadd.f32 %v693, 1.0
  %v930 = vadd.f32 %v695, 1.0
  %v931 = vadd.f32 %v697, 1.0
  %v932 = vadd.f32 %v699, 1.0
  %v933 = vadd.f32 %v701, 1.0
  %v934 = vadd.f32 %v703, 1.0
  %v935 = vadd.f32 %v705, 1.0
  %v936 = vadd.f32 %v707, 1.0
  %v937 = vadd.f32 %v709, 1.0
  %v938 = vadd.f32 %v711, 1.0
  %v939 = vadd.f32 %v713, 1.0
  %v940 = vadd.f32 %v715, 1.0
  %v941 = vadd.f32 %v717, 1.0
  %v942 = vadd.f32 %v719, 1.0
  %v943 = vadd.f32 %v721, 1.0
  %v944 = vadd.f32 %v723, 1.0
  %v945 = vadd.f32 %v725, 1.0
  %v946 = vadd.f32 %v727, 1.0
  %v947 = vadd.f32 %v729, 1.0
  %v948 = vadd.f32 %v731, 1.0
  %v949 = vadd.f32 %v733, 1.0
  %v950 = vadd.f32 %v735, 1.0
  %v951 = vadd.f32 %v737, 1.0
  %v952 = vadd.f32 %v739, 1.0
  %v953 = vadd.f32 %v741, 1.0
  %v954 = vadd.f32 %v743, 1.0
  %v955 = vadd.f32 %v745, 1.0
  %v956 = vadd.f32 %v747, 1.0
  %v957 = vadd.f32 %v749, 1.0
  %v958 = vadd.f32 %v751, 1.0
  %v959 = vadd.f32 %v753, 1.0
  %v960 = vadd.f32 %v755, 1.0
  %v961 = vadd.f32 %v757, 1.0
  %v962 = vadd.f32 %v759, 1.0
  %v963 = vadd.f32 %v761, 1.0
  %v964 = vadd.f32 %v763, 1.0
  %v965 = vadd.f32 %v765, 1.0
  %v966 = vadd.f32 %v767, 1.0
  %v967 = vadd.f32 %v769, 1.0
  %v968 = vadd.f32 %v771, 1.0
  %v969 = vadd.f32 %v773, 1.0
  %v970 = vadd.f32 %v775, 1.0
  %v971 = vadd.f32 %v777, 1.0
  %v972 = vadd.f32 %v779, 1.0
  %v973 = vadd.f32 %v781, 1.0
  %v974 = vadd.f32 %v783, 1.0
  %v975 = vadd.f32 %v785, 1.0
  %v976 = vadd.f32 %v787, 1.0
  %v977 = vadd.f32 %v789, 1.0
  %v978 = vadd.f32 %v791, 1.0
  %v979 = vadd.f32 %v793, 1.0
  %v980 = vadd.f32 %v795, 1.0
  %v981 = vadd.f32 %v797, 1.0
  %v982 = vadd.f32 %v799, 1.0
  %v983 = vadd.f32 %v801, 1.0
  %v984 = vadd.f32 %v803, 1.0
  %v985 = vadd.f32 %v805, 1.0
  %v986 = vadd.f32 %v807, 1.0
  %v987 = vadd.f32 %v809, 1.0
  %v988 = vadd.f32 %v811, 1.0
  %v989 = vadd.f32 %v813, 1.0
  %v990 = vadd.f32 %v815, 1.0
  %v991 = vadd.f32 %v817, 1.0
  %v992 = vadd.f32 %v819, 1.0
  %v993 = vadd.f32 %v821, 1.0
  %v994 = vadd.f32 %v823, 1.0
  %v995 = vadd.f32 %v825, 1.0
  %v996 = vadd.f32 %v827, 1.0
  %v997 = vadd.f32 %v829, 1.0
  %v998 = vadd.f32 %v831, 1.0
  %v999 = vadd.f32 %v833, 1.0
  %v1000 = vadd.f32 %v835, 1.0
  %v1001 = vadd.f32 %v837, 1.0
  %v1002 = vadd.f32 %v839, 1.0
  %v1003 = vadd.f32 %v841, 1.0
  %v1004 = vadd.f32 %v843, 1.0
  %v1005 = vadd.f32 %v845, 1.0
  %v1006 = vadd.f32 %v847, 1.0
  %v1007 = vadd.f32 %v849, 1.0
  %v1008 = vadd.f32 %v851, 1.0
  %v1009 = vadd.f32 %v853, 1.0
  %v1010 = vadd.f32 %v855, 1.0
  %v1011 = vadd.f32 %v857, 1.0
  %v1012 = vadd.f32 %v859, 1.0
  %v1013 = vadd.f32 %v861, 1.0
  %v1014 = vadd.f32 %v863, 1.0
  %v1015 = vadd.f32 %v865, 1.0
  %v1016 = vadd.f32 %v867, 1.0
  %v1017 = vadd.f32 %v869, 1.0
  %v1018 = vadd.f32 %v871, 1.0
  %v1019 = vadd.f32 %v873, 1.0
  %v1020 = vadd.f32 %v875, 1.0
  %v1021 = vadd.f32 %v877, 1.0
  %v1022 = vadd.f32 %v879, 1.0
  %v1023 = vadd.f32 %v881, 1.0
  %v1024 = vadd.f32 %v883, 1.0
  %v1025 = vadd.f32 %v885, 1.0
  %v1026 = vadd.f32 %v887, 1.0
  %v1027 = vadd.f32 %v889, 1.0
  %v1028 = vadd.f32 %v891, 1.0
  %v1029 = vadd.f32 %v893, 1.0
  %v1030 = vadd.f32 %v895, 1.0
  %v1031 = vadd.f32 %v897, 1.0
  %v1032 = vadd.f32 %v899, 1.0
  %v1033 = vadd.f32 %v901, 1.0
  %v1034 = vadd.f32 %v903, 1.0
  %v1035 = vadd.f32 %v905, 1.0
  %v1036 = vadd.f32 %v907, 1.0
  %v1037 = vadd.f32 %v909, 1.0
  %v1038 = vrcp.pop %v910
  %v1039 = vmul.f32 %v910, %v1038
  %v1040 = vsub.f32 1.0, %v1039
  %v1041 = vmul.f32 %v1038, %v1040
  %v1042 = vadd.f32 %v1038, %v1041
  %vm1043 = vweird.f32 %v910
  %vm1044 = vweird.f32 %v1038
  %vm1045 = vmor %vm1043, %vm1044
  %v1046 = vsel %vm1045, %v1038, %v1042
  %v1047 = vand.u32 2147483647, %v910
  %vm1048 = vcmp.eq.f32.partialorder %v1047, 8.507059e+37
  %v1049 = vand.u32 %v910, 2147483648
  %v1050 = vor.u32 1.1754944e-38, %v1049
  %v1051 = vsel %vm1048, %v1050, %v1046
  %v1052 = vmul.f32 1.0, %v1051
  %v1053 = vrcp.pop %v911
  %v1054 = vmul.f32 %v911, %v1053
  %v1055 = vsub.f32 1.0, %v1054
  %v1056 = vmul.f32 %v1053, %v1055
  %v1057 = vadd.f32 %v1053, %v1056
  %vm1058 = vweird.f32 %v911
  %vm1059 = vweird.f32 %v1053
  %vm1060 = vmor %vm1058, %vm1059
  %v1061 = vsel %vm1060, %v1053, %v1057
  %v1062 = vand.u32 2147483647, %v911
  %vm1063 = vcmp.eq.f32.partialorder %v1062, 8.507059e+37
  %v1064 = vand.u32 %v911, 2147483648
  %v1065 = vor.u32 1.1754944e-38, %v1064
  %v1066 = vsel %vm1063, %v1065, %v1061
  %v1067 = vmul.f32 1.0, %v1066
  %v1068 = vrcp.pop %v912
  %v1069 = vmul.f32 %v912, %v1068
  %v1070 = vsub.f32 1.0, %v1069
  %v1071 = vmul.f32 %v1068, %v1070
  %v1072 = vadd.f32 %v1068, %v1071
  %vm1073 = vweird.f32 %v912
  %vm1074 = vweird.f32 %v1068
  %vm1075 = vmor %vm1073, %vm1074
  %v1076 = vsel %vm1075, %v1068, %v1072
  %v1077 = vand.u32 2147483647, %v912
  %vm1078 = vcmp.eq.f32.partialorder %v1077, 8.507059e+37
  %v1079 = vand.u32 %v912, 2147483648
  %v1080 = vor.u32 1.1754944e-38, %v1079
  %v1081 = vsel %vm1078, %v1080, %v1076
  %v1082 = vmul.f32 1.0, %v1081
  %v1083 = vrcp.pop %v913
  %v1084 = vmul.f32 %v913, %v1083
  %v1085 = vsub.f32 1.0, %v1084
  %v1086 = vmul.f32 %v1083, %v1085
  %v1087 = vadd.f32 %v1083, %v1086
  %vm1088 = vweird.f32 %v913
  %vm1089 = vweird.f32 %v1083
  %vm1090 = vmor %vm1088, %vm1089
  %v1091 = vsel %vm1090, %v1083, %v1087
  %v1092 = vand.u32 2147483647, %v913
  %vm1093 = vcmp.eq.f32.partialorder %v1092, 8.507059e+37
  %v1094 = vand.u32 %v913, 2147483648
  %v1095 = vor.u32 1.1754944e-38, %v1094
  %v1096 = vsel %vm1093, %v1095, %v1091
  %v1097 = vmul.f32 1.0, %v1096
  %v1098 = vrcp.pop %v914
  %v1099 = vmul.f32 %v914, %v1098
  %v1100 = vsub.f32 1.0, %v1099
  %v1101 = vmul.f32 %v1098, %v1100
  %v1102 = vadd.f32 %v1098, %v1101
  %vm1103 = vweird.f32 %v914
  %vm1104 = vweird.f32 %v1098
  %vm1105 = vmor %vm1103, %vm1104
  %v1106 = vsel %vm1105, %v1098, %v1102
  %v1107 = vand.u32 2147483647, %v914
  %vm1108 = vcmp.eq.f32.partialorder %v1107, 8.507059e+37
  %v1109 = vand.u32 %v914, 2147483648
  %v1110 = vor.u32 1.1754944e-38, %v1109
  %v1111 = vsel %vm1108, %v1110, %v1106
  %v1112 = vmul.f32 1.0, %v1111
  %v1113 = vrcp.pop %v915
  %v1114 = vmul.f32 %v915, %v1113
  %v1115 = vsub.f32 1.0, %v1114
  %v1116 = vmul.f32 %v1113, %v1115
  %v1117 = vadd.f32 %v1113, %v1116
  %vm1118 = vweird.f32 %v915
  %vm1119 = vweird.f32 %v1113
  %vm1120 = vmor %vm1118, %vm1119
  %v1121 = vsel %vm1120, %v1113, %v1117
  %v1122 = vand.u32 2147483647, %v915
  %vm1123 = vcmp.eq.f32.partialorder %v1122, 8.507059e+37
  %v1124 = vand.u32 %v915, 2147483648
  %v1125 = vor.u32 1.1754944e-38, %v1124
  %v1126 = vsel %vm1123, %v1125, %v1121
  %v1127 = vmul.f32 1.0, %v1126
  %v1128 = vrcp.pop %v916
  %v1129 = vmul.f32 %v916, %v1128
  %v1130 = vsub.f32 1.0, %v1129
  %v1131 = vmul.f32 %v1128, %v1130
  %v1132 = vadd.f32 %v1128, %v1131
  %vm1133 = vweird.f32 %v916
  %vm1134 = vweird.f32 %v1128
  %vm1135 = vmor %vm1133, %vm1134
  %v1136 = vsel %vm1135, %v1128, %v1132
  %v1137 = vand.u32 2147483647, %v916
  %vm1138 = vcmp.eq.f32.partialorder %v1137, 8.507059e+37
  %v1139 = vand.u32 %v916, 2147483648
  %v1140 = vor.u32 1.1754944e-38, %v1139
  %v1141 = vsel %vm1138, %v1140, %v1136
  %v1142 = vmul.f32 1.0, %v1141
  %v1143 = vrcp.pop %v917
  %v1144 = vmul.f32 %v917, %v1143
  %v1145 = vsub.f32 1.0, %v1144
  %v1146 = vmul.f32 %v1143, %v1145
  %v1147 = vadd.f32 %v1143, %v1146
  %vm1148 = vweird.f32 %v917
  %vm1149 = vweird.f32 %v1143
  %vm1150 = vmor %vm1148, %vm1149
  %v1151 = vsel %vm1150, %v1143, %v1147
  %v1152 = vand.u32 2147483647, %v917
  %vm1153 = vcmp.eq.f32.partialorder %v1152, 8.507059e+37
  %v1154 = vand.u32 %v917, 2147483648
  %v1155 = vor.u32 1.1754944e-38, %v1154
  %v1156 = vsel %vm1153, %v1155, %v1151
  %v1157 = vmul.f32 1.0, %v1156
  %v1158 = vrcp.pop %v918
  %v1159 = vmul.f32 %v918, %v1158
  %v1160 = vsub.f32 1.0, %v1159
  %v1161 = vmul.f32 %v1158, %v1160
  %v1162 = vadd.f32 %v1158, %v1161
  %vm1163 = vweird.f32 %v918
  %vm1164 = vweird.f32 %v1158
  %vm1165 = vmor %vm1163, %vm1164
  %v1166 = vsel %vm1165, %v1158, %v1162
  %v1167 = vand.u32 2147483647, %v918
  %vm1168 = vcmp.eq.f32.partialorder %v1167, 8.507059e+37
  %v1169 = vand.u32 %v918, 2147483648
  %v1170 = vor.u32 1.1754944e-38, %v1169
  %v1171 = vsel %vm1168, %v1170, %v1166
  %v1172 = vmul.f32 1.0, %v1171
  %v1173 = vrcp.pop %v919
  %v1174 = vmul.f32 %v919, %v1173
  %v1175 = vsub.f32 1.0, %v1174
  %v1176 = vmul.f32 %v1173, %v1175
  %v1177 = vadd.f32 %v1173, %v1176
  %vm1178 = vweird.f32 %v919
  %vm1179 = vweird.f32 %v1173
  %vm1180 = vmor %vm1178, %vm1179
  %v1181 = vsel %vm1180, %v1173, %v1177
  %v1182 = vand.u32 2147483647, %v919
  %vm1183 = vcmp.eq.f32.partialorder %v1182, 8.507059e+37
  %v1184 = vand.u32 %v919, 2147483648
  %v1185 = vor.u32 1.1754944e-38, %v1184
  %v1186 = vsel %vm1183, %v1185, %v1181
  %v1187 = vmul.f32 1.0, %v1186
  %v1188 = vrcp.pop %v920
  %v1189 = vmul.f32 %v920, %v1188
  %v1190 = vsub.f32 1.0, %v1189
  %v1191 = vmul.f32 %v1188, %v1190
  %v1192 = vadd.f32 %v1188, %v1191
  %vm1193 = vweird.f32 %v920
  %vm1194 = vweird.f32 %v1188
  %vm1195 = vmor %vm1193, %vm1194
  %v1196 = vsel %vm1195, %v1188, %v1192
  %v1197 = vand.u32 2147483647, %v920
  %vm1198 = vcmp.eq.f32.partialorder %v1197, 8.507059e+37
  %v1199 = vand.u32 %v920, 2147483648
  %v1200 = vor.u32 1.1754944e-38, %v1199
  %v1201 = vsel %vm1198, %v1200, %v1196
  %v1202 = vmul.f32 1.0, %v1201
  %v1203 = vrcp.pop %v921
  %v1204 = vmul.f32 %v921, %v1203
  %v1205 = vsub.f32 1.0, %v1204
  %v1206 = vmul.f32 %v1203, %v1205
  %v1207 = vadd.f32 %v1203, %v1206
  %vm1208 = vweird.f32 %v921
  %vm1209 = vweird.f32 %v1203
  %vm1210 = vmor %vm1208, %vm1209
  %v1211 = vsel %vm1210, %v1203, %v1207
  %v1212 = vand.u32 2147483647, %v921
  %vm1213 = vcmp.eq.f32.partialorder %v1212, 8.507059e+37
  %v1214 = vand.u32 %v921, 2147483648
  %v1215 = vor.u32 1.1754944e-38, %v1214
  %v1216 = vsel %vm1213, %v1215, %v1211
  %v1217 = vmul.f32 1.0, %v1216
  %v1218 = vrcp.pop %v922
  %v1219 = vmul.f32 %v922, %v1218
  %v1220 = vsub.f32 1.0, %v1219
  %v1221 = vmul.f32 %v1218, %v1220
  %v1222 = vadd.f32 %v1218, %v1221
  %vm1223 = vweird.f32 %v922
  %vm1224 = vweird.f32 %v1218
  %vm1225 = vmor %vm1223, %vm1224
  %v1226 = vsel %vm1225, %v1218, %v1222
  %v1227 = vand.u32 2147483647, %v922
  %vm1228 = vcmp.eq.f32.partialorder %v1227, 8.507059e+37
  %v1229 = vand.u32 %v922, 2147483648
  %v1230 = vor.u32 1.1754944e-38, %v1229
  %v1231 = vsel %vm1228, %v1230, %v1226
  %v1232 = vmul.f32 1.0, %v1231
  %v1233 = vrcp.pop %v923
  %v1234 = vmul.f32 %v923, %v1233
  %v1235 = vsub.f32 1.0, %v1234
  %v1236 = vmul.f32 %v1233, %v1235
  %v1237 = vadd.f32 %v1233, %v1236
  %vm1238 = vweird.f32 %v923
  %vm1239 = vweird.f32 %v1233
  %vm1240 = vmor %vm1238, %vm1239
  %v1241 = vsel %vm1240, %v1233, %v1237
  %v1242 = vand.u32 2147483647, %v923
  %vm1243 = vcmp.eq.f32.partialorder %v1242, 8.507059e+37
  %v1244 = vand.u32 %v923, 2147483648
  %v1245 = vor.u32 1.1754944e-38, %v1244
  %v1246 = vsel %vm1243, %v1245, %v1241
  %v1247 = vmul.f32 1.0, %v1246
  %v1248 = vrcp.pop %v924
  %v1249 = vmul.f32 %v924, %v1248
  %v1250 = vsub.f32 1.0, %v1249
  %v1251 = vmul.f32 %v1248, %v1250
  %v1252 = vadd.f32 %v1248, %v1251
  %vm1253 = vweird.f32 %v924
  %vm1254 = vweird.f32 %v1248
  %vm1255 = vmor %vm1253, %vm1254
  %v1256 = vsel %vm1255, %v1248, %v1252
  %v1257 = vand.u32 2147483647, %v924
  %vm1258 = vcmp.eq.f32.partialorder %v1257, 8.507059e+37
  %v1259 = vand.u32 %v924, 2147483648
  %v1260 = vor.u32 1.1754944e-38, %v1259
  %v1261 = vsel %vm1258, %v1260, %v1256
  %v1262 = vmul.f32 1.0, %v1261
  %v1263 = vrcp.pop %v925
  %v1264 = vmul.f32 %v925, %v1263
  %v1265 = vsub.f32 1.0, %v1264
  %v1266 = vmul.f32 %v1263, %v1265
  %v1267 = vadd.f32 %v1263, %v1266
  %vm1268 = vweird.f32 %v925
  %vm1269 = vweird.f32 %v1263
  %vm1270 = vmor %vm1268, %vm1269
  %v1271 = vsel %vm1270, %v1263, %v1267
  %v1272 = vand.u32 2147483647, %v925
  %vm1273 = vcmp.eq.f32.partialorder %v1272, 8.507059e+37
  %v1274 = vand.u32 %v925, 2147483648
  %v1275 = vor.u32 1.1754944e-38, %v1274
  %v1276 = vsel %vm1273, %v1275, %v1271
  %v1277 = vmul.f32 1.0, %v1276
  %v1278 = vrcp.pop %v926
  %v1279 = vmul.f32 %v926, %v1278
  %v1280 = vsub.f32 1.0, %v1279
  %v1281 = vmul.f32 %v1278, %v1280
  %v1282 = vadd.f32 %v1278, %v1281
  %vm1283 = vweird.f32 %v926
  %vm1284 = vweird.f32 %v1278
  %vm1285 = vmor %vm1283, %vm1284
  %v1286 = vsel %vm1285, %v1278, %v1282
  %v1287 = vand.u32 2147483647, %v926
  %vm1288 = vcmp.eq.f32.partialorder %v1287, 8.507059e+37
  %v1289 = vand.u32 %v926, 2147483648
  %v1290 = vor.u32 1.1754944e-38, %v1289
  %v1291 = vsel %vm1288, %v1290, %v1286
  %v1292 = vmul.f32 1.0, %v1291
  %v1293 = vrcp.pop %v927
  %v1294 = vmul.f32 %v927, %v1293
  %v1295 = vsub.f32 1.0, %v1294
  %v1296 = vmul.f32 %v1293, %v1295
  %v1297 = vadd.f32 %v1293, %v1296
  %vm1298 = vweird.f32 %v927
  %vm1299 = vweird.f32 %v1293
  %vm1300 = vmor %vm1298, %vm1299
  %v1301 = vsel %vm1300, %v1293, %v1297
  %v1302 = vand.u32 2147483647, %v927
  %vm1303 = vcmp.eq.f32.partialorder %v1302, 8.507059e+37
  %v1304 = vand.u32 %v927, 2147483648
  %v1305 = vor.u32 1.1754944e-38, %v1304
  %v1306 = vsel %vm1303, %v1305, %v1301
  %v1307 = vmul.f32 1.0, %v1306
  %v1308 = vrcp.pop %v928
  %v1309 = vmul.f32 %v928, %v1308
  %v1310 = vsub.f32 1.0, %v1309
  %v1311 = vmul.f32 %v1308, %v1310
  %v1312 = vadd.f32 %v1308, %v1311
  %vm1313 = vweird.f32 %v928
  %vm1314 = vweird.f32 %v1308
  %vm1315 = vmor %vm1313, %vm1314
  %v1316 = vsel %vm1315, %v1308, %v1312
  %v1317 = vand.u32 2147483647, %v928
  %vm1318 = vcmp.eq.f32.partialorder %v1317, 8.507059e+37
  %v1319 = vand.u32 %v928, 2147483648
  %v1320 = vor.u32 1.1754944e-38, %v1319
  %v1321 = vsel %vm1318, %v1320, %v1316
  %v1322 = vmul.f32 1.0, %v1321
  %v1323 = vrcp.pop %v929
  %v1324 = vmul.f32 %v929, %v1323
  %v1325 = vsub.f32 1.0, %v1324
  %v1326 = vmul.f32 %v1323, %v1325
  %v1327 = vadd.f32 %v1323, %v1326
  %vm1328 = vweird.f32 %v929
  %vm1329 = vweird.f32 %v1323
  %vm1330 = vmor %vm1328, %vm1329
  %v1331 = vsel %vm1330, %v1323, %v1327
  %v1332 = vand.u32 2147483647, %v929
  %vm1333 = vcmp.eq.f32.partialorder %v1332, 8.507059e+37
  %v1334 = vand.u32 %v929, 2147483648
  %v1335 = vor.u32 1.1754944e-38, %v1334
  %v1336 = vsel %vm1333, %v1335, %v1331
  %v1337 = vmul.f32 1.0, %v1336
  %v1338 = vrcp.pop %v930
  %v1339 = vmul.f32 %v930, %v1338
  %v1340 = vsub.f32 1.0, %v1339
  %v1341 = vmul.f32 %v1338, %v1340
  %v1342 = vadd.f32 %v1338, %v1341
  %vm1343 = vweird.f32 %v930
  %vm1344 = vweird.f32 %v1338
  %vm1345 = vmor %vm1343, %vm1344
  %v1346 = vsel %vm1345, %v1338, %v1342
  %v1347 = vand.u32 2147483647, %v930
  %vm1348 = vcmp.eq.f32.partialorder %v1347, 8.507059e+37
  %v1349 = vand.u32 %v930, 2147483648
  %v1350 = vor.u32 1.1754944e-38, %v1349
  %v1351 = vsel %vm1348, %v1350, %v1346
  %v1352 = vmul.f32 1.0, %v1351
  %v1353 = vrcp.pop %v931
  %v1354 = vmul.f32 %v931, %v1353
  %v1355 = vsub.f32 1.0, %v1354
  %v1356 = vmul.f32 %v1353, %v1355
  %v1357 = vadd.f32 %v1353, %v1356
  %vm1358 = vweird.f32 %v931
  %vm1359 = vweird.f32 %v1353
  %vm1360 = vmor %vm1358, %vm1359
  %v1361 = vsel %vm1360, %v1353, %v1357
  %v1362 = vand.u32 2147483647, %v931
  %vm1363 = vcmp.eq.f32.partialorder %v1362, 8.507059e+37
  %v1364 = vand.u32 %v931, 2147483648
  %v1365 = vor.u32 1.1754944e-38, %v1364
  %v1366 = vsel %vm1363, %v1365, %v1361
  %v1367 = vmul.f32 1.0, %v1366
  %v1368 = vrcp.pop %v932
  %v1369 = vmul.f32 %v932, %v1368
  %v1370 = vsub.f32 1.0, %v1369
  %v1371 = vmul.f32 %v1368, %v1370
  %v1372 = vadd.f32 %v1368, %v1371
  %vm1373 = vweird.f32 %v932
  %vm1374 = vweird.f32 %v1368
  %vm1375 = vmor %vm1373, %vm1374
  %v1376 = vsel %vm1375, %v1368, %v1372
  %v1377 = vand.u32 2147483647, %v932
  %vm1378 = vcmp.eq.f32.partialorder %v1377, 8.507059e+37
  %v1379 = vand.u32 %v932, 2147483648
  %v1380 = vor.u32 1.1754944e-38, %v1379
  %v1381 = vsel %vm1378, %v1380, %v1376
  %v1382 = vmul.f32 1.0, %v1381
  %v1383 = vrcp.pop %v933
  %v1384 = vmul.f32 %v933, %v1383
  %v1385 = vsub.f32 1.0, %v1384
  %v1386 = vmul.f32 %v1383, %v1385
  %v1387 = vadd.f32 %v1383, %v1386
  %vm1388 = vweird.f32 %v933
  %vm1389 = vweird.f32 %v1383
  %vm1390 = vmor %vm1388, %vm1389
  %v1391 = vsel %vm1390, %v1383, %v1387
  %v1392 = vand.u32 2147483647, %v933
  %vm1393 = vcmp.eq.f32.partialorder %v1392, 8.507059e+37
  %v1394 = vand.u32 %v933, 2147483648
  %v1395 = vor.u32 1.1754944e-38, %v1394
  %v1396 = vsel %vm1393, %v1395, %v1391
  %v1397 = vmul.f32 1.0, %v1396
  %v1398 = vrcp.pop %v934
  %v1399 = vmul.f32 %v934, %v1398
  %v1400 = vsub.f32 1.0, %v1399
  %v1401 = vmul.f32 %v1398, %v1400
  %v1402 = vadd.f32 %v1398, %v1401
  %vm1403 = vweird.f32 %v934
  %vm1404 = vweird.f32 %v1398
  %vm1405 = vmor %vm1403, %vm1404
  %v1406 = vsel %vm1405, %v1398, %v1402
  %v1407 = vand.u32 2147483647, %v934
  %vm1408 = vcmp.eq.f32.partialorder %v1407, 8.507059e+37
  %v1409 = vand.u32 %v934, 2147483648
  %v1410 = vor.u32 1.1754944e-38, %v1409
  %v1411 = vsel %vm1408, %v1410, %v1406
  %v1412 = vmul.f32 1.0, %v1411
  %v1413 = vrcp.pop %v935
  %v1414 = vmul.f32 %v935, %v1413
  %v1415 = vsub.f32 1.0, %v1414
  %v1416 = vmul.f32 %v1413, %v1415
  %v1417 = vadd.f32 %v1413, %v1416
  %vm1418 = vweird.f32 %v935
  %vm1419 = vweird.f32 %v1413
  %vm1420 = vmor %vm1418, %vm1419
  %v1421 = vsel %vm1420, %v1413, %v1417
  %v1422 = vand.u32 2147483647, %v935
  %vm1423 = vcmp.eq.f32.partialorder %v1422, 8.507059e+37
  %v1424 = vand.u32 %v935, 2147483648
  %v1425 = vor.u32 1.1754944e-38, %v1424
  %v1426 = vsel %vm1423, %v1425, %v1421
  %v1427 = vmul.f32 1.0, %v1426
  %v1428 = vrcp.pop %v936
  %v1429 = vmul.f32 %v936, %v1428
  %v1430 = vsub.f32 1.0, %v1429
  %v1431 = vmul.f32 %v1428, %v1430
  %v1432 = vadd.f32 %v1428, %v1431
  %vm1433 = vweird.f32 %v936
  %vm1434 = vweird.f32 %v1428
  %vm1435 = vmor %vm1433, %vm1434
  %v1436 = vsel %vm1435, %v1428, %v1432
  %v1437 = vand.u32 2147483647, %v936
  %vm1438 = vcmp.eq.f32.partialorder %v1437, 8.507059e+37
  %v1439 = vand.u32 %v936, 2147483648
  %v1440 = vor.u32 1.1754944e-38, %v1439
  %v1441 = vsel %vm1438, %v1440, %v1436
  %v1442 = vmul.f32 1.0, %v1441
  %v1443 = vrcp.pop %v937
  %v1444 = vmul.f32 %v937, %v1443
  %v1445 = vsub.f32 1.0, %v1444
  %v1446 = vmul.f32 %v1443, %v1445
  %v1447 = vadd.f32 %v1443, %v1446
  %vm1448 = vweird.f32 %v937
  %vm1449 = vweird.f32 %v1443
  %vm1450 = vmor %vm1448, %vm1449
  %v1451 = vsel %vm1450, %v1443, %v1447
  %v1452 = vand.u32 2147483647, %v937
  %vm1453 = vcmp.eq.f32.partialorder %v1452, 8.507059e+37
  %v1454 = vand.u32 %v937, 2147483648
  %v1455 = vor.u32 1.1754944e-38, %v1454
  %v1456 = vsel %vm1453, %v1455, %v1451
  %v1457 = vmul.f32 1.0, %v1456
  %v1458 = vrcp.pop %v938
  %v1459 = vmul.f32 %v938, %v1458
  %v1460 = vsub.f32 1.0, %v1459
  %v1461 = vmul.f32 %v1458, %v1460
  %v1462 = vadd.f32 %v1458, %v1461
  %vm1463 = vweird.f32 %v938
  %vm1464 = vweird.f32 %v1458
  %vm1465 = vmor %vm1463, %vm1464
  %v1466 = vsel %vm1465, %v1458, %v1462
  %v1467 = vand.u32 2147483647, %v938
  %vm1468 = vcmp.eq.f32.partialorder %v1467, 8.507059e+37
  %v1469 = vand.u32 %v938, 2147483648
  %v1470 = vor.u32 1.1754944e-38, %v1469
  %v1471 = vsel %vm1468, %v1470, %v1466
  %v1472 = vmul.f32 1.0, %v1471
  %v1473 = vrcp.pop %v939
  %v1474 = vmul.f32 %v939, %v1473
  %v1475 = vsub.f32 1.0, %v1474
  %v1476 = vmul.f32 %v1473, %v1475
  %v1477 = vadd.f32 %v1473, %v1476
  %vm1478 = vweird.f32 %v939
  %vm1479 = vweird.f32 %v1473
  %vm1480 = vmor %vm1478, %vm1479
  %v1481 = vsel %vm1480, %v1473, %v1477
  %v1482 = vand.u32 2147483647, %v939
  %vm1483 = vcmp.eq.f32.partialorder %v1482, 8.507059e+37
  %v1484 = vand.u32 %v939, 2147483648
  %v1485 = vor.u32 1.1754944e-38, %v1484
  %v1486 = vsel %vm1483, %v1485, %v1481
  %v1487 = vmul.f32 1.0, %v1486
  %v1488 = vrcp.pop %v940
  %v1489 = vmul.f32 %v940, %v1488
  %v1490 = vsub.f32 1.0, %v1489
  %v1491 = vmul.f32 %v1488, %v1490
  %v1492 = vadd.f32 %v1488, %v1491
  %vm1493 = vweird.f32 %v940
  %vm1494 = vweird.f32 %v1488
  %vm1495 = vmor %vm1493, %vm1494
  %v1496 = vsel %vm1495, %v1488, %v1492
  %v1497 = vand.u32 2147483647, %v940
  %vm1498 = vcmp.eq.f32.partialorder %v1497, 8.507059e+37
  %v1499 = vand.u32 %v940, 2147483648
  %v1500 = vor.u32 1.1754944e-38, %v1499
  %v1501 = vsel %vm1498, %v1500, %v1496
  %v1502 = vmul.f32 1.0, %v1501
  %v1503 = vrcp.pop %v941
  %v1504 = vmul.f32 %v941, %v1503
  %v1505 = vsub.f32 1.0, %v1504
  %v1506 = vmul.f32 %v1503, %v1505
  %v1507 = vadd.f32 %v1503, %v1506
  %vm1508 = vweird.f32 %v941
  %vm1509 = vweird.f32 %v1503
  %vm1510 = vmor %vm1508, %vm1509
  %v1511 = vsel %vm1510, %v1503, %v1507
  %v1512 = vand.u32 2147483647, %v941
  %vm1513 = vcmp.eq.f32.partialorder %v1512, 8.507059e+37
  %v1514 = vand.u32 %v941, 2147483648
  %v1515 = vor.u32 1.1754944e-38, %v1514
  %v1516 = vsel %vm1513, %v1515, %v1511
  %v1517 = vmul.f32 1.0, %v1516
  %v1518 = vrcp.pop %v942
  %v1519 = vmul.f32 %v942, %v1518
  %v1520 = vsub.f32 1.0, %v1519
  %v1521 = vmul.f32 %v1518, %v1520
  %v1522 = vadd.f32 %v1518, %v1521
  %vm1523 = vweird.f32 %v942
  %vm1524 = vweird.f32 %v1518
  %vm1525 = vmor %vm1523, %vm1524
  %v1526 = vsel %vm1525, %v1518, %v1522
  %v1527 = vand.u32 2147483647, %v942
  %vm1528 = vcmp.eq.f32.partialorder %v1527, 8.507059e+37
  %v1529 = vand.u32 %v942, 2147483648
  %v1530 = vor.u32 1.1754944e-38, %v1529
  %v1531 = vsel %vm1528, %v1530, %v1526
  %v1532 = vmul.f32 1.0, %v1531
  %v1533 = vrcp.pop %v943
  %v1534 = vmul.f32 %v943, %v1533
  %v1535 = vsub.f32 1.0, %v1534
  %v1536 = vmul.f32 %v1533, %v1535
  %v1537 = vadd.f32 %v1533, %v1536
  %vm1538 = vweird.f32 %v943
  %vm1539 = vweird.f32 %v1533
  %vm1540 = vmor %vm1538, %vm1539
  %v1541 = vsel %vm1540, %v1533, %v1537
  %v1542 = vand.u32 2147483647, %v943
  %vm1543 = vcmp.eq.f32.partialorder %v1542, 8.507059e+37
  %v1544 = vand.u32 %v943, 2147483648
  %v1545 = vor.u32 1.1754944e-38, %v1544
  %v1546 = vsel %vm1543, %v1545, %v1541
  %v1547 = vmul.f32 1.0, %v1546
  %v1548 = vrcp.pop %v944
  %v1549 = vmul.f32 %v944, %v1548
  %v1550 = vsub.f32 1.0, %v1549
  %v1551 = vmul.f32 %v1548, %v1550
  %v1552 = vadd.f32 %v1548, %v1551
  %vm1553 = vweird.f32 %v944
  %vm1554 = vweird.f32 %v1548
  %vm1555 = vmor %vm1553, %vm1554
  %v1556 = vsel %vm1555, %v1548, %v1552
  %v1557 = vand.u32 2147483647, %v944
  %vm1558 = vcmp.eq.f32.partialorder %v1557, 8.507059e+37
  %v1559 = vand.u32 %v944, 2147483648
  %v1560 = vor.u32 1.1754944e-38, %v1559
  %v1561 = vsel %vm1558, %v1560, %v1556
  %v1562 = vmul.f32 1.0, %v1561
  %v1563 = vrcp.pop %v945
  %v1564 = vmul.f32 %v945, %v1563
  %v1565 = vsub.f32 1.0, %v1564
  %v1566 = vmul.f32 %v1563, %v1565
  %v1567 = vadd.f32 %v1563, %v1566
  %vm1568 = vweird.f32 %v945
  %vm1569 = vweird.f32 %v1563
  %vm1570 = vmor %vm1568, %vm1569
  %v1571 = vsel %vm1570, %v1563, %v1567
  %v1572 = vand.u32 2147483647, %v945
  %vm1573 = vcmp.eq.f32.partialorder %v1572, 8.507059e+37
  %v1574 = vand.u32 %v945, 2147483648
  %v1575 = vor.u32 1.1754944e-38, %v1574
  %v1576 = vsel %vm1573, %v1575, %v1571
  %v1577 = vmul.f32 1.0, %v1576
  %v1578 = vrcp.pop %v946
  %v1579 = vmul.f32 %v946, %v1578
  %v1580 = vsub.f32 1.0, %v1579
  %v1581 = vmul.f32 %v1578, %v1580
  %v1582 = vadd.f32 %v1578, %v1581
  %vm1583 = vweird.f32 %v946
  %vm1584 = vweird.f32 %v1578
  %vm1585 = vmor %vm1583, %vm1584
  %v1586 = vsel %vm1585, %v1578, %v1582
  %v1587 = vand.u32 2147483647, %v946
  %vm1588 = vcmp.eq.f32.partialorder %v1587, 8.507059e+37
  %v1589 = vand.u32 %v946, 2147483648
  %v1590 = vor.u32 1.1754944e-38, %v1589
  %v1591 = vsel %vm1588, %v1590, %v1586
  %v1592 = vmul.f32 1.0, %v1591
  %v1593 = vrcp.pop %v947
  %v1594 = vmul.f32 %v947, %v1593
  %v1595 = vsub.f32 1.0, %v1594
  %v1596 = vmul.f32 %v1593, %v1595
  %v1597 = vadd.f32 %v1593, %v1596
  %vm1598 = vweird.f32 %v947
  %vm1599 = vweird.f32 %v1593
  %vm1600 = vmor %vm1598, %vm1599
  %v1601 = vsel %vm1600, %v1593, %v1597
  %v1602 = vand.u32 2147483647, %v947
  %vm1603 = vcmp.eq.f32.partialorder %v1602, 8.507059e+37
  %v1604 = vand.u32 %v947, 2147483648
  %v1605 = vor.u32 1.1754944e-38, %v1604
  %v1606 = vsel %vm1603, %v1605, %v1601
  %v1607 = vmul.f32 1.0, %v1606
  %v1608 = vrcp.pop %v948
  %v1609 = vmul.f32 %v948, %v1608
  %v1610 = vsub.f32 1.0, %v1609
  %v1611 = vmul.f32 %v1608, %v1610
  %v1612 = vadd.f32 %v1608, %v1611
  %vm1613 = vweird.f32 %v948
  %vm1614 = vweird.f32 %v1608
  %vm1615 = vmor %vm1613, %vm1614
  %v1616 = vsel %vm1615, %v1608, %v1612
  %v1617 = vand.u32 2147483647, %v948
  %vm1618 = vcmp.eq.f32.partialorder %v1617, 8.507059e+37
  %v1619 = vand.u32 %v948, 2147483648
  %v1620 = vor.u32 1.1754944e-38, %v1619
  %v1621 = vsel %vm1618, %v1620, %v1616
  %v1622 = vmul.f32 1.0, %v1621
  %v1623 = vrcp.pop %v949
  %v1624 = vmul.f32 %v949, %v1623
  %v1625 = vsub.f32 1.0, %v1624
  %v1626 = vmul.f32 %v1623, %v1625
  %v1627 = vadd.f32 %v1623, %v1626
  %vm1628 = vweird.f32 %v949
  %vm1629 = vweird.f32 %v1623
  %vm1630 = vmor %vm1628, %vm1629
  %v1631 = vsel %vm1630, %v1623, %v1627
  %v1632 = vand.u32 2147483647, %v949
  %vm1633 = vcmp.eq.f32.partialorder %v1632, 8.507059e+37
  %v1634 = vand.u32 %v949, 2147483648
  %v1635 = vor.u32 1.1754944e-38, %v1634
  %v1636 = vsel %vm1633, %v1635, %v1631
  %v1637 = vmul.f32 1.0, %v1636
  %v1638 = vrcp.pop %v950
  %v1639 = vmul.f32 %v950, %v1638
  %v1640 = vsub.f32 1.0, %v1639
  %v1641 = vmul.f32 %v1638, %v1640
  %v1642 = vadd.f32 %v1638, %v1641
  %vm1643 = vweird.f32 %v950
  %vm1644 = vweird.f32 %v1638
  %vm1645 = vmor %vm1643, %vm1644
  %v1646 = vsel %vm1645, %v1638, %v1642
  %v1647 = vand.u32 2147483647, %v950
  %vm1648 = vcmp.eq.f32.partialorder %v1647, 8.507059e+37
  %v1649 = vand.u32 %v950, 2147483648
  %v1650 = vor.u32 1.1754944e-38, %v1649
  %v1651 = vsel %vm1648, %v1650, %v1646
  %v1652 = vmul.f32 1.0, %v1651
  %v1653 = vrcp.pop %v951
  %v1654 = vmul.f32 %v951, %v1653
  %v1655 = vsub.f32 1.0, %v1654
  %v1656 = vmul.f32 %v1653, %v1655
  %v1657 = vadd.f32 %v1653, %v1656
  %vm1658 = vweird.f32 %v951
  %vm1659 = vweird.f32 %v1653
  %vm1660 = vmor %vm1658, %vm1659
  %v1661 = vsel %vm1660, %v1653, %v1657
  %v1662 = vand.u32 2147483647, %v951
  %vm1663 = vcmp.eq.f32.partialorder %v1662, 8.507059e+37
  %v1664 = vand.u32 %v951, 2147483648
  %v1665 = vor.u32 1.1754944e-38, %v1664
  %v1666 = vsel %vm1663, %v1665, %v1661
  %v1667 = vmul.f32 1.0, %v1666
  %v1668 = vrcp.pop %v952
  %v1669 = vmul.f32 %v952, %v1668
  %v1670 = vsub.f32 1.0, %v1669
  %v1671 = vmul.f32 %v1668, %v1670
  %v1672 = vadd.f32 %v1668, %v1671
  %vm1673 = vweird.f32 %v952
  %vm1674 = vweird.f32 %v1668
  %vm1675 = vmor %vm1673, %vm1674
  %v1676 = vsel %vm1675, %v1668, %v1672
  %v1677 = vand.u32 2147483647, %v952
  %vm1678 = vcmp.eq.f32.partialorder %v1677, 8.507059e+37
  %v1679 = vand.u32 %v952, 2147483648
  %v1680 = vor.u32 1.1754944e-38, %v1679
  %v1681 = vsel %vm1678, %v1680, %v1676
  %v1682 = vmul.f32 1.0, %v1681
  %v1683 = vrcp.pop %v953
  %v1684 = vmul.f32 %v953, %v1683
  %v1685 = vsub.f32 1.0, %v1684
  %v1686 = vmul.f32 %v1683, %v1685
  %v1687 = vadd.f32 %v1683, %v1686
  %vm1688 = vweird.f32 %v953
  %vm1689 = vweird.f32 %v1683
  %vm1690 = vmor %vm1688, %vm1689
  %v1691 = vsel %vm1690, %v1683, %v1687
  %v1692 = vand.u32 2147483647, %v953
  %vm1693 = vcmp.eq.f32.partialorder %v1692, 8.507059e+37
  %v1694 = vand.u32 %v953, 2147483648
  %v1695 = vor.u32 1.1754944e-38, %v1694
  %v1696 = vsel %vm1693, %v1695, %v1691
  %v1697 = vmul.f32 1.0, %v1696
  %v1698 = vrcp.pop %v954
  %v1699 = vmul.f32 %v954, %v1698
  %v1700 = vsub.f32 1.0, %v1699
  %v1701 = vmul.f32 %v1698, %v1700
  %v1702 = vadd.f32 %v1698, %v1701
  %vm1703 = vweird.f32 %v954
  %vm1704 = vweird.f32 %v1698
  %vm1705 = vmor %vm1703, %vm1704
  %v1706 = vsel %vm1705, %v1698, %v1702
  %v1707 = vand.u32 2147483647, %v954
  %vm1708 = vcmp.eq.f32.partialorder %v1707, 8.507059e+37
  %v1709 = vand.u32 %v954, 2147483648
  %v1710 = vor.u32 1.1754944e-38, %v1709
  %v1711 = vsel %vm1708, %v1710, %v1706
  %v1712 = vmul.f32 1.0, %v1711
  %v1713 = vrcp.pop %v955
  %v1714 = vmul.f32 %v955, %v1713
  %v1715 = vsub.f32 1.0, %v1714
  %v1716 = vmul.f32 %v1713, %v1715
  %v1717 = vadd.f32 %v1713, %v1716
  %vm1718 = vweird.f32 %v955
  %vm1719 = vweird.f32 %v1713
  %vm1720 = vmor %vm1718, %vm1719
  %v1721 = vsel %vm1720, %v1713, %v1717
  %v1722 = vand.u32 2147483647, %v955
  %vm1723 = vcmp.eq.f32.partialorder %v1722, 8.507059e+37
  %v1724 = vand.u32 %v955, 2147483648
  %v1725 = vor.u32 1.1754944e-38, %v1724
  %v1726 = vsel %vm1723, %v1725, %v1721
  %v1727 = vmul.f32 1.0, %v1726
  %v1728 = vrcp.pop %v956
  %v1729 = vmul.f32 %v956, %v1728
  %v1730 = vsub.f32 1.0, %v1729
  %v1731 = vmul.f32 %v1728, %v1730
  %v1732 = vadd.f32 %v1728, %v1731
  %vm1733 = vweird.f32 %v956
  %vm1734 = vweird.f32 %v1728
  %vm1735 = vmor %vm1733, %vm1734
  %v1736 = vsel %vm1735, %v1728, %v1732
  %v1737 = vand.u32 2147483647, %v956
  %vm1738 = vcmp.eq.f32.partialorder %v1737, 8.507059e+37
  %v1739 = vand.u32 %v956, 2147483648
  %v1740 = vor.u32 1.1754944e-38, %v1739
  %v1741 = vsel %vm1738, %v1740, %v1736
  %v1742 = vmul.f32 1.0, %v1741
  %v1743 = vrcp.pop %v957
  %v1744 = vmul.f32 %v957, %v1743
  %v1745 = vsub.f32 1.0, %v1744
  %v1746 = vmul.f32 %v1743, %v1745
  %v1747 = vadd.f32 %v1743, %v1746
  %vm1748 = vweird.f32 %v957
  %vm1749 = vweird.f32 %v1743
  %vm1750 = vmor %vm1748, %vm1749
  %v1751 = vsel %vm1750, %v1743, %v1747
  %v1752 = vand.u32 2147483647, %v957
  %vm1753 = vcmp.eq.f32.partialorder %v1752, 8.507059e+37
  %v1754 = vand.u32 %v957, 2147483648
  %v1755 = vor.u32 1.1754944e-38, %v1754
  %v1756 = vsel %vm1753, %v1755, %v1751
  %v1757 = vmul.f32 1.0, %v1756
  %v1758 = vrcp.pop %v958
  %v1759 = vmul.f32 %v958, %v1758
  %v1760 = vsub.f32 1.0, %v1759
  %v1761 = vmul.f32 %v1758, %v1760
  %v1762 = vadd.f32 %v1758, %v1761
  %vm1763 = vweird.f32 %v958
  %vm1764 = vweird.f32 %v1758
  %vm1765 = vmor %vm1763, %vm1764
  %v1766 = vsel %vm1765, %v1758, %v1762
  %v1767 = vand.u32 2147483647, %v958
  %vm1768 = vcmp.eq.f32.partialorder %v1767, 8.507059e+37
  %v1769 = vand.u32 %v958, 2147483648
  %v1770 = vor.u32 1.1754944e-38, %v1769
  %v1771 = vsel %vm1768, %v1770, %v1766
  %v1772 = vmul.f32 1.0, %v1771
  %v1773 = vrcp.pop %v959
  %v1774 = vmul.f32 %v959, %v1773
  %v1775 = vsub.f32 1.0, %v1774
  %v1776 = vmul.f32 %v1773, %v1775
  %v1777 = vadd.f32 %v1773, %v1776
  %vm1778 = vweird.f32 %v959
  %vm1779 = vweird.f32 %v1773
  %vm1780 = vmor %vm1778, %vm1779
  %v1781 = vsel %vm1780, %v1773, %v1777
  %v1782 = vand.u32 2147483647, %v959
  %vm1783 = vcmp.eq.f32.partialorder %v1782, 8.507059e+37
  %v1784 = vand.u32 %v959, 2147483648
  %v1785 = vor.u32 1.1754944e-38, %v1784
  %v1786 = vsel %vm1783, %v1785, %v1781
  %v1787 = vmul.f32 1.0, %v1786
  %v1788 = vrcp.pop %v960
  %v1789 = vmul.f32 %v960, %v1788
  %v1790 = vsub.f32 1.0, %v1789
  %v1791 = vmul.f32 %v1788, %v1790
  %v1792 = vadd.f32 %v1788, %v1791
  %vm1793 = vweird.f32 %v960
  %vm1794 = vweird.f32 %v1788
  %vm1795 = vmor %vm1793, %vm1794
  %v1796 = vsel %vm1795, %v1788, %v1792
  %v1797 = vand.u32 2147483647, %v960
  %vm1798 = vcmp.eq.f32.partialorder %v1797, 8.507059e+37
  %v1799 = vand.u32 %v960, 2147483648
  %v1800 = vor.u32 1.1754944e-38, %v1799
  %v1801 = vsel %vm1798, %v1800, %v1796
  %v1802 = vmul.f32 1.0, %v1801
  %v1803 = vrcp.pop %v961
  %v1804 = vmul.f32 %v961, %v1803
  %v1805 = vsub.f32 1.0, %v1804
  %v1806 = vmul.f32 %v1803, %v1805
  %v1807 = vadd.f32 %v1803, %v1806
  %vm1808 = vweird.f32 %v961
  %vm1809 = vweird.f32 %v1803
  %vm1810 = vmor %vm1808, %vm1809
  %v1811 = vsel %vm1810, %v1803, %v1807
  %v1812 = vand.u32 2147483647, %v961
  %vm1813 = vcmp.eq.f32.partialorder %v1812, 8.507059e+37
  %v1814 = vand.u32 %v961, 2147483648
  %v1815 = vor.u32 1.1754944e-38, %v1814
  %v1816 = vsel %vm1813, %v1815, %v1811
  %v1817 = vmul.f32 1.0, %v1816
  %v1818 = vrcp.pop %v962
  %v1819 = vmul.f32 %v962, %v1818
  %v1820 = vsub.f32 1.0, %v1819
  %v1821 = vmul.f32 %v1818, %v1820
  %v1822 = vadd.f32 %v1818, %v1821
  %vm1823 = vweird.f32 %v962
  %vm1824 = vweird.f32 %v1818
  %vm1825 = vmor %vm1823, %vm1824
  %v1826 = vsel %vm1825, %v1818, %v1822
  %v1827 = vand.u32 2147483647, %v962
  %vm1828 = vcmp.eq.f32.partialorder %v1827, 8.507059e+37
  %v1829 = vand.u32 %v962, 2147483648
  %v1830 = vor.u32 1.1754944e-38, %v1829
  %v1831 = vsel %vm1828, %v1830, %v1826
  %v1832 = vmul.f32 1.0, %v1831
  %v1833 = vrcp.pop %v963
  %v1834 = vmul.f32 %v963, %v1833
  %v1835 = vsub.f32 1.0, %v1834
  %v1836 = vmul.f32 %v1833, %v1835
  %v1837 = vadd.f32 %v1833, %v1836
  %vm1838 = vweird.f32 %v963
  %vm1839 = vweird.f32 %v1833
  %vm1840 = vmor %vm1838, %vm1839
  %v1841 = vsel %vm1840, %v1833, %v1837
  %v1842 = vand.u32 2147483647, %v963
  %vm1843 = vcmp.eq.f32.partialorder %v1842, 8.507059e+37
  %v1844 = vand.u32 %v963, 2147483648
  %v1845 = vor.u32 1.1754944e-38, %v1844
  %v1846 = vsel %vm1843, %v1845, %v1841
  %v1847 = vmul.f32 1.0, %v1846
  %v1848 = vrcp.pop %v964
  %v1849 = vmul.f32 %v964, %v1848
  %v1850 = vsub.f32 1.0, %v1849
  %v1851 = vmul.f32 %v1848, %v1850
  %v1852 = vadd.f32 %v1848, %v1851
  %vm1853 = vweird.f32 %v964
  %vm1854 = vweird.f32 %v1848
  %vm1855 = vmor %vm1853, %vm1854
  %v1856 = vsel %vm1855, %v1848, %v1852
  %v1857 = vand.u32 2147483647, %v964
  %vm1858 = vcmp.eq.f32.partialorder %v1857, 8.507059e+37
  %v1859 = vand.u32 %v964, 2147483648
  %v1860 = vor.u32 1.1754944e-38, %v1859
  %v1861 = vsel %vm1858, %v1860, %v1856
  %v1862 = vmul.f32 1.0, %v1861
  %v1863 = vrcp.pop %v965
  %v1864 = vmul.f32 %v965, %v1863
  %v1865 = vsub.f32 1.0, %v1864
  %v1866 = vmul.f32 %v1863, %v1865
  %v1867 = vadd.f32 %v1863, %v1866
  %vm1868 = vweird.f32 %v965
  %vm1869 = vweird.f32 %v1863
  %vm1870 = vmor %vm1868, %vm1869
  %v1871 = vsel %vm1870, %v1863, %v1867
  %v1872 = vand.u32 2147483647, %v965
  %vm1873 = vcmp.eq.f32.partialorder %v1872, 8.507059e+37
  %v1874 = vand.u32 %v965, 2147483648
  %v1875 = vor.u32 1.1754944e-38, %v1874
  %v1876 = vsel %vm1873, %v1875, %v1871
  %v1877 = vmul.f32 1.0, %v1876
  %v1878 = vrcp.pop %v966
  %v1879 = vmul.f32 %v966, %v1878
  %v1880 = vsub.f32 1.0, %v1879
  %v1881 = vmul.f32 %v1878, %v1880
  %v1882 = vadd.f32 %v1878, %v1881
  %vm1883 = vweird.f32 %v966
  %vm1884 = vweird.f32 %v1878
  %vm1885 = vmor %vm1883, %vm1884
  %v1886 = vsel %vm1885, %v1878, %v1882
  %v1887 = vand.u32 2147483647, %v966
  %vm1888 = vcmp.eq.f32.partialorder %v1887, 8.507059e+37
  %v1889 = vand.u32 %v966, 2147483648
  %v1890 = vor.u32 1.1754944e-38, %v1889
  %v1891 = vsel %vm1888, %v1890, %v1886
  %v1892 = vmul.f32 1.0, %v1891
  %v1893 = vrcp.pop %v967
  %v1894 = vmul.f32 %v967, %v1893
  %v1895 = vsub.f32 1.0, %v1894
  %v1896 = vmul.f32 %v1893, %v1895
  %v1897 = vadd.f32 %v1893, %v1896
  %vm1898 = vweird.f32 %v967
  %vm1899 = vweird.f32 %v1893
  %vm1900 = vmor %vm1898, %vm1899
  %v1901 = vsel %vm1900, %v1893, %v1897
  %v1902 = vand.u32 2147483647, %v967
  %vm1903 = vcmp.eq.f32.partialorder %v1902, 8.507059e+37
  %v1904 = vand.u32 %v967, 2147483648
  %v1905 = vor.u32 1.1754944e-38, %v1904
  %v1906 = vsel %vm1903, %v1905, %v1901
  %v1907 = vmul.f32 1.0, %v1906
  %v1908 = vrcp.pop %v968
  %v1909 = vmul.f32 %v968, %v1908
  %v1910 = vsub.f32 1.0, %v1909
  %v1911 = vmul.f32 %v1908, %v1910
  %v1912 = vadd.f32 %v1908, %v1911
  %vm1913 = vweird.f32 %v968
  %vm1914 = vweird.f32 %v1908
  %vm1915 = vmor %vm1913, %vm1914
  %v1916 = vsel %vm1915, %v1908, %v1912
  %v1917 = vand.u32 2147483647, %v968
  %vm1918 = vcmp.eq.f32.partialorder %v1917, 8.507059e+37
  %v1919 = vand.u32 %v968, 2147483648
  %v1920 = vor.u32 1.1754944e-38, %v1919
  %v1921 = vsel %vm1918, %v1920, %v1916
  %v1922 = vmul.f32 1.0, %v1921
  %v1923 = vrcp.pop %v969
  %v1924 = vmul.f32 %v969, %v1923
  %v1925 = vsub.f32 1.0, %v1924
  %v1926 = vmul.f32 %v1923, %v1925
  %v1927 = vadd.f32 %v1923, %v1926
  %vm1928 = vweird.f32 %v969
  %vm1929 = vweird.f32 %v1923
  %vm1930 = vmor %vm1928, %vm1929
  %v1931 = vsel %vm1930, %v1923, %v1927
  %v1932 = vand.u32 2147483647, %v969
  %vm1933 = vcmp.eq.f32.partialorder %v1932, 8.507059e+37
  %v1934 = vand.u32 %v969, 2147483648
  %v1935 = vor.u32 1.1754944e-38, %v1934
  %v1936 = vsel %vm1933, %v1935, %v1931
  %v1937 = vmul.f32 1.0, %v1936
  %v1938 = vrcp.pop %v970
  %v1939 = vmul.f32 %v970, %v1938
  %v1940 = vsub.f32 1.0, %v1939
  %v1941 = vmul.f32 %v1938, %v1940
  %v1942 = vadd.f32 %v1938, %v1941
  %vm1943 = vweird.f32 %v970
  %vm1944 = vweird.f32 %v1938
  %vm1945 = vmor %vm1943, %vm1944
  %v1946 = vsel %vm1945, %v1938, %v1942
  %v1947 = vand.u32 2147483647, %v970
  %vm1948 = vcmp.eq.f32.partialorder %v1947, 8.507059e+37
  %v1949 = vand.u32 %v970, 2147483648
  %v1950 = vor.u32 1.1754944e-38, %v1949
  %v1951 = vsel %vm1948, %v1950, %v1946
  %v1952 = vmul.f32 1.0, %v1951
  %v1953 = vrcp.pop %v971
  %v1954 = vmul.f32 %v971, %v1953
  %v1955 = vsub.f32 1.0, %v1954
  %v1956 = vmul.f32 %v1953, %v1955
  %v1957 = vadd.f32 %v1953, %v1956
  %vm1958 = vweird.f32 %v971
  %vm1959 = vweird.f32 %v1953
  %vm1960 = vmor %vm1958, %vm1959
  %v1961 = vsel %vm1960, %v1953, %v1957
  %v1962 = vand.u32 2147483647, %v971
  %vm1963 = vcmp.eq.f32.partialorder %v1962, 8.507059e+37
  %v1964 = vand.u32 %v971, 2147483648
  %v1965 = vor.u32 1.1754944e-38, %v1964
  %v1966 = vsel %vm1963, %v1965, %v1961
  %v1967 = vmul.f32 1.0, %v1966
  %v1968 = vrcp.pop %v972
  %v1969 = vmul.f32 %v972, %v1968
  %v1970 = vsub.f32 1.0, %v1969
  %v1971 = vmul.f32 %v1968, %v1970
  %v1972 = vadd.f32 %v1968, %v1971
  %vm1973 = vweird.f32 %v972
  %vm1974 = vweird.f32 %v1968
  %vm1975 = vmor %vm1973, %vm1974
  %v1976 = vsel %vm1975, %v1968, %v1972
  %v1977 = vand.u32 2147483647, %v972
  %vm1978 = vcmp.eq.f32.partialorder %v1977, 8.507059e+37
  %v1979 = vand.u32 %v972, 2147483648
  %v1980 = vor.u32 1.1754944e-38, %v1979
  %v1981 = vsel %vm1978, %v1980, %v1976
  %v1982 = vmul.f32 1.0, %v1981
  %v1983 = vrcp.pop %v973
  %v1984 = vmul.f32 %v973, %v1983
  %v1985 = vsub.f32 1.0, %v1984
  %v1986 = vmul.f32 %v1983, %v1985
  %v1987 = vadd.f32 %v1983, %v1986
  %vm1988 = vweird.f32 %v973
  %vm1989 = vweird.f32 %v1983
  %vm1990 = vmor %vm1988, %vm1989
  %v1991 = vsel %vm1990, %v1983, %v1987
  %v1992 = vand.u32 2147483647, %v973
  %vm1993 = vcmp.eq.f32.partialorder %v1992, 8.507059e+37
  %v1994 = vand.u32 %v973, 2147483648
  %v1995 = vor.u32 1.1754944e-38, %v1994
  %v1996 = vsel %vm1993, %v1995, %v1991
  %v1997 = vmul.f32 1.0, %v1996
  %v1998 = vrcp.pop %v974
  %v1999 = vmul.f32 %v974, %v1998
  %v2000 = vsub.f32 1.0, %v1999
  %v2001 = vmul.f32 %v1998, %v2000
  %v2002 = vadd.f32 %v1998, %v2001
  %vm2003 = vweird.f32 %v974
  %vm2004 = vweird.f32 %v1998
  %vm2005 = vmor %vm2003, %vm2004
  %v2006 = vsel %vm2005, %v1998, %v2002
  %v2007 = vand.u32 2147483647, %v974
  %vm2008 = vcmp.eq.f32.partialorder %v2007, 8.507059e+37
  %v2009 = vand.u32 %v974, 2147483648
  %v2010 = vor.u32 1.1754944e-38, %v2009
  %v2011 = vsel %vm2008, %v2010, %v2006
  %v2012 = vmul.f32 1.0, %v2011
  %v2013 = vrcp.pop %v975
  %v2014 = vmul.f32 %v975, %v2013
  %v2015 = vsub.f32 1.0, %v2014
  %v2016 = vmul.f32 %v2013, %v2015
  %v2017 = vadd.f32 %v2013, %v2016
  %vm2018 = vweird.f32 %v975
  %vm2019 = vweird.f32 %v2013
  %vm2020 = vmor %vm2018, %vm2019
  %v2021 = vsel %vm2020, %v2013, %v2017
  %v2022 = vand.u32 2147483647, %v975
  %vm2023 = vcmp.eq.f32.partialorder %v2022, 8.507059e+37
  %v2024 = vand.u32 %v975, 2147483648
  %v2025 = vor.u32 1.1754944e-38, %v2024
  %v2026 = vsel %vm2023, %v2025, %v2021
  %v2027 = vmul.f32 1.0, %v2026
  %v2028 = vrcp.pop %v976
  %v2029 = vmul.f32 %v976, %v2028
  %v2030 = vsub.f32 1.0, %v2029
  %v2031 = vmul.f32 %v2028, %v2030
  %v2032 = vadd.f32 %v2028, %v2031
  %vm2033 = vweird.f32 %v976
  %vm2034 = vweird.f32 %v2028
  %vm2035 = vmor %vm2033, %vm2034
  %v2036 = vsel %vm2035, %v2028, %v2032
  %v2037 = vand.u32 2147483647, %v976
  %vm2038 = vcmp.eq.f32.partialorder %v2037, 8.507059e+37
  %v2039 = vand.u32 %v976, 2147483648
  %v2040 = vor.u32 1.1754944e-38, %v2039
  %v2041 = vsel %vm2038, %v2040, %v2036
  %v2042 = vmul.f32 1.0, %v2041
  %v2043 = vrcp.pop %v977
  %v2044 = vmul.f32 %v977, %v2043
  %v2045 = vsub.f32 1.0, %v2044
  %v2046 = vmul.f32 %v2043, %v2045
  %v2047 = vadd.f32 %v2043, %v2046
  %vm2048 = vweird.f32 %v977
  %vm2049 = vweird.f32 %v2043
  %vm2050 = vmor %vm2048, %vm2049
  %v2051 = vsel %vm2050, %v2043, %v2047
  %v2052 = vand.u32 2147483647, %v977
  %vm2053 = vcmp.eq.f32.partialorder %v2052, 8.507059e+37
  %v2054 = vand.u32 %v977, 2147483648
  %v2055 = vor.u32 1.1754944e-38, %v2054
  %v2056 = vsel %vm2053, %v2055, %v2051
  %v2057 = vmul.f32 1.0, %v2056
  %v2058 = vrcp.pop %v978
  %v2059 = vmul.f32 %v978, %v2058
  %v2060 = vsub.f32 1.0, %v2059
  %v2061 = vmul.f32 %v2058, %v2060
  %v2062 = vadd.f32 %v2058, %v2061
  %vm2063 = vweird.f32 %v978
  %vm2064 = vweird.f32 %v2058
  %vm2065 = vmor %vm2063, %vm2064
  %v2066 = vsel %vm2065, %v2058, %v2062
  %v2067 = vand.u32 2147483647, %v978
  %vm2068 = vcmp.eq.f32.partialorder %v2067, 8.507059e+37
  %v2069 = vand.u32 %v978, 2147483648
  %v2070 = vor.u32 1.1754944e-38, %v2069
  %v2071 = vsel %vm2068, %v2070, %v2066
  %v2072 = vmul.f32 1.0, %v2071
  %v2073 = vrcp.pop %v979
  %v2074 = vmul.f32 %v979, %v2073
  %v2075 = vsub.f32 1.0, %v2074
  %v2076 = vmul.f32 %v2073, %v2075
  %v2077 = vadd.f32 %v2073, %v2076
  %vm2078 = vweird.f32 %v979
  %vm2079 = vweird.f32 %v2073
  %vm2080 = vmor %vm2078, %vm2079
  %v2081 = vsel %vm2080, %v2073, %v2077
  %v2082 = vand.u32 2147483647, %v979
  %vm2083 = vcmp.eq.f32.partialorder %v2082, 8.507059e+37
  %v2084 = vand.u32 %v979, 2147483648
  %v2085 = vor.u32 1.1754944e-38, %v2084
  %v2086 = vsel %vm2083, %v2085, %v2081
  %v2087 = vmul.f32 1.0, %v2086
  %v2088 = vrcp.pop %v980
  %v2089 = vmul.f32 %v980, %v2088
  %v2090 = vsub.f32 1.0, %v2089
  %v2091 = vmul.f32 %v2088, %v2090
  %v2092 = vadd.f32 %v2088, %v2091
  %vm2093 = vweird.f32 %v980
  %vm2094 = vweird.f32 %v2088
  %vm2095 = vmor %vm2093, %vm2094
  %v2096 = vsel %vm2095, %v2088, %v2092
  %v2097 = vand.u32 2147483647, %v980
  %vm2098 = vcmp.eq.f32.partialorder %v2097, 8.507059e+37
  %v2099 = vand.u32 %v980, 2147483648
  %v2100 = vor.u32 1.1754944e-38, %v2099
  %v2101 = vsel %vm2098, %v2100, %v2096
  %v2102 = vmul.f32 1.0, %v2101
  %v2103 = vrcp.pop %v981
  %v2104 = vmul.f32 %v981, %v2103
  %v2105 = vsub.f32 1.0, %v2104
  %v2106 = vmul.f32 %v2103, %v2105
  %v2107 = vadd.f32 %v2103, %v2106
  %vm2108 = vweird.f32 %v981
  %vm2109 = vweird.f32 %v2103
  %vm2110 = vmor %vm2108, %vm2109
  %v2111 = vsel %vm2110, %v2103, %v2107
  %v2112 = vand.u32 2147483647, %v981
  %vm2113 = vcmp.eq.f32.partialorder %v2112, 8.507059e+37
  %v2114 = vand.u32 %v981, 2147483648
  %v2115 = vor.u32 1.1754944e-38, %v2114
  %v2116 = vsel %vm2113, %v2115, %v2111
  %v2117 = vmul.f32 1.0, %v2116
  %v2118 = vrcp.pop %v982
  %v2119 = vmul.f32 %v982, %v2118
  %v2120 = vsub.f32 1.0, %v2119
  %v2121 = vmul.f32 %v2118, %v2120
  %v2122 = vadd.f32 %v2118, %v2121
  %vm2123 = vweird.f32 %v982
  %vm2124 = vweird.f32 %v2118
  %vm2125 = vmor %vm2123, %vm2124
  %v2126 = vsel %vm2125, %v2118, %v2122
  %v2127 = vand.u32 2147483647, %v982
  %vm2128 = vcmp.eq.f32.partialorder %v2127, 8.507059e+37
  %v2129 = vand.u32 %v982, 2147483648
  %v2130 = vor.u32 1.1754944e-38, %v2129
  %v2131 = vsel %vm2128, %v2130, %v2126
  %v2132 = vmul.f32 1.0, %v2131
  %v2133 = vrcp.pop %v983
  %v2134 = vmul.f32 %v983, %v2133
  %v2135 = vsub.f32 1.0, %v2134
  %v2136 = vmul.f32 %v2133, %v2135
  %v2137 = vadd.f32 %v2133, %v2136
  %vm2138 = vweird.f32 %v983
  %vm2139 = vweird.f32 %v2133
  %vm2140 = vmor %vm2138, %vm2139
  %v2141 = vsel %vm2140, %v2133, %v2137
  %v2142 = vand.u32 2147483647, %v983
  %vm2143 = vcmp.eq.f32.partialorder %v2142, 8.507059e+37
  %v2144 = vand.u32 %v983, 2147483648
  %v2145 = vor.u32 1.1754944e-38, %v2144
  %v2146 = vsel %vm2143, %v2145, %v2141
  %v2147 = vmul.f32 1.0, %v2146
  %v2148 = vrcp.pop %v984
  %v2149 = vmul.f32 %v984, %v2148
  %v2150 = vsub.f32 1.0, %v2149
  %v2151 = vmul.f32 %v2148, %v2150
  %v2152 = vadd.f32 %v2148, %v2151
  %vm2153 = vweird.f32 %v984
  %vm2154 = vweird.f32 %v2148
  %vm2155 = vmor %vm2153, %vm2154
  %v2156 = vsel %vm2155, %v2148, %v2152
  %v2157 = vand.u32 2147483647, %v984
  %vm2158 = vcmp.eq.f32.partialorder %v2157, 8.507059e+37
  %v2159 = vand.u32 %v984, 2147483648
  %v2160 = vor.u32 1.1754944e-38, %v2159
  %v2161 = vsel %vm2158, %v2160, %v2156
  %v2162 = vmul.f32 1.0, %v2161
  %v2163 = vrcp.pop %v985
  %v2164 = vmul.f32 %v985, %v2163
  %v2165 = vsub.f32 1.0, %v2164
  %v2166 = vmul.f32 %v2163, %v2165
  %v2167 = vadd.f32 %v2163, %v2166
  %vm2168 = vweird.f32 %v985
  %vm2169 = vweird.f32 %v2163
  %vm2170 = vmor %vm2168, %vm2169
  %v2171 = vsel %vm2170, %v2163, %v2167
  %v2172 = vand.u32 2147483647, %v985
  %vm2173 = vcmp.eq.f32.partialorder %v2172, 8.507059e+37
  %v2174 = vand.u32 %v985, 2147483648
  %v2175 = vor.u32 1.1754944e-38, %v2174
  %v2176 = vsel %vm2173, %v2175, %v2171
  %v2177 = vmul.f32 1.0, %v2176
  %v2178 = vrcp.pop %v986
  %v2179 = vmul.f32 %v986, %v2178
  %v2180 = vsub.f32 1.0, %v2179
  %v2181 = vmul.f32 %v2178, %v2180
  %v2182 = vadd.f32 %v2178, %v2181
  %vm2183 = vweird.f32 %v986
  %vm2184 = vweird.f32 %v2178
  %vm2185 = vmor %vm2183, %vm2184
  %v2186 = vsel %vm2185, %v2178, %v2182
  %v2187 = vand.u32 2147483647, %v986
  %vm2188 = vcmp.eq.f32.partialorder %v2187, 8.507059e+37
  %v2189 = vand.u32 %v986, 2147483648
  %v2190 = vor.u32 1.1754944e-38, %v2189
  %v2191 = vsel %vm2188, %v2190, %v2186
  %v2192 = vmul.f32 1.0, %v2191
  %v2193 = vrcp.pop %v987
  %v2194 = vmul.f32 %v987, %v2193
  %v2195 = vsub.f32 1.0, %v2194
  %v2196 = vmul.f32 %v2193, %v2195
  %v2197 = vadd.f32 %v2193, %v2196
  %vm2198 = vweird.f32 %v987
  %vm2199 = vweird.f32 %v2193
  %vm2200 = vmor %vm2198, %vm2199
  %v2201 = vsel %vm2200, %v2193, %v2197
  %v2202 = vand.u32 2147483647, %v987
  %vm2203 = vcmp.eq.f32.partialorder %v2202, 8.507059e+37
  %v2204 = vand.u32 %v987, 2147483648
  %v2205 = vor.u32 1.1754944e-38, %v2204
  %v2206 = vsel %vm2203, %v2205, %v2201
  %v2207 = vmul.f32 1.0, %v2206
  %v2208 = vrcp.pop %v988
  %v2209 = vmul.f32 %v988, %v2208
  %v2210 = vsub.f32 1.0, %v2209
  %v2211 = vmul.f32 %v2208, %v2210
  %v2212 = vadd.f32 %v2208, %v2211
  %vm2213 = vweird.f32 %v988
  %vm2214 = vweird.f32 %v2208
  %vm2215 = vmor %vm2213, %vm2214
  %v2216 = vsel %vm2215, %v2208, %v2212
  %v2217 = vand.u32 2147483647, %v988
  %vm2218 = vcmp.eq.f32.partialorder %v2217, 8.507059e+37
  %v2219 = vand.u32 %v988, 2147483648
  %v2220 = vor.u32 1.1754944e-38, %v2219
  %v2221 = vsel %vm2218, %v2220, %v2216
  %v2222 = vmul.f32 1.0, %v2221
  %v2223 = vrcp.pop %v989
  %v2224 = vmul.f32 %v989, %v2223
  %v2225 = vsub.f32 1.0, %v2224
  %v2226 = vmul.f32 %v2223, %v2225
  %v2227 = vadd.f32 %v2223, %v2226
  %vm2228 = vweird.f32 %v989
  %vm2229 = vweird.f32 %v2223
  %vm2230 = vmor %vm2228, %vm2229
  %v2231 = vsel %vm2230, %v2223, %v2227
  %v2232 = vand.u32 2147483647, %v989
  %vm2233 = vcmp.eq.f32.partialorder %v2232, 8.507059e+37
  %v2234 = vand.u32 %v989, 2147483648
  %v2235 = vor.u32 1.1754944e-38, %v2234
  %v2236 = vsel %vm2233, %v2235, %v2231
  %v2237 = vmul.f32 1.0, %v2236
  %v2238 = vrcp.pop %v990
  %v2239 = vmul.f32 %v990, %v2238
  %v2240 = vsub.f32 1.0, %v2239
  %v2241 = vmul.f32 %v2238, %v2240
  %v2242 = vadd.f32 %v2238, %v2241
  %vm2243 = vweird.f32 %v990
  %vm2244 = vweird.f32 %v2238
  %vm2245 = vmor %vm2243, %vm2244
  %v2246 = vsel %vm2245, %v2238, %v2242
  %v2247 = vand.u32 2147483647, %v990
  %vm2248 = vcmp.eq.f32.partialorder %v2247, 8.507059e+37
  %v2249 = vand.u32 %v990, 2147483648
  %v2250 = vor.u32 1.1754944e-38, %v2249
  %v2251 = vsel %vm2248, %v2250, %v2246
  %v2252 = vmul.f32 1.0, %v2251
  %v2253 = vrcp.pop %v991
  %v2254 = vmul.f32 %v991, %v2253
  %v2255 = vsub.f32 1.0, %v2254
  %v2256 = vmul.f32 %v2253, %v2255
  %v2257 = vadd.f32 %v2253, %v2256
  %vm2258 = vweird.f32 %v991
  %vm2259 = vweird.f32 %v2253
  %vm2260 = vmor %vm2258, %vm2259
  %v2261 = vsel %vm2260, %v2253, %v2257
  %v2262 = vand.u32 2147483647, %v991
  %vm2263 = vcmp.eq.f32.partialorder %v2262, 8.507059e+37
  %v2264 = vand.u32 %v991, 2147483648
  %v2265 = vor.u32 1.1754944e-38, %v2264
  %v2266 = vsel %vm2263, %v2265, %v2261
  %v2267 = vmul.f32 1.0, %v2266
  %v2268 = vrcp.pop %v992
  %v2269 = vmul.f32 %v992, %v2268
  %v2270 = vsub.f32 1.0, %v2269
  %v2271 = vmul.f32 %v2268, %v2270
  %v2272 = vadd.f32 %v2268, %v2271
  %vm2273 = vweird.f32 %v992
  %vm2274 = vweird.f32 %v2268
  %vm2275 = vmor %vm2273, %vm2274
  %v2276 = vsel %vm2275, %v2268, %v2272
  %v2277 = vand.u32 2147483647, %v992
  %vm2278 = vcmp.eq.f32.partialorder %v2277, 8.507059e+37
  %v2279 = vand.u32 %v992, 2147483648
  %v2280 = vor.u32 1.1754944e-38, %v2279
  %v2281 = vsel %vm2278, %v2280, %v2276
  %v2282 = vmul.f32 1.0, %v2281
  %v2283 = vrcp.pop %v993
  %v2284 = vmul.f32 %v993, %v2283
  %v2285 = vsub.f32 1.0, %v2284
  %v2286 = vmul.f32 %v2283, %v2285
  %v2287 = vadd.f32 %v2283, %v2286
  %vm2288 = vweird.f32 %v993
  %vm2289 = vweird.f32 %v2283
  %vm2290 = vmor %vm2288, %vm2289
  %v2291 = vsel %vm2290, %v2283, %v2287
  %v2292 = vand.u32 2147483647, %v993
  %vm2293 = vcmp.eq.f32.partialorder %v2292, 8.507059e+37
  %v2294 = vand.u32 %v993, 2147483648
  %v2295 = vor.u32 1.1754944e-38, %v2294
  %v2296 = vsel %vm2293, %v2295, %v2291
  %v2297 = vmul.f32 1.0, %v2296
  %v2298 = vrcp.pop %v994
  %v2299 = vmul.f32 %v994, %v2298
  %v2300 = vsub.f32 1.0, %v2299
  %v2301 = vmul.f32 %v2298, %v2300
  %v2302 = vadd.f32 %v2298, %v2301
  %vm2303 = vweird.f32 %v994
  %vm2304 = vweird.f32 %v2298
  %vm2305 = vmor %vm2303, %vm2304
  %v2306 = vsel %vm2305, %v2298, %v2302
  %v2307 = vand.u32 2147483647, %v994
  %vm2308 = vcmp.eq.f32.partialorder %v2307, 8.507059e+37
  %v2309 = vand.u32 %v994, 2147483648
  %v2310 = vor.u32 1.1754944e-38, %v2309
  %v2311 = vsel %vm2308, %v2310, %v2306
  %v2312 = vmul.f32 1.0, %v2311
  %v2313 = vrcp.pop %v995
  %v2314 = vmul.f32 %v995, %v2313
  %v2315 = vsub.f32 1.0, %v2314
  %v2316 = vmul.f32 %v2313, %v2315
  %v2317 = vadd.f32 %v2313, %v2316
  %vm2318 = vweird.f32 %v995
  %vm2319 = vweird.f32 %v2313
  %vm2320 = vmor %vm2318, %vm2319
  %v2321 = vsel %vm2320, %v2313, %v2317
  %v2322 = vand.u32 2147483647, %v995
  %vm2323 = vcmp.eq.f32.partialorder %v2322, 8.507059e+37
  %v2324 = vand.u32 %v995, 2147483648
  %v2325 = vor.u32 1.1754944e-38, %v2324
  %v2326 = vsel %vm2323, %v2325, %v2321
  %v2327 = vmul.f32 1.0, %v2326
  %v2328 = vrcp.pop %v996
  %v2329 = vmul.f32 %v996, %v2328
  %v2330 = vsub.f32 1.0, %v2329
  %v2331 = vmul.f32 %v2328, %v2330
  %v2332 = vadd.f32 %v2328, %v2331
  %vm2333 = vweird.f32 %v996
  %vm2334 = vweird.f32 %v2328
  %vm2335 = vmor %vm2333, %vm2334
  %v2336 = vsel %vm2335, %v2328, %v2332
  %v2337 = vand.u32 2147483647, %v996
  %vm2338 = vcmp.eq.f32.partialorder %v2337, 8.507059e+37
  %v2339 = vand.u32 %v996, 2147483648
  %v2340 = vor.u32 1.1754944e-38, %v2339
  %v2341 = vsel %vm2338, %v2340, %v2336
  %v2342 = vmul.f32 1.0, %v2341
  %v2343 = vrcp.pop %v997
  %v2344 = vmul.f32 %v997, %v2343
  %v2345 = vsub.f32 1.0, %v2344
  %v2346 = vmul.f32 %v2343, %v2345
  %v2347 = vadd.f32 %v2343, %v2346
  %vm2348 = vweird.f32 %v997
  %vm2349 = vweird.f32 %v2343
  %vm2350 = vmor %vm2348, %vm2349
  %v2351 = vsel %vm2350, %v2343, %v2347
  %v2352 = vand.u32 2147483647, %v997
  %vm2353 = vcmp.eq.f32.partialorder %v2352, 8.507059e+37
  %v2354 = vand.u32 %v997, 2147483648
  %v2355 = vor.u32 1.1754944e-38, %v2354
  %v2356 = vsel %vm2353, %v2355, %v2351
  %v2357 = vmul.f32 1.0, %v2356
  %v2358 = vrcp.pop %v998
  %v2359 = vmul.f32 %v998, %v2358
  %v2360 = vsub.f32 1.0, %v2359
  %v2361 = vmul.f32 %v2358, %v2360
  %v2362 = vadd.f32 %v2358, %v2361
  %vm2363 = vweird.f32 %v998
  %vm2364 = vweird.f32 %v2358
  %vm2365 = vmor %vm2363, %vm2364
  %v2366 = vsel %vm2365, %v2358, %v2362
  %v2367 = vand.u32 2147483647, %v998
  %vm2368 = vcmp.eq.f32.partialorder %v2367, 8.507059e+37
  %v2369 = vand.u32 %v998, 2147483648
  %v2370 = vor.u32 1.1754944e-38, %v2369
  %v2371 = vsel %vm2368, %v2370, %v2366
  %v2372 = vmul.f32 1.0, %v2371
  %v2373 = vrcp.pop %v999
  %v2374 = vmul.f32 %v999, %v2373
  %v2375 = vsub.f32 1.0, %v2374
  %v2376 = vmul.f32 %v2373, %v2375
  %v2377 = vadd.f32 %v2373, %v2376
  %vm2378 = vweird.f32 %v999
  %vm2379 = vweird.f32 %v2373
  %vm2380 = vmor %vm2378, %vm2379
  %v2381 = vsel %vm2380, %v2373, %v2377
  %v2382 = vand.u32 2147483647, %v999
  %vm2383 = vcmp.eq.f32.partialorder %v2382, 8.507059e+37
  %v2384 = vand.u32 %v999, 2147483648
  %v2385 = vor.u32 1.1754944e-38, %v2384
  %v2386 = vsel %vm2383, %v2385, %v2381
  %v2387 = vmul.f32 1.0, %v2386
  %v2388 = vrcp.pop %v1000
  %v2389 = vmul.f32 %v1000, %v2388
  %v2390 = vsub.f32 1.0, %v2389
  %v2391 = vmul.f32 %v2388, %v2390
  %v2392 = vadd.f32 %v2388, %v2391
  %vm2393 = vweird.f32 %v1000
  %vm2394 = vweird.f32 %v2388
  %vm2395 = vmor %vm2393, %vm2394
  %v2396 = vsel %vm2395, %v2388, %v2392
  %v2397 = vand.u32 2147483647, %v1000
  %vm2398 = vcmp.eq.f32.partialorder %v2397, 8.507059e+37
  %v2399 = vand.u32 %v1000, 2147483648
  %v2400 = vor.u32 1.1754944e-38, %v2399
  %v2401 = vsel %vm2398, %v2400, %v2396
  %v2402 = vmul.f32 1.0, %v2401
  %v2403 = vrcp.pop %v1001
  %v2404 = vmul.f32 %v1001, %v2403
  %v2405 = vsub.f32 1.0, %v2404
  %v2406 = vmul.f32 %v2403, %v2405
  %v2407 = vadd.f32 %v2403, %v2406
  %vm2408 = vweird.f32 %v1001
  %vm2409 = vweird.f32 %v2403
  %vm2410 = vmor %vm2408, %vm2409
  %v2411 = vsel %vm2410, %v2403, %v2407
  %v2412 = vand.u32 2147483647, %v1001
  %vm2413 = vcmp.eq.f32.partialorder %v2412, 8.507059e+37
  %v2414 = vand.u32 %v1001, 2147483648
  %v2415 = vor.u32 1.1754944e-38, %v2414
  %v2416 = vsel %vm2413, %v2415, %v2411
  %v2417 = vmul.f32 1.0, %v2416
  %v2418 = vrcp.pop %v1002
  %v2419 = vmul.f32 %v1002, %v2418
  %v2420 = vsub.f32 1.0, %v2419
  %v2421 = vmul.f32 %v2418, %v2420
  %v2422 = vadd.f32 %v2418, %v2421
  %vm2423 = vweird.f32 %v1002
  %vm2424 = vweird.f32 %v2418
  %vm2425 = vmor %vm2423, %vm2424
  %v2426 = vsel %vm2425, %v2418, %v2422
  %v2427 = vand.u32 2147483647, %v1002
  %vm2428 = vcmp.eq.f32.partialorder %v2427, 8.507059e+37
  %v2429 = vand.u32 %v1002, 2147483648
  %v2430 = vor.u32 1.1754944e-38, %v2429
  %v2431 = vsel %vm2428, %v2430, %v2426
  %v2432 = vmul.f32 1.0, %v2431
  %v2433 = vrcp.pop %v1003
  %v2434 = vmul.f32 %v1003, %v2433
  %v2435 = vsub.f32 1.0, %v2434
  %v2436 = vmul.f32 %v2433, %v2435
  %v2437 = vadd.f32 %v2433, %v2436
  %vm2438 = vweird.f32 %v1003
  %vm2439 = vweird.f32 %v2433
  %vm2440 = vmor %vm2438, %vm2439
  %v2441 = vsel %vm2440, %v2433, %v2437
  %v2442 = vand.u32 2147483647, %v1003
  %vm2443 = vcmp.eq.f32.partialorder %v2442, 8.507059e+37
  %v2444 = vand.u32 %v1003, 2147483648
  %v2445 = vor.u32 1.1754944e-38, %v2444
  %v2446 = vsel %vm2443, %v2445, %v2441
  %v2447 = vmul.f32 1.0, %v2446
  %v2448 = vrcp.pop %v1004
  %v2449 = vmul.f32 %v1004, %v2448
  %v2450 = vsub.f32 1.0, %v2449
  %v2451 = vmul.f32 %v2448, %v2450
  %v2452 = vadd.f32 %v2448, %v2451
  %vm2453 = vweird.f32 %v1004
  %vm2454 = vweird.f32 %v2448
  %vm2455 = vmor %vm2453, %vm2454
  %v2456 = vsel %vm2455, %v2448, %v2452
  %v2457 = vand.u32 2147483647, %v1004
  %vm2458 = vcmp.eq.f32.partialorder %v2457, 8.507059e+37
  %v2459 = vand.u32 %v1004, 2147483648
  %v2460 = vor.u32 1.1754944e-38, %v2459
  %v2461 = vsel %vm2458, %v2460, %v2456
  %v2462 = vmul.f32 1.0, %v2461
  %v2463 = vrcp.pop %v1005
  %v2464 = vmul.f32 %v1005, %v2463
  %v2465 = vsub.f32 1.0, %v2464
  %v2466 = vmul.f32 %v2463, %v2465
  %v2467 = vadd.f32 %v2463, %v2466
  %vm2468 = vweird.f32 %v1005
  %vm2469 = vweird.f32 %v2463
  %vm2470 = vmor %vm2468, %vm2469
  %v2471 = vsel %vm2470, %v2463, %v2467
  %v2472 = vand.u32 2147483647, %v1005
  %vm2473 = vcmp.eq.f32.partialorder %v2472, 8.507059e+37
  %v2474 = vand.u32 %v1005, 2147483648
  %v2475 = vor.u32 1.1754944e-38, %v2474
  %v2476 = vsel %vm2473, %v2475, %v2471
  %v2477 = vmul.f32 1.0, %v2476
  %v2478 = vrcp.pop %v1006
  %v2479 = vmul.f32 %v1006, %v2478
  %v2480 = vsub.f32 1.0, %v2479
  %v2481 = vmul.f32 %v2478, %v2480
  %v2482 = vadd.f32 %v2478, %v2481
  %vm2483 = vweird.f32 %v1006
  %vm2484 = vweird.f32 %v2478
  %vm2485 = vmor %vm2483, %vm2484
  %v2486 = vsel %vm2485, %v2478, %v2482
  %v2487 = vand.u32 2147483647, %v1006
  %vm2488 = vcmp.eq.f32.partialorder %v2487, 8.507059e+37
  %v2489 = vand.u32 %v1006, 2147483648
  %v2490 = vor.u32 1.1754944e-38, %v2489
  %v2491 = vsel %vm2488, %v2490, %v2486
  %v2492 = vmul.f32 1.0, %v2491
  %v2493 = vrcp.pop %v1007
  %v2494 = vmul.f32 %v1007, %v2493
  %v2495 = vsub.f32 1.0, %v2494
  %v2496 = vmul.f32 %v2493, %v2495
  %v2497 = vadd.f32 %v2493, %v2496
  %vm2498 = vweird.f32 %v1007
  %vm2499 = vweird.f32 %v2493
  %vm2500 = vmor %vm2498, %vm2499
  %v2501 = vsel %vm2500, %v2493, %v2497
  %v2502 = vand.u32 2147483647, %v1007
  %vm2503 = vcmp.eq.f32.partialorder %v2502, 8.507059e+37
  %v2504 = vand.u32 %v1007, 2147483648
  %v2505 = vor.u32 1.1754944e-38, %v2504
  %v2506 = vsel %vm2503, %v2505, %v2501
  %v2507 = vmul.f32 1.0, %v2506
  %v2508 = vrcp.pop %v1008
  %v2509 = vmul.f32 %v1008, %v2508
  %v2510 = vsub.f32 1.0, %v2509
  %v2511 = vmul.f32 %v2508, %v2510
  %v2512 = vadd.f32 %v2508, %v2511
  %vm2513 = vweird.f32 %v1008
  %vm2514 = vweird.f32 %v2508
  %vm2515 = vmor %vm2513, %vm2514
  %v2516 = vsel %vm2515, %v2508, %v2512
  %v2517 = vand.u32 2147483647, %v1008
  %vm2518 = vcmp.eq.f32.partialorder %v2517, 8.507059e+37
  %v2519 = vand.u32 %v1008, 2147483648
  %v2520 = vor.u32 1.1754944e-38, %v2519
  %v2521 = vsel %vm2518, %v2520, %v2516
  %v2522 = vmul.f32 1.0, %v2521
  %v2523 = vrcp.pop %v1009
  %v2524 = vmul.f32 %v1009, %v2523
  %v2525 = vsub.f32 1.0, %v2524
  %v2526 = vmul.f32 %v2523, %v2525
  %v2527 = vadd.f32 %v2523, %v2526
  %vm2528 = vweird.f32 %v1009
  %vm2529 = vweird.f32 %v2523
  %vm2530 = vmor %vm2528, %vm2529
  %v2531 = vsel %vm2530, %v2523, %v2527
  %v2532 = vand.u32 2147483647, %v1009
  %vm2533 = vcmp.eq.f32.partialorder %v2532, 8.507059e+37
  %v2534 = vand.u32 %v1009, 2147483648
  %v2535 = vor.u32 1.1754944e-38, %v2534
  %v2536 = vsel %vm2533, %v2535, %v2531
  %v2537 = vmul.f32 1.0, %v2536
  %v2538 = vrcp.pop %v1010
  %v2539 = vmul.f32 %v1010, %v2538
  %v2540 = vsub.f32 1.0, %v2539
  %v2541 = vmul.f32 %v2538, %v2540
  %v2542 = vadd.f32 %v2538, %v2541
  %vm2543 = vweird.f32 %v1010
  %vm2544 = vweird.f32 %v2538
  %vm2545 = vmor %vm2543, %vm2544
  %v2546 = vsel %vm2545, %v2538, %v2542
  %v2547 = vand.u32 2147483647, %v1010
  %vm2548 = vcmp.eq.f32.partialorder %v2547, 8.507059e+37
  %v2549 = vand.u32 %v1010, 2147483648
  %v2550 = vor.u32 1.1754944e-38, %v2549
  %v2551 = vsel %vm2548, %v2550, %v2546
  %v2552 = vmul.f32 1.0, %v2551
  %v2553 = vrcp.pop %v1011
  %v2554 = vmul.f32 %v1011, %v2553
  %v2555 = vsub.f32 1.0, %v2554
  %v2556 = vmul.f32 %v2553, %v2555
  %v2557 = vadd.f32 %v2553, %v2556
  %vm2558 = vweird.f32 %v1011
  %vm2559 = vweird.f32 %v2553
  %vm2560 = vmor %vm2558, %vm2559
  %v2561 = vsel %vm2560, %v2553, %v2557
  %v2562 = vand.u32 2147483647, %v1011
  %vm2563 = vcmp.eq.f32.partialorder %v2562, 8.507059e+37
  %v2564 = vand.u32 %v1011, 2147483648
  %v2565 = vor.u32 1.1754944e-38, %v2564
  %v2566 = vsel %vm2563, %v2565, %v2561
  %v2567 = vmul.f32 1.0, %v2566
  %v2568 = vrcp.pop %v1012
  %v2569 = vmul.f32 %v1012, %v2568
  %v2570 = vsub.f32 1.0, %v2569
  %v2571 = vmul.f32 %v2568, %v2570
  %v2572 = vadd.f32 %v2568, %v2571
  %vm2573 = vweird.f32 %v1012
  %vm2574 = vweird.f32 %v2568
  %vm2575 = vmor %vm2573, %vm2574
  %v2576 = vsel %vm2575, %v2568, %v2572
  %v2577 = vand.u32 2147483647, %v1012
  %vm2578 = vcmp.eq.f32.partialorder %v2577, 8.507059e+37
  %v2579 = vand.u32 %v1012, 2147483648
  %v2580 = vor.u32 1.1754944e-38, %v2579
  %v2581 = vsel %vm2578, %v2580, %v2576
  %v2582 = vmul.f32 1.0, %v2581
  %v2583 = vrcp.pop %v1013
  %v2584 = vmul.f32 %v1013, %v2583
  %v2585 = vsub.f32 1.0, %v2584
  %v2586 = vmul.f32 %v2583, %v2585
  %v2587 = vadd.f32 %v2583, %v2586
  %vm2588 = vweird.f32 %v1013
  %vm2589 = vweird.f32 %v2583
  %vm2590 = vmor %vm2588, %vm2589
  %v2591 = vsel %vm2590, %v2583, %v2587
  %v2592 = vand.u32 2147483647, %v1013
  %vm2593 = vcmp.eq.f32.partialorder %v2592, 8.507059e+37
  %v2594 = vand.u32 %v1013, 2147483648
  %v2595 = vor.u32 1.1754944e-38, %v2594
  %v2596 = vsel %vm2593, %v2595, %v2591
  %v2597 = vmul.f32 1.0, %v2596
  %v2598 = vrcp.pop %v1014
  %v2599 = vmul.f32 %v1014, %v2598
  %v2600 = vsub.f32 1.0, %v2599
  %v2601 = vmul.f32 %v2598, %v2600
  %v2602 = vadd.f32 %v2598, %v2601
  %vm2603 = vweird.f32 %v1014
  %vm2604 = vweird.f32 %v2598
  %vm2605 = vmor %vm2603, %vm2604
  %v2606 = vsel %vm2605, %v2598, %v2602
  %v2607 = vand.u32 2147483647, %v1014
  %vm2608 = vcmp.eq.f32.partialorder %v2607, 8.507059e+37
  %v2609 = vand.u32 %v1014, 2147483648
  %v2610 = vor.u32 1.1754944e-38, %v2609
  %v2611 = vsel %vm2608, %v2610, %v2606
  %v2612 = vmul.f32 1.0, %v2611
  %v2613 = vrcp.pop %v1015
  %v2614 = vmul.f32 %v1015, %v2613
  %v2615 = vsub.f32 1.0, %v2614
  %v2616 = vmul.f32 %v2613, %v2615
  %v2617 = vadd.f32 %v2613, %v2616
  %vm2618 = vweird.f32 %v1015
  %vm2619 = vweird.f32 %v2613
  %vm2620 = vmor %vm2618, %vm2619
  %v2621 = vsel %vm2620, %v2613, %v2617
  %v2622 = vand.u32 2147483647, %v1015
  %vm2623 = vcmp.eq.f32.partialorder %v2622, 8.507059e+37
  %v2624 = vand.u32 %v1015, 2147483648
  %v2625 = vor.u32 1.1754944e-38, %v2624
  %v2626 = vsel %vm2623, %v2625, %v2621
  %v2627 = vmul.f32 1.0, %v2626
  %v2628 = vrcp.pop %v1016
  %v2629 = vmul.f32 %v1016, %v2628
  %v2630 = vsub.f32 1.0, %v2629
  %v2631 = vmul.f32 %v2628, %v2630
  %v2632 = vadd.f32 %v2628, %v2631
  %vm2633 = vweird.f32 %v1016
  %vm2634 = vweird.f32 %v2628
  %vm2635 = vmor %vm2633, %vm2634
  %v2636 = vsel %vm2635, %v2628, %v2632
  %v2637 = vand.u32 2147483647, %v1016
  %vm2638 = vcmp.eq.f32.partialorder %v2637, 8.507059e+37
  %v2639 = vand.u32 %v1016, 2147483648
  %v2640 = vor.u32 1.1754944e-38, %v2639
  %v2641 = vsel %vm2638, %v2640, %v2636
  %v2642 = vmul.f32 1.0, %v2641
  %v2643 = vrcp.pop %v1017
  %v2644 = vmul.f32 %v1017, %v2643
  %v2645 = vsub.f32 1.0, %v2644
  %v2646 = vmul.f32 %v2643, %v2645
  %v2647 = vadd.f32 %v2643, %v2646
  %vm2648 = vweird.f32 %v1017
  %vm2649 = vweird.f32 %v2643
  %vm2650 = vmor %vm2648, %vm2649
  %v2651 = vsel %vm2650, %v2643, %v2647
  %v2652 = vand.u32 2147483647, %v1017
  %vm2653 = vcmp.eq.f32.partialorder %v2652, 8.507059e+37
  %v2654 = vand.u32 %v1017, 2147483648
  %v2655 = vor.u32 1.1754944e-38, %v2654
  %v2656 = vsel %vm2653, %v2655, %v2651
  %v2657 = vmul.f32 1.0, %v2656
  %v2658 = vrcp.pop %v1018
  %v2659 = vmul.f32 %v1018, %v2658
  %v2660 = vsub.f32 1.0, %v2659
  %v2661 = vmul.f32 %v2658, %v2660
  %v2662 = vadd.f32 %v2658, %v2661
  %vm2663 = vweird.f32 %v1018
  %vm2664 = vweird.f32 %v2658
  %vm2665 = vmor %vm2663, %vm2664
  %v2666 = vsel %vm2665, %v2658, %v2662
  %v2667 = vand.u32 2147483647, %v1018
  %vm2668 = vcmp.eq.f32.partialorder %v2667, 8.507059e+37
  %v2669 = vand.u32 %v1018, 2147483648
  %v2670 = vor.u32 1.1754944e-38, %v2669
  %v2671 = vsel %vm2668, %v2670, %v2666
  %v2672 = vmul.f32 1.0, %v2671
  %v2673 = vrcp.pop %v1019
  %v2674 = vmul.f32 %v1019, %v2673
  %v2675 = vsub.f32 1.0, %v2674
  %v2676 = vmul.f32 %v2673, %v2675
  %v2677 = vadd.f32 %v2673, %v2676
  %vm2678 = vweird.f32 %v1019
  %vm2679 = vweird.f32 %v2673
  %vm2680 = vmor %vm2678, %vm2679
  %v2681 = vsel %vm2680, %v2673, %v2677
  %v2682 = vand.u32 2147483647, %v1019
  %vm2683 = vcmp.eq.f32.partialorder %v2682, 8.507059e+37
  %v2684 = vand.u32 %v1019, 2147483648
  %v2685 = vor.u32 1.1754944e-38, %v2684
  %v2686 = vsel %vm2683, %v2685, %v2681
  %v2687 = vmul.f32 1.0, %v2686
  %v2688 = vrcp.pop %v1020
  %v2689 = vmul.f32 %v1020, %v2688
  %v2690 = vsub.f32 1.0, %v2689
  %v2691 = vmul.f32 %v2688, %v2690
  %v2692 = vadd.f32 %v2688, %v2691
  %vm2693 = vweird.f32 %v1020
  %vm2694 = vweird.f32 %v2688
  %vm2695 = vmor %vm2693, %vm2694
  %v2696 = vsel %vm2695, %v2688, %v2692
  %v2697 = vand.u32 2147483647, %v1020
  %vm2698 = vcmp.eq.f32.partialorder %v2697, 8.507059e+37
  %v2699 = vand.u32 %v1020, 2147483648
  %v2700 = vor.u32 1.1754944e-38, %v2699
  %v2701 = vsel %vm2698, %v2700, %v2696
  %v2702 = vmul.f32 1.0, %v2701
  %v2703 = vrcp.pop %v1021
  %v2704 = vmul.f32 %v1021, %v2703
  %v2705 = vsub.f32 1.0, %v2704
  %v2706 = vmul.f32 %v2703, %v2705
  %v2707 = vadd.f32 %v2703, %v2706
  %vm2708 = vweird.f32 %v1021
  %vm2709 = vweird.f32 %v2703
  %vm2710 = vmor %vm2708, %vm2709
  %v2711 = vsel %vm2710, %v2703, %v2707
  %v2712 = vand.u32 2147483647, %v1021
  %vm2713 = vcmp.eq.f32.partialorder %v2712, 8.507059e+37
  %v2714 = vand.u32 %v1021, 2147483648
  %v2715 = vor.u32 1.1754944e-38, %v2714
  %v2716 = vsel %vm2713, %v2715, %v2711
  %v2717 = vmul.f32 1.0, %v2716
  %v2718 = vrcp.pop %v1022
  %v2719 = vmul.f32 %v1022, %v2718
  %v2720 = vsub.f32 1.0, %v2719
  %v2721 = vmul.f32 %v2718, %v2720
  %v2722 = vadd.f32 %v2718, %v2721
  %vm2723 = vweird.f32 %v1022
  %vm2724 = vweird.f32 %v2718
  %vm2725 = vmor %vm2723, %vm2724
  %v2726 = vsel %vm2725, %v2718, %v2722
  %v2727 = vand.u32 2147483647, %v1022
  %vm2728 = vcmp.eq.f32.partialorder %v2727, 8.507059e+37
  %v2729 = vand.u32 %v1022, 2147483648
  %v2730 = vor.u32 1.1754944e-38, %v2729
  %v2731 = vsel %vm2728, %v2730, %v2726
  %v2732 = vmul.f32 1.0, %v2731
  %v2733 = vrcp.pop %v1023
  %v2734 = vmul.f32 %v1023, %v2733
  %v2735 = vsub.f32 1.0, %v2734
  %v2736 = vmul.f32 %v2733, %v2735
  %v2737 = vadd.f32 %v2733, %v2736
  %vm2738 = vweird.f32 %v1023
  %vm2739 = vweird.f32 %v2733
  %vm2740 = vmor %vm2738, %vm2739
  %v2741 = vsel %vm2740, %v2733, %v2737
  %v2742 = vand.u32 2147483647, %v1023
  %vm2743 = vcmp.eq.f32.partialorder %v2742, 8.507059e+37
  %v2744 = vand.u32 %v1023, 2147483648
  %v2745 = vor.u32 1.1754944e-38, %v2744
  %v2746 = vsel %vm2743, %v2745, %v2741
  %v2747 = vmul.f32 1.0, %v2746
  %v2748 = vrcp.pop %v1024
  %v2749 = vmul.f32 %v1024, %v2748
  %v2750 = vsub.f32 1.0, %v2749
  %v2751 = vmul.f32 %v2748, %v2750
  %v2752 = vadd.f32 %v2748, %v2751
  %vm2753 = vweird.f32 %v1024
  %vm2754 = vweird.f32 %v2748
  %vm2755 = vmor %vm2753, %vm2754
  %v2756 = vsel %vm2755, %v2748, %v2752
  %v2757 = vand.u32 2147483647, %v1024
  %vm2758 = vcmp.eq.f32.partialorder %v2757, 8.507059e+37
  %v2759 = vand.u32 %v1024, 2147483648
  %v2760 = vor.u32 1.1754944e-38, %v2759
  %v2761 = vsel %vm2758, %v2760, %v2756
  %v2762 = vmul.f32 1.0, %v2761
  %v2763 = vrcp.pop %v1025
  %v2764 = vmul.f32 %v1025, %v2763
  %v2765 = vsub.f32 1.0, %v2764
  %v2766 = vmul.f32 %v2763, %v2765
  %v2767 = vadd.f32 %v2763, %v2766
  %vm2768 = vweird.f32 %v1025
  %vm2769 = vweird.f32 %v2763
  %vm2770 = vmor %vm2768, %vm2769
  %v2771 = vsel %vm2770, %v2763, %v2767
  %v2772 = vand.u32 2147483647, %v1025
  %vm2773 = vcmp.eq.f32.partialorder %v2772, 8.507059e+37
  %v2774 = vand.u32 %v1025, 2147483648
  %v2775 = vor.u32 1.1754944e-38, %v2774
  %v2776 = vsel %vm2773, %v2775, %v2771
  %v2777 = vmul.f32 1.0, %v2776
  %v2778 = vrcp.pop %v1026
  %v2779 = vmul.f32 %v1026, %v2778
  %v2780 = vsub.f32 1.0, %v2779
  %v2781 = vmul.f32 %v2778, %v2780
  %v2782 = vadd.f32 %v2778, %v2781
  %vm2783 = vweird.f32 %v1026
  %vm2784 = vweird.f32 %v2778
  %vm2785 = vmor %vm2783, %vm2784
  %v2786 = vsel %vm2785, %v2778, %v2782
  %v2787 = vand.u32 2147483647, %v1026
  %vm2788 = vcmp.eq.f32.partialorder %v2787, 8.507059e+37
  %v2789 = vand.u32 %v1026, 2147483648
  %v2790 = vor.u32 1.1754944e-38, %v2789
  %v2791 = vsel %vm2788, %v2790, %v2786
  %v2792 = vmul.f32 1.0, %v2791
  %v2793 = vrcp.pop %v1027
  %v2794 = vmul.f32 %v1027, %v2793
  %v2795 = vsub.f32 1.0, %v2794
  %v2796 = vmul.f32 %v2793, %v2795
  %v2797 = vadd.f32 %v2793, %v2796
  %vm2798 = vweird.f32 %v1027
  %vm2799 = vweird.f32 %v2793
  %vm2800 = vmor %vm2798, %vm2799
  %v2801 = vsel %vm2800, %v2793, %v2797
  %v2802 = vand.u32 2147483647, %v1027
  %vm2803 = vcmp.eq.f32.partialorder %v2802, 8.507059e+37
  %v2804 = vand.u32 %v1027, 2147483648
  %v2805 = vor.u32 1.1754944e-38, %v2804
  %v2806 = vsel %vm2803, %v2805, %v2801
  %v2807 = vmul.f32 1.0, %v2806
  %v2808 = vrcp.pop %v1028
  %v2809 = vmul.f32 %v1028, %v2808
  %v2810 = vsub.f32 1.0, %v2809
  %v2811 = vmul.f32 %v2808, %v2810
  %v2812 = vadd.f32 %v2808, %v2811
  %vm2813 = vweird.f32 %v1028
  %vm2814 = vweird.f32 %v2808
  %vm2815 = vmor %vm2813, %vm2814
  %v2816 = vsel %vm2815, %v2808, %v2812
  %v2817 = vand.u32 2147483647, %v1028
  %vm2818 = vcmp.eq.f32.partialorder %v2817, 8.507059e+37
  %v2819 = vand.u32 %v1028, 2147483648
  %v2820 = vor.u32 1.1754944e-38, %v2819
  %v2821 = vsel %vm2818, %v2820, %v2816
  %v2822 = vmul.f32 1.0, %v2821
  %v2823 = vrcp.pop %v1029
  %v2824 = vmul.f32 %v1029, %v2823
  %v2825 = vsub.f32 1.0, %v2824
  %v2826 = vmul.f32 %v2823, %v2825
  %v2827 = vadd.f32 %v2823, %v2826
  %vm2828 = vweird.f32 %v1029
  %vm2829 = vweird.f32 %v2823
  %vm2830 = vmor %vm2828, %vm2829
  %v2831 = vsel %vm2830, %v2823, %v2827
  %v2832 = vand.u32 2147483647, %v1029
  %vm2833 = vcmp.eq.f32.partialorder %v2832, 8.507059e+37
  %v2834 = vand.u32 %v1029, 2147483648
  %v2835 = vor.u32 1.1754944e-38, %v2834
  %v2836 = vsel %vm2833, %v2835, %v2831
  %v2837 = vmul.f32 1.0, %v2836
  %v2838 = vrcp.pop %v1030
  %v2839 = vmul.f32 %v1030, %v2838
  %v2840 = vsub.f32 1.0, %v2839
  %v2841 = vmul.f32 %v2838, %v2840
  %v2842 = vadd.f32 %v2838, %v2841
  %vm2843 = vweird.f32 %v1030
  %vm2844 = vweird.f32 %v2838
  %vm2845 = vmor %vm2843, %vm2844
  %v2846 = vsel %vm2845, %v2838, %v2842
  %v2847 = vand.u32 2147483647, %v1030
  %vm2848 = vcmp.eq.f32.partialorder %v2847, 8.507059e+37
  %v2849 = vand.u32 %v1030, 2147483648
  %v2850 = vor.u32 1.1754944e-38, %v2849
  %v2851 = vsel %vm2848, %v2850, %v2846
  %v2852 = vmul.f32 1.0, %v2851
  %v2853 = vrcp.pop %v1031
  %v2854 = vmul.f32 %v1031, %v2853
  %v2855 = vsub.f32 1.0, %v2854
  %v2856 = vmul.f32 %v2853, %v2855
  %v2857 = vadd.f32 %v2853, %v2856
  %vm2858 = vweird.f32 %v1031
  %vm2859 = vweird.f32 %v2853
  %vm2860 = vmor %vm2858, %vm2859
  %v2861 = vsel %vm2860, %v2853, %v2857
  %v2862 = vand.u32 2147483647, %v1031
  %vm2863 = vcmp.eq.f32.partialorder %v2862, 8.507059e+37
  %v2864 = vand.u32 %v1031, 2147483648
  %v2865 = vor.u32 1.1754944e-38, %v2864
  %v2866 = vsel %vm2863, %v2865, %v2861
  %v2867 = vmul.f32 1.0, %v2866
  %v2868 = vrcp.pop %v1032
  %v2869 = vmul.f32 %v1032, %v2868
  %v2870 = vsub.f32 1.0, %v2869
  %v2871 = vmul.f32 %v2868, %v2870
  %v2872 = vadd.f32 %v2868, %v2871
  %vm2873 = vweird.f32 %v1032
  %vm2874 = vweird.f32 %v2868
  %vm2875 = vmor %vm2873, %vm2874
  %v2876 = vsel %vm2875, %v2868, %v2872
  %v2877 = vand.u32 2147483647, %v1032
  %vm2878 = vcmp.eq.f32.partialorder %v2877, 8.507059e+37
  %v2879 = vand.u32 %v1032, 2147483648
  %v2880 = vor.u32 1.1754944e-38, %v2879
  %v2881 = vsel %vm2878, %v2880, %v2876
  %v2882 = vmul.f32 1.0, %v2881
  %v2883 = vrcp.pop %v1033
  %v2884 = vmul.f32 %v1033, %v2883
  %v2885 = vsub.f32 1.0, %v2884
  %v2886 = vmul.f32 %v2883, %v2885
  %v2887 = vadd.f32 %v2883, %v2886
  %vm2888 = vweird.f32 %v1033
  %vm2889 = vweird.f32 %v2883
  %vm2890 = vmor %vm2888, %vm2889
  %v2891 = vsel %vm2890, %v2883, %v2887
  %v2892 = vand.u32 2147483647, %v1033
  %vm2893 = vcmp.eq.f32.partialorder %v2892, 8.507059e+37
  %v2894 = vand.u32 %v1033, 2147483648
  %v2895 = vor.u32 1.1754944e-38, %v2894
  %v2896 = vsel %vm2893, %v2895, %v2891
  %v2897 = vmul.f32 1.0, %v2896
  %v2898 = vrcp.pop %v1034
  %v2899 = vmul.f32 %v1034, %v2898
  %v2900 = vsub.f32 1.0, %v2899
  %v2901 = vmul.f32 %v2898, %v2900
  %v2902 = vadd.f32 %v2898, %v2901
  %vm2903 = vweird.f32 %v1034
  %vm2904 = vweird.f32 %v2898
  %vm2905 = vmor %vm2903, %vm2904
  %v2906 = vsel %vm2905, %v2898, %v2902
  %v2907 = vand.u32 2147483647, %v1034
  %vm2908 = vcmp.eq.f32.partialorder %v2907, 8.507059e+37
  %v2909 = vand.u32 %v1034, 2147483648
  %v2910 = vor.u32 1.1754944e-38, %v2909
  %v2911 = vsel %vm2908, %v2910, %v2906
  %v2912 = vmul.f32 1.0, %v2911
  %v2913 = vrcp.pop %v1035
  %v2914 = vmul.f32 %v1035, %v2913
  %v2915 = vsub.f32 1.0, %v2914
  %v2916 = vmul.f32 %v2913, %v2915
  %v2917 = vadd.f32 %v2913, %v2916
  %vm2918 = vweird.f32 %v1035
  %vm2919 = vweird.f32 %v2913
  %vm2920 = vmor %vm2918, %vm2919
  %v2921 = vsel %vm2920, %v2913, %v2917
  %v2922 = vand.u32 2147483647, %v1035
  %vm2923 = vcmp.eq.f32.partialorder %v2922, 8.507059e+37
  %v2924 = vand.u32 %v1035, 2147483648
  %v2925 = vor.u32 1.1754944e-38, %v2924
  %v2926 = vsel %vm2923, %v2925, %v2921
  %v2927 = vmul.f32 1.0, %v2926
  %v2928 = vrcp.pop %v1036
  %v2929 = vmul.f32 %v1036, %v2928
  %v2930 = vsub.f32 1.0, %v2929
  %v2931 = vmul.f32 %v2928, %v2930
  %v2932 = vadd.f32 %v2928, %v2931
  %vm2933 = vweird.f32 %v1036
  %vm2934 = vweird.f32 %v2928
  %vm2935 = vmor %vm2933, %vm2934
  %v2936 = vsel %vm2935, %v2928, %v2932
  %v2937 = vand.u32 2147483647, %v1036
  %vm2938 = vcmp.eq.f32.partialorder %v2937, 8.507059e+37
  %v2939 = vand.u32 %v1036, 2147483648
  %v2940 = vor.u32 1.1754944e-38, %v2939
  %v2941 = vsel %vm2938, %v2940, %v2936
  %v2942 = vmul.f32 1.0, %v2941
  %v2943 = vrcp.pop %v1037
  %v2944 = vmul.f32 %v1037, %v2943
  %v2945 = vsub.f32 1.0, %v2944
  %v2946 = vmul.f32 %v2943, %v2945
  %v2947 = vadd.f32 %v2943, %v2946
  %vm2948 = vweird.f32 %v1037
  %vm2949 = vweird.f32 %v2943
  %vm2950 = vmor %vm2948, %vm2949
  %v2951 = vsel %vm2950, %v2943, %v2947
  %v2952 = vand.u32 2147483647, %v1037
  %vm2953 = vcmp.eq.f32.partialorder %v2952, 8.507059e+37
  %v2954 = vand.u32 %v1037, 2147483648
  %v2955 = vor.u32 1.1754944e-38, %v2954
  %v2956 = vsel %vm2953, %v2955, %v2951
  %v2957 = vmul.f32 1.0, %v2956
  %v2958 = vlaneseq
  %v2959 = vshrl.u32 %v2958, 7
  %v2960 = vadd.s32 %v2959, 8
  %v2961 = vadd.s32 %v2959, 16
  %v2962 = vadd.s32 %v2959, 24
  %v2963 = vadd.s32 %v2959, 32
  %v2964 = vadd.s32 %v2959, 40
  %v2965 = vadd.s32 %v2959, 48
  %v2966 = vadd.s32 %v2959, 56
  %vm2967 = vcmp.lt.s32.totalorder %v2959, 48
  %vm2968 = vcmp.lt.s32.totalorder %v2960, 48
  %vm2969 = vcmp.lt.s32.totalorder %v2961, 48
  %vm2970 = vcmp.lt.s32.totalorder %v2962, 48
  %vm2971 = vcmp.lt.s32.totalorder %v2963, 48
  %vm2972 = vcmp.lt.s32.totalorder %v2964, 48
  %vm2973 = vcmp.lt.s32.totalorder %v2965, 48
  %vm2974 = vcmp.lt.s32.totalorder %v2966, 48
  %v2975 = vsel %vm2967, 1, 0
  %v2976 = vsel %vm2968, 1, 0
  %v2977 = vsel %vm2969, 1, 0
  %v2978 = vsel %vm2970, 1, 0
  %v2979 = vsel %vm2971, 1, 0
  %v2980 = vsel %vm2972, 1, 0
  %v2981 = vsel %vm2973, 1, 0
  %v2982 = vsel %vm2974, 1, 0
  %v2983 = vcvt.s32.f32 %v2975
  %v2984 = vcvt.s32.f32 %v2976
  %v2985 = vcvt.s32.f32 %v2977
  %v2986 = vcvt.s32.f32 %v2978
  %v2987 = vcvt.s32.f32 %v2979
  %v2988 = vcvt.s32.f32 %v2980
  %v2989 = vcvt.s32.f32 %v2981
  %v2990 = vcvt.s32.f32 %v2982
  %2992 = vset.pattern.permute.xlu0 8
  %2993 = vperm.xlu0 %2992, %v18
  %v2994 = vpop.permute.xlu0 %2993
  %2997 = vset.pattern.permute.xlu0 8
  %2998 = vperm.xlu0 %2997, %v19
  %v2999 = vpop.permute.xlu0 %2998
  %3002 = vset.pattern.permute.xlu0 8
  %3003 = vperm.xlu0 %3002, %v20
  %v3004 = vpop.permute.xlu0 %3003
  %3007 = vset.pattern.permute.xlu0 8
  %3008 = vperm.xlu0 %3007, %v21
  %v3009 = vpop.permute.xlu0 %3008
  %3012 = vset.pattern.permute.xlu0 8
  %3013 = vperm.xlu0 %3012, %v22
  %v3014 = vpop.permute.xlu0 %3013
  %3017 = vset.pattern.permute.xlu0 8
  %3018 = vperm.xlu0 %3017, %v23
  %v3019 = vpop.permute.xlu0 %3018
  %3022 = vset.pattern.permute.xlu0 8
  %3023 = vperm.xlu0 %3022, %v24
  %v3024 = vpop.permute.xlu0 %3023
  %3027 = vset.pattern.permute.xlu0 8
  %3028 = vperm.xlu0 %3027, %v25
  %v3029 = vpop.permute.xlu0 %3028
  %3032 = vset.pattern.permute.xlu0 8
  %3033 = vperm.xlu0 %3032, %v26
  %v3034 = vpop.permute.xlu0 %3033
  %3037 = vset.pattern.permute.xlu0 8
  %3038 = vperm.xlu0 %3037, %v27
  %v3039 = vpop.permute.xlu0 %3038
  %3042 = vset.pattern.permute.xlu0 8
  %3043 = vperm.xlu0 %3042, %v28
  %v3044 = vpop.permute.xlu0 %3043
  %3047 = vset.pattern.permute.xlu0 8
  %3048 = vperm.xlu0 %3047, %v29
  %v3049 = vpop.permute.xlu0 %3048
  %3052 = vset.pattern.permute.xlu0 8
  %3053 = vperm.xlu0 %3052, %v30
  %v3054 = vpop.permute.xlu0 %3053
  %3057 = vset.pattern.permute.xlu0 8
  %3058 = vperm.xlu0 %3057, %v31
  %v3059 = vpop.permute.xlu0 %3058
  %3062 = vset.pattern.permute.xlu0 8
  %3063 = vperm.xlu0 %3062, %v32
  %v3064 = vpop.permute.xlu0 %3063
  %3067 = vset.pattern.permute.xlu0 8
  %3068 = vperm.xlu0 %3067, %v33
  %v3069 = vpop.permute.xlu0 %3068
  %v3071 = vmul.f32 %v1142, %v2994
  %v3072 = vmul.f32 %v1157, %v2994
  %v3073 = vmul.f32 %v1262, %v2999
  %v3074 = vmul.f32 %v1277, %v2999
  %v3075 = vmul.f32 %v1382, %v3004
  %v3076 = vmul.f32 %v1397, %v3004
  %v3077 = vmul.f32 %v1502, %v3009
  %v3078 = vmul.f32 %v1517, %v3009
  %v3079 = vmul.f32 %v1622, %v3014
  %v3080 = vmul.f32 %v1637, %v3014
  %v3081 = vmul.f32 %v1742, %v3019
  %v3082 = vmul.f32 %v1757, %v3019
  %v3083 = vmul.f32 %v1862, %v3024
  %v3084 = vmul.f32 %v1877, %v3024
  %v3085 = vmul.f32 %v1982, %v3029
  %v3086 = vmul.f32 %v1997, %v3029
  %v3087 = vmul.f32 %v2102, %v3034
  %v3088 = vmul.f32 %v2117, %v3034
  %v3089 = vmul.f32 %v2222, %v3039
  %v3090 = vmul.f32 %v2237, %v3039
  %v3091 = vmul.f32 %v2342, %v3044
  %v3092 = vmul.f32 %v2357, %v3044
  %v3093 = vmul.f32 %v2462, %v3049
  %v3094 = vmul.f32 %v2477, %v3049
  %v3095 = vmul.f32 %v2582, %v3054
  %v3096 = vmul.f32 %v2597, %v3054
  %v3097 = vmul.f32 %v2702, %v3059
  %v3098 = vmul.f32 %v2717, %v3059
  %v3099 = vmul.f32 %v2822, %v3064
  %v3100 = vmul.f32 %v2837, %v3064
  %v3101 = vmul.f32 %v2942, %v3069
  %v3102 = vmul.f32 %v2957, %v3069
  %v3103 = vmul.f32 %v3071, %v2983
  %v3104 = vmul.f32 %v3072, %v2983
  %v3105 = vmul.f32 %v3073, %v2984
  %v3106 = vmul.f32 %v3074, %v2984
  %v3107 = vmul.f32 %v3075, %v2985
  %v3108 = vmul.f32 %v3076, %v2985
  %v3109 = vmul.f32 %v3077, %v2986
  %v3110 = vmul.f32 %v3078, %v2986
  %v3111 = vmul.f32 %v3079, %v2987
  %v3112 = vmul.f32 %v3080, %v2987
  %v3113 = vmul.f32 %v3081, %v2988
  %v3114 = vmul.f32 %v3082, %v2988
  %v3115 = vmul.f32 %v3083, %v2989
  %v3116 = vmul.f32 %v3084, %v2989
  %v3117 = vmul.f32 %v3085, %v2990
  %v3118 = vmul.f32 %v3086, %v2990
  %v3119 = vmul.f32 %v3087, %v2983
  %v3120 = vmul.f32 %v3088, %v2983
  %v3121 = vmul.f32 %v3089, %v2984
  %v3122 = vmul.f32 %v3090, %v2984
  %v3123 = vmul.f32 %v3091, %v2985
  %v3124 = vmul.f32 %v3092, %v2985
  %v3125 = vmul.f32 %v3093, %v2986
  %v3126 = vmul.f32 %v3094, %v2986
  %v3127 = vmul.f32 %v3095, %v2987
  %v3128 = vmul.f32 %v3096, %v2987
  %v3129 = vmul.f32 %v3097, %v2988
  %v3130 = vmul.f32 %v3098, %v2988
  %v3131 = vmul.f32 %v3099, %v2989
  %v3132 = vmul.f32 %v3100, %v2989
  %v3133 = vmul.f32 %v3101, %v2990
  %v3134 = vmul.f32 %v3102, %v2990
  %v3135 = vadd.f32 %v3103, %v3105
  %v3136 = vadd.f32 %v3135, %v3107
  %v3137 = vadd.f32 %v3136, %v3109
  %v3138 = vadd.f32 %v3137, %v3111
  %v3139 = vadd.f32 %v3138, %v3113
  %v3140 = vadd.f32 %v3139, %v3115
  %v3141 = vadd.f32 %v3140, %v3117
  %v3142 = vrot.slane %v3141, 4
  %v3143 = vadd.f32 %v3141, %v3142
  %v3144 = vrot.slane %v3143, 2
  %v3145 = vadd.f32 %v3143, %v3144
  %v3146 = vrot.slane %v3145, 1
  %v3147 = vadd.f32 %v3145, %v3146
  %v3148 = vadd.f32 %v3104, %v3106
  %v3149 = vadd.f32 %v3148, %v3108
  %v3150 = vadd.f32 %v3149, %v3110
  %v3151 = vadd.f32 %v3150, %v3112
  %v3152 = vadd.f32 %v3151, %v3114
  %v3153 = vadd.f32 %v3152, %v3116
  %v3154 = vadd.f32 %v3153, %v3118
  %v3155 = vrot.slane %v3154, 4
  %v3156 = vadd.f32 %v3154, %v3155
  %v3157 = vrot.slane %v3156, 2
  %v3158 = vadd.f32 %v3156, %v3157
  %v3159 = vrot.slane %v3158, 1
  %v3160 = vadd.f32 %v3158, %v3159
  %v3161 = vadd.f32 %v3119, %v3121
  %v3162 = vadd.f32 %v3161, %v3123
  %v3163 = vadd.f32 %v3162, %v3125
  %v3164 = vadd.f32 %v3163, %v3127
  %v3165 = vadd.f32 %v3164, %v3129
  %v3166 = vadd.f32 %v3165, %v3131
  %v3167 = vadd.f32 %v3166, %v3133
  %v3168 = vrot.slane %v3167, 4
  %v3169 = vadd.f32 %v3167, %v3168
  %v3170 = vrot.slane %v3169, 2
  %v3171 = vadd.f32 %v3169, %v3170
  %v3172 = vrot.slane %v3171, 1
  %v3173 = vadd.f32 %v3171, %v3172
  %v3174 = vadd.f32 %v3120, %v3122
  %v3175 = vadd.f32 %v3174, %v3124
  %v3176 = vadd.f32 %v3175, %v3126
  %v3177 = vadd.f32 %v3176, %v3128
  %v3178 = vadd.f32 %v3177, %v3130
  %v3179 = vadd.f32 %v3178, %v3132
  %v3180 = vadd.f32 %v3179, %v3134
  %v3181 = vrot.slane %v3180, 4
  %v3182 = vadd.f32 %v3180, %v3181
  %v3183 = vrot.slane %v3182, 2
  %v3184 = vadd.f32 %v3182, %v3183
  %v3185 = vrot.slane %v3184, 1
  %v3186 = vadd.f32 %v3184, %v3185
  %v3187 = vmax.f32 %v3147, 1e-15
  %v3188 = vmax.f32 %v3160, 1e-15
  %v3189 = vmax.f32 %v3173, 1e-15
  %v3190 = vmax.f32 %v3186, 1e-15
  %v3191 = vmin.f32 %v3187, 1.0
  %v3192 = vmin.f32 %v3188, 1.0
  %v3193 = vmin.f32 %v3189, 1.0
  %v3194 = vmin.f32 %v3190, 1.0
  %v3195 = vsub.f32 1.0, %v2983
  %v3196 = vsub.f32 1.0, %v2984
  %v3197 = vsub.f32 1.0, %v2985
  %v3198 = vsub.f32 1.0, %v2986
  %v3199 = vsub.f32 1.0, %v2987
  %v3200 = vsub.f32 1.0, %v2988
  %v3201 = vsub.f32 1.0, %v2989
  %v3202 = vsub.f32 1.0, %v2990
  %v3203 = vsub.f32 1.0, %v3191
  %v3204 = vsub.f32 1.0, %v3192
  %v3205 = vsub.f32 1.0, %v3193
  %v3206 = vsub.f32 1.0, %v3194
  %v3207 = vmul.f32 %v3195, %v3203
  %v3208 = vmul.f32 %v3195, %v3204
  %v3209 = vmul.f32 %v3196, %v3203
  %v3210 = vmul.f32 %v3196, %v3204
  %v3211 = vmul.f32 %v3197, %v3203
  %v3212 = vmul.f32 %v3197, %v3204
  %v3213 = vmul.f32 %v3198, %v3203
  %v3214 = vmul.f32 %v3198, %v3204
  %v3215 = vmul.f32 %v3199, %v3203
  %v3216 = vmul.f32 %v3199, %v3204
  %v3217 = vmul.f32 %v3200, %v3203
  %v3218 = vmul.f32 %v3200, %v3204
  %v3219 = vmul.f32 %v3201, %v3203
  %v3220 = vmul.f32 %v3201, %v3204
  %v3221 = vmul.f32 %v3202, %v3203
  %v3222 = vmul.f32 %v3202, %v3204
  %v3223 = vmul.f32 %v3195, %v3205
  %v3224 = vmul.f32 %v3195, %v3206
  %v3225 = vmul.f32 %v3196, %v3205
  %v3226 = vmul.f32 %v3196, %v3206
  %v3227 = vmul.f32 %v3197, %v3205
  %v3228 = vmul.f32 %v3197, %v3206
  %v3229 = vmul.f32 %v3198, %v3205
  %v3230 = vmul.f32 %v3198, %v3206
  %v3231 = vmul.f32 %v3199, %v3205
  %v3232 = vmul.f32 %v3199, %v3206
  %v3233 = vmul.f32 %v3200, %v3205
  %v3234 = vmul.f32 %v3200, %v3206
  %v3235 = vmul.f32 %v3201, %v3205
  %v3236 = vmul.f32 %v3201, %v3206
  %v3237 = vmul.f32 %v3202, %v3205
  %v3238 = vmul.f32 %v3202, %v3206
  %v3239 = vadd.f32 %v2983, %v3207
  %v3240 = vadd.f32 %v2983, %v3208
  %v3241 = vadd.f32 %v2984, %v3209
  %v3242 = vadd.f32 %v2984, %v3210
  %v3243 = vadd.f32 %v2985, %v3211
  %v3244 = vadd.f32 %v2985, %v3212
  %v3245 = vadd.f32 %v2986, %v3213
  %v3246 = vadd.f32 %v2986, %v3214
  %v3247 = vadd.f32 %v2987, %v3215
  %v3248 = vadd.f32 %v2987, %v3216
  %v3249 = vadd.f32 %v2988, %v3217
  %v3250 = vadd.f32 %v2988, %v3218
  %v3251 = vadd.f32 %v2989, %v3219
  %v3252 = vadd.f32 %v2989, %v3220
  %v3253 = vadd.f32 %v2990, %v3221
  %v3254 = vadd.f32 %v2990, %v3222
  %v3255 = vadd.f32 %v2983, %v3223
  %v3256 = vadd.f32 %v2983, %v3224
  %v3257 = vadd.f32 %v2984, %v3225
  %v3258 = vadd.f32 %v2984, %v3226
  %v3259 = vadd.f32 %v2985, %v3227
  %v3260 = vadd.f32 %v2985, %v3228
  %v3261 = vadd.f32 %v2986, %v3229
  %v3262 = vadd.f32 %v2986, %v3230
  %v3263 = vadd.f32 %v2987, %v3231
  %v3264 = vadd.f32 %v2987, %v3232
  %v3265 = vadd.f32 %v2988, %v3233
  %v3266 = vadd.f32 %v2988, %v3234
  %v3267 = vadd.f32 %v2989, %v3235
  %v3268 = vadd.f32 %v2989, %v3236
  %v3269 = vadd.f32 %v2990, %v3237
  %v3270 = vadd.f32 %v2990, %v3238
  %v3271 = vmul.f32 %v3071, %v3239
  %v3272 = vmul.f32 %v3072, %v3240
  %v3273 = vmul.f32 %v3073, %v3241
  %v3274 = vmul.f32 %v3074, %v3242
  %v3275 = vmul.f32 %v3075, %v3243
  %v3276 = vmul.f32 %v3076, %v3244
  %v3277 = vmul.f32 %v3077, %v3245
  %v3278 = vmul.f32 %v3078, %v3246
  %v3279 = vmul.f32 %v3079, %v3247
  %v3280 = vmul.f32 %v3080, %v3248
  %v3281 = vmul.f32 %v3081, %v3249
  %v3282 = vmul.f32 %v3082, %v3250
  %v3283 = vmul.f32 %v3083, %v3251
  %v3284 = vmul.f32 %v3084, %v3252
  %v3285 = vmul.f32 %v3085, %v3253
  %v3286 = vmul.f32 %v3086, %v3254
  %v3287 = vmul.f32 %v3087, %v3255
  %v3288 = vmul.f32 %v3088, %v3256
  %v3289 = vmul.f32 %v3089, %v3257
  %v3290 = vmul.f32 %v3090, %v3258
  %v3291 = vmul.f32 %v3091, %v3259
  %v3292 = vmul.f32 %v3092, %v3260
  %v3293 = vmul.f32 %v3093, %v3261
  %v3294 = vmul.f32 %v3094, %v3262
  %v3295 = vmul.f32 %v3095, %v3263
  %v3296 = vmul.f32 %v3096, %v3264
  %v3297 = vmul.f32 %v3097, %v3265
  %v3298 = vmul.f32 %v3098, %v3266
  %v3299 = vmul.f32 %v3099, %v3267
  %v3300 = vmul.f32 %v3100, %v3268
  %v3301 = vmul.f32 %v3101, %v3269
  %v3302 = vmul.f32 %v3102, %v3270
  %3303 = vset.pattern.permute.xlu0 9
  %3304 = vperm.xlu0 %3303, %v18
  %v3305 = vpop.permute.xlu0 %3304
  %3307 = vset.pattern.permute.xlu0 9
  %3308 = vperm.xlu0 %3307, %v19
  %v3309 = vpop.permute.xlu0 %3308
  %3311 = vset.pattern.permute.xlu0 9
  %3312 = vperm.xlu0 %3311, %v20
  %v3313 = vpop.permute.xlu0 %3312
  %3315 = vset.pattern.permute.xlu0 9
  %3316 = vperm.xlu0 %3315, %v21
  %v3317 = vpop.permute.xlu0 %3316
  %3319 = vset.pattern.permute.xlu0 9
  %3320 = vperm.xlu0 %3319, %v22
  %v3321 = vpop.permute.xlu0 %3320
  %3323 = vset.pattern.permute.xlu0 9
  %3324 = vperm.xlu0 %3323, %v23
  %v3325 = vpop.permute.xlu0 %3324
  %3327 = vset.pattern.permute.xlu0 9
  %3328 = vperm.xlu0 %3327, %v24
  %v3329 = vpop.permute.xlu0 %3328
  %3331 = vset.pattern.permute.xlu0 9
  %3332 = vperm.xlu0 %3331, %v25
  %v3333 = vpop.permute.xlu0 %3332
  %3335 = vset.pattern.permute.xlu0 9
  %3336 = vperm.xlu0 %3335, %v26
  %v3337 = vpop.permute.xlu0 %3336
  %3339 = vset.pattern.permute.xlu0 9
  %3340 = vperm.xlu0 %3339, %v27
  %v3341 = vpop.permute.xlu0 %3340
  %3343 = vset.pattern.permute.xlu0 9
  %3344 = vperm.xlu0 %3343, %v28
  %v3345 = vpop.permute.xlu0 %3344
  %3347 = vset.pattern.permute.xlu0 9
  %3348 = vperm.xlu0 %3347, %v29
  %v3349 = vpop.permute.xlu0 %3348
  %3351 = vset.pattern.permute.xlu0 9
  %3352 = vperm.xlu0 %3351, %v30
  %v3353 = vpop.permute.xlu0 %3352
  %3355 = vset.pattern.permute.xlu0 9
  %3356 = vperm.xlu0 %3355, %v31
  %v3357 = vpop.permute.xlu0 %3356
  %3359 = vset.pattern.permute.xlu0 9
  %3360 = vperm.xlu0 %3359, %v32
  %v3361 = vpop.permute.xlu0 %3360
  %3363 = vset.pattern.permute.xlu0 9
  %3364 = vperm.xlu0 %3363, %v33
  %v3365 = vpop.permute.xlu0 %3364
  %v3367 = vmul.f32 %v3271, %v3305
  %v3368 = vmul.f32 %v3272, %v3305
  %v3369 = vmul.f32 %v3273, %v3309
  %v3370 = vmul.f32 %v3274, %v3309
  %v3371 = vmul.f32 %v3275, %v3313
  %v3372 = vmul.f32 %v3276, %v3313
  %v3373 = vmul.f32 %v3277, %v3317
  %v3374 = vmul.f32 %v3278, %v3317
  %v3375 = vmul.f32 %v3279, %v3321
  %v3376 = vmul.f32 %v3280, %v3321
  %v3377 = vmul.f32 %v3281, %v3325
  %v3378 = vmul.f32 %v3282, %v3325
  %v3379 = vmul.f32 %v3283, %v3329
  %v3380 = vmul.f32 %v3284, %v3329
  %v3381 = vmul.f32 %v3285, %v3333
  %v3382 = vmul.f32 %v3286, %v3333
  %v3383 = vmul.f32 %v3287, %v3337
  %v3384 = vmul.f32 %v3288, %v3337
  %v3385 = vmul.f32 %v3289, %v3341
  %v3386 = vmul.f32 %v3290, %v3341
  %v3387 = vmul.f32 %v3291, %v3345
  %v3388 = vmul.f32 %v3292, %v3345
  %v3389 = vmul.f32 %v3293, %v3349
  %v3390 = vmul.f32 %v3294, %v3349
  %v3391 = vmul.f32 %v3295, %v3353
  %v3392 = vmul.f32 %v3296, %v3353
  %v3393 = vmul.f32 %v3297, %v3357
  %v3394 = vmul.f32 %v3298, %v3357
  %v3395 = vmul.f32 %v3299, %v3361
  %v3396 = vmul.f32 %v3300, %v3361
  %v3397 = vmul.f32 %v3301, %v3365
  %v3398 = vmul.f32 %v3302, %v3365
  %v3399 = vadd.f32 %v3367, %v3369
  %v3400 = vadd.f32 %v3399, %v3371
  %v3401 = vadd.f32 %v3400, %v3373
  %v3402 = vadd.f32 %v3401, %v3375
  %v3403 = vadd.f32 %v3402, %v3377
  %v3404 = vadd.f32 %v3403, %v3379
  %v3405 = vadd.f32 %v3404, %v3381
  %v3406 = vrot.slane %v3405, 4
  %v3407 = vadd.f32 %v3405, %v3406
  %v3408 = vrot.slane %v3407, 2
  %v3409 = vadd.f32 %v3407, %v3408
  %v3410 = vrot.slane %v3409, 1
  %v3411 = vadd.f32 %v3409, %v3410
  %v3412 = vadd.f32 %v3368, %v3370
  %v3413 = vadd.f32 %v3412, %v3372
  %v3414 = vadd.f32 %v3413, %v3374
  %v3415 = vadd.f32 %v3414, %v3376
  %v3416 = vadd.f32 %v3415, %v3378
  %v3417 = vadd.f32 %v3416, %v3380
  %v3418 = vadd.f32 %v3417, %v3382
  %v3419 = vrot.slane %v3418, 4
  %v3420 = vadd.f32 %v3418, %v3419
  %v3421 = vrot.slane %v3420, 2
  %v3422 = vadd.f32 %v3420, %v3421
  %v3423 = vrot.slane %v3422, 1
  %v3424 = vadd.f32 %v3422, %v3423
  %v3425 = vadd.f32 %v3383, %v3385
  %v3426 = vadd.f32 %v3425, %v3387
  %v3427 = vadd.f32 %v3426, %v3389
  %v3428 = vadd.f32 %v3427, %v3391
  %v3429 = vadd.f32 %v3428, %v3393
  %v3430 = vadd.f32 %v3429, %v3395
  %v3431 = vadd.f32 %v3430, %v3397
  %v3432 = vrot.slane %v3431, 4
  %v3433 = vadd.f32 %v3431, %v3432
  %v3434 = vrot.slane %v3433, 2
  %v3435 = vadd.f32 %v3433, %v3434
  %v3436 = vrot.slane %v3435, 1
  %v3437 = vadd.f32 %v3435, %v3436
  %v3438 = vadd.f32 %v3384, %v3386
  %v3439 = vadd.f32 %v3438, %v3388
  %v3440 = vadd.f32 %v3439, %v3390
  %v3441 = vadd.f32 %v3440, %v3392
  %v3442 = vadd.f32 %v3441, %v3394
  %v3443 = vadd.f32 %v3442, %v3396
  %v3444 = vadd.f32 %v3443, %v3398
  %v3445 = vrot.slane %v3444, 4
  %v3446 = vadd.f32 %v3444, %v3445
  %v3447 = vrot.slane %v3446, 2
  %v3448 = vadd.f32 %v3446, %v3447
  %v3449 = vrot.slane %v3448, 1
  %v3450 = vadd.f32 %v3448, %v3449
  %v3451 = vadd.f32 %v3411, 1e-15
  %v3452 = vadd.f32 %v3424, 1e-15
  %v3453 = vadd.f32 %v3437, 1e-15
  %v3454 = vadd.f32 %v3450, 1e-15
  %v3455 = vrcp.pop %v3451
  %v3456 = vrcp.pop %v3452
  %v3457 = vrcp.pop %v3453
  %v3458 = vrcp.pop %v3454
  %v3459 = vmul.f32 %v3367, %v3455
  %v3460 = vmul.f32 %v3368, %v3456
  %v3461 = vmul.f32 %v3369, %v3455
  %v3462 = vmul.f32 %v3370, %v3456
  %v3463 = vmul.f32 %v3371, %v3455
  %v3464 = vmul.f32 %v3372, %v3456
  %v3465 = vmul.f32 %v3373, %v3455
  %v3466 = vmul.f32 %v3374, %v3456
  %v3467 = vmul.f32 %v3375, %v3455
  %v3468 = vmul.f32 %v3376, %v3456
  %v3469 = vmul.f32 %v3377, %v3455
  %v3470 = vmul.f32 %v3378, %v3456
  %v3471 = vmul.f32 %v3379, %v3455
  %v3472 = vmul.f32 %v3380, %v3456
  %v3473 = vmul.f32 %v3381, %v3455
  %v3474 = vmul.f32 %v3382, %v3456
  %v3475 = vmul.f32 %v3383, %v3457
  %v3476 = vmul.f32 %v3384, %v3458
  %v3477 = vmul.f32 %v3385, %v3457
  %v3478 = vmul.f32 %v3386, %v3458
  %v3479 = vmul.f32 %v3387, %v3457
  %v3480 = vmul.f32 %v3388, %v3458
  %v3481 = vmul.f32 %v3389, %v3457
  %v3482 = vmul.f32 %v3390, %v3458
  %v3483 = vmul.f32 %v3391, %v3457
  %v3484 = vmul.f32 %v3392, %v3458
  %v3485 = vmul.f32 %v3393, %v3457
  %v3486 = vmul.f32 %v3394, %v3458
  %v3487 = vmul.f32 %v3395, %v3457
  %v3488 = vmul.f32 %v3396, %v3458
  %v3489 = vmul.f32 %v3397, %v3457
  %v3490 = vmul.f32 %v3398, %v3458
  %v3491 = vadd.f32 %v3271, %v3273
  %v3492 = vadd.f32 %v3491, %v3275
  %v3493 = vadd.f32 %v3492, %v3277
  %v3494 = vadd.f32 %v3493, %v3279
  %v3495 = vadd.f32 %v3494, %v3281
  %v3496 = vadd.f32 %v3495, %v3283
  %v3497 = vadd.f32 %v3496, %v3285
  %v3498 = vrot.slane %v3497, 4
  %v3499 = vadd.f32 %v3497, %v3498
  %v3500 = vrot.slane %v3499, 2
  %v3501 = vadd.f32 %v3499, %v3500
  %v3502 = vrot.slane %v3501, 1
  %v3503 = vadd.f32 %v3501, %v3502
  %v3504 = vadd.f32 %v3272, %v3274
  %v3505 = vadd.f32 %v3504, %v3276
  %v3506 = vadd.f32 %v3505, %v3278
  %v3507 = vadd.f32 %v3506, %v3280
  %v3508 = vadd.f32 %v3507, %v3282
  %v3509 = vadd.f32 %v3508, %v3284
  %v3510 = vadd.f32 %v3509, %v3286
  %v3511 = vrot.slane %v3510, 4
  %v3512 = vadd.f32 %v3510, %v3511
  %v3513 = vrot.slane %v3512, 2
  %v3514 = vadd.f32 %v3512, %v3513
  %v3515 = vrot.slane %v3514, 1
  %v3516 = vadd.f32 %v3514, %v3515
  %v3517 = vadd.f32 %v3287, %v3289
  %v3518 = vadd.f32 %v3517, %v3291
  %v3519 = vadd.f32 %v3518, %v3293
  %v3520 = vadd.f32 %v3519, %v3295
  %v3521 = vadd.f32 %v3520, %v3297
  %v3522 = vadd.f32 %v3521, %v3299
  %v3523 = vadd.f32 %v3522, %v3301
  %v3524 = vrot.slane %v3523, 4
  %v3525 = vadd.f32 %v3523, %v3524
  %v3526 = vrot.slane %v3525, 2
  %v3527 = vadd.f32 %v3525, %v3526
  %v3528 = vrot.slane %v3527, 1
  %v3529 = vadd.f32 %v3527, %v3528
  %v3530 = vadd.f32 %v3288, %v3290
  %v3531 = vadd.f32 %v3530, %v3292
  %v3532 = vadd.f32 %v3531, %v3294
  %v3533 = vadd.f32 %v3532, %v3296
  %v3534 = vadd.f32 %v3533, %v3298
  %v3535 = vadd.f32 %v3534, %v3300
  %v3536 = vadd.f32 %v3535, %v3302
  %v3537 = vrot.slane %v3536, 4
  %v3538 = vadd.f32 %v3536, %v3537
  %v3539 = vrot.slane %v3538, 2
  %v3540 = vadd.f32 %v3538, %v3539
  %v3541 = vrot.slane %v3540, 1
  %v3542 = vadd.f32 %v3540, %v3541
  %v3543 = vmax.f32 %v3503, 1e-15
  %v3544 = vmax.f32 %v3516, 1e-15
  %v3545 = vmax.f32 %v3529, 1e-15
  %v3546 = vmax.f32 %v3542, 1e-15
  %v3547 = vmin.f32 %v3543, 1.0
  %v3548 = vmin.f32 %v3544, 1.0
  %v3549 = vmin.f32 %v3545, 1.0
  %v3550 = vmin.f32 %v3546, 1.0
  %v3551 = vmul.f32 %v3271, %v3459
  %v3552 = vmul.f32 %v3272, %v3460
  %v3553 = vmul.f32 %v3273, %v3461
  %v3554 = vmul.f32 %v3274, %v3462
  %v3555 = vmul.f32 %v3275, %v3463
  %v3556 = vmul.f32 %v3276, %v3464
  %v3557 = vmul.f32 %v3277, %v3465
  %v3558 = vmul.f32 %v3278, %v3466
  %v3559 = vmul.f32 %v3279, %v3467
  %v3560 = vmul.f32 %v3280, %v3468
  %v3561 = vmul.f32 %v3281, %v3469
  %v3562 = vmul.f32 %v3282, %v3470
  %v3563 = vmul.f32 %v3283, %v3471
  %v3564 = vmul.f32 %v3284, %v3472
  %v3565 = vmul.f32 %v3285, %v3473
  %v3566 = vmul.f32 %v3286, %v3474
  %v3567 = vmul.f32 %v3287, %v3475
  %v3568 = vmul.f32 %v3288, %v3476
  %v3569 = vmul.f32 %v3289, %v3477
  %v3570 = vmul.f32 %v3290, %v3478
  %v3571 = vmul.f32 %v3291, %v3479
  %v3572 = vmul.f32 %v3292, %v3480
  %v3573 = vmul.f32 %v3293, %v3481
  %v3574 = vmul.f32 %v3294, %v3482
  %v3575 = vmul.f32 %v3295, %v3483
  %v3576 = vmul.f32 %v3296, %v3484
  %v3577 = vmul.f32 %v3297, %v3485
  %v3578 = vmul.f32 %v3298, %v3486
  %v3579 = vmul.f32 %v3299, %v3487
  %v3580 = vmul.f32 %v3300, %v3488
  %v3581 = vmul.f32 %v3301, %v3489
  %v3582 = vmul.f32 %v3302, %v3490
  %v3583 = vmul.f32 %v1052, %v3551
  %v3584 = vmul.f32 %v1067, %v3552
  %v3585 = vmul.f32 %v1172, %v3553
  %v3586 = vmul.f32 %v1187, %v3554
  %v3587 = vmul.f32 %v1292, %v3555
  %v3588 = vmul.f32 %v1307, %v3556
  %v3589 = vmul.f32 %v1412, %v3557
  %v3590 = vmul.f32 %v1427, %v3558
  %v3591 = vmul.f32 %v1532, %v3559
  %v3592 = vmul.f32 %v1547, %v3560
  %v3593 = vmul.f32 %v1652, %v3561
  %v3594 = vmul.f32 %v1667, %v3562
  %v3595 = vmul.f32 %v1772, %v3563
  %v3596 = vmul.f32 %v1787, %v3564
  %v3597 = vmul.f32 %v1892, %v3565
  %v3598 = vmul.f32 %v1907, %v3566
  %v3599 = vmul.f32 %v2012, %v3567
  %v3600 = vmul.f32 %v2027, %v3568
  %v3601 = vmul.f32 %v2132, %v3569
  %v3602 = vmul.f32 %v2147, %v3570
  %v3603 = vmul.f32 %v2252, %v3571
  %v3604 = vmul.f32 %v2267, %v3572
  %v3605 = vmul.f32 %v2372, %v3573
  %v3606 = vmul.f32 %v2387, %v3574
  %v3607 = vmul.f32 %v2492, %v3575
  %v3608 = vmul.f32 %v2507, %v3576
  %v3609 = vmul.f32 %v2612, %v3577
  %v3610 = vmul.f32 %v2627, %v3578
  %v3611 = vmul.f32 %v2732, %v3579
  %v3612 = vmul.f32 %v2747, %v3580
  %v3613 = vmul.f32 %v2852, %v3581
  %v3614 = vmul.f32 %v2867, %v3582
  %v3615 = vadd.f32 %v3583, %v3585
  %v3616 = vadd.f32 %v3615, %v3587
  %v3617 = vadd.f32 %v3616, %v3589
  %v3618 = vadd.f32 %v3617, %v3591
  %v3619 = vadd.f32 %v3618, %v3593
  %v3620 = vadd.f32 %v3619, %v3595
  %v3621 = vadd.f32 %v3620, %v3597
  %v3622 = vrot.slane %v3621, 4
  %v3623 = vadd.f32 %v3621, %v3622
  %v3624 = vrot.slane %v3623, 2
  %v3625 = vadd.f32 %v3623, %v3624
  %v3626 = vrot.slane %v3625, 1
  %v3627 = vadd.f32 %v3625, %v3626
  %v3628 = vadd.f32 %v3584, %v3586
  %v3629 = vadd.f32 %v3628, %v3588
  %v3630 = vadd.f32 %v3629, %v3590
  %v3631 = vadd.f32 %v3630, %v3592
  %v3632 = vadd.f32 %v3631, %v3594
  %v3633 = vadd.f32 %v3632, %v3596
  %v3634 = vadd.f32 %v3633, %v3598
  %v3635 = vrot.slane %v3634, 4
  %v3636 = vadd.f32 %v3634, %v3635
  %v3637 = vrot.slane %v3636, 2
  %v3638 = vadd.f32 %v3636, %v3637
  %v3639 = vrot.slane %v3638, 1
  %v3640 = vadd.f32 %v3638, %v3639
  %v3641 = vadd.f32 %v3599, %v3601
  %v3642 = vadd.f32 %v3641, %v3603
  %v3643 = vadd.f32 %v3642, %v3605
  %v3644 = vadd.f32 %v3643, %v3607
  %v3645 = vadd.f32 %v3644, %v3609
  %v3646 = vadd.f32 %v3645, %v3611
  %v3647 = vadd.f32 %v3646, %v3613
  %v3648 = vrot.slane %v3647, 4
  %v3649 = vadd.f32 %v3647, %v3648
  %v3650 = vrot.slane %v3649, 2
  %v3651 = vadd.f32 %v3649, %v3650
  %v3652 = vrot.slane %v3651, 1
  %v3653 = vadd.f32 %v3651, %v3652
  %v3654 = vadd.f32 %v3600, %v3602
  %v3655 = vadd.f32 %v3654, %v3604
  %v3656 = vadd.f32 %v3655, %v3606
  %v3657 = vadd.f32 %v3656, %v3608
  %v3658 = vadd.f32 %v3657, %v3610
  %v3659 = vadd.f32 %v3658, %v3612
  %v3660 = vadd.f32 %v3659, %v3614
  %v3661 = vrot.slane %v3660, 4
  %v3662 = vadd.f32 %v3660, %v3661
  %v3663 = vrot.slane %v3662, 2
  %v3664 = vadd.f32 %v3662, %v3663
  %v3665 = vrot.slane %v3664, 1
  %v3666 = vadd.f32 %v3664, %v3665
  %v3667 = vmul.f32 %v1082, %v3551
  %v3668 = vmul.f32 %v1097, %v3552
  %v3669 = vmul.f32 %v1202, %v3553
  %v3670 = vmul.f32 %v1217, %v3554
  %v3671 = vmul.f32 %v1322, %v3555
  %v3672 = vmul.f32 %v1337, %v3556
  %v3673 = vmul.f32 %v1442, %v3557
  %v3674 = vmul.f32 %v1457, %v3558
  %v3675 = vmul.f32 %v1562, %v3559
  %v3676 = vmul.f32 %v1577, %v3560
  %v3677 = vmul.f32 %v1682, %v3561
  %v3678 = vmul.f32 %v1697, %v3562
  %v3679 = vmul.f32 %v1802, %v3563
  %v3680 = vmul.f32 %v1817, %v3564
  %v3681 = vmul.f32 %v1922, %v3565
  %v3682 = vmul.f32 %v1937, %v3566
  %v3683 = vmul.f32 %v2042, %v3567
  %v3684 = vmul.f32 %v2057, %v3568
  %v3685 = vmul.f32 %v2162, %v3569
  %v3686 = vmul.f32 %v2177, %v3570
  %v3687 = vmul.f32 %v2282, %v3571
  %v3688 = vmul.f32 %v2297, %v3572
  %v3689 = vmul.f32 %v2402, %v3573
  %v3690 = vmul.f32 %v2417, %v3574
  %v3691 = vmul.f32 %v2522, %v3575
  %v3692 = vmul.f32 %v2537, %v3576
  %v3693 = vmul.f32 %v2642, %v3577
  %v3694 = vmul.f32 %v2657, %v3578
  %v3695 = vmul.f32 %v2762, %v3579
  %v3696 = vmul.f32 %v2777, %v3580
  %v3697 = vmul.f32 %v2882, %v3581
  %v3698 = vmul.f32 %v2897, %v3582
  %v3699 = vadd.f32 %v3667, %v3669
  %v3700 = vadd.f32 %v3699, %v3671
  %v3701 = vadd.f32 %v3700, %v3673
  %v3702 = vadd.f32 %v3701, %v3675
  %v3703 = vadd.f32 %v3702, %v3677
  %v3704 = vadd.f32 %v3703, %v3679
  %v3705 = vadd.f32 %v3704, %v3681
  %v3706 = vrot.slane %v3705, 4
  %v3707 = vadd.f32 %v3705, %v3706
  %v3708 = vrot.slane %v3707, 2
  %v3709 = vadd.f32 %v3707, %v3708
  %v3710 = vrot.slane %v3709, 1
  %v3711 = vadd.f32 %v3709, %v3710
  %v3712 = vadd.f32 %v3668, %v3670
  %v3713 = vadd.f32 %v3712, %v3672
  %v3714 = vadd.f32 %v3713, %v3674
  %v3715 = vadd.f32 %v3714, %v3676
  %v3716 = vadd.f32 %v3715, %v3678
  %v3717 = vadd.f32 %v3716, %v3680
  %v3718 = vadd.f32 %v3717, %v3682
  %v3719 = vrot.slane %v3718, 4
  %v3720 = vadd.f32 %v3718, %v3719
  %v3721 = vrot.slane %v3720, 2
  %v3722 = vadd.f32 %v3720, %v3721
  %v3723 = vrot.slane %v3722, 1
  %v3724 = vadd.f32 %v3722, %v3723
  %v3725 = vadd.f32 %v3683, %v3685
  %v3726 = vadd.f32 %v3725, %v3687
  %v3727 = vadd.f32 %v3726, %v3689
  %v3728 = vadd.f32 %v3727, %v3691
  %v3729 = vadd.f32 %v3728, %v3693
  %v3730 = vadd.f32 %v3729, %v3695
  %v3731 = vadd.f32 %v3730, %v3697
  %v3732 = vrot.slane %v3731, 4
  %v3733 = vadd.f32 %v3731, %v3732
  %v3734 = vrot.slane %v3733, 2
  %v3735 = vadd.f32 %v3733, %v3734
  %v3736 = vrot.slane %v3735, 1
  %v3737 = vadd.f32 %v3735, %v3736
  %v3738 = vadd.f32 %v3684, %v3686
  %v3739 = vadd.f32 %v3738, %v3688
  %v3740 = vadd.f32 %v3739, %v3690
  %v3741 = vadd.f32 %v3740, %v3692
  %v3742 = vadd.f32 %v3741, %v3694
  %v3743 = vadd.f32 %v3742, %v3696
  %v3744 = vadd.f32 %v3743, %v3698
  %v3745 = vrot.slane %v3744, 4
  %v3746 = vadd.f32 %v3744, %v3745
  %v3747 = vrot.slane %v3746, 2
  %v3748 = vadd.f32 %v3746, %v3747
  %v3749 = vrot.slane %v3748, 1
  %v3750 = vadd.f32 %v3748, %v3749
  %v3751 = vmul.f32 %v1112, %v3551
  %v3752 = vmul.f32 %v1127, %v3552
  %v3753 = vmul.f32 %v1232, %v3553
  %v3754 = vmul.f32 %v1247, %v3554
  %v3755 = vmul.f32 %v1352, %v3555
  %v3756 = vmul.f32 %v1367, %v3556
  %v3757 = vmul.f32 %v1472, %v3557
  %v3758 = vmul.f32 %v1487, %v3558
  %v3759 = vmul.f32 %v1592, %v3559
  %v3760 = vmul.f32 %v1607, %v3560
  %v3761 = vmul.f32 %v1712, %v3561
  %v3762 = vmul.f32 %v1727, %v3562
  %v3763 = vmul.f32 %v1832, %v3563
  %v3764 = vmul.f32 %v1847, %v3564
  %v3765 = vmul.f32 %v1952, %v3565
  %v3766 = vmul.f32 %v1967, %v3566
  %v3767 = vmul.f32 %v2072, %v3567
  %v3768 = vmul.f32 %v2087, %v3568
  %v3769 = vmul.f32 %v2192, %v3569
  %v3770 = vmul.f32 %v2207, %v3570
  %v3771 = vmul.f32 %v2312, %v3571
  %v3772 = vmul.f32 %v2327, %v3572
  %v3773 = vmul.f32 %v2432, %v3573
  %v3774 = vmul.f32 %v2447, %v3574
  %v3775 = vmul.f32 %v2552, %v3575
  %v3776 = vmul.f32 %v2567, %v3576
  %v3777 = vmul.f32 %v2672, %v3577
  %v3778 = vmul.f32 %v2687, %v3578
  %v3779 = vmul.f32 %v2792, %v3579
  %v3780 = vmul.f32 %v2807, %v3580
  %v3781 = vmul.f32 %v2912, %v3581
  %v3782 = vmul.f32 %v2927, %v3582
  %v3783 = vadd.f32 %v3751, %v3753
  %v3784 = vadd.f32 %v3783, %v3755
  %v3785 = vadd.f32 %v3784, %v3757
  %v3786 = vadd.f32 %v3785, %v3759
  %v3787 = vadd.f32 %v3786, %v3761
  %v3788 = vadd.f32 %v3787, %v3763
  %v3789 = vadd.f32 %v3788, %v3765
  %v3790 = vrot.slane %v3789, 4
  %v3791 = vadd.f32 %v3789, %v3790
  %v3792 = vrot.slane %v3791, 2
  %v3793 = vadd.f32 %v3791, %v3792
  %v3794 = vrot.slane %v3793, 1
  %v3795 = vadd.f32 %v3793, %v3794
  %v3796 = vadd.f32 %v3752, %v3754
  %v3797 = vadd.f32 %v3796, %v3756
  %v3798 = vadd.f32 %v3797, %v3758
  %v3799 = vadd.f32 %v3798, %v3760
  %v3800 = vadd.f32 %v3799, %v3762
  %v3801 = vadd.f32 %v3800, %v3764
  %v3802 = vadd.f32 %v3801, %v3766
  %v3803 = vrot.slane %v3802, 4
  %v3804 = vadd.f32 %v3802, %v3803
  %v3805 = vrot.slane %v3804, 2
  %v3806 = vadd.f32 %v3804, %v3805
  %v3807 = vrot.slane %v3806, 1
  %v3808 = vadd.f32 %v3806, %v3807
  %v3809 = vadd.f32 %v3767, %v3769
  %v3810 = vadd.f32 %v3809, %v3771
  %v3811 = vadd.f32 %v3810, %v3773
  %v3812 = vadd.f32 %v3811, %v3775
  %v3813 = vadd.f32 %v3812, %v3777
  %v3814 = vadd.f32 %v3813, %v3779
  %v3815 = vadd.f32 %v3814, %v3781
  %v3816 = vrot.slane %v3815, 4
  %v3817 = vadd.f32 %v3815, %v3816
  %v3818 = vrot.slane %v3817, 2
  %v3819 = vadd.f32 %v3817, %v3818
  %v3820 = vrot.slane %v3819, 1
  %v3821 = vadd.f32 %v3819, %v3820
  %v3822 = vadd.f32 %v3768, %v3770
  %v3823 = vadd.f32 %v3822, %v3772
  %v3824 = vadd.f32 %v3823, %v3774
  %v3825 = vadd.f32 %v3824, %v3776
  %v3826 = vadd.f32 %v3825, %v3778
  %v3827 = vadd.f32 %v3826, %v3780
  %v3828 = vadd.f32 %v3827, %v3782
  %v3829 = vrot.slane %v3828, 4
  %v3830 = vadd.f32 %v3828, %v3829
  %v3831 = vrot.slane %v3830, 2
  %v3832 = vadd.f32 %v3830, %v3831
  %v3833 = vrot.slane %v3832, 1
  %v3834 = vadd.f32 %v3832, %v3833
  %v3847 = vrot.slane %v3640, 7
  %v3848 = vrot.slane %v3711, 6
  %v3849 = vrot.slane %v3724, 5
  %v3850 = vrot.slane %v3795, 4
  %v3851 = vrot.slane %v3808, 3
  %v3852 = vrot.slane %v3666, 7
  %v3853 = vrot.slane %v3737, 6
  %v3854 = vrot.slane %v3750, 5
  %v3855 = vrot.slane %v3821, 4
  %v3856 = vrot.slane %v3834, 3
  %vm3857 = vcmask 1040384
  %v3858 = vsel %vm3857, %v3627, %v3847
  %vm3859 = vcmask 1041408
  %v3860 = vsel %vm3859, %v3858, %v3848
  %vm3861 = vcmask 1043459
  %v3862 = vsel %vm3861, %v3849, %v3850
  %vm3863 = vcmask 1044483
  %v3864 = vsel %vm3863, %v3862, %v3851
  %vm3865 = vcmask 1042432
  %v3866 = vsel %vm3865, %v3860, %v3864
  %v3867 = vsel %vm3857, %v3653, %v3852
  %v3868 = vsel %vm3859, %v3867, %v3853
  %v3869 = vsel %vm3861, %v3854, %v3855
  %v3870 = vsel %vm3863, %v3869, %v3856
  %v3871 = vsel %vm3865, %v3868, %v3870
  %v3874 = vlaneseq
  %vm3875 = vcmp.ge.s32.totalorder %v3874, 0
  %vm3876 = vcmp.lt.s32.totalorder %v3874, 768
  %vm3877 = vmand %vm3875, %vm3876
  %3878 = vst.msk [vmem:[%s3] sm:$0x3f] %vm3877, %v3866
  %3879 = vst.msk [vmem:[%s3 + $0x6] sm:$0x3f] %vm3877, %v3871
  %v3884 = vrot.slane %v3548, 7
  %v3885 = vrot.slane %v3550, 7
  %v3886 = vsel %vm3857, %v3547, %v3884
  %v3887 = vsel %vm3857, %v3549, %v3885
  %vm3890 = vcmp.lt.s32.totalorder %v3874, 256
  %vm3891 = vmand %vm3875, %vm3890
  %3892 = vst.msk [vmem:[%s4] sm:$0x3] %vm3891, %v3886
  %3893 = vst.msk [vmem:[%s4 + $0x2] sm:$0x3] %vm3891, %v3887
  %vm3894 = vcmp.gt.f32.partialorder %v3271, 0.3
  %vm3895 = vcmp.gt.f32.partialorder %v3272, 0.3
  %vm3896 = vcmp.gt.f32.partialorder %v3273, 0.3
  %vm3897 = vcmp.gt.f32.partialorder %v3274, 0.3
  %vm3898 = vcmp.gt.f32.partialorder %v3275, 0.3
  %vm3899 = vcmp.gt.f32.partialorder %v3276, 0.3
  %vm3900 = vcmp.gt.f32.partialorder %v3277, 0.3
  %vm3901 = vcmp.gt.f32.partialorder %v3278, 0.3
  %vm3902 = vcmp.gt.f32.partialorder %v3279, 0.3
  %vm3903 = vcmp.gt.f32.partialorder %v3280, 0.3
  %vm3904 = vcmp.gt.f32.partialorder %v3281, 0.3
  %vm3905 = vcmp.gt.f32.partialorder %v3282, 0.3
  %vm3906 = vcmp.gt.f32.partialorder %v3283, 0.3
  %vm3907 = vcmp.gt.f32.partialorder %v3284, 0.3
  %vm3908 = vcmp.gt.f32.partialorder %v3285, 0.3
  %vm3909 = vcmp.gt.f32.partialorder %v3286, 0.3
  %vm3910 = vcmp.gt.f32.partialorder %v3287, 0.3
  %vm3911 = vcmp.gt.f32.partialorder %v3288, 0.3
  %vm3912 = vcmp.gt.f32.partialorder %v3289, 0.3
  %vm3913 = vcmp.gt.f32.partialorder %v3290, 0.3
  %vm3914 = vcmp.gt.f32.partialorder %v3291, 0.3
  %vm3915 = vcmp.gt.f32.partialorder %v3292, 0.3
  %vm3916 = vcmp.gt.f32.partialorder %v3293, 0.3
  %vm3917 = vcmp.gt.f32.partialorder %v3294, 0.3
  %vm3918 = vcmp.gt.f32.partialorder %v3295, 0.3
  %vm3919 = vcmp.gt.f32.partialorder %v3296, 0.3
  %vm3920 = vcmp.gt.f32.partialorder %v3297, 0.3
  %vm3921 = vcmp.gt.f32.partialorder %v3298, 0.3
  %vm3922 = vcmp.gt.f32.partialorder %v3299, 0.3
  %vm3923 = vcmp.gt.f32.partialorder %v3300, 0.3
  %vm3924 = vcmp.gt.f32.partialorder %v3301, 0.3
  %vm3925 = vcmp.gt.f32.partialorder %v3302, 0.3
  %v3926 = vsel %vm3894, 1, 0
  %v3927 = vsel %vm3895, 1, 0
  %v3928 = vsel %vm3896, 1, 0
  %v3929 = vsel %vm3897, 1, 0
  %v3930 = vsel %vm3898, 1, 0
  %v3931 = vsel %vm3899, 1, 0
  %v3932 = vsel %vm3900, 1, 0
  %v3933 = vsel %vm3901, 1, 0
  %v3934 = vsel %vm3902, 1, 0
  %v3935 = vsel %vm3903, 1, 0
  %v3936 = vsel %vm3904, 1, 0
  %v3937 = vsel %vm3905, 1, 0
  %v3938 = vsel %vm3906, 1, 0
  %v3939 = vsel %vm3907, 1, 0
  %v3940 = vsel %vm3908, 1, 0
  %v3941 = vsel %vm3909, 1, 0
  %v3942 = vsel %vm3910, 1, 0
  %v3943 = vsel %vm3911, 1, 0
  %v3944 = vsel %vm3912, 1, 0
  %v3945 = vsel %vm3913, 1, 0
  %v3946 = vsel %vm3914, 1, 0
  %v3947 = vsel %vm3915, 1, 0
  %v3948 = vsel %vm3916, 1, 0
  %v3949 = vsel %vm3917, 1, 0
  %v3950 = vsel %vm3918, 1, 0
  %v3951 = vsel %vm3919, 1, 0
  %v3952 = vsel %vm3920, 1, 0
  %v3953 = vsel %vm3921, 1, 0
  %v3954 = vsel %vm3922, 1, 0
  %v3955 = vsel %vm3923, 1, 0
  %v3956 = vsel %vm3924, 1, 0
  %v3957 = vsel %vm3925, 1, 0
  %v3958 = vcvt.s32.f32 %v3926
  %v3959 = vcvt.s32.f32 %v3927
  %v3960 = vcvt.s32.f32 %v3928
  %v3961 = vcvt.s32.f32 %v3929
  %v3962 = vcvt.s32.f32 %v3930
  %v3963 = vcvt.s32.f32 %v3931
  %v3964 = vcvt.s32.f32 %v3932
  %v3965 = vcvt.s32.f32 %v3933
  %v3966 = vcvt.s32.f32 %v3934
  %v3967 = vcvt.s32.f32 %v3935
  %v3968 = vcvt.s32.f32 %v3936
  %v3969 = vcvt.s32.f32 %v3937
  %v3970 = vcvt.s32.f32 %v3938
  %v3971 = vcvt.s32.f32 %v3939
  %v3972 = vcvt.s32.f32 %v3940
  %v3973 = vcvt.s32.f32 %v3941
  %v3974 = vcvt.s32.f32 %v3942
  %v3975 = vcvt.s32.f32 %v3943
  %v3976 = vcvt.s32.f32 %v3944
  %v3977 = vcvt.s32.f32 %v3945
  %v3978 = vcvt.s32.f32 %v3946
  %v3979 = vcvt.s32.f32 %v3947
  %v3980 = vcvt.s32.f32 %v3948
  %v3981 = vcvt.s32.f32 %v3949
  %v3982 = vcvt.s32.f32 %v3950
  %v3983 = vcvt.s32.f32 %v3951
  %v3984 = vcvt.s32.f32 %v3952
  %v3985 = vcvt.s32.f32 %v3953
  %v3986 = vcvt.s32.f32 %v3954
  %v3987 = vcvt.s32.f32 %v3955
  %v3988 = vcvt.s32.f32 %v3956
  %v3989 = vcvt.s32.f32 %v3957
  %v3990 = vmul.f32 %v3958, %v3459
  %v3991 = vmul.f32 %v3959, %v3460
  %v3992 = vmul.f32 %v3960, %v3461
  %v3993 = vmul.f32 %v3961, %v3462
  %v3994 = vmul.f32 %v3962, %v3463
  %v3995 = vmul.f32 %v3963, %v3464
  %v3996 = vmul.f32 %v3964, %v3465
  %v3997 = vmul.f32 %v3965, %v3466
  %v3998 = vmul.f32 %v3966, %v3467
  %v3999 = vmul.f32 %v3967, %v3468
  %v4000 = vmul.f32 %v3968, %v3469
  %v4001 = vmul.f32 %v3969, %v3470
  %v4002 = vmul.f32 %v3970, %v3471
  %v4003 = vmul.f32 %v3971, %v3472
  %v4004 = vmul.f32 %v3972, %v3473
  %v4005 = vmul.f32 %v3973, %v3474
  %v4006 = vmul.f32 %v3974, %v3475
  %v4007 = vmul.f32 %v3975, %v3476
  %v4008 = vmul.f32 %v3976, %v3477
  %v4009 = vmul.f32 %v3977, %v3478
  %v4010 = vmul.f32 %v3978, %v3479
  %v4011 = vmul.f32 %v3979, %v3480
  %v4012 = vmul.f32 %v3980, %v3481
  %v4013 = vmul.f32 %v3981, %v3482
  %v4014 = vmul.f32 %v3982, %v3483
  %v4015 = vmul.f32 %v3983, %v3484
  %v4016 = vmul.f32 %v3984, %v3485
  %v4017 = vmul.f32 %v3985, %v3486
  %v4018 = vmul.f32 %v3986, %v3487
  %v4019 = vmul.f32 %v3987, %v3488
  %v4020 = vmul.f32 %v3988, %v3489
  %v4021 = vmul.f32 %v3989, %v3490
  %v4022 = vmax.f32 %v3990, %v3992
  %v4023 = vmax.f32 %v4022, %v3994
  %v4024 = vmax.f32 %v4023, %v3996
  %v4025 = vmax.f32 %v4024, %v3998
  %v4026 = vmax.f32 %v4025, %v4000
  %v4027 = vmax.f32 %v4026, %v4002
  %v4028 = vmax.f32 %v4027, %v4004
  %v4029 = vrot.slane %v4028, 4
  %v4030 = vmax.f32 %v4028, %v4029
  %v4031 = vrot.slane %v4030, 2
  %v4032 = vmax.f32 %v4030, %v4031
  %v4033 = vrot.slane %v4032, 1
  %v4034 = vmax.f32 %v4032, %v4033
  %v4035 = vmax.f32 %v3991, %v3993
  %v4036 = vmax.f32 %v4035, %v3995
  %v4037 = vmax.f32 %v4036, %v3997
  %v4038 = vmax.f32 %v4037, %v3999
  %v4039 = vmax.f32 %v4038, %v4001
  %v4040 = vmax.f32 %v4039, %v4003
  %v4041 = vmax.f32 %v4040, %v4005
  %v4042 = vrot.slane %v4041, 4
  %v4043 = vmax.f32 %v4041, %v4042
  %v4044 = vrot.slane %v4043, 2
  %v4045 = vmax.f32 %v4043, %v4044
  %v4046 = vrot.slane %v4045, 1
  %v4047 = vmax.f32 %v4045, %v4046
  %v4048 = vmax.f32 %v4006, %v4008
  %v4049 = vmax.f32 %v4048, %v4010
  %v4050 = vmax.f32 %v4049, %v4012
  %v4051 = vmax.f32 %v4050, %v4014
  %v4052 = vmax.f32 %v4051, %v4016
  %v4053 = vmax.f32 %v4052, %v4018
  %v4054 = vmax.f32 %v4053, %v4020
  %v4055 = vrot.slane %v4054, 4
  %v4056 = vmax.f32 %v4054, %v4055
  %v4057 = vrot.slane %v4056, 2
  %v4058 = vmax.f32 %v4056, %v4057
  %v4059 = vrot.slane %v4058, 1
  %v4060 = vmax.f32 %v4058, %v4059
  %v4061 = vmax.f32 %v4007, %v4009
  %v4062 = vmax.f32 %v4061, %v4011
  %v4063 = vmax.f32 %v4062, %v4013
  %v4064 = vmax.f32 %v4063, %v4015
  %v4065 = vmax.f32 %v4064, %v4017
  %v4066 = vmax.f32 %v4065, %v4019
  %v4067 = vmax.f32 %v4066, %v4021
  %v4068 = vrot.slane %v4067, 4
  %v4069 = vmax.f32 %v4067, %v4068
  %v4070 = vrot.slane %v4069, 2
  %v4071 = vmax.f32 %v4069, %v4070
  %v4072 = vrot.slane %v4071, 1
  %v4073 = vmax.f32 %v4071, %v4072
  %vm4074 = vcmp.eq.f32.partialorder %v3990, %v4034
  %vm4075 = vcmp.eq.f32.partialorder %v3991, %v4047
  %vm4076 = vcmp.eq.f32.partialorder %v3992, %v4034
  %vm4077 = vcmp.eq.f32.partialorder %v3993, %v4047
  %vm4078 = vcmp.eq.f32.partialorder %v3994, %v4034
  %vm4079 = vcmp.eq.f32.partialorder %v3995, %v4047
  %vm4080 = vcmp.eq.f32.partialorder %v3996, %v4034
  %vm4081 = vcmp.eq.f32.partialorder %v3997, %v4047
  %vm4082 = vcmp.eq.f32.partialorder %v3998, %v4034
  %vm4083 = vcmp.eq.f32.partialorder %v3999, %v4047
  %vm4084 = vcmp.eq.f32.partialorder %v4000, %v4034
  %vm4085 = vcmp.eq.f32.partialorder %v4001, %v4047
  %vm4086 = vcmp.eq.f32.partialorder %v4002, %v4034
  %vm4087 = vcmp.eq.f32.partialorder %v4003, %v4047
  %vm4088 = vcmp.eq.f32.partialorder %v4004, %v4034
  %vm4089 = vcmp.eq.f32.partialorder %v4005, %v4047
  %vm4090 = vcmp.eq.f32.partialorder %v4006, %v4060
  %vm4091 = vcmp.eq.f32.partialorder %v4007, %v4073
  %vm4092 = vcmp.eq.f32.partialorder %v4008, %v4060
  %vm4093 = vcmp.eq.f32.partialorder %v4009, %v4073
  %vm4094 = vcmp.eq.f32.partialorder %v4010, %v4060
  %vm4095 = vcmp.eq.f32.partialorder %v4011, %v4073
  %vm4096 = vcmp.eq.f32.partialorder %v4012, %v4060
  %vm4097 = vcmp.eq.f32.partialorder %v4013, %v4073
  %vm4098 = vcmp.eq.f32.partialorder %v4014, %v4060
  %vm4099 = vcmp.eq.f32.partialorder %v4015, %v4073
  %vm4100 = vcmp.eq.f32.partialorder %v4016, %v4060
  %vm4101 = vcmp.eq.f32.partialorder %v4017, %v4073
  %vm4102 = vcmp.eq.f32.partialorder %v4018, %v4060
  %vm4103 = vcmp.eq.f32.partialorder %v4019, %v4073
  %vm4104 = vcmp.eq.f32.partialorder %v4020, %v4060
  %vm4105 = vcmp.eq.f32.partialorder %v4021, %v4073
  %v4106 = vsel %vm4074, %v2959, 64
  %v4107 = vsel %vm4075, %v2959, 64
  %v4108 = vsel %vm4076, %v2960, 64
  %v4109 = vsel %vm4077, %v2960, 64
  %v4110 = vsel %vm4078, %v2961, 64
  %v4111 = vsel %vm4079, %v2961, 64
  %v4112 = vsel %vm4080, %v2962, 64
  %v4113 = vsel %vm4081, %v2962, 64
  %v4114 = vsel %vm4082, %v2963, 64
  %v4115 = vsel %vm4083, %v2963, 64
  %v4116 = vsel %vm4084, %v2964, 64
  %v4117 = vsel %vm4085, %v2964, 64
  %v4118 = vsel %vm4086, %v2965, 64
  %v4119 = vsel %vm4087, %v2965, 64
  %v4120 = vsel %vm4088, %v2966, 64
  %v4121 = vsel %vm4089, %v2966, 64
  %v4122 = vsel %vm4090, %v2959, 64
  %v4123 = vsel %vm4091, %v2959, 64
  %v4124 = vsel %vm4092, %v2960, 64
  %v4125 = vsel %vm4093, %v2960, 64
  %v4126 = vsel %vm4094, %v2961, 64
  %v4127 = vsel %vm4095, %v2961, 64
  %v4128 = vsel %vm4096, %v2962, 64
  %v4129 = vsel %vm4097, %v2962, 64
  %v4130 = vsel %vm4098, %v2963, 64
  %v4131 = vsel %vm4099, %v2963, 64
  %v4132 = vsel %vm4100, %v2964, 64
  %v4133 = vsel %vm4101, %v2964, 64
  %v4134 = vsel %vm4102, %v2965, 64
  %v4135 = vsel %vm4103, %v2965, 64
  %v4136 = vsel %vm4104, %v2966, 64
  %v4137 = vsel %vm4105, %v2966, 64
  %vm4138 = vcmp.lt.s32.totalorder %v4106, %v4108
  %v4139 = vsel %vm4138, %v4106, %v4108
  %vm4140 = vcmp.lt.s32.totalorder %v4139, %v4110
  %v4141 = vsel %vm4140, %v4139, %v4110
  %vm4142 = vcmp.lt.s32.totalorder %v4141, %v4112
  %v4143 = vsel %vm4142, %v4141, %v4112
  %vm4144 = vcmp.lt.s32.totalorder %v4143, %v4114
  %v4145 = vsel %vm4144, %v4143, %v4114
  %vm4146 = vcmp.lt.s32.totalorder %v4145, %v4116
  %v4147 = vsel %vm4146, %v4145, %v4116
  %vm4148 = vcmp.lt.s32.totalorder %v4147, %v4118
  %v4149 = vsel %vm4148, %v4147, %v4118
  %vm4150 = vcmp.lt.s32.totalorder %v4149, %v4120
  %v4151 = vsel %vm4150, %v4149, %v4120
  %v4152 = vrot.slane %v4151, 4
  %vm4153 = vcmp.lt.s32.totalorder %v4151, %v4152
  %v4154 = vsel %vm4153, %v4151, %v4152
  %v4155 = vrot.slane %v4154, 2
  %vm4156 = vcmp.lt.s32.totalorder %v4154, %v4155
  %v4157 = vsel %vm4156, %v4154, %v4155
  %v4158 = vrot.slane %v4157, 1
  %vm4159 = vcmp.lt.s32.totalorder %v4157, %v4158
  %v4160 = vsel %vm4159, %v4157, %v4158
  %vm4161 = vcmp.lt.s32.totalorder %v4107, %v4109
  %v4162 = vsel %vm4161, %v4107, %v4109
  %vm4163 = vcmp.lt.s32.totalorder %v4162, %v4111
  %v4164 = vsel %vm4163, %v4162, %v4111
  %vm4165 = vcmp.lt.s32.totalorder %v4164, %v4113
  %v4166 = vsel %vm4165, %v4164, %v4113
  %vm4167 = vcmp.lt.s32.totalorder %v4166, %v4115
  %v4168 = vsel %vm4167, %v4166, %v4115
  %vm4169 = vcmp.lt.s32.totalorder %v4168, %v4117
  %v4170 = vsel %vm4169, %v4168, %v4117
  %vm4171 = vcmp.lt.s32.totalorder %v4170, %v4119
  %v4172 = vsel %vm4171, %v4170, %v4119
  %vm4173 = vcmp.lt.s32.totalorder %v4172, %v4121
  %v4174 = vsel %vm4173, %v4172, %v4121
  %v4175 = vrot.slane %v4174, 4
  %vm4176 = vcmp.lt.s32.totalorder %v4174, %v4175
  %v4177 = vsel %vm4176, %v4174, %v4175
  %v4178 = vrot.slane %v4177, 2
  %vm4179 = vcmp.lt.s32.totalorder %v4177, %v4178
  %v4180 = vsel %vm4179, %v4177, %v4178
  %v4181 = vrot.slane %v4180, 1
  %vm4182 = vcmp.lt.s32.totalorder %v4180, %v4181
  %v4183 = vsel %vm4182, %v4180, %v4181
  %vm4184 = vcmp.lt.s32.totalorder %v4122, %v4124
  %v4185 = vsel %vm4184, %v4122, %v4124
  %vm4186 = vcmp.lt.s32.totalorder %v4185, %v4126
  %v4187 = vsel %vm4186, %v4185, %v4126
  %vm4188 = vcmp.lt.s32.totalorder %v4187, %v4128
  %v4189 = vsel %vm4188, %v4187, %v4128
  %vm4190 = vcmp.lt.s32.totalorder %v4189, %v4130
  %v4191 = vsel %vm4190, %v4189, %v4130
  %vm4192 = vcmp.lt.s32.totalorder %v4191, %v4132
  %v4193 = vsel %vm4192, %v4191, %v4132
  %vm4194 = vcmp.lt.s32.totalorder %v4193, %v4134
  %v4195 = vsel %vm4194, %v4193, %v4134
  %vm4196 = vcmp.lt.s32.totalorder %v4195, %v4136
  %v4197 = vsel %vm4196, %v4195, %v4136
  %v4198 = vrot.slane %v4197, 4
  %vm4199 = vcmp.lt.s32.totalorder %v4197, %v4198
  %v4200 = vsel %vm4199, %v4197, %v4198
  %v4201 = vrot.slane %v4200, 2
  %vm4202 = vcmp.lt.s32.totalorder %v4200, %v4201
  %v4203 = vsel %vm4202, %v4200, %v4201
  %v4204 = vrot.slane %v4203, 1
  %vm4205 = vcmp.lt.s32.totalorder %v4203, %v4204
  %v4206 = vsel %vm4205, %v4203, %v4204
  %vm4207 = vcmp.lt.s32.totalorder %v4123, %v4125
  %v4208 = vsel %vm4207, %v4123, %v4125
  %vm4209 = vcmp.lt.s32.totalorder %v4208, %v4127
  %v4210 = vsel %vm4209, %v4208, %v4127
  %vm4211 = vcmp.lt.s32.totalorder %v4210, %v4129
  %v4212 = vsel %vm4211, %v4210, %v4129
  %vm4213 = vcmp.lt.s32.totalorder %v4212, %v4131
  %v4214 = vsel %vm4213, %v4212, %v4131
  %vm4215 = vcmp.lt.s32.totalorder %v4214, %v4133
  %v4216 = vsel %vm4215, %v4214, %v4133
  %vm4217 = vcmp.lt.s32.totalorder %v4216, %v4135
  %v4218 = vsel %vm4217, %v4216, %v4135
  %vm4219 = vcmp.lt.s32.totalorder %v4218, %v4137
  %v4220 = vsel %vm4219, %v4218, %v4137
  %v4221 = vrot.slane %v4220, 4
  %vm4222 = vcmp.lt.s32.totalorder %v4220, %v4221
  %v4223 = vsel %vm4222, %v4220, %v4221
  %v4224 = vrot.slane %v4223, 2
  %vm4225 = vcmp.lt.s32.totalorder %v4223, %v4224
  %v4226 = vsel %vm4225, %v4223, %v4224
  %v4227 = vrot.slane %v4226, 1
  %vm4228 = vcmp.lt.s32.totalorder %v4226, %v4227
  %v4229 = vsel %vm4228, %v4226, %v4227
  %vm4230 = vcmp.eq.s32.totalorder %v2959, %v4160
  %vm4231 = vcmp.eq.s32.totalorder %v2959, %v4183
  %vm4232 = vcmp.eq.s32.totalorder %v2960, %v4160
  %vm4233 = vcmp.eq.s32.totalorder %v2960, %v4183
  %vm4234 = vcmp.eq.s32.totalorder %v2961, %v4160
  %vm4235 = vcmp.eq.s32.totalorder %v2961, %v4183
  %vm4236 = vcmp.eq.s32.totalorder %v2962, %v4160
  %vm4237 = vcmp.eq.s32.totalorder %v2962, %v4183
  %vm4238 = vcmp.eq.s32.totalorder %v2963, %v4160
  %vm4239 = vcmp.eq.s32.totalorder %v2963, %v4183
  %vm4240 = vcmp.eq.s32.totalorder %v2964, %v4160
  %vm4241 = vcmp.eq.s32.totalorder %v2964, %v4183
  %vm4242 = vcmp.eq.s32.totalorder %v2965, %v4160
  %vm4243 = vcmp.eq.s32.totalorder %v2965, %v4183
  %vm4244 = vcmp.eq.s32.totalorder %v2966, %v4160
  %vm4245 = vcmp.eq.s32.totalorder %v2966, %v4183
  %vm4246 = vcmp.eq.s32.totalorder %v2959, %v4206
  %vm4247 = vcmp.eq.s32.totalorder %v2959, %v4229
  %vm4248 = vcmp.eq.s32.totalorder %v2960, %v4206
  %vm4249 = vcmp.eq.s32.totalorder %v2960, %v4229
  %vm4250 = vcmp.eq.s32.totalorder %v2961, %v4206
  %vm4251 = vcmp.eq.s32.totalorder %v2961, %v4229
  %vm4252 = vcmp.eq.s32.totalorder %v2962, %v4206
  %vm4253 = vcmp.eq.s32.totalorder %v2962, %v4229
  %vm4254 = vcmp.eq.s32.totalorder %v2963, %v4206
  %vm4255 = vcmp.eq.s32.totalorder %v2963, %v4229
  %vm4256 = vcmp.eq.s32.totalorder %v2964, %v4206
  %vm4257 = vcmp.eq.s32.totalorder %v2964, %v4229
  %vm4258 = vcmp.eq.s32.totalorder %v2965, %v4206
  %vm4259 = vcmp.eq.s32.totalorder %v2965, %v4229
  %vm4260 = vcmp.eq.s32.totalorder %v2966, %v4206
  %vm4261 = vcmp.eq.s32.totalorder %v2966, %v4229
  %v4262 = vsel %vm4230, 1, 0
  %v4263 = vsel %vm4231, 1, 0
  %v4264 = vsel %vm4232, 1, 0
  %v4265 = vsel %vm4233, 1, 0
  %v4266 = vsel %vm4234, 1, 0
  %v4267 = vsel %vm4235, 1, 0
  %v4268 = vsel %vm4236, 1, 0
  %v4269 = vsel %vm4237, 1, 0
  %v4270 = vsel %vm4238, 1, 0
  %v4271 = vsel %vm4239, 1, 0
  %v4272 = vsel %vm4240, 1, 0
  %v4273 = vsel %vm4241, 1, 0
  %v4274 = vsel %vm4242, 1, 0
  %v4275 = vsel %vm4243, 1, 0
  %v4276 = vsel %vm4244, 1, 0
  %v4277 = vsel %vm4245, 1, 0
  %v4278 = vsel %vm4246, 1, 0
  %v4279 = vsel %vm4247, 1, 0
  %v4280 = vsel %vm4248, 1, 0
  %v4281 = vsel %vm4249, 1, 0
  %v4282 = vsel %vm4250, 1, 0
  %v4283 = vsel %vm4251, 1, 0
  %v4284 = vsel %vm4252, 1, 0
  %v4285 = vsel %vm4253, 1, 0
  %v4286 = vsel %vm4254, 1, 0
  %v4287 = vsel %vm4255, 1, 0
  %v4288 = vsel %vm4256, 1, 0
  %v4289 = vsel %vm4257, 1, 0
  %v4290 = vsel %vm4258, 1, 0
  %v4291 = vsel %vm4259, 1, 0
  %v4292 = vsel %vm4260, 1, 0
  %v4293 = vsel %vm4261, 1, 0
  %v4294 = vcvt.s32.f32 %v4262
  %v4295 = vcvt.s32.f32 %v4263
  %v4296 = vcvt.s32.f32 %v4264
  %v4297 = vcvt.s32.f32 %v4265
  %v4298 = vcvt.s32.f32 %v4266
  %v4299 = vcvt.s32.f32 %v4267
  %v4300 = vcvt.s32.f32 %v4268
  %v4301 = vcvt.s32.f32 %v4269
  %v4302 = vcvt.s32.f32 %v4270
  %v4303 = vcvt.s32.f32 %v4271
  %v4304 = vcvt.s32.f32 %v4272
  %v4305 = vcvt.s32.f32 %v4273
  %v4306 = vcvt.s32.f32 %v4274
  %v4307 = vcvt.s32.f32 %v4275
  %v4308 = vcvt.s32.f32 %v4276
  %v4309 = vcvt.s32.f32 %v4277
  %v4310 = vcvt.s32.f32 %v4278
  %v4311 = vcvt.s32.f32 %v4279
  %v4312 = vcvt.s32.f32 %v4280
  %v4313 = vcvt.s32.f32 %v4281
  %v4314 = vcvt.s32.f32 %v4282
  %v4315 = vcvt.s32.f32 %v4283
  %v4316 = vcvt.s32.f32 %v4284
  %v4317 = vcvt.s32.f32 %v4285
  %v4318 = vcvt.s32.f32 %v4286
  %v4319 = vcvt.s32.f32 %v4287
  %v4320 = vcvt.s32.f32 %v4288
  %v4321 = vcvt.s32.f32 %v4289
  %v4322 = vcvt.s32.f32 %v4290
  %v4323 = vcvt.s32.f32 %v4291
  %v4324 = vcvt.s32.f32 %v4292
  %v4325 = vcvt.s32.f32 %v4293
  %4326 = vset.pattern.permute.xlu0 10
  %4327 = vperm.xlu0 %4326, %v18
  %v4328 = vpop.permute.xlu0 %4327
  %4330 = vset.pattern.permute.xlu0 10
  %4331 = vperm.xlu0 %4330, %v19
  %v4332 = vpop.permute.xlu0 %4331
  %4334 = vset.pattern.permute.xlu0 10
  %4335 = vperm.xlu0 %4334, %v20
  %v4336 = vpop.permute.xlu0 %4335
  %4338 = vset.pattern.permute.xlu0 10
  %4339 = vperm.xlu0 %4338, %v21
  %v4340 = vpop.permute.xlu0 %4339
  %4342 = vset.pattern.permute.xlu0 10
  %4343 = vperm.xlu0 %4342, %v22
  %v4344 = vpop.permute.xlu0 %4343
  %4346 = vset.pattern.permute.xlu0 10
  %4347 = vperm.xlu0 %4346, %v23
  %v4348 = vpop.permute.xlu0 %4347
  %4350 = vset.pattern.permute.xlu0 10
  %4351 = vperm.xlu0 %4350, %v24
  %v4352 = vpop.permute.xlu0 %4351
  %4354 = vset.pattern.permute.xlu0 10
  %4355 = vperm.xlu0 %4354, %v25
  %v4356 = vpop.permute.xlu0 %4355
  %4358 = vset.pattern.permute.xlu0 10
  %4359 = vperm.xlu0 %4358, %v26
  %v4360 = vpop.permute.xlu0 %4359
  %4362 = vset.pattern.permute.xlu0 10
  %4363 = vperm.xlu0 %4362, %v27
  %v4364 = vpop.permute.xlu0 %4363
  %4366 = vset.pattern.permute.xlu0 10
  %4367 = vperm.xlu0 %4366, %v28
  %v4368 = vpop.permute.xlu0 %4367
  %4370 = vset.pattern.permute.xlu0 10
  %4371 = vperm.xlu0 %4370, %v29
  %v4372 = vpop.permute.xlu0 %4371
  %4374 = vset.pattern.permute.xlu0 10
  %4375 = vperm.xlu0 %4374, %v30
  %v4376 = vpop.permute.xlu0 %4375
  %4378 = vset.pattern.permute.xlu0 10
  %4379 = vperm.xlu0 %4378, %v31
  %v4380 = vpop.permute.xlu0 %4379
  %4382 = vset.pattern.permute.xlu0 10
  %4383 = vperm.xlu0 %4382, %v32
  %v4384 = vpop.permute.xlu0 %4383
  %4386 = vset.pattern.permute.xlu0 10
  %4387 = vperm.xlu0 %4386, %v33
  %v4388 = vpop.permute.xlu0 %4387
  %v4390 = vmul.f32 %v4294, %v4328
  %v4391 = vmul.f32 %v4295, %v4328
  %v4392 = vmul.f32 %v4296, %v4332
  %v4393 = vmul.f32 %v4297, %v4332
  %v4394 = vmul.f32 %v4298, %v4336
  %v4395 = vmul.f32 %v4299, %v4336
  %v4396 = vmul.f32 %v4300, %v4340
  %v4397 = vmul.f32 %v4301, %v4340
  %v4398 = vmul.f32 %v4302, %v4344
  %v4399 = vmul.f32 %v4303, %v4344
  %v4400 = vmul.f32 %v4304, %v4348
  %v4401 = vmul.f32 %v4305, %v4348
  %v4402 = vmul.f32 %v4306, %v4352
  %v4403 = vmul.f32 %v4307, %v4352
  %v4404 = vmul.f32 %v4308, %v4356
  %v4405 = vmul.f32 %v4309, %v4356
  %v4406 = vmul.f32 %v4310, %v4360
  %v4407 = vmul.f32 %v4311, %v4360
  %v4408 = vmul.f32 %v4312, %v4364
  %v4409 = vmul.f32 %v4313, %v4364
  %v4410 = vmul.f32 %v4314, %v4368
  %v4411 = vmul.f32 %v4315, %v4368
  %v4412 = vmul.f32 %v4316, %v4372
  %v4413 = vmul.f32 %v4317, %v4372
  %v4414 = vmul.f32 %v4318, %v4376
  %v4415 = vmul.f32 %v4319, %v4376
  %v4416 = vmul.f32 %v4320, %v4380
  %v4417 = vmul.f32 %v4321, %v4380
  %v4418 = vmul.f32 %v4322, %v4384
  %v4419 = vmul.f32 %v4323, %v4384
  %v4420 = vmul.f32 %v4324, %v4388
  %v4421 = vmul.f32 %v4325, %v4388
  %v4422 = vadd.f32 %v4390, %v4392
  %v4423 = vadd.f32 %v4422, %v4394
  %v4424 = vadd.f32 %v4423, %v4396
  %v4425 = vadd.f32 %v4424, %v4398
  %v4426 = vadd.f32 %v4425, %v4400
  %v4427 = vadd.f32 %v4426, %v4402
  %v4428 = vadd.f32 %v4427, %v4404
  %v4429 = vrot.slane %v4428, 4
  %v4430 = vadd.f32 %v4428, %v4429
  %v4431 = vrot.slane %v4430, 2
  %v4432 = vadd.f32 %v4430, %v4431
  %v4433 = vrot.slane %v4432, 1
  %v4434 = vadd.f32 %v4432, %v4433
  %v4435 = vadd.f32 %v4391, %v4393
  %v4436 = vadd.f32 %v4435, %v4395
  %v4437 = vadd.f32 %v4436, %v4397
  %v4438 = vadd.f32 %v4437, %v4399
  %v4439 = vadd.f32 %v4438, %v4401
  %v4440 = vadd.f32 %v4439, %v4403
  %v4441 = vadd.f32 %v4440, %v4405
  %v4442 = vrot.slane %v4441, 4
  %v4443 = vadd.f32 %v4441, %v4442
  %v4444 = vrot.slane %v4443, 2
  %v4445 = vadd.f32 %v4443, %v4444
  %v4446 = vrot.slane %v4445, 1
  %v4447 = vadd.f32 %v4445, %v4446
  %v4448 = vadd.f32 %v4406, %v4408
  %v4449 = vadd.f32 %v4448, %v4410
  %v4450 = vadd.f32 %v4449, %v4412
  %v4451 = vadd.f32 %v4450, %v4414
  %v4452 = vadd.f32 %v4451, %v4416
  %v4453 = vadd.f32 %v4452, %v4418
  %v4454 = vadd.f32 %v4453, %v4420
  %v4455 = vrot.slane %v4454, 4
  %v4456 = vadd.f32 %v4454, %v4455
  %v4457 = vrot.slane %v4456, 2
  %v4458 = vadd.f32 %v4456, %v4457
  %v4459 = vrot.slane %v4458, 1
  %v4460 = vadd.f32 %v4458, %v4459
  %v4461 = vadd.f32 %v4407, %v4409
  %v4462 = vadd.f32 %v4461, %v4411
  %v4463 = vadd.f32 %v4462, %v4413
  %v4464 = vadd.f32 %v4463, %v4415
  %v4465 = vadd.f32 %v4464, %v4417
  %v4466 = vadd.f32 %v4465, %v4419
  %v4467 = vadd.f32 %v4466, %v4421
  %v4468 = vrot.slane %v4467, 4
  %v4469 = vadd.f32 %v4467, %v4468
  %v4470 = vrot.slane %v4469, 2
  %v4471 = vadd.f32 %v4469, %v4470
  %v4472 = vrot.slane %v4471, 1
  %v4473 = vadd.f32 %v4471, %v4472
  %vm4474 = vcmp.gt.f32.partialorder %v3547, 0.3
  %vm4475 = vcmp.gt.f32.partialorder %v3548, 0.3
  %vm4476 = vcmp.gt.f32.partialorder %v3549, 0.3
  %vm4477 = vcmp.gt.f32.partialorder %v3550, 0.3
  %v4478 = vsel %vm4474, 1, 0
  %v4479 = vsel %vm4475, 1, 0
  %v4480 = vsel %vm4476, 1, 0
  %v4481 = vsel %vm4477, 1, 0
  %v4482 = vcvt.s32.f32 %v4478
  %v4483 = vcvt.s32.f32 %v4479
  %v4484 = vcvt.s32.f32 %v4480
  %v4485 = vcvt.s32.f32 %v4481
  %v4486 = vmul.f32 %v4482, %v4434
  %v4487 = vmul.f32 %v4483, %v4447
  %v4488 = vmul.f32 %v4484, %v4460
  %v4489 = vmul.f32 %v4485, %v4473
  %v4494 = vrot.slane %v4487, 7
  %v4495 = vrot.slane %v4489, 7
  %v4496 = vsel %vm3857, %v4486, %v4494
  %v4497 = vsel %vm3857, %v4488, %v4495
  %4500 = vst.msk [vmem:[%s5] sm:$0x3] %vm3891, %v4496
  %4501 = vst.msk [vmem:[%s5 + $0x2] sm:$0x3] %vm3891, %v4497
  // Predicated region
  $region14: #{closed_call.46} parent=0 // pred_check
    _
  $region15: #{closed_call.46} parent=0 // pred_check_branch
    %4503 = sbr.rel (0) target = $region17
  $region16: #{closed_call.46} parent=0 // pred_region
    _
  $region17: #{closed_call.46} parent=0 // pred_fallthru
    _
  // Predicated region
  $region18: #{closed_call.46} parent=0 // pred_check
    _
  $region19: #{closed_call.46} parent=0 // pred_check_branch
    %4505 = sbr.rel (0) target = $region21
  $region20: #{closed_call.46} parent=0 // pred_region
    _
  $region21: #{closed_call.46} parent=0 // pred_fallthru
    _
  // Predicated region
  $region22: #{closed_call.46} parent=0 // pred_check
    _
  $region23: #{closed_call.46} parent=0 // pred_check_branch
    %4507 = sbr.rel (0) target = $region25
  $region24: #{closed_call.46} parent=0 // pred_region
    _
  $region25: #{closed_call.46} parent=0 // pred_fallthru
    _
  // Predicated region
  $region26: #{closed_call.46} parent=0 // pred_check
    _
  $region27: #{closed_call.46} parent=0 // pred_check_branch
    %4509 = sbr.rel (0) target = $region29
  $region28: #{closed_call.46} parent=0 // pred_region
    _
  $region29: #{closed_call.46} parent=0 // pred_fallthru
    _
  // Predicated region
  $region30: #{closed_call.46} parent=0 // pred_check
    _
  $region31: #{closed_call.46} parent=0 // pred_check_branch
    %4511 = sbr.rel (0) target = $region33
  $region32: #{closed_call.46} parent=0 // pred_region
    _
  $region33: #{closed_call.46} parent=0 // pred_fallthru
    _
  // Predicated region
  $region34: #{closed_call.46} parent=0 // pred_check
    _
  $region35: #{closed_call.46} parent=0 // pred_check_branch
    %4513 = sbr.rel (0) target = $region37
  $region36: #{closed_call.46} parent=0 // pred_region
    _
  $region37: #{closed_call.46} parent=0 // pred_fallthru
    _

</llo_original>
